<compile_context>
chip_gen: v7x
topology: tpu7x:2x2x1
jax: 0.10.0
libtpu: 0.0.40
codegen_flags: <defaults>
</compile_context>

<pallas_src>
import math

import jax
import jax.numpy as jnp
from jax import lax
from jax.experimental import pallas as pl
from jax.experimental.pallas import tpu as pltpu

HEAD = 8
MASK_FILL = -65504.0          # value used by the PyTorch module's masked_fill
IDX_V, IDX_K, IDX_Q, IDX_M = 0, 1, 2, 3   # stacked weight order [v, k, q, merge]


# ----------------------------- kernel ---------------------------------------
def _make_decoder_kernel(tkv_self, tkv_cross):
    f32 = jnp.float32
    bf16 = jnp.bfloat16

    def layer_norm(z, g, b, eps=1e-5):
        mu = jnp.mean(z, axis=-1, keepdims=True)
        var = jnp.mean((z - mu) ** 2, axis=-1, keepdims=True)
        return (z - mu) * lax.rsqrt(var + eps) * g + b

    def decoder_kernel(xq_ref, xkv_ref, ykv_ref, xb_ref, yb_ref,
                       a1w_ref, a1b_ref, a2w_ref, a2b_ref,
                       w1_ref, b1_ref, w2_ref, b2_ref,
                       lng_ref, lnb_ref,
                       o_ref,
                       k1_scr, v1_scr, k2_scr, v2_scr):
        TQ, H = xq_ref.shape[1], xq_ref.shape[2]
        hs = H // HEAD

        # ---- hoist: full-sequence K/V projections, once per batch row ------
        @pl.when(pl.program_id(1) == 0)
        def _():
            xf = xkv_ref[0]                       # (N, H) bf16
            yf = ykv_ref[0]                       # (M, H) bf16
            k1_scr[...] = (jnp.dot(xf, a1w_ref[IDX_K], preferred_element_type=f32)
                           + a1b_ref[IDX_K]).astype(bf16)
            v1_scr[...] = (jnp.dot(xf, a1w_ref[IDX_V], preferred_element_type=f32)
                           + a1b_ref[IDX_V]).astype(bf16)
            k2_scr[...] = (jnp.dot(yf, a2w_ref[IDX_K], preferred_element_type=f32)
                           + a2b_ref[IDX_K]).astype(bf16)
            v2_scr[...] = (jnp.dot(yf, a2w_ref[IDX_V], preferred_element_type=f32)
                           + a2b_ref[IDX_V]).astype(bf16)

        def attention(q_in, w_ref, b_ref, k_scr, v_scr, bias_ref, tkv):
            # q_in: (TQ, H) f32; k_scr/v_scr: (S, H) bf16 scratch; bias bf16.
            S = k_scr.shape[0]
            n_chunks = S // tkv
            # Head-fused Q projection (1/sqrt(hs) folded into the weights).
            q_full = jnp.dot(q_in.astype(bf16), w_ref[IDX_Q],
                             preferred_element_type=f32) + b_ref[IDX_Q]
            bias = bias_ref[0]                    # (TQ, S) bf16, added directly
            heads = []
            for h in range(HEAD):                 # static unroll over heads
                q_h = q_full[:, h * hs:(h + 1) * hs].astype(bf16)
                m_i = jnp.full((TQ, 1), -1e30, dtype=f32)
                l_i = jnp.zeros((TQ, 1), dtype=f32)
                acc = jnp.zeros((TQ, hs), dtype=f32)
                for j in range(n_chunks):         # online softmax over KV chunks
                    lo, hi = j * tkv, (j + 1) * tkv
                    k_c = k_scr[lo:hi, h * hs:(h + 1) * hs]       # (tkv, hs) bf16
                    v_c = v_scr[lo:hi, h * hs:(h + 1) * hs]       # (tkv, hs) bf16
                    # q @ k^T without materializing a transpose.
                    s = lax.dot_general(q_h, k_c,
                                        dimension_numbers=(((1,), (1,)), ((), ())),
                                        preferred_element_type=f32)
                    s = s + bias[:, lo:hi]        # bf16 bias, promoted in the add
                    m_new = jnp.maximum(m_i, jnp.max(s, axis=-1, keepdims=True))
                    alpha = jnp.exp(m_i - m_new)
                    p = jnp.exp(s - m_new)
                    l_i = alpha * l_i + jnp.sum(p, axis=-1, keepdims=True)
                    acc = alpha * acc + jnp.dot(p.astype(bf16), v_c,
                                                preferred_element_type=f32)
                    m_i = m_new
                heads.append(acc * pl.reciprocal(l_i, approx=True))
            # Lane-dense attended slab -> single head-fused merge matmul.
            attended = jnp.concatenate(heads, axis=-1).astype(bf16)   # (TQ, H)
            return jnp.dot(attended, w_ref[IDX_M],
                           preferred_element_type=f32) + b_ref[IDX_M]

        xq = xq_ref[0]                            # (TQ, H) f32 query block

        # --- sub-layer 1: self-attention + residual + LN ---
        att1 = attention(xq, a1w_ref, a1b_ref, k1_scr, v1_scr, xb_ref, tkv_self)
        x1 = layer_norm(xq + att1, lng_ref[0], lnb_ref[0])

        # --- sub-layer 2: cross-attention + residual + LN ---
        att2 = attention(x1, a2w_ref, a2b_ref, k2_scr, v2_scr, yb_ref, tkv_cross)
        x2 = layer_norm(x1 + att2, lng_ref[1], lnb_ref[1])

        # --- sub-layer 3: position-wise FFN + residual + LN ---
        h1 = jnp.maximum(jnp.dot(x2.astype(bf16), w1_ref[...],
                                 preferred_element_type=f32) + b1_ref[...], 0.0)
        ffn = jnp.dot(h1.astype(bf16), w2_ref[...],
                      preferred_element_type=f32) + b2_ref[...]
        x3 = layer_norm(x2 + ffn, lng_ref[2], lnb_ref[2])

        o_ref[0] = x3.astype(o_ref.dtype)

    return decoder_kernel


# ----------------------------- wrapper ---------------------------------------
def _prep_attention_params(w4, b4, head):
    # w4: (4, H, H) stored (in, out) in order [v, k, q, merge].  b4: (4, H).
    H = w4.shape[-1]
    hs = H // head
    scale = 1.0 / math.sqrt(hs)
    scale_vec = jnp.array([1.0, 1.0, scale, 1.0], jnp.float32)  # fold into Q
    w = (w4 * scale_vec[:, None, None]).astype(jnp.bfloat16)    # (4, H, H) bf16
    b = (b4 * scale_vec[:, None]).reshape(4, 1, H).astype(jnp.float32)
    return w, b


def _vmem_budget_bytes():
    cap = 128 * 1024 * 1024
    try:
        info = pltpu.get_tpu_info()
        cap = int(getattr(info, "vmem_capacity_bytes", cap))
    except Exception:
        pass
    # Leave headroom for compiler scratch/spills: ~48 MiB on v7x (64 MiB/TC),
    # ~96 MiB on v5e/v6e (128 MiB).
    return min((cap * 3) // 4, 100 * 1024 * 1024)


def _pick_query_tile(N, vmem_budget):
    candidates = (512, 256, 128) if vmem_budget >= 90 * 1024 * 1024 else (256, 128)
    for t in candidates:
        if N % t == 0 and N > t:
            return t
    return N


def _pick_kv_chunk(S):
    for c in (512, 256):
        if S % c == 0 and S > c:
            return c
    return S


def decoder_forward(x, y, x_mask, y_mask, params):
    B, N, H = x.shape
    M = y.shape[1]
    (a1w, a1b, a2w, a2b, w1, b1, w2, b2, lng, lnb) = params

    a1_w, a1_b = _prep_attention_params(a1w, a1b, HEAD)
    a2_w, a2_b = _prep_attention_params(a2w, a2b, HEAD)
    w1_bf = w1.astype(jnp.bfloat16)
    w2_bf = w2.astype(jnp.bfloat16)
    b1_f = b1.reshape(1, -1).astype(jnp.float32)
    b2_f = b2.reshape(1, -1).astype(jnp.float32)
    lng_f = lng.reshape(3, 1, H).astype(jnp.float32)
    lnb_f = lnb.reshape(3, 1, H).astype(jnp.float32)

    # bf16 K/V streams (halves the largest DMAs); query path stays f32.
    x_kv = x.astype(jnp.bfloat16)
    y_kv = y.astype(jnp.bfloat16)

    # Additive mask bias, streamed bf16 and added directly (no f32 copy).
    x_bias = (x_mask * MASK_FILL).astype(jnp.bfloat16)
    y_bias = (y_mask * MASK_FILL).astype(jnp.bfloat16)

    vmem_budget = _vmem_budget_bytes()
    TQ = _pick_query_tile(N, vmem_budget)
    NQ = N // TQ
    tkv_self = _pick_kv_chunk(N)
    tkv_cross = _pick_kv_chunk(M)

    kernel = _make_decoder_kernel(tkv_self, tkv_cross)

    # Advisory cost estimate (MAC-based flops, exp counts).
    flops = int(2 * B * (10 * N * H * H + 2 * M * H * H
                         + 2 * N * N * H + 2 * N * M * H))
    transc = int(B * HEAD * N * (N + M) + 4 * B * N)
    arrays = (x, x_kv, y_kv, x_bias, y_bias, a1_w, a1_b, a2_w, a2_b,
              w1_bf, b1_f, w2_bf, b2_f, lng_f, lnb_f)
    bytes_accessed = int(sum(int(a.size) * a.dtype.itemsize for a in arrays)
                         + B * N * H * 4)                        # f32 output

    def run(single_buffer_weights):
        def const_spec(a):
            nd = a.ndim
            kw = {}
            if single_buffer_weights:
                # Constant block index -> double-buffering is pure VMEM waste.
                kw["pipeline_mode"] = pl.Buffered(1)
            return pl.BlockSpec(a.shape, lambda b, qi, _nd=nd: (0,) * _nd, **kw)

        grid_spec = pltpu.PrefetchScalarGridSpec(
            num_scalar_prefetch=0,
            grid=(B, NQ),
            in_specs=[
                pl.BlockSpec((1, TQ, H), lambda b, qi: (b, qi, 0)),   # x query (f32)
                pl.BlockSpec((1, N, H), lambda b, qi: (b, 0, 0)),     # x full (bf16)
                pl.BlockSpec((1, M, H), lambda b, qi: (b, 0, 0)),     # y full (bf16)
                pl.BlockSpec((1, TQ, N), lambda b, qi: (b, qi, 0)),   # x mask bias
                pl.BlockSpec((1, TQ, M), lambda b, qi: (b, qi, 0)),   # y mask bias
                const_spec(a1_w), const_spec(a1_b),
                const_spec(a2_w), const_spec(a2_b),
                const_spec(w1_bf), const_spec(b1_f),
                const_spec(w2_bf), const_spec(b2_f),
                const_spec(lng_f), const_spec(lnb_f),
            ],
            out_specs=pl.BlockSpec((1, TQ, H), lambda b, qi: (b, qi, 0)),
            scratch_shapes=[
                pltpu.VMEM((N, H), jnp.bfloat16),   # self-attn K (hoisted)
                pltpu.VMEM((N, H), jnp.bfloat16),   # self-attn V (hoisted)
                pltpu.VMEM((M, H), jnp.bfloat16),   # cross-attn K (hoisted)
                pltpu.VMEM((M, H), jnp.bfloat16),   # cross-attn V (hoisted)
            ],
        )
        return pl.pallas_call(
            kernel,
            out_shape=jax.ShapeDtypeStruct((B, N, H), jnp.float32),
            grid_spec=grid_spec,
            compiler_params=pltpu.CompilerParams(
                # batch "parallel" (megacore splits batch rows, one K/V copy
                # per core); query-tile axis "arbitrary" so the K/V hoist at
                # qi == 0 is valid across the persistent scratch.
                dimension_semantics=("parallel", "arbitrary"),
                vmem_limit_bytes=int(vmem_budget)),
            cost_estimate=pl.CostEstimate(flops=flops, transcendentals=transc,
                                          bytes_accessed=bytes_accessed),
        )(x, x_kv, y_kv, x_bias, y_bias,
          a1_w, a1_b, a2_w, a2_b,
          w1_bf, b1_f, w2_bf, b2_f, lng_f, lnb_f)

    try:
        return run(True)
    except Exception:
        # pipeline_mode=pl.Buffered(1) unsupported on this jax build: fall back.
        return run(False)


# ------------------------- pure-JAX (f32) reference --------------------------
def decoder_ref(x, y, xm, ym, params):
    (a1w, a1b, a2w, a2b, w1, b1, w2, b2, lng, lnb) = params
    B, N, H = x.shape
    hs = H // HEAD
    scale = 1.0 / math.sqrt(hs)

    def ln(z, g, b):
        mu = jnp.mean(z, -1, keepdims=True)
        var = jnp.mean((z - mu) ** 2, -1, keepdims=True)
        return (z - mu) / jnp.sqrt(var + 1e-5) * g + b

    def mha(v_in, k_in, q_in, w, b, mask):
        v = v_in @ w[0] + b[0]
        k = k_in @ w[1] + b[1]
        q = q_in @ w[2] + b[2]
        v = v.reshape(B, -1, HEAD, hs).transpose(0, 2, 1, 3)
        k = k.reshape(B, -1, HEAD, hs).transpose(0, 2, 1, 3)
        q = q.reshape(B, -1, HEAD, hs).transpose(0, 2, 1, 3)
        s = jnp.einsum("bhnd,bhmd->bhnm", q, k) * scale
        s = jnp.where(mask[:, None] > 0.5, MASK_FILL, s)
        p = jax.nn.softmax(s, axis=-1)
        o = jnp.einsum("bhnm,bhmd->bhnd", p, v)
        o = o.transpose(0, 2, 1, 3).reshape(B, -1, H)
        return o @ w[3] + b[3]

    x1 = ln(x + mha(x, x, x, a1w, a1b, xm), lng[0], lnb[0])
    x2 = ln(x1 + mha(y, y, x1, a2w, a2b, ym), lng[1], lnb[1])
    ffn = jnp.maximum(x2 @ w1 + b1[0], 0.0) @ w2 + b2[0]
    return ln(x2 + ffn, lng[2], lnb[2])


if __name__ == "__main__":
    B, N, M, H = 2, 8, 8, 32   # hidden=32, head=8 -> head_size=4 (toy shapes)
    key = jax.random.PRNGKey(0)
    ks = jax.random.split(key, 12)

    x = jax.random.normal(ks[0], (B, N, H), jnp.float32)
    y = jax.random.normal(ks[1], (B, M, H), jnp.float32)
    # masks: 1.0 == masked position (PyTorch masked_fill semantics)
    x_mask = (jax.random.uniform(ks[2], (B, N, N)) < 0.2).astype(jnp.float32)
    y_mask = (jax.random.uniform(ks[3], (B, N, M)) < 0.2).astype(jnp.float32)

    s = 0.1
    a1w = jax.random.normal(ks[4], (4, H, H), jnp.float32) * s   # (in, out)
    a1b = jax.random.normal(ks[5], (4, H), jnp.float32) * s
    a2w = jax.random.normal(ks[6], (4, H, H), jnp.float32) * s
    a2b = jax.random.normal(ks[7], (4, H), jnp.float32) * s
    w1 = jax.random.normal(ks[8], (H, 2 * H), jnp.float32) * s
    b1 = jax.random.normal(ks[9], (1, 2 * H), jnp.float32) * s
    w2 = jax.random.normal(ks[10], (2 * H, H), jnp.float32) * s
    b2 = jax.random.normal(ks[11], (1, H), jnp.float32) * s
    lng = jnp.ones((3, H), jnp.float32)
    lnb = jnp.zeros((3, H), jnp.float32)

    params = (a1w, a1b, a2w, a2b, w1, b1, w2, b2, lng, lnb)

    out = decoder_forward(x, y, x_mask, y_mask, params)
    out = jax.block_until_ready(out)

    ref = decoder_ref(x, y, x_mask, y_mask, params)
    # bf16 MXU operands vs f32 reference -> relaxed tolerance.
    assert jnp.allclose(out, ref, rtol=5e-2, atol=5e-2), (
        float(jnp.max(jnp.abs(out - ref))))

    print("KERNEL_OK")
</pallas_src>

<mosaic_0001>
module attributes {stable_mosaic.version = 11 : i64} {
  func.func @decoder_kernel(%arg0: i32, %arg1: i32, %arg2: memref<1x8x32xf32, #tpu.memory_space<vmem>>, %arg3: memref<1x8x32xbf16, #tpu.memory_space<vmem>>, %arg4: memref<1x8x32xbf16, #tpu.memory_space<vmem>>, %arg5: memref<1x8x8xbf16, #tpu.memory_space<vmem>>, %arg6: memref<1x8x8xbf16, #tpu.memory_space<vmem>>, %arg7: memref<4x32x32xbf16, #tpu.memory_space<vmem>>, %arg8: memref<4x1x32xf32, #tpu.memory_space<vmem>>, %arg9: memref<4x32x32xbf16, #tpu.memory_space<vmem>>, %arg10: memref<4x1x32xf32, #tpu.memory_space<vmem>>, %arg11: memref<32x64xbf16, #tpu.memory_space<vmem>>, %arg12: memref<1x64xf32, #tpu.memory_space<vmem>>, %arg13: memref<64x32xbf16, #tpu.memory_space<vmem>>, %arg14: memref<1x32xf32, #tpu.memory_space<vmem>>, %arg15: memref<3x1x32xf32, #tpu.memory_space<vmem>>, %arg16: memref<3x1x32xf32, #tpu.memory_space<vmem>>, %arg17: memref<1x8x32xf32, #tpu.memory_space<vmem>>, %arg18: memref<8x32xbf16, #tpu.memory_space<vmem>>, %arg19: memref<8x32xbf16, #tpu.memory_space<vmem>>, %arg20: memref<8x32xbf16, #tpu.memory_space<vmem>>, %arg21: memref<8x32xbf16, #tpu.memory_space<vmem>>) attributes {dimension_semantics = [#tpu.dimension_semantics<parallel>, #tpu.dimension_semantics<arbitrary>], iteration_bounds = array<i64: 2, 1>, scalar_prefetch = 0 : i64, scratch_operands = 4 : i64, tpu.core_type = #tpu.core_type<tc>, window_params = [{transform_indices = @transform_0, window_bounds = array<i64: 1, 8, 32>}, {transform_indices = @transform_1, window_bounds = array<i64: 1, 8, 32>}, {transform_indices = @transform_2, window_bounds = array<i64: 1, 8, 32>}, {transform_indices = @transform_3, window_bounds = array<i64: 1, 8, 8>}, {transform_indices = @transform_4, window_bounds = array<i64: 1, 8, 8>}, {pipeline_mode = #tpu.pipeline_mode<synchronous>, transform_indices = @transform_5, window_bounds = array<i64: 4, 32, 32>}, {pipeline_mode = #tpu.pipeline_mode<synchronous>, transform_indices = @transform_6, window_bounds = array<i64: 4, 1, 32>}, {pipeline_mode = #tpu.pipeline_mode<synchronous>, transform_indices = @transform_7, window_bounds = array<i64: 4, 32, 32>}, {pipeline_mode = #tpu.pipeline_mode<synchronous>, transform_indices = @transform_8, window_bounds = array<i64: 4, 1, 32>}, {pipeline_mode = #tpu.pipeline_mode<synchronous>, transform_indices = @transform_9, window_bounds = array<i64: 32, 64>}, {pipeline_mode = #tpu.pipeline_mode<synchronous>, transform_indices = @transform_10, window_bounds = array<i64: 1, 64>}, {pipeline_mode = #tpu.pipeline_mode<synchronous>, transform_indices = @transform_11, window_bounds = array<i64: 64, 32>}, {pipeline_mode = #tpu.pipeline_mode<synchronous>, transform_indices = @transform_12, window_bounds = array<i64: 1, 32>}, {pipeline_mode = #tpu.pipeline_mode<synchronous>, transform_indices = @transform_13, window_bounds = array<i64: 3, 1, 32>}, {pipeline_mode = #tpu.pipeline_mode<synchronous>, transform_indices = @transform_14, window_bounds = array<i64: 3, 1, 32>}, {transform_indices = @transform_15, window_bounds = array<i64: 1, 8, 32>}]} {
    %c0_i32 = arith.constant 0 : i32
    %0 = arith.cmpi eq, %arg1, %c0_i32 : i32
    %1 = arith.extui %0 : i1 to i32
    %c0_i32_0 = arith.constant 0 : i32
    %2 = arith.cmpi ne, %1, %c0_i32_0 : i32
    scf.if %2 {
      %c0_249 = arith.constant 0 : index
      %c0_250 = arith.constant 0 : index
      %c0_251 = arith.constant 0 : index
      %621 = vector.load %arg3[%c0_249, %c0_250, %c0_251] : memref<1x8x32xbf16, #tpu.memory_space<vmem>>, vector<1x8x32xbf16>
      %622 = vector.shape_cast %621 : vector<1x8x32xbf16> to vector<8x32xbf16>
      %c0_252 = arith.constant 0 : index
      %c0_253 = arith.constant 0 : index
      %c0_254 = arith.constant 0 : index
      %623 = vector.load %arg4[%c0_252, %c0_253, %c0_254] : memref<1x8x32xbf16, #tpu.memory_space<vmem>>, vector<1x8x32xbf16>
      %624 = vector.shape_cast %623 : vector<1x8x32xbf16> to vector<8x32xbf16>
      %c1_255 = arith.constant 1 : index
      %c0_256 = arith.constant 0 : index
      %c0_257 = arith.constant 0 : index
      %625 = vector.load %arg7[%c1_255, %c0_256, %c0_257] : memref<4x32x32xbf16, #tpu.memory_space<vmem>>, vector<1x32x32xbf16>
      %626 = vector.shape_cast %625 : vector<1x32x32xbf16> to vector<32x32xbf16>
      %cst_258 = arith.constant dense<0.000000e+00> : vector<8x32xf32>
      %627 = tpu.matmul %622, %626, %cst_258 {dimension_numbers = #tpu.dot_dimension_numbers<[1], [0], [0], [1], [0, 0, 1, 1], [], []>} : vector<8x32xbf16>, vector<32x32xbf16>, vector<8x32xf32> -> vector<8x32xf32>
      %c1_259 = arith.constant 1 : index
      %c0_260 = arith.constant 0 : index
      %c0_261 = arith.constant 0 : index
      %628 = vector.load %arg8[%c1_259, %c0_260, %c0_261] : memref<4x1x32xf32, #tpu.memory_space<vmem>>, vector<1x1x32xf32>
      %629 = vector.shape_cast %628 : vector<1x1x32xf32> to vector<1x32xf32>
      %630 = vector.broadcast %629 : vector<1x32xf32> to vector<8x32xf32>
      %631 = arith.addf %627, %630 : vector<8x32xf32>
      %632 = arith.truncf %631 : vector<8x32xf32> to vector<8x32xbf16>
      %c0_262 = arith.constant 0 : index
      %c0_263 = arith.constant 0 : index
      %633 = vector.load %arg18[%c0_262, %c0_263] : memref<8x32xbf16, #tpu.memory_space<vmem>>, vector<8x32xbf16>
      tpu.vector_store %arg18[%c0_262, %c0_263], %632 {strides = array<i32>} : memref<8x32xbf16, #tpu.memory_space<vmem>>, vector<8x32xbf16>,
      %c0_264 = arith.constant 0 : index
      %c0_265 = arith.constant 0 : index
      %c0_266 = arith.constant 0 : index
      %634 = vector.load %arg7[%c0_264, %c0_265, %c0_266] : memref<4x32x32xbf16, #tpu.memory_space<vmem>>, vector<1x32x32xbf16>
      %635 = vector.shape_cast %634 : vector<1x32x32xbf16> to vector<32x32xbf16>
      %cst_267 = arith.constant dense<0.000000e+00> : vector<8x32xf32>
      %636 = tpu.matmul %622, %635, %cst_267 {dimension_numbers = #tpu.dot_dimension_numbers<[1], [0], [0], [1], [0, 0, 1, 1], [], []>} : vector<8x32xbf16>, vector<32x32xbf16>, vector<8x32xf32> -> vector<8x32xf32>
      %c0_268 = arith.constant 0 : index
      %c0_269 = arith.constant 0 : index
      %c0_270 = arith.constant 0 : index
      %637 = vector.load %arg8[%c0_268, %c0_269, %c0_270] : memref<4x1x32xf32, #tpu.memory_space<vmem>>, vector<1x1x32xf32>
      %638 = vector.shape_cast %637 : vector<1x1x32xf32> to vector<1x32xf32>
      %639 = vector.broadcast %638 : vector<1x32xf32> to vector<8x32xf32>
      %640 = arith.addf %636, %639 : vector<8x32xf32>
      %641 = arith.truncf %640 : vector<8x32xf32> to vector<8x32xbf16>
      %c0_271 = arith.constant 0 : index
      %c0_272 = arith.constant 0 : index
      %642 = vector.load %arg19[%c0_271, %c0_272] : memref<8x32xbf16, #tpu.memory_space<vmem>>, vector<8x32xbf16>
      tpu.vector_store %arg19[%c0_271, %c0_272], %641 {strides = array<i32>} : memref<8x32xbf16, #tpu.memory_space<vmem>>, vector<8x32xbf16>,
      %c1_273 = arith.constant 1 : index
      %c0_274 = arith.constant 0 : index
      %c0_275 = arith.constant 0 : index
      %643 = vector.load %arg9[%c1_273, %c0_274, %c0_275] : memref<4x32x32xbf16, #tpu.memory_space<vmem>>, vector<1x32x32xbf16>
      %644 = vector.shape_cast %643 : vector<1x32x32xbf16> to vector<32x32xbf16>
      %cst_276 = arith.constant dense<0.000000e+00> : vector<8x32xf32>
      %645 = tpu.matmul %624, %644, %cst_276 {dimension_numbers = #tpu.dot_dimension_numbers<[1], [0], [0], [1], [0, 0, 1, 1], [], []>} : vector<8x32xbf16>, vector<32x32xbf16>, vector<8x32xf32> -> vector<8x32xf32>
      %c1_277 = arith.constant 1 : index
      %c0_278 = arith.constant 0 : index
      %c0_279 = arith.constant 0 : index
      %646 = vector.load %arg10[%c1_277, %c0_278, %c0_279] : memref<4x1x32xf32, #tpu.memory_space<vmem>>, vector<1x1x32xf32>
      %647 = vector.shape_cast %646 : vector<1x1x32xf32> to vector<1x32xf32>
      %648 = vector.broadcast %647 : vector<1x32xf32> to vector<8x32xf32>
      %649 = arith.addf %645, %648 : vector<8x32xf32>
      %650 = arith.truncf %649 : vector<8x32xf32> to vector<8x32xbf16>
      %c0_280 = arith.constant 0 : index
      %c0_281 = arith.constant 0 : index
      %651 = vector.load %arg20[%c0_280, %c0_281] : memref<8x32xbf16, #tpu.memory_space<vmem>>, vector<8x32xbf16>
      tpu.vector_store %arg20[%c0_280, %c0_281], %650 {strides = array<i32>} : memref<8x32xbf16, #tpu.memory_space<vmem>>, vector<8x32xbf16>,
      %c0_282 = arith.constant 0 : index
      %c0_283 = arith.constant 0 : index
      %c0_284 = arith.constant 0 : index
      %652 = vector.load %arg9[%c0_282, %c0_283, %c0_284] : memref<4x32x32xbf16, #tpu.memory_space<vmem>>, vector<1x32x32xbf16>
      %653 = vector.shape_cast %652 : vector<1x32x32xbf16> to vector<32x32xbf16>
      %cst_285 = arith.constant dense<0.000000e+00> : vector<8x32xf32>
      %654 = tpu.matmul %624, %653, %cst_285 {dimension_numbers = #tpu.dot_dimension_numbers<[1], [0], [0], [1], [0, 0, 1, 1], [], []>} : vector<8x32xbf16>, vector<32x32xbf16>, vector<8x32xf32> -> vector<8x32xf32>
      %c0_286 = arith.constant 0 : index
      %c0_287 = arith.constant 0 : index
      %c0_288 = arith.constant 0 : index
      %655 = vector.load %arg10[%c0_286, %c0_287, %c0_288] : memref<4x1x32xf32, #tpu.memory_space<vmem>>, vector<1x1x32xf32>
      %656 = vector.shape_cast %655 : vector<1x1x32xf32> to vector<1x32xf32>
      %657 = vector.broadcast %656 : vector<1x32xf32> to vector<8x32xf32>
      %658 = arith.addf %654, %657 : vector<8x32xf32>
      %659 = arith.truncf %658 : vector<8x32xf32> to vector<8x32xbf16>
      %c0_289 = arith.constant 0 : index
      %c0_290 = arith.constant 0 : index
      %660 = vector.load %arg21[%c0_289, %c0_290] : memref<8x32xbf16, #tpu.memory_space<vmem>>, vector<8x32xbf16>
      tpu.vector_store %arg21[%c0_289, %c0_290], %659 {strides = array<i32>} : memref<8x32xbf16, #tpu.memory_space<vmem>>, vector<8x32xbf16>,
    } else {
    }
    %c0 = arith.constant 0 : index
    %c0_1 = arith.constant 0 : index
    %c0_2 = arith.constant 0 : index
    %3 = vector.load %arg2[%c0, %c0_1, %c0_2] : memref<1x8x32xf32, #tpu.memory_space<vmem>>, vector<1x8x32xf32>
    %4 = vector.shape_cast %3 : vector<1x8x32xf32> to vector<8x32xf32>
    %5 = arith.truncf %4 : vector<8x32xf32> to vector<8x32xbf16>
    %c2 = arith.constant 2 : index
    %c0_3 = arith.constant 0 : index
    %c0_4 = arith.constant 0 : index
    %6 = vector.load %arg7[%c2, %c0_3, %c0_4] : memref<4x32x32xbf16, #tpu.memory_space<vmem>>, vector<1x32x32xbf16>
    %7 = vector.shape_cast %6 : vector<1x32x32xbf16> to vector<32x32xbf16>
    %cst = arith.constant dense<0.000000e+00> : vector<8x32xf32>
    %8 = tpu.matmul %5, %7, %cst {dimension_numbers = #tpu.dot_dimension_numbers<[1], [0], [0], [1], [0, 0, 1, 1], [], []>} : vector<8x32xbf16>, vector<32x32xbf16>, vector<8x32xf32> -> vector<8x32xf32>
    %c2_5 = arith.constant 2 : index
    %c0_6 = arith.constant 0 : index
    %c0_7 = arith.constant 0 : index
    %9 = vector.load %arg8[%c2_5, %c0_6, %c0_7] : memref<4x1x32xf32, #tpu.memory_space<vmem>>, vector<1x1x32xf32>
    %10 = vector.shape_cast %9 : vector<1x1x32xf32> to vector<1x32xf32>
    %11 = vector.broadcast %10 : vector<1x32xf32> to vector<8x32xf32>
    %12 = arith.addf %8, %11 : vector<8x32xf32>
    %c0_8 = arith.constant 0 : index
    %c0_9 = arith.constant 0 : index
    %c0_10 = arith.constant 0 : index
    %13 = vector.load %arg5[%c0_8, %c0_9, %c0_10] : memref<1x8x8xbf16, #tpu.memory_space<vmem>>, vector<1x8x8xbf16>
    %14 = vector.shape_cast %13 : vector<1x8x8xbf16> to vector<8x8xbf16>
    %15 = vector.extract_strided_slice %12 {offsets = [0, 0], sizes = [8, 4], strides = [1, 1]} : vector<8x32xf32> to vector<8x4xf32>
    %16 = arith.truncf %15 : vector<8x4xf32> to vector<8x4xbf16>
    %cst_11 = arith.constant -1.000000e+30 : f32
    %17 = vector.broadcast %cst_11 : f32 to vector<8x1xf32>
    %cst_12 = arith.constant 0.000000e+00 : f32
    %18 = vector.broadcast %cst_12 : f32 to vector<8x1xf32>
    %cst_13 = arith.constant 0.000000e+00 : f32
    %19 = vector.broadcast %cst_13 : f32 to vector<8x4xf32>
    %c0_14 = arith.constant 0 : index
    %c0_15 = arith.constant 0 : index
    %20 = vector.load %arg18[%c0_14, %c0_15] : memref<8x32xbf16, #tpu.memory_space<vmem>>, vector<8x4xbf16>
    %c0_16 = arith.constant 0 : index
    %c0_17 = arith.constant 0 : index
    %21 = vector.load %arg19[%c0_16, %c0_17] : memref<8x32xbf16, #tpu.memory_space<vmem>>, vector<8x4xbf16>
    %cst_18 = arith.constant dense<0.000000e+00> : vector<8x8xf32>
    %22 = tpu.matmul %16, %20, %cst_18 {dimension_numbers = #tpu.dot_dimension_numbers<[1], [1], [0], [0], [0, 0, 1, 0], [], []>} : vector<8x4xbf16>, vector<8x4xbf16>, vector<8x8xf32> -> vector<8x8xf32>
    %23 = arith.extf %14 : vector<8x8xbf16> to vector<8x8xf32>
    %24 = arith.addf %22, %23 : vector<8x8xf32>
    %cst_19 = arith.constant dense<0xFF800000> : vector<8xf32>
    %25 = vector.multi_reduction <maximumf>, %24, %cst_19 [1] : vector<8x8xf32> to vector<8xf32>
    %26 = vector.shape_cast %25 : vector<8xf32> to vector<8x1xf32>
    %27 = arith.maximumf %17, %26 : vector<8x1xf32>
    %28 = arith.subf %17, %27 : vector<8x1xf32>
    %29 = math.exp %28 : vector<8x1xf32>
    %30 = vector.broadcast %27 : vector<8x1xf32> to vector<8x8xf32>
    %31 = arith.subf %24, %30 : vector<8x8xf32>
    %32 = math.exp %31 : vector<8x8xf32>
    %33 = arith.mulf %29, %18 : vector<8x1xf32>
    %cst_20 = arith.constant dense<0.000000e+00> : vector<8xf32>
    %34 = vector.multi_reduction <add>, %32, %cst_20 [1] : vector<8x8xf32> to vector<8xf32>
    %35 = vector.shape_cast %34 : vector<8xf32> to vector<8x1xf32>
    %36 = arith.addf %33, %35 : vector<8x1xf32>
    %37 = vector.broadcast %29 : vector<8x1xf32> to vector<8x4xf32>
    %38 = arith.mulf %37, %19 : vector<8x4xf32>
    %39 = arith.truncf %32 : vector<8x8xf32> to vector<8x8xbf16>
    %cst_21 = arith.constant dense<0.000000e+00> : vector<8x4xf32>
    %40 = tpu.matmul %39, %21, %cst_21 {dimension_numbers = #tpu.dot_dimension_numbers<[1], [0], [0], [1], [0, 0, 1, 1], [], []>} : vector<8x8xbf16>, vector<8x4xbf16>, vector<8x4xf32> -> vector<8x4xf32>
    %41 = arith.addf %38, %40 : vector<8x4xf32>
    %42 = tpu.reciprocal %36 {approx = true} : vector<8x1xf32> -> vector<8x1xf32>
    %43 = vector.broadcast %42 : vector<8x1xf32> to vector<8x4xf32>
    %44 = arith.mulf %41, %43 : vector<8x4xf32>
    %45 = vector.extract_strided_slice %12 {offsets = [0, 4], sizes = [8, 4], strides = [1, 1]} : vector<8x32xf32> to vector<8x4xf32>
    %46 = arith.truncf %45 : vector<8x4xf32> to vector<8x4xbf16>
    %cst_22 = arith.constant -1.000000e+30 : f32
    %47 = vector.broadcast %cst_22 : f32 to vector<8x1xf32>
    %cst_23 = arith.constant 0.000000e+00 : f32
    %48 = vector.broadcast %cst_23 : f32 to vector<8x1xf32>
    %cst_24 = arith.constant 0.000000e+00 : f32
    %49 = vector.broadcast %cst_24 : f32 to vector<8x4xf32>
    %c0_25 = arith.constant 0 : index
    %c4 = arith.constant 4 : index
    %50 = vector.load %arg18[%c0_25, %c4] : memref<8x32xbf16, #tpu.memory_space<vmem>>, vector<8x4xbf16>
    %c0_26 = arith.constant 0 : index
    %c4_27 = arith.constant 4 : index
    %51 = vector.load %arg19[%c0_26, %c4_27] : memref<8x32xbf16, #tpu.memory_space<vmem>>, vector<8x4xbf16>
    %cst_28 = arith.constant dense<0.000000e+00> : vector<8x8xf32>
    %52 = tpu.matmul %46, %50, %cst_28 {dimension_numbers = #tpu.dot_dimension_numbers<[1], [1], [0], [0], [0, 0, 1, 0], [], []>} : vector<8x4xbf16>, vector<8x4xbf16>, vector<8x8xf32> -> vector<8x8xf32>
    %53 = arith.extf %14 : vector<8x8xbf16> to vector<8x8xf32>
    %54 = arith.addf %52, %53 : vector<8x8xf32>
    %cst_29 = arith.constant dense<0xFF800000> : vector<8xf32>
    %55 = vector.multi_reduction <maximumf>, %54, %cst_29 [1] : vector<8x8xf32> to vector<8xf32>
    %56 = vector.shape_cast %55 : vector<8xf32> to vector<8x1xf32>
    %57 = arith.maximumf %47, %56 : vector<8x1xf32>
    %58 = arith.subf %47, %57 : vector<8x1xf32>
    %59 = math.exp %58 : vector<8x1xf32>
    %60 = vector.broadcast %57 : vector<8x1xf32> to vector<8x8xf32>
    %61 = arith.subf %54, %60 : vector<8x8xf32>
    %62 = math.exp %61 : vector<8x8xf32>
    %63 = arith.mulf %59, %48 : vector<8x1xf32>
    %cst_30 = arith.constant dense<0.000000e+00> : vector<8xf32>
    %64 = vector.multi_reduction <add>, %62, %cst_30 [1] : vector<8x8xf32> to vector<8xf32>
    %65 = vector.shape_cast %64 : vector<8xf32> to vector<8x1xf32>
    %66 = arith.addf %63, %65 : vector<8x1xf32>
    %67 = vector.broadcast %59 : vector<8x1xf32> to vector<8x4xf32>
    %68 = arith.mulf %67, %49 : vector<8x4xf32>
    %69 = arith.truncf %62 : vector<8x8xf32> to vector<8x8xbf16>
    %cst_31 = arith.constant dense<0.000000e+00> : vector<8x4xf32>
    %70 = tpu.matmul %69, %51, %cst_31 {dimension_numbers = #tpu.dot_dimension_numbers<[1], [0], [0], [1], [0, 0, 1, 1], [], []>} : vector<8x8xbf16>, vector<8x4xbf16>, vector<8x4xf32> -> vector<8x4xf32>
    %71 = arith.addf %68, %70 : vector<8x4xf32>
    %72 = tpu.reciprocal %66 {approx = true} : vector<8x1xf32> -> vector<8x1xf32>
    %73 = vector.broadcast %72 : vector<8x1xf32> to vector<8x4xf32>
    %74 = arith.mulf %71, %73 : vector<8x4xf32>
    %75 = vector.extract_strided_slice %12 {offsets = [0, 8], sizes = [8, 4], strides = [1, 1]} : vector<8x32xf32> to vector<8x4xf32>
    %76 = arith.truncf %75 : vector<8x4xf32> to vector<8x4xbf16>
    %cst_32 = arith.constant -1.000000e+30 : f32
    %77 = vector.broadcast %cst_32 : f32 to vector<8x1xf32>
    %cst_33 = arith.constant 0.000000e+00 : f32
    %78 = vector.broadcast %cst_33 : f32 to vector<8x1xf32>
    %cst_34 = arith.constant 0.000000e+00 : f32
    %79 = vector.broadcast %cst_34 : f32 to vector<8x4xf32>
    %c0_35 = arith.constant 0 : index
    %c8 = arith.constant 8 : index
    %80 = vector.load %arg18[%c0_35, %c8] : memref<8x32xbf16, #tpu.memory_space<vmem>>, vector<8x4xbf16>
    %c0_36 = arith.constant 0 : index
    %c8_37 = arith.constant 8 : index
    %81 = vector.load %arg19[%c0_36, %c8_37] : memref<8x32xbf16, #tpu.memory_space<vmem>>, vector<8x4xbf16>
    %cst_38 = arith.constant dense<0.000000e+00> : vector<8x8xf32>
    %82 = tpu.matmul %76, %80, %cst_38 {dimension_numbers = #tpu.dot_dimension_numbers<[1], [1], [0], [0], [0, 0, 1, 0], [], []>} : vector<8x4xbf16>, vector<8x4xbf16>, vector<8x8xf32> -> vector<8x8xf32>
    %83 = arith.extf %14 : vector<8x8xbf16> to vector<8x8xf32>
    %84 = arith.addf %82, %83 : vector<8x8xf32>
    %cst_39 = arith.constant dense<0xFF800000> : vector<8xf32>
    %85 = vector.multi_reduction <maximumf>, %84, %cst_39 [1] : vector<8x8xf32> to vector<8xf32>
    %86 = vector.shape_cast %85 : vector<8xf32> to vector<8x1xf32>
    %87 = arith.maximumf %77, %86 : vector<8x1xf32>
    %88 = arith.subf %77, %87 : vector<8x1xf32>
    %89 = math.exp %88 : vector<8x1xf32>
    %90 = vector.broadcast %87 : vector<8x1xf32> to vector<8x8xf32>
    %91 = arith.subf %84, %90 : vector<8x8xf32>
    %92 = math.exp %91 : vector<8x8xf32>
    %93 = arith.mulf %89, %78 : vector<8x1xf32>
    %cst_40 = arith.constant dense<0.000000e+00> : vector<8xf32>
    %94 = vector.multi_reduction <add>, %92, %cst_40 [1] : vector<8x8xf32> to vector<8xf32>
    %95 = vector.shape_cast %94 : vector<8xf32> to vector<8x1xf32>
    %96 = arith.addf %93, %95 : vector<8x1xf32>
    %97 = vector.broadcast %89 : vector<8x1xf32> to vector<8x4xf32>
    %98 = arith.mulf %97, %79 : vector<8x4xf32>
    %99 = arith.truncf %92 : vector<8x8xf32> to vector<8x8xbf16>
    %cst_41 = arith.constant dense<0.000000e+00> : vector<8x4xf32>
    %100 = tpu.matmul %99, %81, %cst_41 {dimension_numbers = #tpu.dot_dimension_numbers<[1], [0], [0], [1], [0, 0, 1, 1], [], []>} : vector<8x8xbf16>, vector<8x4xbf16>, vector<8x4xf32> -> vector<8x4xf32>
    %101 = arith.addf %98, %100 : vector<8x4xf32>
    %102 = tpu.reciprocal %96 {approx = true} : vector<8x1xf32> -> vector<8x1xf32>
    %103 = vector.broadcast %102 : vector<8x1xf32> to vector<8x4xf32>
    %104 = arith.mulf %101, %103 : vector<8x4xf32>
    %105 = vector.extract_strided_slice %12 {offsets = [0, 12], sizes = [8, 4], strides = [1, 1]} : vector<8x32xf32> to vector<8x4xf32>
    %106 = arith.truncf %105 : vector<8x4xf32> to vector<8x4xbf16>
    %cst_42 = arith.constant -1.000000e+30 : f32
    %107 = vector.broadcast %cst_42 : f32 to vector<8x1xf32>
    %cst_43 = arith.constant 0.000000e+00 : f32
    %108 = vector.broadcast %cst_43 : f32 to vector<8x1xf32>
    %cst_44 = arith.constant 0.000000e+00 : f32
    %109 = vector.broadcast %cst_44 : f32 to vector<8x4xf32>
    %c0_45 = arith.constant 0 : index
    %c12 = arith.constant 12 : index
    %110 = vector.load %arg18[%c0_45, %c12] : memref<8x32xbf16, #tpu.memory_space<vmem>>, vector<8x4xbf16>
    %c0_46 = arith.constant 0 : index
    %c12_47 = arith.constant 12 : index
    %111 = vector.load %arg19[%c0_46, %c12_47] : memref<8x32xbf16, #tpu.memory_space<vmem>>, vector<8x4xbf16>
    %cst_48 = arith.constant dense<0.000000e+00> : vector<8x8xf32>
    %112 = tpu.matmul %106, %110, %cst_48 {dimension_numbers = #tpu.dot_dimension_numbers<[1], [1], [0], [0], [0, 0, 1, 0], [], []>} : vector<8x4xbf16>, vector<8x4xbf16>, vector<8x8xf32> -> vector<8x8xf32>
    %113 = arith.extf %14 : vector<8x8xbf16> to vector<8x8xf32>
    %114 = arith.addf %112, %113 : vector<8x8xf32>
    %cst_49 = arith.constant dense<0xFF800000> : vector<8xf32>
    %115 = vector.multi_reduction <maximumf>, %114, %cst_49 [1] : vector<8x8xf32> to vector<8xf32>
    %116 = vector.shape_cast %115 : vector<8xf32> to vector<8x1xf32>
    %117 = arith.maximumf %107, %116 : vector<8x1xf32>
    %118 = arith.subf %107, %117 : vector<8x1xf32>
    %119 = math.exp %118 : vector<8x1xf32>
    %120 = vector.broadcast %117 : vector<8x1xf32> to vector<8x8xf32>
    %121 = arith.subf %114, %120 : vector<8x8xf32>
    %122 = math.exp %121 : vector<8x8xf32>
    %123 = arith.mulf %119, %108 : vector<8x1xf32>
    %cst_50 = arith.constant dense<0.000000e+00> : vector<8xf32>
    %124 = vector.multi_reduction <add>, %122, %cst_50 [1] : vector<8x8xf32> to vector<8xf32>
    %125 = vector.shape_cast %124 : vector<8xf32> to vector<8x1xf32>
    %126 = arith.addf %123, %125 : vector<8x1xf32>
    %127 = vector.broadcast %119 : vector<8x1xf32> to vector<8x4xf32>
    %128 = arith.mulf %127, %109 : vector<8x4xf32>
    %129 = arith.truncf %122 : vector<8x8xf32> to vector<8x8xbf16>
    %cst_51 = arith.constant dense<0.000000e+00> : vector<8x4xf32>
    %130 = tpu.matmul %129, %111, %cst_51 {dimension_numbers = #tpu.dot_dimension_numbers<[1], [0], [0], [1], [0, 0, 1, 1], [], []>} : vector<8x8xbf16>, vector<8x4xbf16>, vector<8x4xf32> -> vector<8x4xf32>
    %131 = arith.addf %128, %130 : vector<8x4xf32>
    %132 = tpu.reciprocal %126 {approx = true} : vector<8x1xf32> -> vector<8x1xf32>
    %133 = vector.broadcast %132 : vector<8x1xf32> to vector<8x4xf32>
    %134 = arith.mulf %131, %133 : vector<8x4xf32>
    %135 = vector.extract_strided_slice %12 {offsets = [0, 16], sizes = [8, 4], strides = [1, 1]} : vector<8x32xf32> to vector<8x4xf32>
    %136 = arith.truncf %135 : vector<8x4xf32> to vector<8x4xbf16>
    %cst_52 = arith.constant -1.000000e+30 : f32
    %137 = vector.broadcast %cst_52 : f32 to vector<8x1xf32>
    %cst_53 = arith.constant 0.000000e+00 : f32
    %138 = vector.broadcast %cst_53 : f32 to vector<8x1xf32>
    %cst_54 = arith.constant 0.000000e+00 : f32
    %139 = vector.broadcast %cst_54 : f32 to vector<8x4xf32>
    %c0_55 = arith.constant 0 : index
    %c16 = arith.constant 16 : index
    %140 = vector.load %arg18[%c0_55, %c16] : memref<8x32xbf16, #tpu.memory_space<vmem>>, vector<8x4xbf16>
    %c0_56 = arith.constant 0 : index
    %c16_57 = arith.constant 16 : index
    %141 = vector.load %arg19[%c0_56, %c16_57] : memref<8x32xbf16, #tpu.memory_space<vmem>>, vector<8x4xbf16>
    %cst_58 = arith.constant dense<0.000000e+00> : vector<8x8xf32>
    %142 = tpu.matmul %136, %140, %cst_58 {dimension_numbers = #tpu.dot_dimension_numbers<[1], [1], [0], [0], [0, 0, 1, 0], [], []>} : vector<8x4xbf16>, vector<8x4xbf16>, vector<8x8xf32> -> vector<8x8xf32>
    %143 = arith.extf %14 : vector<8x8xbf16> to vector<8x8xf32>
    %144 = arith.addf %142, %143 : vector<8x8xf32>
    %cst_59 = arith.constant dense<0xFF800000> : vector<8xf32>
    %145 = vector.multi_reduction <maximumf>, %144, %cst_59 [1] : vector<8x8xf32> to vector<8xf32>
    %146 = vector.shape_cast %145 : vector<8xf32> to vector<8x1xf32>
    %147 = arith.maximumf %137, %146 : vector<8x1xf32>
    %148 = arith.subf %137, %147 : vector<8x1xf32>
    %149 = math.exp %148 : vector<8x1xf32>
    %150 = vector.broadcast %147 : vector<8x1xf32> to vector<8x8xf32>
    %151 = arith.subf %144, %150 : vector<8x8xf32>
    %152 = math.exp %151 : vector<8x8xf32>
    %153 = arith.mulf %149, %138 : vector<8x1xf32>
    %cst_60 = arith.constant dense<0.000000e+00> : vector<8xf32>
    %154 = vector.multi_reduction <add>, %152, %cst_60 [1] : vector<8x8xf32> to vector<8xf32>
    %155 = vector.shape_cast %154 : vector<8xf32> to vector<8x1xf32>
    %156 = arith.addf %153, %155 : vector<8x1xf32>
    %157 = vector.broadcast %149 : vector<8x1xf32> to vector<8x4xf32>
    %158 = arith.mulf %157, %139 : vector<8x4xf32>
    %159 = arith.truncf %152 : vector<8x8xf32> to vector<8x8xbf16>
    %cst_61 = arith.constant dense<0.000000e+00> : vector<8x4xf32>
    %160 = tpu.matmul %159, %141, %cst_61 {dimension_numbers = #tpu.dot_dimension_numbers<[1], [0], [0], [1], [0, 0, 1, 1], [], []>} : vector<8x8xbf16>, vector<8x4xbf16>, vector<8x4xf32> -> vector<8x4xf32>
    %161 = arith.addf %158, %160 : vector<8x4xf32>
    %162 = tpu.reciprocal %156 {approx = true} : vector<8x1xf32> -> vector<8x1xf32>
    %163 = vector.broadcast %162 : vector<8x1xf32> to vector<8x4xf32>
    %164 = arith.mulf %161, %163 : vector<8x4xf32>
    %165 = vector.extract_strided_slice %12 {offsets = [0, 20], sizes = [8, 4], strides = [1, 1]} : vector<8x32xf32> to vector<8x4xf32>
    %166 = arith.truncf %165 : vector<8x4xf32> to vector<8x4xbf16>
    %cst_62 = arith.constant -1.000000e+30 : f32
    %167 = vector.broadcast %cst_62 : f32 to vector<8x1xf32>
    %cst_63 = arith.constant 0.000000e+00 : f32
    %168 = vector.broadcast %cst_63 : f32 to vector<8x1xf32>
    %cst_64 = arith.constant 0.000000e+00 : f32
    %169 = vector.broadcast %cst_64 : f32 to vector<8x4xf32>
    %c0_65 = arith.constant 0 : index
    %c20 = arith.constant 20 : index
    %170 = vector.load %arg18[%c0_65, %c20] : memref<8x32xbf16, #tpu.memory_space<vmem>>, vector<8x4xbf16>
    %c0_66 = arith.constant 0 : index
    %c20_67 = arith.constant 20 : index
    %171 = vector.load %arg19[%c0_66, %c20_67] : memref<8x32xbf16, #tpu.memory_space<vmem>>, vector<8x4xbf16>
    %cst_68 = arith.constant dense<0.000000e+00> : vector<8x8xf32>
    %172 = tpu.matmul %166, %170, %cst_68 {dimension_numbers = #tpu.dot_dimension_numbers<[1], [1], [0], [0], [0, 0, 1, 0], [], []>} : vector<8x4xbf16>, vector<8x4xbf16>, vector<8x8xf32> -> vector<8x8xf32>
    %173 = arith.extf %14 : vector<8x8xbf16> to vector<8x8xf32>
    %174 = arith.addf %172, %173 : vector<8x8xf32>
    %cst_69 = arith.constant dense<0xFF800000> : vector<8xf32>
    %175 = vector.multi_reduction <maximumf>, %174, %cst_69 [1] : vector<8x8xf32> to vector<8xf32>
    %176 = vector.shape_cast %175 : vector<8xf32> to vector<8x1xf32>
    %177 = arith.maximumf %167, %176 : vector<8x1xf32>
    %178 = arith.subf %167, %177 : vector<8x1xf32>
    %179 = math.exp %178 : vector<8x1xf32>
    %180 = vector.broadcast %177 : vector<8x1xf32> to vector<8x8xf32>
    %181 = arith.subf %174, %180 : vector<8x8xf32>
    %182 = math.exp %181 : vector<8x8xf32>
    %183 = arith.mulf %179, %168 : vector<8x1xf32>
    %cst_70 = arith.constant dense<0.000000e+00> : vector<8xf32>
    %184 = vector.multi_reduction <add>, %182, %cst_70 [1] : vector<8x8xf32> to vector<8xf32>
    %185 = vector.shape_cast %184 : vector<8xf32> to vector<8x1xf32>
    %186 = arith.addf %183, %185 : vector<8x1xf32>
    %187 = vector.broadcast %179 : vector<8x1xf32> to vector<8x4xf32>
    %188 = arith.mulf %187, %169 : vector<8x4xf32>
    %189 = arith.truncf %182 : vector<8x8xf32> to vector<8x8xbf16>
    %cst_71 = arith.constant dense<0.000000e+00> : vector<8x4xf32>
    %190 = tpu.matmul %189, %171, %cst_71 {dimension_numbers = #tpu.dot_dimension_numbers<[1], [0], [0], [1], [0, 0, 1, 1], [], []>} : vector<8x8xbf16>, vector<8x4xbf16>, vector<8x4xf32> -> vector<8x4xf32>
    %191 = arith.addf %188, %190 : vector<8x4xf32>
    %192 = tpu.reciprocal %186 {approx = true} : vector<8x1xf32> -> vector<8x1xf32>
    %193 = vector.broadcast %192 : vector<8x1xf32> to vector<8x4xf32>
    %194 = arith.mulf %191, %193 : vector<8x4xf32>
    %195 = vector.extract_strided_slice %12 {offsets = [0, 24], sizes = [8, 4], strides = [1, 1]} : vector<8x32xf32> to vector<8x4xf32>
    %196 = arith.truncf %195 : vector<8x4xf32> to vector<8x4xbf16>
    %cst_72 = arith.constant -1.000000e+30 : f32
    %197 = vector.broadcast %cst_72 : f32 to vector<8x1xf32>
    %cst_73 = arith.constant 0.000000e+00 : f32
    %198 = vector.broadcast %cst_73 : f32 to vector<8x1xf32>
    %cst_74 = arith.constant 0.000000e+00 : f32
    %199 = vector.broadcast %cst_74 : f32 to vector<8x4xf32>
    %c0_75 = arith.constant 0 : index
    %c24 = arith.constant 24 : index
    %200 = vector.load %arg18[%c0_75, %c24] : memref<8x32xbf16, #tpu.memory_space<vmem>>, vector<8x4xbf16>
    %c0_76 = arith.constant 0 : index
    %c24_77 = arith.constant 24 : index
    %201 = vector.load %arg19[%c0_76, %c24_77] : memref<8x32xbf16, #tpu.memory_space<vmem>>, vector<8x4xbf16>
    %cst_78 = arith.constant dense<0.000000e+00> : vector<8x8xf32>
    %202 = tpu.matmul %196, %200, %cst_78 {dimension_numbers = #tpu.dot_dimension_numbers<[1], [1], [0], [0], [0, 0, 1, 0], [], []>} : vector<8x4xbf16>, vector<8x4xbf16>, vector<8x8xf32> -> vector<8x8xf32>
    %203 = arith.extf %14 : vector<8x8xbf16> to vector<8x8xf32>
    %204 = arith.addf %202, %203 : vector<8x8xf32>
    %cst_79 = arith.constant dense<0xFF800000> : vector<8xf32>
    %205 = vector.multi_reduction <maximumf>, %204, %cst_79 [1] : vector<8x8xf32> to vector<8xf32>
    %206 = vector.shape_cast %205 : vector<8xf32> to vector<8x1xf32>
    %207 = arith.maximumf %197, %206 : vector<8x1xf32>
    %208 = arith.subf %197, %207 : vector<8x1xf32>
    %209 = math.exp %208 : vector<8x1xf32>
    %210 = vector.broadcast %207 : vector<8x1xf32> to vector<8x8xf32>
    %211 = arith.subf %204, %210 : vector<8x8xf32>
    %212 = math.exp %211 : vector<8x8xf32>
    %213 = arith.mulf %209, %198 : vector<8x1xf32>
    %cst_80 = arith.constant dense<0.000000e+00> : vector<8xf32>
    %214 = vector.multi_reduction <add>, %212, %cst_80 [1] : vector<8x8xf32> to vector<8xf32>
    %215 = vector.shape_cast %214 : vector<8xf32> to vector<8x1xf32>
    %216 = arith.addf %213, %215 : vector<8x1xf32>
    %217 = vector.broadcast %209 : vector<8x1xf32> to vector<8x4xf32>
    %218 = arith.mulf %217, %199 : vector<8x4xf32>
    %219 = arith.truncf %212 : vector<8x8xf32> to vector<8x8xbf16>
    %cst_81 = arith.constant dense<0.000000e+00> : vector<8x4xf32>
    %220 = tpu.matmul %219, %201, %cst_81 {dimension_numbers = #tpu.dot_dimension_numbers<[1], [0], [0], [1], [0, 0, 1, 1], [], []>} : vector<8x8xbf16>, vector<8x4xbf16>, vector<8x4xf32> -> vector<8x4xf32>
    %221 = arith.addf %218, %220 : vector<8x4xf32>
    %222 = tpu.reciprocal %216 {approx = true} : vector<8x1xf32> -> vector<8x1xf32>
    %223 = vector.broadcast %222 : vector<8x1xf32> to vector<8x4xf32>
    %224 = arith.mulf %221, %223 : vector<8x4xf32>
    %225 = vector.extract_strided_slice %12 {offsets = [0, 28], sizes = [8, 4], strides = [1, 1]} : vector<8x32xf32> to vector<8x4xf32>
    %226 = arith.truncf %225 : vector<8x4xf32> to vector<8x4xbf16>
    %cst_82 = arith.constant -1.000000e+30 : f32
    %227 = vector.broadcast %cst_82 : f32 to vector<8x1xf32>
    %cst_83 = arith.constant 0.000000e+00 : f32
    %228 = vector.broadcast %cst_83 : f32 to vector<8x1xf32>
    %cst_84 = arith.constant 0.000000e+00 : f32
    %229 = vector.broadcast %cst_84 : f32 to vector<8x4xf32>
    %c0_85 = arith.constant 0 : index
    %c28 = arith.constant 28 : index
    %230 = vector.load %arg18[%c0_85, %c28] : memref<8x32xbf16, #tpu.memory_space<vmem>>, vector<8x4xbf16>
    %c0_86 = arith.constant 0 : index
    %c28_87 = arith.constant 28 : index
    %231 = vector.load %arg19[%c0_86, %c28_87] : memref<8x32xbf16, #tpu.memory_space<vmem>>, vector<8x4xbf16>
    %cst_88 = arith.constant dense<0.000000e+00> : vector<8x8xf32>
    %232 = tpu.matmul %226, %230, %cst_88 {dimension_numbers = #tpu.dot_dimension_numbers<[1], [1], [0], [0], [0, 0, 1, 0], [], []>} : vector<8x4xbf16>, vector<8x4xbf16>, vector<8x8xf32> -> vector<8x8xf32>
    %233 = arith.extf %14 : vector<8x8xbf16> to vector<8x8xf32>
    %234 = arith.addf %232, %233 : vector<8x8xf32>
    %cst_89 = arith.constant dense<0xFF800000> : vector<8xf32>
    %235 = vector.multi_reduction <maximumf>, %234, %cst_89 [1] : vector<8x8xf32> to vector<8xf32>
    %236 = vector.shape_cast %235 : vector<8xf32> to vector<8x1xf32>
    %237 = arith.maximumf %227, %236 : vector<8x1xf32>
    %238 = arith.subf %227, %237 : vector<8x1xf32>
    %239 = math.exp %238 : vector<8x1xf32>
    %240 = vector.broadcast %237 : vector<8x1xf32> to vector<8x8xf32>
    %241 = arith.subf %234, %240 : vector<8x8xf32>
    %242 = math.exp %241 : vector<8x8xf32>
    %243 = arith.mulf %239, %228 : vector<8x1xf32>
    %cst_90 = arith.constant dense<0.000000e+00> : vector<8xf32>
    %244 = vector.multi_reduction <add>, %242, %cst_90 [1] : vector<8x8xf32> to vector<8xf32>
    %245 = vector.shape_cast %244 : vector<8xf32> to vector<8x1xf32>
    %246 = arith.addf %243, %245 : vector<8x1xf32>
    %247 = vector.broadcast %239 : vector<8x1xf32> to vector<8x4xf32>
    %248 = arith.mulf %247, %229 : vector<8x4xf32>
    %249 = arith.truncf %242 : vector<8x8xf32> to vector<8x8xbf16>
    %cst_91 = arith.constant dense<0.000000e+00> : vector<8x4xf32>
    %250 = tpu.matmul %249, %231, %cst_91 {dimension_numbers = #tpu.dot_dimension_numbers<[1], [0], [0], [1], [0, 0, 1, 1], [], []>} : vector<8x8xbf16>, vector<8x4xbf16>, vector<8x4xf32> -> vector<8x4xf32>
    %251 = arith.addf %248, %250 : vector<8x4xf32>
    %252 = tpu.reciprocal %246 {approx = true} : vector<8x1xf32> -> vector<8x1xf32>
    %253 = vector.broadcast %252 : vector<8x1xf32> to vector<8x4xf32>
    %254 = arith.mulf %251, %253 : vector<8x4xf32>
    %255 = tpu.concatenate %44, %74, %104, %134, %164, %194, %224, %254 in 1 : vector<8x4xf32>, vector<8x4xf32>, vector<8x4xf32>, vector<8x4xf32>, vector<8x4xf32>, vector<8x4xf32>, vector<8x4xf32>, vector<8x4xf32> -> vector<8x32xf32>
    %256 = arith.truncf %255 : vector<8x32xf32> to vector<8x32xbf16>
    %c3 = arith.constant 3 : index
    %c0_92 = arith.constant 0 : index
    %c0_93 = arith.constant 0 : index
    %257 = vector.load %arg7[%c3, %c0_92, %c0_93] : memref<4x32x32xbf16, #tpu.memory_space<vmem>>, vector<1x32x32xbf16>
    %258 = vector.shape_cast %257 : vector<1x32x32xbf16> to vector<32x32xbf16>
    %cst_94 = arith.constant dense<0.000000e+00> : vector<8x32xf32>
    %259 = tpu.matmul %256, %258, %cst_94 {dimension_numbers = #tpu.dot_dimension_numbers<[1], [0], [0], [1], [0, 0, 1, 1], [], []>} : vector<8x32xbf16>, vector<32x32xbf16>, vector<8x32xf32> -> vector<8x32xf32>
    %c3_95 = arith.constant 3 : index
    %c0_96 = arith.constant 0 : index
    %c0_97 = arith.constant 0 : index
    %260 = vector.load %arg8[%c3_95, %c0_96, %c0_97] : memref<4x1x32xf32, #tpu.memory_space<vmem>>, vector<1x1x32xf32>
    %261 = vector.shape_cast %260 : vector<1x1x32xf32> to vector<1x32xf32>
    %262 = vector.broadcast %261 : vector<1x32xf32> to vector<8x32xf32>
    %263 = arith.addf %259, %262 : vector<8x32xf32>
    %264 = arith.addf %4, %263 : vector<8x32xf32>
    %c0_98 = arith.constant 0 : index
    %c0_99 = arith.constant 0 : index
    %c0_100 = arith.constant 0 : index
    %265 = vector.load %arg15[%c0_98, %c0_99, %c0_100] : memref<3x1x32xf32, #tpu.memory_space<vmem>>, vector<1x1x32xf32>
    %266 = vector.shape_cast %265 : vector<1x1x32xf32> to vector<1x32xf32>
    %c0_101 = arith.constant 0 : index
    %c0_102 = arith.constant 0 : index
    %c0_103 = arith.constant 0 : index
    %267 = vector.load %arg16[%c0_101, %c0_102, %c0_103] : memref<3x1x32xf32, #tpu.memory_space<vmem>>, vector<1x1x32xf32>
    %268 = vector.shape_cast %267 : vector<1x1x32xf32> to vector<1x32xf32>
    %cst_104 = arith.constant dense<0.000000e+00> : vector<8xf32>
    %269 = vector.multi_reduction <add>, %264, %cst_104 [1] : vector<8x32xf32> to vector<8xf32>
    %270 = vector.shape_cast %269 : vector<8xf32> to vector<8x1xf32>
    %cst_105 = arith.constant 3.200000e+01 : f32
    %271 = vector.broadcast %cst_105 : f32 to vector<8x1xf32>
    %272 = arith.divf %270, %271 : vector<8x1xf32>
    %273 = vector.broadcast %272 : vector<8x1xf32> to vector<8x32xf32>
    %274 = arith.subf %264, %273 : vector<8x32xf32>
    %275 = arith.mulf %274, %274 : vector<8x32xf32>
    %cst_106 = arith.constant dense<0.000000e+00> : vector<8xf32>
    %276 = vector.multi_reduction <add>, %275, %cst_106 [1] : vector<8x32xf32> to vector<8xf32>
    %277 = vector.shape_cast %276 : vector<8xf32> to vector<8x1xf32>
    %cst_107 = arith.constant 3.200000e+01 : f32
    %278 = vector.broadcast %cst_107 : f32 to vector<8x1xf32>
    %279 = arith.divf %277, %278 : vector<8x1xf32>
    %280 = vector.broadcast %272 : vector<8x1xf32> to vector<8x32xf32>
    %281 = arith.subf %264, %280 : vector<8x32xf32>
    %cst_108 = arith.constant 9.99999974E-6 : f32
    %282 = vector.broadcast %cst_108 : f32 to vector<8x1xf32>
    %283 = arith.addf %279, %282 : vector<8x1xf32>
    %284 = math.rsqrt %283 : vector<8x1xf32>
    %285 = vector.broadcast %284 : vector<8x1xf32> to vector<8x32xf32>
    %286 = arith.mulf %281, %285 : vector<8x32xf32>
    %287 = vector.broadcast %266 : vector<1x32xf32> to vector<8x32xf32>
    %288 = arith.mulf %286, %287 : vector<8x32xf32>
    %289 = vector.broadcast %268 : vector<1x32xf32> to vector<8x32xf32>
    %290 = arith.addf %288, %289 : vector<8x32xf32>
    %291 = arith.truncf %290 : vector<8x32xf32> to vector<8x32xbf16>
    %c2_109 = arith.constant 2 : index
    %c0_110 = arith.constant 0 : index
    %c0_111 = arith.constant 0 : index
    %292 = vector.load %arg9[%c2_109, %c0_110, %c0_111] : memref<4x32x32xbf16, #tpu.memory_space<vmem>>, vector<1x32x32xbf16>
    %293 = vector.shape_cast %292 : vector<1x32x32xbf16> to vector<32x32xbf16>
    %cst_112 = arith.constant dense<0.000000e+00> : vector<8x32xf32>
    %294 = tpu.matmul %291, %293, %cst_112 {dimension_numbers = #tpu.dot_dimension_numbers<[1], [0], [0], [1], [0, 0, 1, 1], [], []>} : vector<8x32xbf16>, vector<32x32xbf16>, vector<8x32xf32> -> vector<8x32xf32>
    %c2_113 = arith.constant 2 : index
    %c0_114 = arith.constant 0 : index
    %c0_115 = arith.constant 0 : index
    %295 = vector.load %arg10[%c2_113, %c0_114, %c0_115] : memref<4x1x32xf32, #tpu.memory_space<vmem>>, vector<1x1x32xf32>
    %296 = vector.shape_cast %295 : vector<1x1x32xf32> to vector<1x32xf32>
    %297 = vector.broadcast %296 : vector<1x32xf32> to vector<8x32xf32>
    %298 = arith.addf %294, %297 : vector<8x32xf32>
    %c0_116 = arith.constant 0 : index
    %c0_117 = arith.constant 0 : index
    %c0_118 = arith.constant 0 : index
    %299 = vector.load %arg6[%c0_116, %c0_117, %c0_118] : memref<1x8x8xbf16, #tpu.memory_space<vmem>>, vector<1x8x8xbf16>
    %300 = vector.shape_cast %299 : vector<1x8x8xbf16> to vector<8x8xbf16>
    %301 = vector.extract_strided_slice %298 {offsets = [0, 0], sizes = [8, 4], strides = [1, 1]} : vector<8x32xf32> to vector<8x4xf32>
    %302 = arith.truncf %301 : vector<8x4xf32> to vector<8x4xbf16>
    %cst_119 = arith.constant -1.000000e+30 : f32
    %303 = vector.broadcast %cst_119 : f32 to vector<8x1xf32>
    %cst_120 = arith.constant 0.000000e+00 : f32
    %304 = vector.broadcast %cst_120 : f32 to vector<8x1xf32>
    %cst_121 = arith.constant 0.000000e+00 : f32
    %305 = vector.broadcast %cst_121 : f32 to vector<8x4xf32>
    %c0_122 = arith.constant 0 : index
    %c0_123 = arith.constant 0 : index
    %306 = vector.load %arg20[%c0_122, %c0_123] : memref<8x32xbf16, #tpu.memory_space<vmem>>, vector<8x4xbf16>
    %c0_124 = arith.constant 0 : index
    %c0_125 = arith.constant 0 : index
    %307 = vector.load %arg21[%c0_124, %c0_125] : memref<8x32xbf16, #tpu.memory_space<vmem>>, vector<8x4xbf16>
    %cst_126 = arith.constant dense<0.000000e+00> : vector<8x8xf32>
    %308 = tpu.matmul %302, %306, %cst_126 {dimension_numbers = #tpu.dot_dimension_numbers<[1], [1], [0], [0], [0, 0, 1, 0], [], []>} : vector<8x4xbf16>, vector<8x4xbf16>, vector<8x8xf32> -> vector<8x8xf32>
    %309 = arith.extf %300 : vector<8x8xbf16> to vector<8x8xf32>
    %310 = arith.addf %308, %309 : vector<8x8xf32>
    %cst_127 = arith.constant dense<0xFF800000> : vector<8xf32>
    %311 = vector.multi_reduction <maximumf>, %310, %cst_127 [1] : vector<8x8xf32> to vector<8xf32>
    %312 = vector.shape_cast %311 : vector<8xf32> to vector<8x1xf32>
    %313 = arith.maximumf %303, %312 : vector<8x1xf32>
    %314 = arith.subf %303, %313 : vector<8x1xf32>
    %315 = math.exp %314 : vector<8x1xf32>
    %316 = vector.broadcast %313 : vector<8x1xf32> to vector<8x8xf32>
    %317 = arith.subf %310, %316 : vector<8x8xf32>
    %318 = math.exp %317 : vector<8x8xf32>
    %319 = arith.mulf %315, %304 : vector<8x1xf32>
    %cst_128 = arith.constant dense<0.000000e+00> : vector<8xf32>
    %320 = vector.multi_reduction <add>, %318, %cst_128 [1] : vector<8x8xf32> to vector<8xf32>
    %321 = vector.shape_cast %320 : vector<8xf32> to vector<8x1xf32>
    %322 = arith.addf %319, %321 : vector<8x1xf32>
    %323 = vector.broadcast %315 : vector<8x1xf32> to vector<8x4xf32>
    %324 = arith.mulf %323, %305 : vector<8x4xf32>
    %325 = arith.truncf %318 : vector<8x8xf32> to vector<8x8xbf16>
    %cst_129 = arith.constant dense<0.000000e+00> : vector<8x4xf32>
    %326 = tpu.matmul %325, %307, %cst_129 {dimension_numbers = #tpu.dot_dimension_numbers<[1], [0], [0], [1], [0, 0, 1, 1], [], []>} : vector<8x8xbf16>, vector<8x4xbf16>, vector<8x4xf32> -> vector<8x4xf32>
    %327 = arith.addf %324, %326 : vector<8x4xf32>
    %328 = tpu.reciprocal %322 {approx = true} : vector<8x1xf32> -> vector<8x1xf32>
    %329 = vector.broadcast %328 : vector<8x1xf32> to vector<8x4xf32>
    %330 = arith.mulf %327, %329 : vector<8x4xf32>
    %331 = vector.extract_strided_slice %298 {offsets = [0, 4], sizes = [8, 4], strides = [1, 1]} : vector<8x32xf32> to vector<8x4xf32>
    %332 = arith.truncf %331 : vector<8x4xf32> to vector<8x4xbf16>
    %cst_130 = arith.constant -1.000000e+30 : f32
    %333 = vector.broadcast %cst_130 : f32 to vector<8x1xf32>
    %cst_131 = arith.constant 0.000000e+00 : f32
    %334 = vector.broadcast %cst_131 : f32 to vector<8x1xf32>
    %cst_132 = arith.constant 0.000000e+00 : f32
    %335 = vector.broadcast %cst_132 : f32 to vector<8x4xf32>
    %c0_133 = arith.constant 0 : index
    %c4_134 = arith.constant 4 : index
    %336 = vector.load %arg20[%c0_133, %c4_134] : memref<8x32xbf16, #tpu.memory_space<vmem>>, vector<8x4xbf16>
    %c0_135 = arith.constant 0 : index
    %c4_136 = arith.constant 4 : index
    %337 = vector.load %arg21[%c0_135, %c4_136] : memref<8x32xbf16, #tpu.memory_space<vmem>>, vector<8x4xbf16>
    %cst_137 = arith.constant dense<0.000000e+00> : vector<8x8xf32>
    %338 = tpu.matmul %332, %336, %cst_137 {dimension_numbers = #tpu.dot_dimension_numbers<[1], [1], [0], [0], [0, 0, 1, 0], [], []>} : vector<8x4xbf16>, vector<8x4xbf16>, vector<8x8xf32> -> vector<8x8xf32>
    %339 = arith.extf %300 : vector<8x8xbf16> to vector<8x8xf32>
    %340 = arith.addf %338, %339 : vector<8x8xf32>
    %cst_138 = arith.constant dense<0xFF800000> : vector<8xf32>
    %341 = vector.multi_reduction <maximumf>, %340, %cst_138 [1] : vector<8x8xf32> to vector<8xf32>
    %342 = vector.shape_cast %341 : vector<8xf32> to vector<8x1xf32>
    %343 = arith.maximumf %333, %342 : vector<8x1xf32>
    %344 = arith.subf %333, %343 : vector<8x1xf32>
    %345 = math.exp %344 : vector<8x1xf32>
    %346 = vector.broadcast %343 : vector<8x1xf32> to vector<8x8xf32>
    %347 = arith.subf %340, %346 : vector<8x8xf32>
    %348 = math.exp %347 : vector<8x8xf32>
    %349 = arith.mulf %345, %334 : vector<8x1xf32>
    %cst_139 = arith.constant dense<0.000000e+00> : vector<8xf32>
    %350 = vector.multi_reduction <add>, %348, %cst_139 [1] : vector<8x8xf32> to vector<8xf32>
    %351 = vector.shape_cast %350 : vector<8xf32> to vector<8x1xf32>
    %352 = arith.addf %349, %351 : vector<8x1xf32>
    %353 = vector.broadcast %345 : vector<8x1xf32> to vector<8x4xf32>
    %354 = arith.mulf %353, %335 : vector<8x4xf32>
    %355 = arith.truncf %348 : vector<8x8xf32> to vector<8x8xbf16>
    %cst_140 = arith.constant dense<0.000000e+00> : vector<8x4xf32>
    %356 = tpu.matmul %355, %337, %cst_140 {dimension_numbers = #tpu.dot_dimension_numbers<[1], [0], [0], [1], [0, 0, 1, 1], [], []>} : vector<8x8xbf16>, vector<8x4xbf16>, vector<8x4xf32> -> vector<8x4xf32>
    %357 = arith.addf %354, %356 : vector<8x4xf32>
    %358 = tpu.reciprocal %352 {approx = true} : vector<8x1xf32> -> vector<8x1xf32>
    %359 = vector.broadcast %358 : vector<8x1xf32> to vector<8x4xf32>
    %360 = arith.mulf %357, %359 : vector<8x4xf32>
    %361 = vector.extract_strided_slice %298 {offsets = [0, 8], sizes = [8, 4], strides = [1, 1]} : vector<8x32xf32> to vector<8x4xf32>
    %362 = arith.truncf %361 : vector<8x4xf32> to vector<8x4xbf16>
    %cst_141 = arith.constant -1.000000e+30 : f32
    %363 = vector.broadcast %cst_141 : f32 to vector<8x1xf32>
    %cst_142 = arith.constant 0.000000e+00 : f32
    %364 = vector.broadcast %cst_142 : f32 to vector<8x1xf32>
    %cst_143 = arith.constant 0.000000e+00 : f32
    %365 = vector.broadcast %cst_143 : f32 to vector<8x4xf32>
    %c0_144 = arith.constant 0 : index
    %c8_145 = arith.constant 8 : index
    %366 = vector.load %arg20[%c0_144, %c8_145] : memref<8x32xbf16, #tpu.memory_space<vmem>>, vector<8x4xbf16>
    %c0_146 = arith.constant 0 : index
    %c8_147 = arith.constant 8 : index
    %367 = vector.load %arg21[%c0_146, %c8_147] : memref<8x32xbf16, #tpu.memory_space<vmem>>, vector<8x4xbf16>
    %cst_148 = arith.constant dense<0.000000e+00> : vector<8x8xf32>
    %368 = tpu.matmul %362, %366, %cst_148 {dimension_numbers = #tpu.dot_dimension_numbers<[1], [1], [0], [0], [0, 0, 1, 0], [], []>} : vector<8x4xbf16>, vector<8x4xbf16>, vector<8x8xf32> -> vector<8x8xf32>
    %369 = arith.extf %300 : vector<8x8xbf16> to vector<8x8xf32>
    %370 = arith.addf %368, %369 : vector<8x8xf32>
    %cst_149 = arith.constant dense<0xFF800000> : vector<8xf32>
    %371 = vector.multi_reduction <maximumf>, %370, %cst_149 [1] : vector<8x8xf32> to vector<8xf32>
    %372 = vector.shape_cast %371 : vector<8xf32> to vector<8x1xf32>
    %373 = arith.maximumf %363, %372 : vector<8x1xf32>
    %374 = arith.subf %363, %373 : vector<8x1xf32>
    %375 = math.exp %374 : vector<8x1xf32>
    %376 = vector.broadcast %373 : vector<8x1xf32> to vector<8x8xf32>
    %377 = arith.subf %370, %376 : vector<8x8xf32>
    %378 = math.exp %377 : vector<8x8xf32>
    %379 = arith.mulf %375, %364 : vector<8x1xf32>
    %cst_150 = arith.constant dense<0.000000e+00> : vector<8xf32>
    %380 = vector.multi_reduction <add>, %378, %cst_150 [1] : vector<8x8xf32> to vector<8xf32>
    %381 = vector.shape_cast %380 : vector<8xf32> to vector<8x1xf32>
    %382 = arith.addf %379, %381 : vector<8x1xf32>
    %383 = vector.broadcast %375 : vector<8x1xf32> to vector<8x4xf32>
    %384 = arith.mulf %383, %365 : vector<8x4xf32>
    %385 = arith.truncf %378 : vector<8x8xf32> to vector<8x8xbf16>
    %cst_151 = arith.constant dense<0.000000e+00> : vector<8x4xf32>
    %386 = tpu.matmul %385, %367, %cst_151 {dimension_numbers = #tpu.dot_dimension_numbers<[1], [0], [0], [1], [0, 0, 1, 1], [], []>} : vector<8x8xbf16>, vector<8x4xbf16>, vector<8x4xf32> -> vector<8x4xf32>
    %387 = arith.addf %384, %386 : vector<8x4xf32>
    %388 = tpu.reciprocal %382 {approx = true} : vector<8x1xf32> -> vector<8x1xf32>
    %389 = vector.broadcast %388 : vector<8x1xf32> to vector<8x4xf32>
    %390 = arith.mulf %387, %389 : vector<8x4xf32>
    %391 = vector.extract_strided_slice %298 {offsets = [0, 12], sizes = [8, 4], strides = [1, 1]} : vector<8x32xf32> to vector<8x4xf32>
    %392 = arith.truncf %391 : vector<8x4xf32> to vector<8x4xbf16>
    %cst_152 = arith.constant -1.000000e+30 : f32
    %393 = vector.broadcast %cst_152 : f32 to vector<8x1xf32>
    %cst_153 = arith.constant 0.000000e+00 : f32
    %394 = vector.broadcast %cst_153 : f32 to vector<8x1xf32>
    %cst_154 = arith.constant 0.000000e+00 : f32
    %395 = vector.broadcast %cst_154 : f32 to vector<8x4xf32>
    %c0_155 = arith.constant 0 : index
    %c12_156 = arith.constant 12 : index
    %396 = vector.load %arg20[%c0_155, %c12_156] : memref<8x32xbf16, #tpu.memory_space<vmem>>, vector<8x4xbf16>
    %c0_157 = arith.constant 0 : index
    %c12_158 = arith.constant 12 : index
    %397 = vector.load %arg21[%c0_157, %c12_158] : memref<8x32xbf16, #tpu.memory_space<vmem>>, vector<8x4xbf16>
    %cst_159 = arith.constant dense<0.000000e+00> : vector<8x8xf32>
    %398 = tpu.matmul %392, %396, %cst_159 {dimension_numbers = #tpu.dot_dimension_numbers<[1], [1], [0], [0], [0, 0, 1, 0], [], []>} : vector<8x4xbf16>, vector<8x4xbf16>, vector<8x8xf32> -> vector<8x8xf32>
    %399 = arith.extf %300 : vector<8x8xbf16> to vector<8x8xf32>
    %400 = arith.addf %398, %399 : vector<8x8xf32>
    %cst_160 = arith.constant dense<0xFF800000> : vector<8xf32>
    %401 = vector.multi_reduction <maximumf>, %400, %cst_160 [1] : vector<8x8xf32> to vector<8xf32>
    %402 = vector.shape_cast %401 : vector<8xf32> to vector<8x1xf32>
    %403 = arith.maximumf %393, %402 : vector<8x1xf32>
    %404 = arith.subf %393, %403 : vector<8x1xf32>
    %405 = math.exp %404 : vector<8x1xf32>
    %406 = vector.broadcast %403 : vector<8x1xf32> to vector<8x8xf32>
    %407 = arith.subf %400, %406 : vector<8x8xf32>
    %408 = math.exp %407 : vector<8x8xf32>
    %409 = arith.mulf %405, %394 : vector<8x1xf32>
    %cst_161 = arith.constant dense<0.000000e+00> : vector<8xf32>
    %410 = vector.multi_reduction <add>, %408, %cst_161 [1] : vector<8x8xf32> to vector<8xf32>
    %411 = vector.shape_cast %410 : vector<8xf32> to vector<8x1xf32>
    %412 = arith.addf %409, %411 : vector<8x1xf32>
    %413 = vector.broadcast %405 : vector<8x1xf32> to vector<8x4xf32>
    %414 = arith.mulf %413, %395 : vector<8x4xf32>
    %415 = arith.truncf %408 : vector<8x8xf32> to vector<8x8xbf16>
    %cst_162 = arith.constant dense<0.000000e+00> : vector<8x4xf32>
    %416 = tpu.matmul %415, %397, %cst_162 {dimension_numbers = #tpu.dot_dimension_numbers<[1], [0], [0], [1], [0, 0, 1, 1], [], []>} : vector<8x8xbf16>, vector<8x4xbf16>, vector<8x4xf32> -> vector<8x4xf32>
    %417 = arith.addf %414, %416 : vector<8x4xf32>
    %418 = tpu.reciprocal %412 {approx = true} : vector<8x1xf32> -> vector<8x1xf32>
    %419 = vector.broadcast %418 : vector<8x1xf32> to vector<8x4xf32>
    %420 = arith.mulf %417, %419 : vector<8x4xf32>
    %421 = vector.extract_strided_slice %298 {offsets = [0, 16], sizes = [8, 4], strides = [1, 1]} : vector<8x32xf32> to vector<8x4xf32>
    %422 = arith.truncf %421 : vector<8x4xf32> to vector<8x4xbf16>
    %cst_163 = arith.constant -1.000000e+30 : f32
    %423 = vector.broadcast %cst_163 : f32 to vector<8x1xf32>
    %cst_164 = arith.constant 0.000000e+00 : f32
    %424 = vector.broadcast %cst_164 : f32 to vector<8x1xf32>
    %cst_165 = arith.constant 0.000000e+00 : f32
    %425 = vector.broadcast %cst_165 : f32 to vector<8x4xf32>
    %c0_166 = arith.constant 0 : index
    %c16_167 = arith.constant 16 : index
    %426 = vector.load %arg20[%c0_166, %c16_167] : memref<8x32xbf16, #tpu.memory_space<vmem>>, vector<8x4xbf16>
    %c0_168 = arith.constant 0 : index
    %c16_169 = arith.constant 16 : index
    %427 = vector.load %arg21[%c0_168, %c16_169] : memref<8x32xbf16, #tpu.memory_space<vmem>>, vector<8x4xbf16>
    %cst_170 = arith.constant dense<0.000000e+00> : vector<8x8xf32>
    %428 = tpu.matmul %422, %426, %cst_170 {dimension_numbers = #tpu.dot_dimension_numbers<[1], [1], [0], [0], [0, 0, 1, 0], [], []>} : vector<8x4xbf16>, vector<8x4xbf16>, vector<8x8xf32> -> vector<8x8xf32>
    %429 = arith.extf %300 : vector<8x8xbf16> to vector<8x8xf32>
    %430 = arith.addf %428, %429 : vector<8x8xf32>
    %cst_171 = arith.constant dense<0xFF800000> : vector<8xf32>
    %431 = vector.multi_reduction <maximumf>, %430, %cst_171 [1] : vector<8x8xf32> to vector<8xf32>
    %432 = vector.shape_cast %431 : vector<8xf32> to vector<8x1xf32>
    %433 = arith.maximumf %423, %432 : vector<8x1xf32>
    %434 = arith.subf %423, %433 : vector<8x1xf32>
    %435 = math.exp %434 : vector<8x1xf32>
    %436 = vector.broadcast %433 : vector<8x1xf32> to vector<8x8xf32>
    %437 = arith.subf %430, %436 : vector<8x8xf32>
    %438 = math.exp %437 : vector<8x8xf32>
    %439 = arith.mulf %435, %424 : vector<8x1xf32>
    %cst_172 = arith.constant dense<0.000000e+00> : vector<8xf32>
    %440 = vector.multi_reduction <add>, %438, %cst_172 [1] : vector<8x8xf32> to vector<8xf32>
    %441 = vector.shape_cast %440 : vector<8xf32> to vector<8x1xf32>
    %442 = arith.addf %439, %441 : vector<8x1xf32>
    %443 = vector.broadcast %435 : vector<8x1xf32> to vector<8x4xf32>
    %444 = arith.mulf %443, %425 : vector<8x4xf32>
    %445 = arith.truncf %438 : vector<8x8xf32> to vector<8x8xbf16>
    %cst_173 = arith.constant dense<0.000000e+00> : vector<8x4xf32>
    %446 = tpu.matmul %445, %427, %cst_173 {dimension_numbers = #tpu.dot_dimension_numbers<[1], [0], [0], [1], [0, 0, 1, 1], [], []>} : vector<8x8xbf16>, vector<8x4xbf16>, vector<8x4xf32> -> vector<8x4xf32>
    %447 = arith.addf %444, %446 : vector<8x4xf32>
    %448 = tpu.reciprocal %442 {approx = true} : vector<8x1xf32> -> vector<8x1xf32>
    %449 = vector.broadcast %448 : vector<8x1xf32> to vector<8x4xf32>
    %450 = arith.mulf %447, %449 : vector<8x4xf32>
    %451 = vector.extract_strided_slice %298 {offsets = [0, 20], sizes = [8, 4], strides = [1, 1]} : vector<8x32xf32> to vector<8x4xf32>
    %452 = arith.truncf %451 : vector<8x4xf32> to vector<8x4xbf16>
    %cst_174 = arith.constant -1.000000e+30 : f32
    %453 = vector.broadcast %cst_174 : f32 to vector<8x1xf32>
    %cst_175 = arith.constant 0.000000e+00 : f32
    %454 = vector.broadcast %cst_175 : f32 to vector<8x1xf32>
    %cst_176 = arith.constant 0.000000e+00 : f32
    %455 = vector.broadcast %cst_176 : f32 to vector<8x4xf32>
    %c0_177 = arith.constant 0 : index
    %c20_178 = arith.constant 20 : index
    %456 = vector.load %arg20[%c0_177, %c20_178] : memref<8x32xbf16, #tpu.memory_space<vmem>>, vector<8x4xbf16>
    %c0_179 = arith.constant 0 : index
    %c20_180 = arith.constant 20 : index
    %457 = vector.load %arg21[%c0_179, %c20_180] : memref<8x32xbf16, #tpu.memory_space<vmem>>, vector<8x4xbf16>
    %cst_181 = arith.constant dense<0.000000e+00> : vector<8x8xf32>
    %458 = tpu.matmul %452, %456, %cst_181 {dimension_numbers = #tpu.dot_dimension_numbers<[1], [1], [0], [0], [0, 0, 1, 0], [], []>} : vector<8x4xbf16>, vector<8x4xbf16>, vector<8x8xf32> -> vector<8x8xf32>
    %459 = arith.extf %300 : vector<8x8xbf16> to vector<8x8xf32>
    %460 = arith.addf %458, %459 : vector<8x8xf32>
    %cst_182 = arith.constant dense<0xFF800000> : vector<8xf32>
    %461 = vector.multi_reduction <maximumf>, %460, %cst_182 [1] : vector<8x8xf32> to vector<8xf32>
    %462 = vector.shape_cast %461 : vector<8xf32> to vector<8x1xf32>
    %463 = arith.maximumf %453, %462 : vector<8x1xf32>
    %464 = arith.subf %453, %463 : vector<8x1xf32>
    %465 = math.exp %464 : vector<8x1xf32>
    %466 = vector.broadcast %463 : vector<8x1xf32> to vector<8x8xf32>
    %467 = arith.subf %460, %466 : vector<8x8xf32>
    %468 = math.exp %467 : vector<8x8xf32>
    %469 = arith.mulf %465, %454 : vector<8x1xf32>
    %cst_183 = arith.constant dense<0.000000e+00> : vector<8xf32>
    %470 = vector.multi_reduction <add>, %468, %cst_183 [1] : vector<8x8xf32> to vector<8xf32>
    %471 = vector.shape_cast %470 : vector<8xf32> to vector<8x1xf32>
    %472 = arith.addf %469, %471 : vector<8x1xf32>
    %473 = vector.broadcast %465 : vector<8x1xf32> to vector<8x4xf32>
    %474 = arith.mulf %473, %455 : vector<8x4xf32>
    %475 = arith.truncf %468 : vector<8x8xf32> to vector<8x8xbf16>
    %cst_184 = arith.constant dense<0.000000e+00> : vector<8x4xf32>
    %476 = tpu.matmul %475, %457, %cst_184 {dimension_numbers = #tpu.dot_dimension_numbers<[1], [0], [0], [1], [0, 0, 1, 1], [], []>} : vector<8x8xbf16>, vector<8x4xbf16>, vector<8x4xf32> -> vector<8x4xf32>
    %477 = arith.addf %474, %476 : vector<8x4xf32>
    %478 = tpu.reciprocal %472 {approx = true} : vector<8x1xf32> -> vector<8x1xf32>
    %479 = vector.broadcast %478 : vector<8x1xf32> to vector<8x4xf32>
    %480 = arith.mulf %477, %479 : vector<8x4xf32>
    %481 = vector.extract_strided_slice %298 {offsets = [0, 24], sizes = [8, 4], strides = [1, 1]} : vector<8x32xf32> to vector<8x4xf32>
    %482 = arith.truncf %481 : vector<8x4xf32> to vector<8x4xbf16>
    %cst_185 = arith.constant -1.000000e+30 : f32
    %483 = vector.broadcast %cst_185 : f32 to vector<8x1xf32>
    %cst_186 = arith.constant 0.000000e+00 : f32
    %484 = vector.broadcast %cst_186 : f32 to vector<8x1xf32>
    %cst_187 = arith.constant 0.000000e+00 : f32
    %485 = vector.broadcast %cst_187 : f32 to vector<8x4xf32>
    %c0_188 = arith.constant 0 : index
    %c24_189 = arith.constant 24 : index
    %486 = vector.load %arg20[%c0_188, %c24_189] : memref<8x32xbf16, #tpu.memory_space<vmem>>, vector<8x4xbf16>
    %c0_190 = arith.constant 0 : index
    %c24_191 = arith.constant 24 : index
    %487 = vector.load %arg21[%c0_190, %c24_191] : memref<8x32xbf16, #tpu.memory_space<vmem>>, vector<8x4xbf16>
    %cst_192 = arith.constant dense<0.000000e+00> : vector<8x8xf32>
    %488 = tpu.matmul %482, %486, %cst_192 {dimension_numbers = #tpu.dot_dimension_numbers<[1], [1], [0], [0], [0, 0, 1, 0], [], []>} : vector<8x4xbf16>, vector<8x4xbf16>, vector<8x8xf32> -> vector<8x8xf32>
    %489 = arith.extf %300 : vector<8x8xbf16> to vector<8x8xf32>
    %490 = arith.addf %488, %489 : vector<8x8xf32>
    %cst_193 = arith.constant dense<0xFF800000> : vector<8xf32>
    %491 = vector.multi_reduction <maximumf>, %490, %cst_193 [1] : vector<8x8xf32> to vector<8xf32>
    %492 = vector.shape_cast %491 : vector<8xf32> to vector<8x1xf32>
    %493 = arith.maximumf %483, %492 : vector<8x1xf32>
    %494 = arith.subf %483, %493 : vector<8x1xf32>
    %495 = math.exp %494 : vector<8x1xf32>
    %496 = vector.broadcast %493 : vector<8x1xf32> to vector<8x8xf32>
    %497 = arith.subf %490, %496 : vector<8x8xf32>
    %498 = math.exp %497 : vector<8x8xf32>
    %499 = arith.mulf %495, %484 : vector<8x1xf32>
    %cst_194 = arith.constant dense<0.000000e+00> : vector<8xf32>
    %500 = vector.multi_reduction <add>, %498, %cst_194 [1] : vector<8x8xf32> to vector<8xf32>
    %501 = vector.shape_cast %500 : vector<8xf32> to vector<8x1xf32>
    %502 = arith.addf %499, %501 : vector<8x1xf32>
    %503 = vector.broadcast %495 : vector<8x1xf32> to vector<8x4xf32>
    %504 = arith.mulf %503, %485 : vector<8x4xf32>
    %505 = arith.truncf %498 : vector<8x8xf32> to vector<8x8xbf16>
    %cst_195 = arith.constant dense<0.000000e+00> : vector<8x4xf32>
    %506 = tpu.matmul %505, %487, %cst_195 {dimension_numbers = #tpu.dot_dimension_numbers<[1], [0], [0], [1], [0, 0, 1, 1], [], []>} : vector<8x8xbf16>, vector<8x4xbf16>, vector<8x4xf32> -> vector<8x4xf32>
    %507 = arith.addf %504, %506 : vector<8x4xf32>
    %508 = tpu.reciprocal %502 {approx = true} : vector<8x1xf32> -> vector<8x1xf32>
    %509 = vector.broadcast %508 : vector<8x1xf32> to vector<8x4xf32>
    %510 = arith.mulf %507, %509 : vector<8x4xf32>
    %511 = vector.extract_strided_slice %298 {offsets = [0, 28], sizes = [8, 4], strides = [1, 1]} : vector<8x32xf32> to vector<8x4xf32>
    %512 = arith.truncf %511 : vector<8x4xf32> to vector<8x4xbf16>
    %cst_196 = arith.constant -1.000000e+30 : f32
    %513 = vector.broadcast %cst_196 : f32 to vector<8x1xf32>
    %cst_197 = arith.constant 0.000000e+00 : f32
    %514 = vector.broadcast %cst_197 : f32 to vector<8x1xf32>
    %cst_198 = arith.constant 0.000000e+00 : f32
    %515 = vector.broadcast %cst_198 : f32 to vector<8x4xf32>
    %c0_199 = arith.constant 0 : index
    %c28_200 = arith.constant 28 : index
    %516 = vector.load %arg20[%c0_199, %c28_200] : memref<8x32xbf16, #tpu.memory_space<vmem>>, vector<8x4xbf16>
    %c0_201 = arith.constant 0 : index
    %c28_202 = arith.constant 28 : index
    %517 = vector.load %arg21[%c0_201, %c28_202] : memref<8x32xbf16, #tpu.memory_space<vmem>>, vector<8x4xbf16>
    %cst_203 = arith.constant dense<0.000000e+00> : vector<8x8xf32>
    %518 = tpu.matmul %512, %516, %cst_203 {dimension_numbers = #tpu.dot_dimension_numbers<[1], [1], [0], [0], [0, 0, 1, 0], [], []>} : vector<8x4xbf16>, vector<8x4xbf16>, vector<8x8xf32> -> vector<8x8xf32>
    %519 = arith.extf %300 : vector<8x8xbf16> to vector<8x8xf32>
    %520 = arith.addf %518, %519 : vector<8x8xf32>
    %cst_204 = arith.constant dense<0xFF800000> : vector<8xf32>
    %521 = vector.multi_reduction <maximumf>, %520, %cst_204 [1] : vector<8x8xf32> to vector<8xf32>
    %522 = vector.shape_cast %521 : vector<8xf32> to vector<8x1xf32>
    %523 = arith.maximumf %513, %522 : vector<8x1xf32>
    %524 = arith.subf %513, %523 : vector<8x1xf32>
    %525 = math.exp %524 : vector<8x1xf32>
    %526 = vector.broadcast %523 : vector<8x1xf32> to vector<8x8xf32>
    %527 = arith.subf %520, %526 : vector<8x8xf32>
    %528 = math.exp %527 : vector<8x8xf32>
    %529 = arith.mulf %525, %514 : vector<8x1xf32>
    %cst_205 = arith.constant dense<0.000000e+00> : vector<8xf32>
    %530 = vector.multi_reduction <add>, %528, %cst_205 [1] : vector<8x8xf32> to vector<8xf32>
    %531 = vector.shape_cast %530 : vector<8xf32> to vector<8x1xf32>
    %532 = arith.addf %529, %531 : vector<8x1xf32>
    %533 = vector.broadcast %525 : vector<8x1xf32> to vector<8x4xf32>
    %534 = arith.mulf %533, %515 : vector<8x4xf32>
    %535 = arith.truncf %528 : vector<8x8xf32> to vector<8x8xbf16>
    %cst_206 = arith.constant dense<0.000000e+00> : vector<8x4xf32>
    %536 = tpu.matmul %535, %517, %cst_206 {dimension_numbers = #tpu.dot_dimension_numbers<[1], [0], [0], [1], [0, 0, 1, 1], [], []>} : vector<8x8xbf16>, vector<8x4xbf16>, vector<8x4xf32> -> vector<8x4xf32>
    %537 = arith.addf %534, %536 : vector<8x4xf32>
    %538 = tpu.reciprocal %532 {approx = true} : vector<8x1xf32> -> vector<8x1xf32>
    %539 = vector.broadcast %538 : vector<8x1xf32> to vector<8x4xf32>
    %540 = arith.mulf %537, %539 : vector<8x4xf32>
    %541 = tpu.concatenate %330, %360, %390, %420, %450, %480, %510, %540 in 1 : vector<8x4xf32>, vector<8x4xf32>, vector<8x4xf32>, vector<8x4xf32>, vector<8x4xf32>, vector<8x4xf32>, vector<8x4xf32>, vector<8x4xf32> -> vector<8x32xf32>
    %542 = arith.truncf %541 : vector<8x32xf32> to vector<8x32xbf16>
    %c3_207 = arith.constant 3 : index
    %c0_208 = arith.constant 0 : index
    %c0_209 = arith.constant 0 : index
    %543 = vector.load %arg9[%c3_207, %c0_208, %c0_209] : memref<4x32x32xbf16, #tpu.memory_space<vmem>>, vector<1x32x32xbf16>
    %544 = vector.shape_cast %543 : vector<1x32x32xbf16> to vector<32x32xbf16>
    %cst_210 = arith.constant dense<0.000000e+00> : vector<8x32xf32>
    %545 = tpu.matmul %542, %544, %cst_210 {dimension_numbers = #tpu.dot_dimension_numbers<[1], [0], [0], [1], [0, 0, 1, 1], [], []>} : vector<8x32xbf16>, vector<32x32xbf16>, vector<8x32xf32> -> vector<8x32xf32>
    %c3_211 = arith.constant 3 : index
    %c0_212 = arith.constant 0 : index
    %c0_213 = arith.constant 0 : index
    %546 = vector.load %arg10[%c3_211, %c0_212, %c0_213] : memref<4x1x32xf32, #tpu.memory_space<vmem>>, vector<1x1x32xf32>
    %547 = vector.shape_cast %546 : vector<1x1x32xf32> to vector<1x32xf32>
    %548 = vector.broadcast %547 : vector<1x32xf32> to vector<8x32xf32>
    %549 = arith.addf %545, %548 : vector<8x32xf32>
    %550 = arith.addf %290, %549 : vector<8x32xf32>
    %c1 = arith.constant 1 : index
    %c0_214 = arith.constant 0 : index
    %c0_215 = arith.constant 0 : index
    %551 = vector.load %arg15[%c1, %c0_214, %c0_215] : memref<3x1x32xf32, #tpu.memory_space<vmem>>, vector<1x1x32xf32>
    %552 = vector.shape_cast %551 : vector<1x1x32xf32> to vector<1x32xf32>
    %c1_216 = arith.constant 1 : index
    %c0_217 = arith.constant 0 : index
    %c0_218 = arith.constant 0 : index
    %553 = vector.load %arg16[%c1_216, %c0_217, %c0_218] : memref<3x1x32xf32, #tpu.memory_space<vmem>>, vector<1x1x32xf32>
    %554 = vector.shape_cast %553 : vector<1x1x32xf32> to vector<1x32xf32>
    %cst_219 = arith.constant dense<0.000000e+00> : vector<8xf32>
    %555 = vector.multi_reduction <add>, %550, %cst_219 [1] : vector<8x32xf32> to vector<8xf32>
    %556 = vector.shape_cast %555 : vector<8xf32> to vector<8x1xf32>
    %cst_220 = arith.constant 3.200000e+01 : f32
    %557 = vector.broadcast %cst_220 : f32 to vector<8x1xf32>
    %558 = arith.divf %556, %557 : vector<8x1xf32>
    %559 = vector.broadcast %558 : vector<8x1xf32> to vector<8x32xf32>
    %560 = arith.subf %550, %559 : vector<8x32xf32>
    %561 = arith.mulf %560, %560 : vector<8x32xf32>
    %cst_221 = arith.constant dense<0.000000e+00> : vector<8xf32>
    %562 = vector.multi_reduction <add>, %561, %cst_221 [1] : vector<8x32xf32> to vector<8xf32>
    %563 = vector.shape_cast %562 : vector<8xf32> to vector<8x1xf32>
    %cst_222 = arith.constant 3.200000e+01 : f32
    %564 = vector.broadcast %cst_222 : f32 to vector<8x1xf32>
    %565 = arith.divf %563, %564 : vector<8x1xf32>
    %566 = vector.broadcast %558 : vector<8x1xf32> to vector<8x32xf32>
    %567 = arith.subf %550, %566 : vector<8x32xf32>
    %cst_223 = arith.constant 9.99999974E-6 : f32
    %568 = vector.broadcast %cst_223 : f32 to vector<8x1xf32>
    %569 = arith.addf %565, %568 : vector<8x1xf32>
    %570 = math.rsqrt %569 : vector<8x1xf32>
    %571 = vector.broadcast %570 : vector<8x1xf32> to vector<8x32xf32>
    %572 = arith.mulf %567, %571 : vector<8x32xf32>
    %573 = vector.broadcast %552 : vector<1x32xf32> to vector<8x32xf32>
    %574 = arith.mulf %572, %573 : vector<8x32xf32>
    %575 = vector.broadcast %554 : vector<1x32xf32> to vector<8x32xf32>
    %576 = arith.addf %574, %575 : vector<8x32xf32>
    %577 = arith.truncf %576 : vector<8x32xf32> to vector<8x32xbf16>
    %c0_224 = arith.constant 0 : index
    %c0_225 = arith.constant 0 : index
    %578 = vector.load %arg11[%c0_224, %c0_225] : memref<32x64xbf16, #tpu.memory_space<vmem>>, vector<32x64xbf16>
    %cst_226 = arith.constant dense<0.000000e+00> : vector<8x64xf32>
    %579 = tpu.matmul %577, %578, %cst_226 {dimension_numbers = #tpu.dot_dimension_numbers<[1], [0], [0], [1], [0, 0, 1, 1], [], []>} : vector<8x32xbf16>, vector<32x64xbf16>, vector<8x64xf32> -> vector<8x64xf32>
    %c0_227 = arith.constant 0 : index
    %c0_228 = arith.constant 0 : index
    %580 = vector.load %arg12[%c0_227, %c0_228] : memref<1x64xf32, #tpu.memory_space<vmem>>, vector<1x64xf32>
    %581 = vector.broadcast %580 : vector<1x64xf32> to vector<8x64xf32>
    %582 = arith.addf %579, %581 : vector<8x64xf32>
    %cst_229 = arith.constant 0.000000e+00 : f32
    %583 = vector.broadcast %cst_229 : f32 to vector<8x64xf32>
    %584 = arith.maximumf %582, %583 : vector<8x64xf32>
    %585 = arith.truncf %584 : vector<8x64xf32> to vector<8x64xbf16>
    %c0_230 = arith.constant 0 : index
    %c0_231 = arith.constant 0 : index
    %586 = vector.load %arg13[%c0_230, %c0_231] : memref<64x32xbf16, #tpu.memory_space<vmem>>, vector<64x32xbf16>
    %cst_232 = arith.constant dense<0.000000e+00> : vector<8x32xf32>
    %587 = tpu.matmul %585, %586, %cst_232 {dimension_numbers = #tpu.dot_dimension_numbers<[1], [0], [0], [1], [0, 0, 1, 1], [], []>} : vector<8x64xbf16>, vector<64x32xbf16>, vector<8x32xf32> -> vector<8x32xf32>
    %c0_233 = arith.constant 0 : index
    %c0_234 = arith.constant 0 : index
    %588 = vector.load %arg14[%c0_233, %c0_234] : memref<1x32xf32, #tpu.memory_space<vmem>>, vector<1x32xf32>
    %589 = vector.broadcast %588 : vector<1x32xf32> to vector<8x32xf32>
    %590 = arith.addf %587, %589 : vector<8x32xf32>
    %591 = arith.addf %576, %590 : vector<8x32xf32>
    %c2_235 = arith.constant 2 : index
    %c0_236 = arith.constant 0 : index
    %c0_237 = arith.constant 0 : index
    %592 = vector.load %arg15[%c2_235, %c0_236, %c0_237] : memref<3x1x32xf32, #tpu.memory_space<vmem>>, vector<1x1x32xf32>
    %593 = vector.shape_cast %592 : vector<1x1x32xf32> to vector<1x32xf32>
    %c2_238 = arith.constant 2 : index
    %c0_239 = arith.constant 0 : index
    %c0_240 = arith.constant 0 : index
    %594 = vector.load %arg16[%c2_238, %c0_239, %c0_240] : memref<3x1x32xf32, #tpu.memory_space<vmem>>, vector<1x1x32xf32>
    %595 = vector.shape_cast %594 : vector<1x1x32xf32> to vector<1x32xf32>
    %cst_241 = arith.constant dense<0.000000e+00> : vector<8xf32>
    %596 = vector.multi_reduction <add>, %591, %cst_241 [1] : vector<8x32xf32> to vector<8xf32>
    %597 = vector.shape_cast %596 : vector<8xf32> to vector<8x1xf32>
    %cst_242 = arith.constant 3.200000e+01 : f32
    %598 = vector.broadcast %cst_242 : f32 to vector<8x1xf32>
    %599 = arith.divf %597, %598 : vector<8x1xf32>
    %600 = vector.broadcast %599 : vector<8x1xf32> to vector<8x32xf32>
    %601 = arith.subf %591, %600 : vector<8x32xf32>
    %602 = arith.mulf %601, %601 : vector<8x32xf32>
    %cst_243 = arith.constant dense<0.000000e+00> : vector<8xf32>
    %603 = vector.multi_reduction <add>, %602, %cst_243 [1] : vector<8x32xf32> to vector<8xf32>
    %604 = vector.shape_cast %603 : vector<8xf32> to vector<8x1xf32>
    %cst_244 = arith.constant 3.200000e+01 : f32
    %605 = vector.broadcast %cst_244 : f32 to vector<8x1xf32>
    %606 = arith.divf %604, %605 : vector<8x1xf32>
    %607 = vector.broadcast %599 : vector<8x1xf32> to vector<8x32xf32>
    %608 = arith.subf %591, %607 : vector<8x32xf32>
    %cst_245 = arith.constant 9.99999974E-6 : f32
    %609 = vector.broadcast %cst_245 : f32 to vector<8x1xf32>
    %610 = arith.addf %606, %609 : vector<8x1xf32>
    %611 = math.rsqrt %610 : vector<8x1xf32>
    %612 = vector.broadcast %611 : vector<8x1xf32> to vector<8x32xf32>
    %613 = arith.mulf %608, %612 : vector<8x32xf32>
    %614 = vector.broadcast %593 : vector<1x32xf32> to vector<8x32xf32>
    %615 = arith.mulf %613, %614 : vector<8x32xf32>
    %616 = vector.broadcast %595 : vector<1x32xf32> to vector<8x32xf32>
    %617 = arith.addf %615, %616 : vector<8x32xf32>
    %c0_246 = arith.constant 0 : index
    %c0_247 = arith.constant 0 : index
    %c0_248 = arith.constant 0 : index
    %618 = vector.load %arg17[%c0_246, %c0_247, %c0_248] : memref<1x8x32xf32, #tpu.memory_space<vmem>>, vector<1x8x32xf32>
    %619 = vector.shape_cast %618 : vector<1x8x32xf32> to vector<8x32xf32>
    %620 = vector.shape_cast %617 : vector<8x32xf32> to vector<1x8x32xf32>
    tpu.vector_store %arg17[%c0_246, %c0_247, %c0_248], %620 {strides = array<i32>} : memref<1x8x32xf32, #tpu.memory_space<vmem>>, vector<1x8x32xf32>,
    return
  }
  func.func @transform_0(%arg0: i32, %arg1: i32) -> (i32, i32, i32) {
    %c0_i32 = arith.constant 0 : i32
    %c0_i32_0 = arith.constant 0 : i32
    return %arg0, %arg1, %c0_i32 : i32, i32, i32
  }
  func.func @transform_1(%arg0: i32, %arg1: i32) -> (i32, i32, i32) {
    %c0_i32 = arith.constant 0 : i32
    %c0_i32_0 = arith.constant 0 : i32
    %c0_i32_1 = arith.constant 0 : i32
    return %arg0, %c0_i32, %c0_i32_0 : i32, i32, i32
  }
  func.func @transform_2(%arg0: i32, %arg1: i32) -> (i32, i32, i32) {
    %c0_i32 = arith.constant 0 : i32
    %c0_i32_0 = arith.constant 0 : i32
    %c0_i32_1 = arith.constant 0 : i32
    return %arg0, %c0_i32, %c0_i32_0 : i32, i32, i32
  }
  func.func @transform_3(%arg0: i32, %arg1: i32) -> (i32, i32, i32) {
    %c0_i32 = arith.constant 0 : i32
    %c0_i32_0 = arith.constant 0 : i32
    return %arg0, %arg1, %c0_i32 : i32, i32, i32
  }
  func.func @transform_4(%arg0: i32, %arg1: i32) -> (i32, i32, i32) {
    %c0_i32 = arith.constant 0 : i32
    %c0_i32_0 = arith.constant 0 : i32
    return %arg0, %arg1, %c0_i32 : i32, i32, i32
  }
  func.func @transform_5(%arg0: i32, %arg1: i32) -> (i32, i32, i32) {
    %c0_i32 = arith.constant 0 : i32
    %c0_i32_0 = arith.constant 0 : i32
    %c0_i32_1 = arith.constant 0 : i32
    %c0_i32_2 = arith.constant 0 : i32
    return %c0_i32, %c0_i32_0, %c0_i32_1 : i32, i32, i32
  }
  func.func @transform_6(%arg0: i32, %arg1: i32) -> (i32, i32, i32) {
    %c0_i32 = arith.constant 0 : i32
    %c0_i32_0 = arith.constant 0 : i32
    %c0_i32_1 = arith.constant 0 : i32
    %c0_i32_2 = arith.constant 0 : i32
    return %c0_i32, %c0_i32_0, %c0_i32_1 : i32, i32, i32
  }
  func.func @transform_7(%arg0: i32, %arg1: i32) -> (i32, i32, i32) {
    %c0_i32 = arith.constant 0 : i32
    %c0_i32_0 = arith.constant 0 : i32
    %c0_i32_1 = arith.constant 0 : i32
    %c0_i32_2 = arith.constant 0 : i32
    return %c0_i32, %c0_i32_0, %c0_i32_1 : i32, i32, i32
  }
  func.func @transform_8(%arg0: i32, %arg1: i32) -> (i32, i32, i32) {
    %c0_i32 = arith.constant 0 : i32
    %c0_i32_0 = arith.constant 0 : i32
    %c0_i32_1 = arith.constant 0 : i32
    %c0_i32_2 = arith.constant 0 : i32
    return %c0_i32, %c0_i32_0, %c0_i32_1 : i32, i32, i32
  }
  func.func @transform_9(%arg0: i32, %arg1: i32) -> (i32, i32) {
    %c0_i32 = arith.constant 0 : i32
    %c0_i32_0 = arith.constant 0 : i32
    %c0_i32_1 = arith.constant 0 : i32
    return %c0_i32, %c0_i32_0 : i32, i32
  }
  func.func @transform_10(%arg0: i32, %arg1: i32) -> (i32, i32) {
    %c0_i32 = arith.constant 0 : i32
    %c0_i32_0 = arith.constant 0 : i32
    %c0_i32_1 = arith.constant 0 : i32
    return %c0_i32, %c0_i32_0 : i32, i32
  }
  func.func @transform_11(%arg0: i32, %arg1: i32) -> (i32, i32) {
    %c0_i32 = arith.constant 0 : i32
    %c0_i32_0 = arith.constant 0 : i32
    %c0_i32_1 = arith.constant 0 : i32
    return %c0_i32, %c0_i32_0 : i32, i32
  }
  func.func @transform_12(%arg0: i32, %arg1: i32) -> (i32, i32) {
    %c0_i32 = arith.constant 0 : i32
    %c0_i32_0 = arith.constant 0 : i32
    %c0_i32_1 = arith.constant 0 : i32
    return %c0_i32, %c0_i32_0 : i32, i32
  }
  func.func @transform_13(%arg0: i32, %arg1: i32) -> (i32, i32, i32) {
    %c0_i32 = arith.constant 0 : i32
    %c0_i32_0 = arith.constant 0 : i32
    %c0_i32_1 = arith.constant 0 : i32
    %c0_i32_2 = arith.constant 0 : i32
    return %c0_i32, %c0_i32_0, %c0_i32_1 : i32, i32, i32
  }
  func.func @transform_14(%arg0: i32, %arg1: i32) -> (i32, i32, i32) {
    %c0_i32 = arith.constant 0 : i32
    %c0_i32_0 = arith.constant 0 : i32
    %c0_i32_1 = arith.constant 0 : i32
    %c0_i32_2 = arith.constant 0 : i32
    return %c0_i32, %c0_i32_0, %c0_i32_1 : i32, i32, i32
  }
  func.func @transform_15(%arg0: i32, %arg1: i32) -> (i32, i32, i32) {
    %c0_i32 = arith.constant 0 : i32
    %c0_i32_0 = arith.constant 0 : i32
    return %arg0, %arg1, %c0_i32 : i32, i32, i32
  }
}

module attributes {stable_mosaic.version = 11 : i64} {
  func.func @decoder_kernel(%arg0: i32, %arg1: i32, %arg2: memref<1x8x32xf32, #tpu.memory_space<vmem>>, %arg3: memref<1x8x32xbf16, #tpu.memory_space<vmem>>, %arg4: memref<1x8x32xbf16, #tpu.memory_space<vmem>>, %arg5: memref<1x8x8xbf16, #tpu.memory_space<vmem>>, %arg6: memref<1x8x8xbf16, #tpu.memory_space<vmem>>, %arg7: memref<4x32x32xbf16, #tpu.memory_space<vmem>>, %arg8: memref<4x1x32xf32, #tpu.memory_space<vmem>>, %arg9: memref<4x32x32xbf16, #tpu.memory_space<vmem>>, %arg10: memref<4x1x32xf32, #tpu.memory_space<vmem>>, %arg11: memref<32x64xbf16, #tpu.memory_space<vmem>>, %arg12: memref<1x64xf32, #tpu.memory_space<vmem>>, %arg13: memref<64x32xbf16, #tpu.memory_space<vmem>>, %arg14: memref<1x32xf32, #tpu.memory_space<vmem>>, %arg15: memref<3x1x32xf32, #tpu.memory_space<vmem>>, %arg16: memref<3x1x32xf32, #tpu.memory_space<vmem>>, %arg17: memref<1x8x32xf32, #tpu.memory_space<vmem>>, %arg18: memref<8x32xbf16, #tpu.memory_space<vmem>>, %arg19: memref<8x32xbf16, #tpu.memory_space<vmem>>, %arg20: memref<8x32xbf16, #tpu.memory_space<vmem>>, %arg21: memref<8x32xbf16, #tpu.memory_space<vmem>>) attributes {dimension_semantics = [#tpu.dimension_semantics<parallel>, #tpu.dimension_semantics<arbitrary>], iteration_bounds = array<i64: 2, 1>, scalar_prefetch = 0 : i64, scratch_operands = 4 : i64, tpu.core_type = #tpu.core_type<tc>, window_params = [{transform_indices = @transform_0, window_bounds = array<i64: 1, 8, 32>}, {transform_indices = @transform_1, window_bounds = array<i64: 1, 8, 32>}, {transform_indices = @transform_2, window_bounds = array<i64: 1, 8, 32>}, {transform_indices = @transform_3, window_bounds = array<i64: 1, 8, 8>}, {transform_indices = @transform_4, window_bounds = array<i64: 1, 8, 8>}, {pipeline_mode = #tpu.pipeline_mode<synchronous>, transform_indices = @transform_5, window_bounds = array<i64: 4, 32, 32>}, {pipeline_mode = #tpu.pipeline_mode<synchronous>, transform_indices = @transform_6, window_bounds = array<i64: 4, 1, 32>}, {pipeline_mode = #tpu.pipeline_mode<synchronous>, transform_indices = @transform_7, window_bounds = array<i64: 4, 32, 32>}, {pipeline_mode = #tpu.pipeline_mode<synchronous>, transform_indices = @transform_8, window_bounds = array<i64: 4, 1, 32>}, {pipeline_mode = #tpu.pipeline_mode<synchronous>, transform_indices = @transform_9, window_bounds = array<i64: 32, 64>}, {pipeline_mode = #tpu.pipeline_mode<synchronous>, transform_indices = @transform_10, window_bounds = array<i64: 1, 64>}, {pipeline_mode = #tpu.pipeline_mode<synchronous>, transform_indices = @transform_11, window_bounds = array<i64: 64, 32>}, {pipeline_mode = #tpu.pipeline_mode<synchronous>, transform_indices = @transform_12, window_bounds = array<i64: 1, 32>}, {pipeline_mode = #tpu.pipeline_mode<synchronous>, transform_indices = @transform_13, window_bounds = array<i64: 3, 1, 32>}, {pipeline_mode = #tpu.pipeline_mode<synchronous>, transform_indices = @transform_14, window_bounds = array<i64: 3, 1, 32>}, {transform_indices = @transform_15, window_bounds = array<i64: 1, 8, 32>}]} {
    %c0_i32 = arith.constant 0 : i32
    %0 = arith.cmpi eq, %arg1, %c0_i32 : i32
    %1 = arith.extui %0 : i1 to i32
    %c0_i32_0 = arith.constant 0 : i32
    %2 = arith.cmpi ne, %1, %c0_i32_0 : i32
    scf.if %2 {
      %c0_249 = arith.constant 0 : index
      %c0_250 = arith.constant 0 : index
      %c0_251 = arith.constant 0 : index
      %621 = vector.load %arg3[%c0_249, %c0_250, %c0_251] : memref<1x8x32xbf16, #tpu.memory_space<vmem>>, vector<1x8x32xbf16>
      %622 = vector.shape_cast %621 : vector<1x8x32xbf16> to vector<8x32xbf16>
      %c0_252 = arith.constant 0 : index
      %c0_253 = arith.constant 0 : index
      %c0_254 = arith.constant 0 : index
      %623 = vector.load %arg4[%c0_252, %c0_253, %c0_254] : memref<1x8x32xbf16, #tpu.memory_space<vmem>>, vector<1x8x32xbf16>
      %624 = vector.shape_cast %623 : vector<1x8x32xbf16> to vector<8x32xbf16>
      %c1_255 = arith.constant 1 : index
      %c0_256 = arith.constant 0 : index
      %c0_257 = arith.constant 0 : index
      %625 = vector.load %arg7[%c1_255, %c0_256, %c0_257] : memref<4x32x32xbf16, #tpu.memory_space<vmem>>, vector<1x32x32xbf16>
      %626 = vector.shape_cast %625 : vector<1x32x32xbf16> to vector<32x32xbf16>
      %cst_258 = arith.constant dense<0.000000e+00> : vector<8x32xf32>
      %627 = tpu.matmul %622, %626, %cst_258 {dimension_numbers = #tpu.dot_dimension_numbers<[1], [0], [0], [1], [0, 0, 1, 1], [], []>} : vector<8x32xbf16>, vector<32x32xbf16>, vector<8x32xf32> -> vector<8x32xf32>
      %c1_259 = arith.constant 1 : index
      %c0_260 = arith.constant 0 : index
      %c0_261 = arith.constant 0 : index
      %628 = vector.load %arg8[%c1_259, %c0_260, %c0_261] : memref<4x1x32xf32, #tpu.memory_space<vmem>>, vector<1x1x32xf32>
      %629 = vector.shape_cast %628 : vector<1x1x32xf32> to vector<1x32xf32>
      %630 = vector.broadcast %629 : vector<1x32xf32> to vector<8x32xf32>
      %631 = arith.addf %627, %630 : vector<8x32xf32>
      %632 = arith.truncf %631 : vector<8x32xf32> to vector<8x32xbf16>
      %c0_262 = arith.constant 0 : index
      %c0_263 = arith.constant 0 : index
      %633 = vector.load %arg18[%c0_262, %c0_263] : memref<8x32xbf16, #tpu.memory_space<vmem>>, vector<8x32xbf16>
      tpu.vector_store %arg18[%c0_262, %c0_263], %632 {strides = array<i32>} : memref<8x32xbf16, #tpu.memory_space<vmem>>, vector<8x32xbf16>,
      %c0_264 = arith.constant 0 : index
      %c0_265 = arith.constant 0 : index
      %c0_266 = arith.constant 0 : index
      %634 = vector.load %arg7[%c0_264, %c0_265, %c0_266] : memref<4x32x32xbf16, #tpu.memory_space<vmem>>, vector<1x32x32xbf16>
      %635 = vector.shape_cast %634 : vector<1x32x32xbf16> to vector<32x32xbf16>
      %cst_267 = arith.constant dense<0.000000e+00> : vector<8x32xf32>
      %636 = tpu.matmul %622, %635, %cst_267 {dimension_numbers = #tpu.dot_dimension_numbers<[1], [0], [0], [1], [0, 0, 1, 1], [], []>} : vector<8x32xbf16>, vector<32x32xbf16>, vector<8x32xf32> -> vector<8x32xf32>
      %c0_268 = arith.constant 0 : index
      %c0_269 = arith.constant 0 : index
      %c0_270 = arith.constant 0 : index
      %637 = vector.load %arg8[%c0_268, %c0_269, %c0_270] : memref<4x1x32xf32, #tpu.memory_space<vmem>>, vector<1x1x32xf32>
      %638 = vector.shape_cast %637 : vector<1x1x32xf32> to vector<1x32xf32>
      %639 = vector.broadcast %638 : vector<1x32xf32> to vector<8x32xf32>
      %640 = arith.addf %636, %639 : vector<8x32xf32>
      %641 = arith.truncf %640 : vector<8x32xf32> to vector<8x32xbf16>
      %c0_271 = arith.constant 0 : index
      %c0_272 = arith.constant 0 : index
      %642 = vector.load %arg19[%c0_271, %c0_272] : memref<8x32xbf16, #tpu.memory_space<vmem>>, vector<8x32xbf16>
      tpu.vector_store %arg19[%c0_271, %c0_272], %641 {strides = array<i32>} : memref<8x32xbf16, #tpu.memory_space<vmem>>, vector<8x32xbf16>,
      %c1_273 = arith.constant 1 : index
      %c0_274 = arith.constant 0 : index
      %c0_275 = arith.constant 0 : index
      %643 = vector.load %arg9[%c1_273, %c0_274, %c0_275] : memref<4x32x32xbf16, #tpu.memory_space<vmem>>, vector<1x32x32xbf16>
      %644 = vector.shape_cast %643 : vector<1x32x32xbf16> to vector<32x32xbf16>
      %cst_276 = arith.constant dense<0.000000e+00> : vector<8x32xf32>
      %645 = tpu.matmul %624, %644, %cst_276 {dimension_numbers = #tpu.dot_dimension_numbers<[1], [0], [0], [1], [0, 0, 1, 1], [], []>} : vector<8x32xbf16>, vector<32x32xbf16>, vector<8x32xf32> -> vector<8x32xf32>
      %c1_277 = arith.constant 1 : index
      %c0_278 = arith.constant 0 : index
      %c0_279 = arith.constant 0 : index
      %646 = vector.load %arg10[%c1_277, %c0_278, %c0_279] : memref<4x1x32xf32, #tpu.memory_space<vmem>>, vector<1x1x32xf32>
      %647 = vector.shape_cast %646 : vector<1x1x32xf32> to vector<1x32xf32>
      %648 = vector.broadcast %647 : vector<1x32xf32> to vector<8x32xf32>
      %649 = arith.addf %645, %648 : vector<8x32xf32>
      %650 = arith.truncf %649 : vector<8x32xf32> to vector<8x32xbf16>
      %c0_280 = arith.constant 0 : index
      %c0_281 = arith.constant 0 : index
      %651 = vector.load %arg20[%c0_280, %c0_281] : memref<8x32xbf16, #tpu.memory_space<vmem>>, vector<8x32xbf16>
      tpu.vector_store %arg20[%c0_280, %c0_281], %650 {strides = array<i32>} : memref<8x32xbf16, #tpu.memory_space<vmem>>, vector<8x32xbf16>,
      %c0_282 = arith.constant 0 : index
      %c0_283 = arith.constant 0 : index
      %c0_284 = arith.constant 0 : index
      %652 = vector.load %arg9[%c0_282, %c0_283, %c0_284] : memref<4x32x32xbf16, #tpu.memory_space<vmem>>, vector<1x32x32xbf16>
      %653 = vector.shape_cast %652 : vector<1x32x32xbf16> to vector<32x32xbf16>
      %cst_285 = arith.constant dense<0.000000e+00> : vector<8x32xf32>
      %654 = tpu.matmul %624, %653, %cst_285 {dimension_numbers = #tpu.dot_dimension_numbers<[1], [0], [0], [1], [0, 0, 1, 1], [], []>} : vector<8x32xbf16>, vector<32x32xbf16>, vector<8x32xf32> -> vector<8x32xf32>
      %c0_286 = arith.constant 0 : index
      %c0_287 = arith.constant 0 : index
      %c0_288 = arith.constant 0 : index
      %655 = vector.load %arg10[%c0_286, %c0_287, %c0_288] : memref<4x1x32xf32, #tpu.memory_space<vmem>>, vector<1x1x32xf32>
      %656 = vector.shape_cast %655 : vector<1x1x32xf32> to vector<1x32xf32>
      %657 = vector.broadcast %656 : vector<1x32xf32> to vector<8x32xf32>
      %658 = arith.addf %654, %657 : vector<8x32xf32>
      %659 = arith.truncf %658 : vector<8x32xf32> to vector<8x32xbf16>
      %c0_289 = arith.constant 0 : index
      %c0_290 = arith.constant 0 : index
      %660 = vector.load %arg21[%c0_289, %c0_290] : memref<8x32xbf16, #tpu.memory_space<vmem>>, vector<8x32xbf16>
      tpu.vector_store %arg21[%c0_289, %c0_290], %659 {strides = array<i32>} : memref<8x32xbf16, #tpu.memory_space<vmem>>, vector<8x32xbf16>,
    } else {
    }
    %c0 = arith.constant 0 : index
    %c0_1 = arith.constant 0 : index
    %c0_2 = arith.constant 0 : index
    %3 = vector.load %arg2[%c0, %c0_1, %c0_2] : memref<1x8x32xf32, #tpu.memory_space<vmem>>, vector<1x8x32xf32>
    %4 = vector.shape_cast %3 : vector<1x8x32xf32> to vector<8x32xf32>
    %5 = arith.truncf %4 : vector<8x32xf32> to vector<8x32xbf16>
    %c2 = arith.constant 2 : index
    %c0_3 = arith.constant 0 : index
    %c0_4 = arith.constant 0 : index
    %6 = vector.load %arg7[%c2, %c0_3, %c0_4] : memref<4x32x32xbf16, #tpu.memory_space<vmem>>, vector<1x32x32xbf16>
    %7 = vector.shape_cast %6 : vector<1x32x32xbf16> to vector<32x32xbf16>
    %cst = arith.constant dense<0.000000e+00> : vector<8x32xf32>
    %8 = tpu.matmul %5, %7, %cst {dimension_numbers = #tpu.dot_dimension_numbers<[1], [0], [0], [1], [0, 0, 1, 1], [], []>} : vector<8x32xbf16>, vector<32x32xbf16>, vector<8x32xf32> -> vector<8x32xf32>
    %c2_5 = arith.constant 2 : index
    %c0_6 = arith.constant 0 : index
    %c0_7 = arith.constant 0 : index
    %9 = vector.load %arg8[%c2_5, %c0_6, %c0_7] : memref<4x1x32xf32, #tpu.memory_space<vmem>>, vector<1x1x32xf32>
    %10 = vector.shape_cast %9 : vector<1x1x32xf32> to vector<1x32xf32>
    %11 = vector.broadcast %10 : vector<1x32xf32> to vector<8x32xf32>
    %12 = arith.addf %8, %11 : vector<8x32xf32>
    %c0_8 = arith.constant 0 : index
    %c0_9 = arith.constant 0 : index
    %c0_10 = arith.constant 0 : index
    %13 = vector.load %arg5[%c0_8, %c0_9, %c0_10] : memref<1x8x8xbf16, #tpu.memory_space<vmem>>, vector<1x8x8xbf16>
    %14 = vector.shape_cast %13 : vector<1x8x8xbf16> to vector<8x8xbf16>
    %15 = vector.extract_strided_slice %12 {offsets = [0, 0], sizes = [8, 4], strides = [1, 1]} : vector<8x32xf32> to vector<8x4xf32>
    %16 = arith.truncf %15 : vector<8x4xf32> to vector<8x4xbf16>
    %cst_11 = arith.constant -1.000000e+30 : f32
    %17 = vector.broadcast %cst_11 : f32 to vector<8x1xf32>
    %cst_12 = arith.constant 0.000000e+00 : f32
    %18 = vector.broadcast %cst_12 : f32 to vector<8x1xf32>
    %cst_13 = arith.constant 0.000000e+00 : f32
    %19 = vector.broadcast %cst_13 : f32 to vector<8x4xf32>
    %c0_14 = arith.constant 0 : index
    %c0_15 = arith.constant 0 : index
    %20 = vector.load %arg18[%c0_14, %c0_15] : memref<8x32xbf16, #tpu.memory_space<vmem>>, vector<8x4xbf16>
    %c0_16 = arith.constant 0 : index
    %c0_17 = arith.constant 0 : index
    %21 = vector.load %arg19[%c0_16, %c0_17] : memref<8x32xbf16, #tpu.memory_space<vmem>>, vector<8x4xbf16>
    %cst_18 = arith.constant dense<0.000000e+00> : vector<8x8xf32>
    %22 = tpu.matmul %16, %20, %cst_18 {dimension_numbers = #tpu.dot_dimension_numbers<[1], [1], [0], [0], [0, 0, 1, 0], [], []>} : vector<8x4xbf16>, vector<8x4xbf16>, vector<8x8xf32> -> vector<8x8xf32>
    %23 = arith.extf %14 : vector<8x8xbf16> to vector<8x8xf32>
    %24 = arith.addf %22, %23 : vector<8x8xf32>
    %cst_19 = arith.constant dense<0xFF800000> : vector<8xf32>
    %25 = vector.multi_reduction <maximumf>, %24, %cst_19 [1] : vector<8x8xf32> to vector<8xf32>
    %26 = vector.shape_cast %25 : vector<8xf32> to vector<8x1xf32>
    %27 = arith.maximumf %17, %26 : vector<8x1xf32>
    %28 = arith.subf %17, %27 : vector<8x1xf32>
    %29 = math.exp %28 : vector<8x1xf32>
    %30 = vector.broadcast %27 : vector<8x1xf32> to vector<8x8xf32>
    %31 = arith.subf %24, %30 : vector<8x8xf32>
    %32 = math.exp %31 : vector<8x8xf32>
    %33 = arith.mulf %29, %18 : vector<8x1xf32>
    %cst_20 = arith.constant dense<0.000000e+00> : vector<8xf32>
    %34 = vector.multi_reduction <add>, %32, %cst_20 [1] : vector<8x8xf32> to vector<8xf32>
    %35 = vector.shape_cast %34 : vector<8xf32> to vector<8x1xf32>
    %36 = arith.addf %33, %35 : vector<8x1xf32>
    %37 = vector.broadcast %29 : vector<8x1xf32> to vector<8x4xf32>
    %38 = arith.mulf %37, %19 : vector<8x4xf32>
    %39 = arith.truncf %32 : vector<8x8xf32> to vector<8x8xbf16>
    %cst_21 = arith.constant dense<0.000000e+00> : vector<8x4xf32>
    %40 = tpu.matmul %39, %21, %cst_21 {dimension_numbers = #tpu.dot_dimension_numbers<[1], [0], [0], [1], [0, 0, 1, 1], [], []>} : vector<8x8xbf16>, vector<8x4xbf16>, vector<8x4xf32> -> vector<8x4xf32>
    %41 = arith.addf %38, %40 : vector<8x4xf32>
    %42 = tpu.reciprocal %36 {approx = true} : vector<8x1xf32> -> vector<8x1xf32>
    %43 = vector.broadcast %42 : vector<8x1xf32> to vector<8x4xf32>
    %44 = arith.mulf %41, %43 : vector<8x4xf32>
    %45 = vector.extract_strided_slice %12 {offsets = [0, 4], sizes = [8, 4], strides = [1, 1]} : vector<8x32xf32> to vector<8x4xf32>
    %46 = arith.truncf %45 : vector<8x4xf32> to vector<8x4xbf16>
    %cst_22 = arith.constant -1.000000e+30 : f32
    %47 = vector.broadcast %cst_22 : f32 to vector<8x1xf32>
    %cst_23 = arith.constant 0.000000e+00 : f32
    %48 = vector.broadcast %cst_23 : f32 to vector<8x1xf32>
    %cst_24 = arith.constant 0.000000e+00 : f32
    %49 = vector.broadcast %cst_24 : f32 to vector<8x4xf32>
    %c0_25 = arith.constant 0 : index
    %c4 = arith.constant 4 : index
    %50 = vector.load %arg18[%c0_25, %c4] : memref<8x32xbf16, #tpu.memory_space<vmem>>, vector<8x4xbf16>
    %c0_26 = arith.constant 0 : index
    %c4_27 = arith.constant 4 : index
    %51 = vector.load %arg19[%c0_26, %c4_27] : memref<8x32xbf16, #tpu.memory_space<vmem>>, vector<8x4xbf16>
    %cst_28 = arith.constant dense<0.000000e+00> : vector<8x8xf32>
    %52 = tpu.matmul %46, %50, %cst_28 {dimension_numbers = #tpu.dot_dimension_numbers<[1], [1], [0], [0], [0, 0, 1, 0], [], []>} : vector<8x4xbf16>, vector<8x4xbf16>, vector<8x8xf32> -> vector<8x8xf32>
    %53 = arith.extf %14 : vector<8x8xbf16> to vector<8x8xf32>
    %54 = arith.addf %52, %53 : vector<8x8xf32>
    %cst_29 = arith.constant dense<0xFF800000> : vector<8xf32>
    %55 = vector.multi_reduction <maximumf>, %54, %cst_29 [1] : vector<8x8xf32> to vector<8xf32>
    %56 = vector.shape_cast %55 : vector<8xf32> to vector<8x1xf32>
    %57 = arith.maximumf %47, %56 : vector<8x1xf32>
    %58 = arith.subf %47, %57 : vector<8x1xf32>
    %59 = math.exp %58 : vector<8x1xf32>
    %60 = vector.broadcast %57 : vector<8x1xf32> to vector<8x8xf32>
    %61 = arith.subf %54, %60 : vector<8x8xf32>
    %62 = math.exp %61 : vector<8x8xf32>
    %63 = arith.mulf %59, %48 : vector<8x1xf32>
    %cst_30 = arith.constant dense<0.000000e+00> : vector<8xf32>
    %64 = vector.multi_reduction <add>, %62, %cst_30 [1] : vector<8x8xf32> to vector<8xf32>
    %65 = vector.shape_cast %64 : vector<8xf32> to vector<8x1xf32>
    %66 = arith.addf %63, %65 : vector<8x1xf32>
    %67 = vector.broadcast %59 : vector<8x1xf32> to vector<8x4xf32>
    %68 = arith.mulf %67, %49 : vector<8x4xf32>
    %69 = arith.truncf %62 : vector<8x8xf32> to vector<8x8xbf16>
    %cst_31 = arith.constant dense<0.000000e+00> : vector<8x4xf32>
    %70 = tpu.matmul %69, %51, %cst_31 {dimension_numbers = #tpu.dot_dimension_numbers<[1], [0], [0], [1], [0, 0, 1, 1], [], []>} : vector<8x8xbf16>, vector<8x4xbf16>, vector<8x4xf32> -> vector<8x4xf32>
    %71 = arith.addf %68, %70 : vector<8x4xf32>
    %72 = tpu.reciprocal %66 {approx = true} : vector<8x1xf32> -> vector<8x1xf32>
    %73 = vector.broadcast %72 : vector<8x1xf32> to vector<8x4xf32>
    %74 = arith.mulf %71, %73 : vector<8x4xf32>
    %75 = vector.extract_strided_slice %12 {offsets = [0, 8], sizes = [8, 4], strides = [1, 1]} : vector<8x32xf32> to vector<8x4xf32>
    %76 = arith.truncf %75 : vector<8x4xf32> to vector<8x4xbf16>
    %cst_32 = arith.constant -1.000000e+30 : f32
    %77 = vector.broadcast %cst_32 : f32 to vector<8x1xf32>
    %cst_33 = arith.constant 0.000000e+00 : f32
    %78 = vector.broadcast %cst_33 : f32 to vector<8x1xf32>
    %cst_34 = arith.constant 0.000000e+00 : f32
    %79 = vector.broadcast %cst_34 : f32 to vector<8x4xf32>
    %c0_35 = arith.constant 0 : index
    %c8 = arith.constant 8 : index
    %80 = vector.load %arg18[%c0_35, %c8] : memref<8x32xbf16, #tpu.memory_space<vmem>>, vector<8x4xbf16>
    %c0_36 = arith.constant 0 : index
    %c8_37 = arith.constant 8 : index
    %81 = vector.load %arg19[%c0_36, %c8_37] : memref<8x32xbf16, #tpu.memory_space<vmem>>, vector<8x4xbf16>
    %cst_38 = arith.constant dense<0.000000e+00> : vector<8x8xf32>
    %82 = tpu.matmul %76, %80, %cst_38 {dimension_numbers = #tpu.dot_dimension_numbers<[1], [1], [0], [0], [0, 0, 1, 0], [], []>} : vector<8x4xbf16>, vector<8x4xbf16>, vector<8x8xf32> -> vector<8x8xf32>
    %83 = arith.extf %14 : vector<8x8xbf16> to vector<8x8xf32>
    %84 = arith.addf %82, %83 : vector<8x8xf32>
    %cst_39 = arith.constant dense<0xFF800000> : vector<8xf32>
    %85 = vector.multi_reduction <maximumf>, %84, %cst_39 [1] : vector<8x8xf32> to vector<8xf32>
    %86 = vector.shape_cast %85 : vector<8xf32> to vector<8x1xf32>
    %87 = arith.maximumf %77, %86 : vector<8x1xf32>
    %88 = arith.subf %77, %87 : vector<8x1xf32>
    %89 = math.exp %88 : vector<8x1xf32>
    %90 = vector.broadcast %87 : vector<8x1xf32> to vector<8x8xf32>
    %91 = arith.subf %84, %90 : vector<8x8xf32>
    %92 = math.exp %91 : vector<8x8xf32>
    %93 = arith.mulf %89, %78 : vector<8x1xf32>
    %cst_40 = arith.constant dense<0.000000e+00> : vector<8xf32>
    %94 = vector.multi_reduction <add>, %92, %cst_40 [1] : vector<8x8xf32> to vector<8xf32>
    %95 = vector.shape_cast %94 : vector<8xf32> to vector<8x1xf32>
    %96 = arith.addf %93, %95 : vector<8x1xf32>
    %97 = vector.broadcast %89 : vector<8x1xf32> to vector<8x4xf32>
    %98 = arith.mulf %97, %79 : vector<8x4xf32>
    %99 = arith.truncf %92 : vector<8x8xf32> to vector<8x8xbf16>
    %cst_41 = arith.constant dense<0.000000e+00> : vector<8x4xf32>
    %100 = tpu.matmul %99, %81, %cst_41 {dimension_numbers = #tpu.dot_dimension_numbers<[1], [0], [0], [1], [0, 0, 1, 1], [], []>} : vector<8x8xbf16>, vector<8x4xbf16>, vector<8x4xf32> -> vector<8x4xf32>
    %101 = arith.addf %98, %100 : vector<8x4xf32>
    %102 = tpu.reciprocal %96 {approx = true} : vector<8x1xf32> -> vector<8x1xf32>
    %103 = vector.broadcast %102 : vector<8x1xf32> to vector<8x4xf32>
    %104 = arith.mulf %101, %103 : vector<8x4xf32>
    %105 = vector.extract_strided_slice %12 {offsets = [0, 12], sizes = [8, 4], strides = [1, 1]} : vector<8x32xf32> to vector<8x4xf32>
    %106 = arith.truncf %105 : vector<8x4xf32> to vector<8x4xbf16>
    %cst_42 = arith.constant -1.000000e+30 : f32
    %107 = vector.broadcast %cst_42 : f32 to vector<8x1xf32>
    %cst_43 = arith.constant 0.000000e+00 : f32
    %108 = vector.broadcast %cst_43 : f32 to vector<8x1xf32>
    %cst_44 = arith.constant 0.000000e+00 : f32
    %109 = vector.broadcast %cst_44 : f32 to vector<8x4xf32>
    %c0_45 = arith.constant 0 : index
    %c12 = arith.constant 12 : index
    %110 = vector.load %arg18[%c0_45, %c12] : memref<8x32xbf16, #tpu.memory_space<vmem>>, vector<8x4xbf16>
    %c0_46 = arith.constant 0 : index
    %c12_47 = arith.constant 12 : index
    %111 = vector.load %arg19[%c0_46, %c12_47] : memref<8x32xbf16, #tpu.memory_space<vmem>>, vector<8x4xbf16>
    %cst_48 = arith.constant dense<0.000000e+00> : vector<8x8xf32>
    %112 = tpu.matmul %106, %110, %cst_48 {dimension_numbers = #tpu.dot_dimension_numbers<[1], [1], [0], [0], [0, 0, 1, 0], [], []>} : vector<8x4xbf16>, vector<8x4xbf16>, vector<8x8xf32> -> vector<8x8xf32>
    %113 = arith.extf %14 : vector<8x8xbf16> to vector<8x8xf32>
    %114 = arith.addf %112, %113 : vector<8x8xf32>
    %cst_49 = arith.constant dense<0xFF800000> : vector<8xf32>
    %115 = vector.multi_reduction <maximumf>, %114, %cst_49 [1] : vector<8x8xf32> to vector<8xf32>
    %116 = vector.shape_cast %115 : vector<8xf32> to vector<8x1xf32>
    %117 = arith.maximumf %107, %116 : vector<8x1xf32>
    %118 = arith.subf %107, %117 : vector<8x1xf32>
    %119 = math.exp %118 : vector<8x1xf32>
    %120 = vector.broadcast %117 : vector<8x1xf32> to vector<8x8xf32>
    %121 = arith.subf %114, %120 : vector<8x8xf32>
    %122 = math.exp %121 : vector<8x8xf32>
    %123 = arith.mulf %119, %108 : vector<8x1xf32>
    %cst_50 = arith.constant dense<0.000000e+00> : vector<8xf32>
    %124 = vector.multi_reduction <add>, %122, %cst_50 [1] : vector<8x8xf32> to vector<8xf32>
    %125 = vector.shape_cast %124 : vector<8xf32> to vector<8x1xf32>
    %126 = arith.addf %123, %125 : vector<8x1xf32>
    %127 = vector.broadcast %119 : vector<8x1xf32> to vector<8x4xf32>
    %128 = arith.mulf %127, %109 : vector<8x4xf32>
    %129 = arith.truncf %122 : vector<8x8xf32> to vector<8x8xbf16>
    %cst_51 = arith.constant dense<0.000000e+00> : vector<8x4xf32>
    %130 = tpu.matmul %129, %111, %cst_51 {dimension_numbers = #tpu.dot_dimension_numbers<[1], [0], [0], [1], [0, 0, 1, 1], [], []>} : vector<8x8xbf16>, vector<8x4xbf16>, vector<8x4xf32> -> vector<8x4xf32>
    %131 = arith.addf %128, %130 : vector<8x4xf32>
    %132 = tpu.reciprocal %126 {approx = true} : vector<8x1xf32> -> vector<8x1xf32>
    %133 = vector.broadcast %132 : vector<8x1xf32> to vector<8x4xf32>
    %134 = arith.mulf %131, %133 : vector<8x4xf32>
    %135 = vector.extract_strided_slice %12 {offsets = [0, 16], sizes = [8, 4], strides = [1, 1]} : vector<8x32xf32> to vector<8x4xf32>
    %136 = arith.truncf %135 : vector<8x4xf32> to vector<8x4xbf16>
    %cst_52 = arith.constant -1.000000e+30 : f32
    %137 = vector.broadcast %cst_52 : f32 to vector<8x1xf32>
    %cst_53 = arith.constant 0.000000e+00 : f32
    %138 = vector.broadcast %cst_53 : f32 to vector<8x1xf32>
    %cst_54 = arith.constant 0.000000e+00 : f32
    %139 = vector.broadcast %cst_54 : f32 to vector<8x4xf32>
    %c0_55 = arith.constant 0 : index
    %c16 = arith.constant 16 : index
    %140 = vector.load %arg18[%c0_55, %c16] : memref<8x32xbf16, #tpu.memory_space<vmem>>, vector<8x4xbf16>
    %c0_56 = arith.constant 0 : index
    %c16_57 = arith.constant 16 : index
    %141 = vector.load %arg19[%c0_56, %c16_57] : memref<8x32xbf16, #tpu.memory_space<vmem>>, vector<8x4xbf16>
    %cst_58 = arith.constant dense<0.000000e+00> : vector<8x8xf32>
    %142 = tpu.matmul %136, %140, %cst_58 {dimension_numbers = #tpu.dot_dimension_numbers<[1], [1], [0], [0], [0, 0, 1, 0], [], []>} : vector<8x4xbf16>, vector<8x4xbf16>, vector<8x8xf32> -> vector<8x8xf32>
    %143 = arith.extf %14 : vector<8x8xbf16> to vector<8x8xf32>
    %144 = arith.addf %142, %143 : vector<8x8xf32>
    %cst_59 = arith.constant dense<0xFF800000> : vector<8xf32>
    %145 = vector.multi_reduction <maximumf>, %144, %cst_59 [1] : vector<8x8xf32> to vector<8xf32>
    %146 = vector.shape_cast %145 : vector<8xf32> to vector<8x1xf32>
    %147 = arith.maximumf %137, %146 : vector<8x1xf32>
    %148 = arith.subf %137, %147 : vector<8x1xf32>
    %149 = math.exp %148 : vector<8x1xf32>
    %150 = vector.broadcast %147 : vector<8x1xf32> to vector<8x8xf32>
    %151 = arith.subf %144, %150 : vector<8x8xf32>
    %152 = math.exp %151 : vector<8x8xf32>
    %153 = arith.mulf %149, %138 : vector<8x1xf32>
    %cst_60 = arith.constant dense<0.000000e+00> : vector<8xf32>
    %154 = vector.multi_reduction <add>, %152, %cst_60 [1] : vector<8x8xf32> to vector<8xf32>
    %155 = vector.shape_cast %154 : vector<8xf32> to vector<8x1xf32>
    %156 = arith.addf %153, %155 : vector<8x1xf32>
    %157 = vector.broadcast %149 : vector<8x1xf32> to vector<8x4xf32>
    %158 = arith.mulf %157, %139 : vector<8x4xf32>
    %159 = arith.truncf %152 : vector<8x8xf32> to vector<8x8xbf16>
    %cst_61 = arith.constant dense<0.000000e+00> : vector<8x4xf32>
    %160 = tpu.matmul %159, %141, %cst_61 {dimension_numbers = #tpu.dot_dimension_numbers<[1], [0], [0], [1], [0, 0, 1, 1], [], []>} : vector<8x8xbf16>, vector<8x4xbf16>, vector<8x4xf32> -> vector<8x4xf32>
    %161 = arith.addf %158, %160 : vector<8x4xf32>
    %162 = tpu.reciprocal %156 {approx = true} : vector<8x1xf32> -> vector<8x1xf32>
    %163 = vector.broadcast %162 : vector<8x1xf32> to vector<8x4xf32>
    %164 = arith.mulf %161, %163 : vector<8x4xf32>
    %165 = vector.extract_strided_slice %12 {offsets = [0, 20], sizes = [8, 4], strides = [1, 1]} : vector<8x32xf32> to vector<8x4xf32>
    %166 = arith.truncf %165 : vector<8x4xf32> to vector<8x4xbf16>
    %cst_62 = arith.constant -1.000000e+30 : f32
    %167 = vector.broadcast %cst_62 : f32 to vector<8x1xf32>
    %cst_63 = arith.constant 0.000000e+00 : f32
    %168 = vector.broadcast %cst_63 : f32 to vector<8x1xf32>
    %cst_64 = arith.constant 0.000000e+00 : f32
    %169 = vector.broadcast %cst_64 : f32 to vector<8x4xf32>
    %c0_65 = arith.constant 0 : index
    %c20 = arith.constant 20 : index
    %170 = vector.load %arg18[%c0_65, %c20] : memref<8x32xbf16, #tpu.memory_space<vmem>>, vector<8x4xbf16>
    %c0_66 = arith.constant 0 : index
    %c20_67 = arith.constant 20 : index
    %171 = vector.load %arg19[%c0_66, %c20_67] : memref<8x32xbf16, #tpu.memory_space<vmem>>, vector<8x4xbf16>
    %cst_68 = arith.constant dense<0.000000e+00> : vector<8x8xf32>
    %172 = tpu.matmul %166, %170, %cst_68 {dimension_numbers = #tpu.dot_dimension_numbers<[1], [1], [0], [0], [0, 0, 1, 0], [], []>} : vector<8x4xbf16>, vector<8x4xbf16>, vector<8x8xf32> -> vector<8x8xf32>
    %173 = arith.extf %14 : vector<8x8xbf16> to vector<8x8xf32>
    %174 = arith.addf %172, %173 : vector<8x8xf32>
    %cst_69 = arith.constant dense<0xFF800000> : vector<8xf32>
    %175 = vector.multi_reduction <maximumf>, %174, %cst_69 [1] : vector<8x8xf32> to vector<8xf32>
    %176 = vector.shape_cast %175 : vector<8xf32> to vector<8x1xf32>
    %177 = arith.maximumf %167, %176 : vector<8x1xf32>
    %178 = arith.subf %167, %177 : vector<8x1xf32>
    %179 = math.exp %178 : vector<8x1xf32>
    %180 = vector.broadcast %177 : vector<8x1xf32> to vector<8x8xf32>
    %181 = arith.subf %174, %180 : vector<8x8xf32>
    %182 = math.exp %181 : vector<8x8xf32>
    %183 = arith.mulf %179, %168 : vector<8x1xf32>
    %cst_70 = arith.constant dense<0.000000e+00> : vector<8xf32>
    %184 = vector.multi_reduction <add>, %182, %cst_70 [1] : vector<8x8xf32> to vector<8xf32>
    %185 = vector.shape_cast %184 : vector<8xf32> to vector<8x1xf32>
    %186 = arith.addf %183, %185 : vector<8x1xf32>
    %187 = vector.broadcast %179 : vector<8x1xf32> to vector<8x4xf32>
    %188 = arith.mulf %187, %169 : vector<8x4xf32>
    %189 = arith.truncf %182 : vector<8x8xf32> to vector<8x8xbf16>
    %cst_71 = arith.constant dense<0.000000e+00> : vector<8x4xf32>
    %190 = tpu.matmul %189, %171, %cst_71 {dimension_numbers = #tpu.dot_dimension_numbers<[1], [0], [0], [1], [0, 0, 1, 1], [], []>} : vector<8x8xbf16>, vector<8x4xbf16>, vector<8x4xf32> -> vector<8x4xf32>
    %191 = arith.addf %188, %190 : vector<8x4xf32>
    %192 = tpu.reciprocal %186 {approx = true} : vector<8x1xf32> -> vector<8x1xf32>
    %193 = vector.broadcast %192 : vector<8x1xf32> to vector<8x4xf32>
    %194 = arith.mulf %191, %193 : vector<8x4xf32>
    %195 = vector.extract_strided_slice %12 {offsets = [0, 24], sizes = [8, 4], strides = [1, 1]} : vector<8x32xf32> to vector<8x4xf32>
    %196 = arith.truncf %195 : vector<8x4xf32> to vector<8x4xbf16>
    %cst_72 = arith.constant -1.000000e+30 : f32
    %197 = vector.broadcast %cst_72 : f32 to vector<8x1xf32>
    %cst_73 = arith.constant 0.000000e+00 : f32
    %198 = vector.broadcast %cst_73 : f32 to vector<8x1xf32>
    %cst_74 = arith.constant 0.000000e+00 : f32
    %199 = vector.broadcast %cst_74 : f32 to vector<8x4xf32>
    %c0_75 = arith.constant 0 : index
    %c24 = arith.constant 24 : index
    %200 = vector.load %arg18[%c0_75, %c24] : memref<8x32xbf16, #tpu.memory_space<vmem>>, vector<8x4xbf16>
    %c0_76 = arith.constant 0 : index
    %c24_77 = arith.constant 24 : index
    %201 = vector.load %arg19[%c0_76, %c24_77] : memref<8x32xbf16, #tpu.memory_space<vmem>>, vector<8x4xbf16>
    %cst_78 = arith.constant dense<0.000000e+00> : vector<8x8xf32>
    %202 = tpu.matmul %196, %200, %cst_78 {dimension_numbers = #tpu.dot_dimension_numbers<[1], [1], [0], [0], [0, 0, 1, 0], [], []>} : vector<8x4xbf16>, vector<8x4xbf16>, vector<8x8xf32> -> vector<8x8xf32>
    %203 = arith.extf %14 : vector<8x8xbf16> to vector<8x8xf32>
    %204 = arith.addf %202, %203 : vector<8x8xf32>
    %cst_79 = arith.constant dense<0xFF800000> : vector<8xf32>
    %205 = vector.multi_reduction <maximumf>, %204, %cst_79 [1] : vector<8x8xf32> to vector<8xf32>
    %206 = vector.shape_cast %205 : vector<8xf32> to vector<8x1xf32>
    %207 = arith.maximumf %197, %206 : vector<8x1xf32>
    %208 = arith.subf %197, %207 : vector<8x1xf32>
    %209 = math.exp %208 : vector<8x1xf32>
    %210 = vector.broadcast %207 : vector<8x1xf32> to vector<8x8xf32>
    %211 = arith.subf %204, %210 : vector<8x8xf32>
    %212 = math.exp %211 : vector<8x8xf32>
    %213 = arith.mulf %209, %198 : vector<8x1xf32>
    %cst_80 = arith.constant dense<0.000000e+00> : vector<8xf32>
    %214 = vector.multi_reduction <add>, %212, %cst_80 [1] : vector<8x8xf32> to vector<8xf32>
    %215 = vector.shape_cast %214 : vector<8xf32> to vector<8x1xf32>
    %216 = arith.addf %213, %215 : vector<8x1xf32>
    %217 = vector.broadcast %209 : vector<8x1xf32> to vector<8x4xf32>
    %218 = arith.mulf %217, %199 : vector<8x4xf32>
    %219 = arith.truncf %212 : vector<8x8xf32> to vector<8x8xbf16>
    %cst_81 = arith.constant dense<0.000000e+00> : vector<8x4xf32>
    %220 = tpu.matmul %219, %201, %cst_81 {dimension_numbers = #tpu.dot_dimension_numbers<[1], [0], [0], [1], [0, 0, 1, 1], [], []>} : vector<8x8xbf16>, vector<8x4xbf16>, vector<8x4xf32> -> vector<8x4xf32>
    %221 = arith.addf %218, %220 : vector<8x4xf32>
    %222 = tpu.reciprocal %216 {approx = true} : vector<8x1xf32> -> vector<8x1xf32>
    %223 = vector.broadcast %222 : vector<8x1xf32> to vector<8x4xf32>
    %224 = arith.mulf %221, %223 : vector<8x4xf32>
    %225 = vector.extract_strided_slice %12 {offsets = [0, 28], sizes = [8, 4], strides = [1, 1]} : vector<8x32xf32> to vector<8x4xf32>
    %226 = arith.truncf %225 : vector<8x4xf32> to vector<8x4xbf16>
    %cst_82 = arith.constant -1.000000e+30 : f32
    %227 = vector.broadcast %cst_82 : f32 to vector<8x1xf32>
    %cst_83 = arith.constant 0.000000e+00 : f32
    %228 = vector.broadcast %cst_83 : f32 to vector<8x1xf32>
    %cst_84 = arith.constant 0.000000e+00 : f32
    %229 = vector.broadcast %cst_84 : f32 to vector<8x4xf32>
    %c0_85 = arith.constant 0 : index
    %c28 = arith.constant 28 : index
    %230 = vector.load %arg18[%c0_85, %c28] : memref<8x32xbf16, #tpu.memory_space<vmem>>, vector<8x4xbf16>
    %c0_86 = arith.constant 0 : index
    %c28_87 = arith.constant 28 : index
    %231 = vector.load %arg19[%c0_86, %c28_87] : memref<8x32xbf16, #tpu.memory_space<vmem>>, vector<8x4xbf16>
    %cst_88 = arith.constant dense<0.000000e+00> : vector<8x8xf32>
    %232 = tpu.matmul %226, %230, %cst_88 {dimension_numbers = #tpu.dot_dimension_numbers<[1], [1], [0], [0], [0, 0, 1, 0], [], []>} : vector<8x4xbf16>, vector<8x4xbf16>, vector<8x8xf32> -> vector<8x8xf32>
    %233 = arith.extf %14 : vector<8x8xbf16> to vector<8x8xf32>
    %234 = arith.addf %232, %233 : vector<8x8xf32>
    %cst_89 = arith.constant dense<0xFF800000> : vector<8xf32>
    %235 = vector.multi_reduction <maximumf>, %234, %cst_89 [1] : vector<8x8xf32> to vector<8xf32>
    %236 = vector.shape_cast %235 : vector<8xf32> to vector<8x1xf32>
    %237 = arith.maximumf %227, %236 : vector<8x1xf32>
    %238 = arith.subf %227, %237 : vector<8x1xf32>
    %239 = math.exp %238 : vector<8x1xf32>
    %240 = vector.broadcast %237 : vector<8x1xf32> to vector<8x8xf32>
    %241 = arith.subf %234, %240 : vector<8x8xf32>
    %242 = math.exp %241 : vector<8x8xf32>
    %243 = arith.mulf %239, %228 : vector<8x1xf32>
    %cst_90 = arith.constant dense<0.000000e+00> : vector<8xf32>
    %244 = vector.multi_reduction <add>, %242, %cst_90 [1] : vector<8x8xf32> to vector<8xf32>
    %245 = vector.shape_cast %244 : vector<8xf32> to vector<8x1xf32>
    %246 = arith.addf %243, %245 : vector<8x1xf32>
    %247 = vector.broadcast %239 : vector<8x1xf32> to vector<8x4xf32>
    %248 = arith.mulf %247, %229 : vector<8x4xf32>
    %249 = arith.truncf %242 : vector<8x8xf32> to vector<8x8xbf16>
    %cst_91 = arith.constant dense<0.000000e+00> : vector<8x4xf32>
    %250 = tpu.matmul %249, %231, %cst_91 {dimension_numbers = #tpu.dot_dimension_numbers<[1], [0], [0], [1], [0, 0, 1, 1], [], []>} : vector<8x8xbf16>, vector<8x4xbf16>, vector<8x4xf32> -> vector<8x4xf32>
    %251 = arith.addf %248, %250 : vector<8x4xf32>
    %252 = tpu.reciprocal %246 {approx = true} : vector<8x1xf32> -> vector<8x1xf32>
    %253 = vector.broadcast %252 : vector<8x1xf32> to vector<8x4xf32>
    %254 = arith.mulf %251, %253 : vector<8x4xf32>
    %255 = tpu.concatenate %44, %74, %104, %134, %164, %194, %224, %254 in 1 : vector<8x4xf32>, vector<8x4xf32>, vector<8x4xf32>, vector<8x4xf32>, vector<8x4xf32>, vector<8x4xf32>, vector<8x4xf32>, vector<8x4xf32> -> vector<8x32xf32>
    %256 = arith.truncf %255 : vector<8x32xf32> to vector<8x32xbf16>
    %c3 = arith.constant 3 : index
    %c0_92 = arith.constant 0 : index
    %c0_93 = arith.constant 0 : index
    %257 = vector.load %arg7[%c3, %c0_92, %c0_93] : memref<4x32x32xbf16, #tpu.memory_space<vmem>>, vector<1x32x32xbf16>
    %258 = vector.shape_cast %257 : vector<1x32x32xbf16> to vector<32x32xbf16>
    %cst_94 = arith.constant dense<0.000000e+00> : vector<8x32xf32>
    %259 = tpu.matmul %256, %258, %cst_94 {dimension_numbers = #tpu.dot_dimension_numbers<[1], [0], [0], [1], [0, 0, 1, 1], [], []>} : vector<8x32xbf16>, vector<32x32xbf16>, vector<8x32xf32> -> vector<8x32xf32>
    %c3_95 = arith.constant 3 : index
    %c0_96 = arith.constant 0 : index
    %c0_97 = arith.constant 0 : index
    %260 = vector.load %arg8[%c3_95, %c0_96, %c0_97] : memref<4x1x32xf32, #tpu.memory_space<vmem>>, vector<1x1x32xf32>
    %261 = vector.shape_cast %260 : vector<1x1x32xf32> to vector<1x32xf32>
    %262 = vector.broadcast %261 : vector<1x32xf32> to vector<8x32xf32>
    %263 = arith.addf %259, %262 : vector<8x32xf32>
    %264 = arith.addf %4, %263 : vector<8x32xf32>
    %c0_98 = arith.constant 0 : index
    %c0_99 = arith.constant 0 : index
    %c0_100 = arith.constant 0 : index
    %265 = vector.load %arg15[%c0_98, %c0_99, %c0_100] : memref<3x1x32xf32, #tpu.memory_space<vmem>>, vector<1x1x32xf32>
    %266 = vector.shape_cast %265 : vector<1x1x32xf32> to vector<1x32xf32>
    %c0_101 = arith.constant 0 : index
    %c0_102 = arith.constant 0 : index
    %c0_103 = arith.constant 0 : index
    %267 = vector.load %arg16[%c0_101, %c0_102, %c0_103] : memref<3x1x32xf32, #tpu.memory_space<vmem>>, vector<1x1x32xf32>
    %268 = vector.shape_cast %267 : vector<1x1x32xf32> to vector<1x32xf32>
    %cst_104 = arith.constant dense<0.000000e+00> : vector<8xf32>
    %269 = vector.multi_reduction <add>, %264, %cst_104 [1] : vector<8x32xf32> to vector<8xf32>
    %270 = vector.shape_cast %269 : vector<8xf32> to vector<8x1xf32>
    %cst_105 = arith.constant 3.200000e+01 : f32
    %271 = vector.broadcast %cst_105 : f32 to vector<8x1xf32>
    %272 = arith.divf %270, %271 : vector<8x1xf32>
    %273 = vector.broadcast %272 : vector<8x1xf32> to vector<8x32xf32>
    %274 = arith.subf %264, %273 : vector<8x32xf32>
    %275 = arith.mulf %274, %274 : vector<8x32xf32>
    %cst_106 = arith.constant dense<0.000000e+00> : vector<8xf32>
    %276 = vector.multi_reduction <add>, %275, %cst_106 [1] : vector<8x32xf32> to vector<8xf32>
    %277 = vector.shape_cast %276 : vector<8xf32> to vector<8x1xf32>
    %cst_107 = arith.constant 3.200000e+01 : f32
    %278 = vector.broadcast %cst_107 : f32 to vector<8x1xf32>
    %279 = arith.divf %277, %278 : vector<8x1xf32>
    %280 = vector.broadcast %272 : vector<8x1xf32> to vector<8x32xf32>
    %281 = arith.subf %264, %280 : vector<8x32xf32>
    %cst_108 = arith.constant 9.99999974E-6 : f32
    %282 = vector.broadcast %cst_108 : f32 to vector<8x1xf32>
    %283 = arith.addf %279, %282 : vector<8x1xf32>
    %284 = math.rsqrt %283 : vector<8x1xf32>
    %285 = vector.broadcast %284 : vector<8x1xf32> to vector<8x32xf32>
    %286 = arith.mulf %281, %285 : vector<8x32xf32>
    %287 = vector.broadcast %266 : vector<1x32xf32> to vector<8x32xf32>
    %288 = arith.mulf %286, %287 : vector<8x32xf32>
    %289 = vector.broadcast %268 : vector<1x32xf32> to vector<8x32xf32>
    %290 = arith.addf %288, %289 : vector<8x32xf32>
    %291 = arith.truncf %290 : vector<8x32xf32> to vector<8x32xbf16>
    %c2_109 = arith.constant 2 : index
    %c0_110 = arith.constant 0 : index
    %c0_111 = arith.constant 0 : index
    %292 = vector.load %arg9[%c2_109, %c0_110, %c0_111] : memref<4x32x32xbf16, #tpu.memory_space<vmem>>, vector<1x32x32xbf16>
    %293 = vector.shape_cast %292 : vector<1x32x32xbf16> to vector<32x32xbf16>
    %cst_112 = arith.constant dense<0.000000e+00> : vector<8x32xf32>
    %294 = tpu.matmul %291, %293, %cst_112 {dimension_numbers = #tpu.dot_dimension_numbers<[1], [0], [0], [1], [0, 0, 1, 1], [], []>} : vector<8x32xbf16>, vector<32x32xbf16>, vector<8x32xf32> -> vector<8x32xf32>
    %c2_113 = arith.constant 2 : index
    %c0_114 = arith.constant 0 : index
    %c0_115 = arith.constant 0 : index
    %295 = vector.load %arg10[%c2_113, %c0_114, %c0_115] : memref<4x1x32xf32, #tpu.memory_space<vmem>>, vector<1x1x32xf32>
    %296 = vector.shape_cast %295 : vector<1x1x32xf32> to vector<1x32xf32>
    %297 = vector.broadcast %296 : vector<1x32xf32> to vector<8x32xf32>
    %298 = arith.addf %294, %297 : vector<8x32xf32>
    %c0_116 = arith.constant 0 : index
    %c0_117 = arith.constant 0 : index
    %c0_118 = arith.constant 0 : index
    %299 = vector.load %arg6[%c0_116, %c0_117, %c0_118] : memref<1x8x8xbf16, #tpu.memory_space<vmem>>, vector<1x8x8xbf16>
    %300 = vector.shape_cast %299 : vector<1x8x8xbf16> to vector<8x8xbf16>
    %301 = vector.extract_strided_slice %298 {offsets = [0, 0], sizes = [8, 4], strides = [1, 1]} : vector<8x32xf32> to vector<8x4xf32>
    %302 = arith.truncf %301 : vector<8x4xf32> to vector<8x4xbf16>
    %cst_119 = arith.constant -1.000000e+30 : f32
    %303 = vector.broadcast %cst_119 : f32 to vector<8x1xf32>
    %cst_120 = arith.constant 0.000000e+00 : f32
    %304 = vector.broadcast %cst_120 : f32 to vector<8x1xf32>
    %cst_121 = arith.constant 0.000000e+00 : f32
    %305 = vector.broadcast %cst_121 : f32 to vector<8x4xf32>
    %c0_122 = arith.constant 0 : index
    %c0_123 = arith.constant 0 : index
    %306 = vector.load %arg20[%c0_122, %c0_123] : memref<8x32xbf16, #tpu.memory_space<vmem>>, vector<8x4xbf16>
    %c0_124 = arith.constant 0 : index
    %c0_125 = arith.constant 0 : index
    %307 = vector.load %arg21[%c0_124, %c0_125] : memref<8x32xbf16, #tpu.memory_space<vmem>>, vector<8x4xbf16>
    %cst_126 = arith.constant dense<0.000000e+00> : vector<8x8xf32>
    %308 = tpu.matmul %302, %306, %cst_126 {dimension_numbers = #tpu.dot_dimension_numbers<[1], [1], [0], [0], [0, 0, 1, 0], [], []>} : vector<8x4xbf16>, vector<8x4xbf16>, vector<8x8xf32> -> vector<8x8xf32>
    %309 = arith.extf %300 : vector<8x8xbf16> to vector<8x8xf32>
    %310 = arith.addf %308, %309 : vector<8x8xf32>
    %cst_127 = arith.constant dense<0xFF800000> : vector<8xf32>
    %311 = vector.multi_reduction <maximumf>, %310, %cst_127 [1] : vector<8x8xf32> to vector<8xf32>
    %312 = vector.shape_cast %311 : vector<8xf32> to vector<8x1xf32>
    %313 = arith.maximumf %303, %312 : vector<8x1xf32>
    %314 = arith.subf %303, %313 : vector<8x1xf32>
    %315 = math.exp %314 : vector<8x1xf32>
    %316 = vector.broadcast %313 : vector<8x1xf32> to vector<8x8xf32>
    %317 = arith.subf %310, %316 : vector<8x8xf32>
    %318 = math.exp %317 : vector<8x8xf32>
    %319 = arith.mulf %315, %304 : vector<8x1xf32>
    %cst_128 = arith.constant dense<0.000000e+00> : vector<8xf32>
    %320 = vector.multi_reduction <add>, %318, %cst_128 [1] : vector<8x8xf32> to vector<8xf32>
    %321 = vector.shape_cast %320 : vector<8xf32> to vector<8x1xf32>
    %322 = arith.addf %319, %321 : vector<8x1xf32>
    %323 = vector.broadcast %315 : vector<8x1xf32> to vector<8x4xf32>
    %324 = arith.mulf %323, %305 : vector<8x4xf32>
    %325 = arith.truncf %318 : vector<8x8xf32> to vector<8x8xbf16>
    %cst_129 = arith.constant dense<0.000000e+00> : vector<8x4xf32>
    %326 = tpu.matmul %325, %307, %cst_129 {dimension_numbers = #tpu.dot_dimension_numbers<[1], [0], [0], [1], [0, 0, 1, 1], [], []>} : vector<8x8xbf16>, vector<8x4xbf16>, vector<8x4xf32> -> vector<8x4xf32>
    %327 = arith.addf %324, %326 : vector<8x4xf32>
    %328 = tpu.reciprocal %322 {approx = true} : vector<8x1xf32> -> vector<8x1xf32>
    %329 = vector.broadcast %328 : vector<8x1xf32> to vector<8x4xf32>
    %330 = arith.mulf %327, %329 : vector<8x4xf32>
    %331 = vector.extract_strided_slice %298 {offsets = [0, 4], sizes = [8, 4], strides = [1, 1]} : vector<8x32xf32> to vector<8x4xf32>
    %332 = arith.truncf %331 : vector<8x4xf32> to vector<8x4xbf16>
    %cst_130 = arith.constant -1.000000e+30 : f32
    %333 = vector.broadcast %cst_130 : f32 to vector<8x1xf32>
    %cst_131 = arith.constant 0.000000e+00 : f32
    %334 = vector.broadcast %cst_131 : f32 to vector<8x1xf32>
    %cst_132 = arith.constant 0.000000e+00 : f32
    %335 = vector.broadcast %cst_132 : f32 to vector<8x4xf32>
    %c0_133 = arith.constant 0 : index
    %c4_134 = arith.constant 4 : index
    %336 = vector.load %arg20[%c0_133, %c4_134] : memref<8x32xbf16, #tpu.memory_space<vmem>>, vector<8x4xbf16>
    %c0_135 = arith.constant 0 : index
    %c4_136 = arith.constant 4 : index
    %337 = vector.load %arg21[%c0_135, %c4_136] : memref<8x32xbf16, #tpu.memory_space<vmem>>, vector<8x4xbf16>
    %cst_137 = arith.constant dense<0.000000e+00> : vector<8x8xf32>
    %338 = tpu.matmul %332, %336, %cst_137 {dimension_numbers = #tpu.dot_dimension_numbers<[1], [1], [0], [0], [0, 0, 1, 0], [], []>} : vector<8x4xbf16>, vector<8x4xbf16>, vector<8x8xf32> -> vector<8x8xf32>
    %339 = arith.extf %300 : vector<8x8xbf16> to vector<8x8xf32>
    %340 = arith.addf %338, %339 : vector<8x8xf32>
    %cst_138 = arith.constant dense<0xFF800000> : vector<8xf32>
    %341 = vector.multi_reduction <maximumf>, %340, %cst_138 [1] : vector<8x8xf32> to vector<8xf32>
    %342 = vector.shape_cast %341 : vector<8xf32> to vector<8x1xf32>
    %343 = arith.maximumf %333, %342 : vector<8x1xf32>
    %344 = arith.subf %333, %343 : vector<8x1xf32>
    %345 = math.exp %344 : vector<8x1xf32>
    %346 = vector.broadcast %343 : vector<8x1xf32> to vector<8x8xf32>
    %347 = arith.subf %340, %346 : vector<8x8xf32>
    %348 = math.exp %347 : vector<8x8xf32>
    %349 = arith.mulf %345, %334 : vector<8x1xf32>
    %cst_139 = arith.constant dense<0.000000e+00> : vector<8xf32>
    %350 = vector.multi_reduction <add>, %348, %cst_139 [1] : vector<8x8xf32> to vector<8xf32>
    %351 = vector.shape_cast %350 : vector<8xf32> to vector<8x1xf32>
    %352 = arith.addf %349, %351 : vector<8x1xf32>
    %353 = vector.broadcast %345 : vector<8x1xf32> to vector<8x4xf32>
    %354 = arith.mulf %353, %335 : vector<8x4xf32>
    %355 = arith.truncf %348 : vector<8x8xf32> to vector<8x8xbf16>
    %cst_140 = arith.constant dense<0.000000e+00> : vector<8x4xf32>
    %356 = tpu.matmul %355, %337, %cst_140 {dimension_numbers = #tpu.dot_dimension_numbers<[1], [0], [0], [1], [0, 0, 1, 1], [], []>} : vector<8x8xbf16>, vector<8x4xbf16>, vector<8x4xf32> -> vector<8x4xf32>
    %357 = arith.addf %354, %356 : vector<8x4xf32>
    %358 = tpu.reciprocal %352 {approx = true} : vector<8x1xf32> -> vector<8x1xf32>
    %359 = vector.broadcast %358 : vector<8x1xf32> to vector<8x4xf32>
    %360 = arith.mulf %357, %359 : vector<8x4xf32>
    %361 = vector.extract_strided_slice %298 {offsets = [0, 8], sizes = [8, 4], strides = [1, 1]} : vector<8x32xf32> to vector<8x4xf32>
    %362 = arith.truncf %361 : vector<8x4xf32> to vector<8x4xbf16>
    %cst_141 = arith.constant -1.000000e+30 : f32
    %363 = vector.broadcast %cst_141 : f32 to vector<8x1xf32>
    %cst_142 = arith.constant 0.000000e+00 : f32
    %364 = vector.broadcast %cst_142 : f32 to vector<8x1xf32>
    %cst_143 = arith.constant 0.000000e+00 : f32
    %365 = vector.broadcast %cst_143 : f32 to vector<8x4xf32>
    %c0_144 = arith.constant 0 : index
    %c8_145 = arith.constant 8 : index
    %366 = vector.load %arg20[%c0_144, %c8_145] : memref<8x32xbf16, #tpu.memory_space<vmem>>, vector<8x4xbf16>
    %c0_146 = arith.constant 0 : index
    %c8_147 = arith.constant 8 : index
    %367 = vector.load %arg21[%c0_146, %c8_147] : memref<8x32xbf16, #tpu.memory_space<vmem>>, vector<8x4xbf16>
    %cst_148 = arith.constant dense<0.000000e+00> : vector<8x8xf32>
    %368 = tpu.matmul %362, %366, %cst_148 {dimension_numbers = #tpu.dot_dimension_numbers<[1], [1], [0], [0], [0, 0, 1, 0], [], []>} : vector<8x4xbf16>, vector<8x4xbf16>, vector<8x8xf32> -> vector<8x8xf32>
    %369 = arith.extf %300 : vector<8x8xbf16> to vector<8x8xf32>
    %370 = arith.addf %368, %369 : vector<8x8xf32>
    %cst_149 = arith.constant dense<0xFF800000> : vector<8xf32>
    %371 = vector.multi_reduction <maximumf>, %370, %cst_149 [1] : vector<8x8xf32> to vector<8xf32>
    %372 = vector.shape_cast %371 : vector<8xf32> to vector<8x1xf32>
    %373 = arith.maximumf %363, %372 : vector<8x1xf32>
    %374 = arith.subf %363, %373 : vector<8x1xf32>
    %375 = math.exp %374 : vector<8x1xf32>
    %376 = vector.broadcast %373 : vector<8x1xf32> to vector<8x8xf32>
    %377 = arith.subf %370, %376 : vector<8x8xf32>
    %378 = math.exp %377 : vector<8x8xf32>
    %379 = arith.mulf %375, %364 : vector<8x1xf32>
    %cst_150 = arith.constant dense<0.000000e+00> : vector<8xf32>
    %380 = vector.multi_reduction <add>, %378, %cst_150 [1] : vector<8x8xf32> to vector<8xf32>
    %381 = vector.shape_cast %380 : vector<8xf32> to vector<8x1xf32>
    %382 = arith.addf %379, %381 : vector<8x1xf32>
    %383 = vector.broadcast %375 : vector<8x1xf32> to vector<8x4xf32>
    %384 = arith.mulf %383, %365 : vector<8x4xf32>
    %385 = arith.truncf %378 : vector<8x8xf32> to vector<8x8xbf16>
    %cst_151 = arith.constant dense<0.000000e+00> : vector<8x4xf32>
    %386 = tpu.matmul %385, %367, %cst_151 {dimension_numbers = #tpu.dot_dimension_numbers<[1], [0], [0], [1], [0, 0, 1, 1], [], []>} : vector<8x8xbf16>, vector<8x4xbf16>, vector<8x4xf32> -> vector<8x4xf32>
    %387 = arith.addf %384, %386 : vector<8x4xf32>
    %388 = tpu.reciprocal %382 {approx = true} : vector<8x1xf32> -> vector<8x1xf32>
    %389 = vector.broadcast %388 : vector<8x1xf32> to vector<8x4xf32>
    %390 = arith.mulf %387, %389 : vector<8x4xf32>
    %391 = vector.extract_strided_slice %298 {offsets = [0, 12], sizes = [8, 4], strides = [1, 1]} : vector<8x32xf32> to vector<8x4xf32>
    %392 = arith.truncf %391 : vector<8x4xf32> to vector<8x4xbf16>
    %cst_152 = arith.constant -1.000000e+30 : f32
    %393 = vector.broadcast %cst_152 : f32 to vector<8x1xf32>
    %cst_153 = arith.constant 0.000000e+00 : f32
    %394 = vector.broadcast %cst_153 : f32 to vector<8x1xf32>
    %cst_154 = arith.constant 0.000000e+00 : f32
    %395 = vector.broadcast %cst_154 : f32 to vector<8x4xf32>
    %c0_155 = arith.constant 0 : index
    %c12_156 = arith.constant 12 : index
    %396 = vector.load %arg20[%c0_155, %c12_156] : memref<8x32xbf16, #tpu.memory_space<vmem>>, vector<8x4xbf16>
    %c0_157 = arith.constant 0 : index
    %c12_158 = arith.constant 12 : index
    %397 = vector.load %arg21[%c0_157, %c12_158] : memref<8x32xbf16, #tpu.memory_space<vmem>>, vector<8x4xbf16>
    %cst_159 = arith.constant dense<0.000000e+00> : vector<8x8xf32>
    %398 = tpu.matmul %392, %396, %cst_159 {dimension_numbers = #tpu.dot_dimension_numbers<[1], [1], [0], [0], [0, 0, 1, 0], [], []>} : vector<8x4xbf16>, vector<8x4xbf16>, vector<8x8xf32> -> vector<8x8xf32>
    %399 = arith.extf %300 : vector<8x8xbf16> to vector<8x8xf32>
    %400 = arith.addf %398, %399 : vector<8x8xf32>
    %cst_160 = arith.constant dense<0xFF800000> : vector<8xf32>
    %401 = vector.multi_reduction <maximumf>, %400, %cst_160 [1] : vector<8x8xf32> to vector<8xf32>
    %402 = vector.shape_cast %401 : vector<8xf32> to vector<8x1xf32>
    %403 = arith.maximumf %393, %402 : vector<8x1xf32>
    %404 = arith.subf %393, %403 : vector<8x1xf32>
    %405 = math.exp %404 : vector<8x1xf32>
    %406 = vector.broadcast %403 : vector<8x1xf32> to vector<8x8xf32>
    %407 = arith.subf %400, %406 : vector<8x8xf32>
    %408 = math.exp %407 : vector<8x8xf32>
    %409 = arith.mulf %405, %394 : vector<8x1xf32>
    %cst_161 = arith.constant dense<0.000000e+00> : vector<8xf32>
    %410 = vector.multi_reduction <add>, %408, %cst_161 [1] : vector<8x8xf32> to vector<8xf32>
    %411 = vector.shape_cast %410 : vector<8xf32> to vector<8x1xf32>
    %412 = arith.addf %409, %411 : vector<8x1xf32>
    %413 = vector.broadcast %405 : vector<8x1xf32> to vector<8x4xf32>
    %414 = arith.mulf %413, %395 : vector<8x4xf32>
    %415 = arith.truncf %408 : vector<8x8xf32> to vector<8x8xbf16>
    %cst_162 = arith.constant dense<0.000000e+00> : vector<8x4xf32>
    %416 = tpu.matmul %415, %397, %cst_162 {dimension_numbers = #tpu.dot_dimension_numbers<[1], [0], [0], [1], [0, 0, 1, 1], [], []>} : vector<8x8xbf16>, vector<8x4xbf16>, vector<8x4xf32> -> vector<8x4xf32>
    %417 = arith.addf %414, %416 : vector<8x4xf32>
    %418 = tpu.reciprocal %412 {approx = true} : vector<8x1xf32> -> vector<8x1xf32>
    %419 = vector.broadcast %418 : vector<8x1xf32> to vector<8x4xf32>
    %420 = arith.mulf %417, %419 : vector<8x4xf32>
    %421 = vector.extract_strided_slice %298 {offsets = [0, 16], sizes = [8, 4], strides = [1, 1]} : vector<8x32xf32> to vector<8x4xf32>
    %422 = arith.truncf %421 : vector<8x4xf32> to vector<8x4xbf16>
    %cst_163 = arith.constant -1.000000e+30 : f32
    %423 = vector.broadcast %cst_163 : f32 to vector<8x1xf32>
    %cst_164 = arith.constant 0.000000e+00 : f32
    %424 = vector.broadcast %cst_164 : f32 to vector<8x1xf32>
    %cst_165 = arith.constant 0.000000e+00 : f32
    %425 = vector.broadcast %cst_165 : f32 to vector<8x4xf32>
    %c0_166 = arith.constant 0 : index
    %c16_167 = arith.constant 16 : index
    %426 = vector.load %arg20[%c0_166, %c16_167] : memref<8x32xbf16, #tpu.memory_space<vmem>>, vector<8x4xbf16>
    %c0_168 = arith.constant 0 : index
    %c16_169 = arith.constant 16 : index
    %427 = vector.load %arg21[%c0_168, %c16_169] : memref<8x32xbf16, #tpu.memory_space<vmem>>, vector<8x4xbf16>
    %cst_170 = arith.constant dense<0.000000e+00> : vector<8x8xf32>
    %428 = tpu.matmul %422, %426, %cst_170 {dimension_numbers = #tpu.dot_dimension_numbers<[1], [1], [0], [0], [0, 0, 1, 0], [], []>} : vector<8x4xbf16>, vector<8x4xbf16>, vector<8x8xf32> -> vector<8x8xf32>
    %429 = arith.extf %300 : vector<8x8xbf16> to vector<8x8xf32>
    %430 = arith.addf %428, %429 : vector<8x8xf32>
    %cst_171 = arith.constant dense<0xFF800000> : vector<8xf32>
    %431 = vector.multi_reduction <maximumf>, %430, %cst_171 [1] : vector<8x8xf32> to vector<8xf32>
    %432 = vector.shape_cast %431 : vector<8xf32> to vector<8x1xf32>
    %433 = arith.maximumf %423, %432 : vector<8x1xf32>
    %434 = arith.subf %423, %433 : vector<8x1xf32>
    %435 = math.exp %434 : vector<8x1xf32>
    %436 = vector.broadcast %433 : vector<8x1xf32> to vector<8x8xf32>
    %437 = arith.subf %430, %436 : vector<8x8xf32>
    %438 = math.exp %437 : vector<8x8xf32>
    %439 = arith.mulf %435, %424 : vector<8x1xf32>
    %cst_172 = arith.constant dense<0.000000e+00> : vector<8xf32>
    %440 = vector.multi_reduction <add>, %438, %cst_172 [1] : vector<8x8xf32> to vector<8xf32>
    %441 = vector.shape_cast %440 : vector<8xf32> to vector<8x1xf32>
    %442 = arith.addf %439, %441 : vector<8x1xf32>
    %443 = vector.broadcast %435 : vector<8x1xf32> to vector<8x4xf32>
    %444 = arith.mulf %443, %425 : vector<8x4xf32>
    %445 = arith.truncf %438 : vector<8x8xf32> to vector<8x8xbf16>
    %cst_173 = arith.constant dense<0.000000e+00> : vector<8x4xf32>
    %446 = tpu.matmul %445, %427, %cst_173 {dimension_numbers = #tpu.dot_dimension_numbers<[1], [0], [0], [1], [0, 0, 1, 1], [], []>} : vector<8x8xbf16>, vector<8x4xbf16>, vector<8x4xf32> -> vector<8x4xf32>
    %447 = arith.addf %444, %446 : vector<8x4xf32>
    %448 = tpu.reciprocal %442 {approx = true} : vector<8x1xf32> -> vector<8x1xf32>
    %449 = vector.broadcast %448 : vector<8x1xf32> to vector<8x4xf32>
    %450 = arith.mulf %447, %449 : vector<8x4xf32>
    %451 = vector.extract_strided_slice %298 {offsets = [0, 20], sizes = [8, 4], strides = [1, 1]} : vector<8x32xf32> to vector<8x4xf32>
    %452 = arith.truncf %451 : vector<8x4xf32> to vector<8x4xbf16>
    %cst_174 = arith.constant -1.000000e+30 : f32
    %453 = vector.broadcast %cst_174 : f32 to vector<8x1xf32>
    %cst_175 = arith.constant 0.000000e+00 : f32
    %454 = vector.broadcast %cst_175 : f32 to vector<8x1xf32>
    %cst_176 = arith.constant 0.000000e+00 : f32
    %455 = vector.broadcast %cst_176 : f32 to vector<8x4xf32>
    %c0_177 = arith.constant 0 : index
    %c20_178 = arith.constant 20 : index
    %456 = vector.load %arg20[%c0_177, %c20_178] : memref<8x32xbf16, #tpu.memory_space<vmem>>, vector<8x4xbf16>
    %c0_179 = arith.constant 0 : index
    %c20_180 = arith.constant 20 : index
    %457 = vector.load %arg21[%c0_179, %c20_180] : memref<8x32xbf16, #tpu.memory_space<vmem>>, vector<8x4xbf16>
    %cst_181 = arith.constant dense<0.000000e+00> : vector<8x8xf32>
    %458 = tpu.matmul %452, %456, %cst_181 {dimension_numbers = #tpu.dot_dimension_numbers<[1], [1], [0], [0], [0, 0, 1, 0], [], []>} : vector<8x4xbf16>, vector<8x4xbf16>, vector<8x8xf32> -> vector<8x8xf32>
    %459 = arith.extf %300 : vector<8x8xbf16> to vector<8x8xf32>
    %460 = arith.addf %458, %459 : vector<8x8xf32>
    %cst_182 = arith.constant dense<0xFF800000> : vector<8xf32>
    %461 = vector.multi_reduction <maximumf>, %460, %cst_182 [1] : vector<8x8xf32> to vector<8xf32>
    %462 = vector.shape_cast %461 : vector<8xf32> to vector<8x1xf32>
    %463 = arith.maximumf %453, %462 : vector<8x1xf32>
    %464 = arith.subf %453, %463 : vector<8x1xf32>
    %465 = math.exp %464 : vector<8x1xf32>
    %466 = vector.broadcast %463 : vector<8x1xf32> to vector<8x8xf32>
    %467 = arith.subf %460, %466 : vector<8x8xf32>
    %468 = math.exp %467 : vector<8x8xf32>
    %469 = arith.mulf %465, %454 : vector<8x1xf32>
    %cst_183 = arith.constant dense<0.000000e+00> : vector<8xf32>
    %470 = vector.multi_reduction <add>, %468, %cst_183 [1] : vector<8x8xf32> to vector<8xf32>
    %471 = vector.shape_cast %470 : vector<8xf32> to vector<8x1xf32>
    %472 = arith.addf %469, %471 : vector<8x1xf32>
    %473 = vector.broadcast %465 : vector<8x1xf32> to vector<8x4xf32>
    %474 = arith.mulf %473, %455 : vector<8x4xf32>
    %475 = arith.truncf %468 : vector<8x8xf32> to vector<8x8xbf16>
    %cst_184 = arith.constant dense<0.000000e+00> : vector<8x4xf32>
    %476 = tpu.matmul %475, %457, %cst_184 {dimension_numbers = #tpu.dot_dimension_numbers<[1], [0], [0], [1], [0, 0, 1, 1], [], []>} : vector<8x8xbf16>, vector<8x4xbf16>, vector<8x4xf32> -> vector<8x4xf32>
    %477 = arith.addf %474, %476 : vector<8x4xf32>
    %478 = tpu.reciprocal %472 {approx = true} : vector<8x1xf32> -> vector<8x1xf32>
    %479 = vector.broadcast %478 : vector<8x1xf32> to vector<8x4xf32>
    %480 = arith.mulf %477, %479 : vector<8x4xf32>
    %481 = vector.extract_strided_slice %298 {offsets = [0, 24], sizes = [8, 4], strides = [1, 1]} : vector<8x32xf32> to vector<8x4xf32>
    %482 = arith.truncf %481 : vector<8x4xf32> to vector<8x4xbf16>
    %cst_185 = arith.constant -1.000000e+30 : f32
    %483 = vector.broadcast %cst_185 : f32 to vector<8x1xf32>
    %cst_186 = arith.constant 0.000000e+00 : f32
    %484 = vector.broadcast %cst_186 : f32 to vector<8x1xf32>
    %cst_187 = arith.constant 0.000000e+00 : f32
    %485 = vector.broadcast %cst_187 : f32 to vector<8x4xf32>
    %c0_188 = arith.constant 0 : index
    %c24_189 = arith.constant 24 : index
    %486 = vector.load %arg20[%c0_188, %c24_189] : memref<8x32xbf16, #tpu.memory_space<vmem>>, vector<8x4xbf16>
    %c0_190 = arith.constant 0 : index
    %c24_191 = arith.constant 24 : index
    %487 = vector.load %arg21[%c0_190, %c24_191] : memref<8x32xbf16, #tpu.memory_space<vmem>>, vector<8x4xbf16>
    %cst_192 = arith.constant dense<0.000000e+00> : vector<8x8xf32>
    %488 = tpu.matmul %482, %486, %cst_192 {dimension_numbers = #tpu.dot_dimension_numbers<[1], [1], [0], [0], [0, 0, 1, 0], [], []>} : vector<8x4xbf16>, vector<8x4xbf16>, vector<8x8xf32> -> vector<8x8xf32>
    %489 = arith.extf %300 : vector<8x8xbf16> to vector<8x8xf32>
    %490 = arith.addf %488, %489 : vector<8x8xf32>
    %cst_193 = arith.constant dense<0xFF800000> : vector<8xf32>
    %491 = vector.multi_reduction <maximumf>, %490, %cst_193 [1] : vector<8x8xf32> to vector<8xf32>
    %492 = vector.shape_cast %491 : vector<8xf32> to vector<8x1xf32>
    %493 = arith.maximumf %483, %492 : vector<8x1xf32>
    %494 = arith.subf %483, %493 : vector<8x1xf32>
    %495 = math.exp %494 : vector<8x1xf32>
    %496 = vector.broadcast %493 : vector<8x1xf32> to vector<8x8xf32>
    %497 = arith.subf %490, %496 : vector<8x8xf32>
    %498 = math.exp %497 : vector<8x8xf32>
    %499 = arith.mulf %495, %484 : vector<8x1xf32>
    %cst_194 = arith.constant dense<0.000000e+00> : vector<8xf32>
    %500 = vector.multi_reduction <add>, %498, %cst_194 [1] : vector<8x8xf32> to vector<8xf32>
    %501 = vector.shape_cast %500 : vector<8xf32> to vector<8x1xf32>
    %502 = arith.addf %499, %501 : vector<8x1xf32>
    %503 = vector.broadcast %495 : vector<8x1xf32> to vector<8x4xf32>
    %504 = arith.mulf %503, %485 : vector<8x4xf32>
    %505 = arith.truncf %498 : vector<8x8xf32> to vector<8x8xbf16>
    %cst_195 = arith.constant dense<0.000000e+00> : vector<8x4xf32>
    %506 = tpu.matmul %505, %487, %cst_195 {dimension_numbers = #tpu.dot_dimension_numbers<[1], [0], [0], [1], [0, 0, 1, 1], [], []>} : vector<8x8xbf16>, vector<8x4xbf16>, vector<8x4xf32> -> vector<8x4xf32>
    %507 = arith.addf %504, %506 : vector<8x4xf32>
    %508 = tpu.reciprocal %502 {approx = true} : vector<8x1xf32> -> vector<8x1xf32>
    %509 = vector.broadcast %508 : vector<8x1xf32> to vector<8x4xf32>
    %510 = arith.mulf %507, %509 : vector<8x4xf32>
    %511 = vector.extract_strided_slice %298 {offsets = [0, 28], sizes = [8, 4], strides = [1, 1]} : vector<8x32xf32> to vector<8x4xf32>
    %512 = arith.truncf %511 : vector<8x4xf32> to vector<8x4xbf16>
    %cst_196 = arith.constant -1.000000e+30 : f32
    %513 = vector.broadcast %cst_196 : f32 to vector<8x1xf32>
    %cst_197 = arith.constant 0.000000e+00 : f32
    %514 = vector.broadcast %cst_197 : f32 to vector<8x1xf32>
    %cst_198 = arith.constant 0.000000e+00 : f32
    %515 = vector.broadcast %cst_198 : f32 to vector<8x4xf32>
    %c0_199 = arith.constant 0 : index
    %c28_200 = arith.constant 28 : index
    %516 = vector.load %arg20[%c0_199, %c28_200] : memref<8x32xbf16, #tpu.memory_space<vmem>>, vector<8x4xbf16>
    %c0_201 = arith.constant 0 : index
    %c28_202 = arith.constant 28 : index
    %517 = vector.load %arg21[%c0_201, %c28_202] : memref<8x32xbf16, #tpu.memory_space<vmem>>, vector<8x4xbf16>
    %cst_203 = arith.constant dense<0.000000e+00> : vector<8x8xf32>
    %518 = tpu.matmul %512, %516, %cst_203 {dimension_numbers = #tpu.dot_dimension_numbers<[1], [1], [0], [0], [0, 0, 1, 0], [], []>} : vector<8x4xbf16>, vector<8x4xbf16>, vector<8x8xf32> -> vector<8x8xf32>
    %519 = arith.extf %300 : vector<8x8xbf16> to vector<8x8xf32>
    %520 = arith.addf %518, %519 : vector<8x8xf32>
    %cst_204 = arith.constant dense<0xFF800000> : vector<8xf32>
    %521 = vector.multi_reduction <maximumf>, %520, %cst_204 [1] : vector<8x8xf32> to vector<8xf32>
    %522 = vector.shape_cast %521 : vector<8xf32> to vector<8x1xf32>
    %523 = arith.maximumf %513, %522 : vector<8x1xf32>
    %524 = arith.subf %513, %523 : vector<8x1xf32>
    %525 = math.exp %524 : vector<8x1xf32>
    %526 = vector.broadcast %523 : vector<8x1xf32> to vector<8x8xf32>
    %527 = arith.subf %520, %526 : vector<8x8xf32>
    %528 = math.exp %527 : vector<8x8xf32>
    %529 = arith.mulf %525, %514 : vector<8x1xf32>
    %cst_205 = arith.constant dense<0.000000e+00> : vector<8xf32>
    %530 = vector.multi_reduction <add>, %528, %cst_205 [1] : vector<8x8xf32> to vector<8xf32>
    %531 = vector.shape_cast %530 : vector<8xf32> to vector<8x1xf32>
    %532 = arith.addf %529, %531 : vector<8x1xf32>
    %533 = vector.broadcast %525 : vector<8x1xf32> to vector<8x4xf32>
    %534 = arith.mulf %533, %515 : vector<8x4xf32>
    %535 = arith.truncf %528 : vector<8x8xf32> to vector<8x8xbf16>
    %cst_206 = arith.constant dense<0.000000e+00> : vector<8x4xf32>
    %536 = tpu.matmul %535, %517, %cst_206 {dimension_numbers = #tpu.dot_dimension_numbers<[1], [0], [0], [1], [0, 0, 1, 1], [], []>} : vector<8x8xbf16>, vector<8x4xbf16>, vector<8x4xf32> -> vector<8x4xf32>
    %537 = arith.addf %534, %536 : vector<8x4xf32>
    %538 = tpu.reciprocal %532 {approx = true} : vector<8x1xf32> -> vector<8x1xf32>
    %539 = vector.broadcast %538 : vector<8x1xf32> to vector<8x4xf32>
    %540 = arith.mulf %537, %539 : vector<8x4xf32>
    %541 = tpu.concatenate %330, %360, %390, %420, %450, %480, %510, %540 in 1 : vector<8x4xf32>, vector<8x4xf32>, vector<8x4xf32>, vector<8x4xf32>, vector<8x4xf32>, vector<8x4xf32>, vector<8x4xf32>, vector<8x4xf32> -> vector<8x32xf32>
    %542 = arith.truncf %541 : vector<8x32xf32> to vector<8x32xbf16>
    %c3_207 = arith.constant 3 : index
    %c0_208 = arith.constant 0 : index
    %c0_209 = arith.constant 0 : index
    %543 = vector.load %arg9[%c3_207, %c0_208, %c0_209] : memref<4x32x32xbf16, #tpu.memory_space<vmem>>, vector<1x32x32xbf16>
    %544 = vector.shape_cast %543 : vector<1x32x32xbf16> to vector<32x32xbf16>
    %cst_210 = arith.constant dense<0.000000e+00> : vector<8x32xf32>
    %545 = tpu.matmul %542, %544, %cst_210 {dimension_numbers = #tpu.dot_dimension_numbers<[1], [0], [0], [1], [0, 0, 1, 1], [], []>} : vector<8x32xbf16>, vector<32x32xbf16>, vector<8x32xf32> -> vector<8x32xf32>
    %c3_211 = arith.constant 3 : index
    %c0_212 = arith.constant 0 : index
    %c0_213 = arith.constant 0 : index
    %546 = vector.load %arg10[%c3_211, %c0_212, %c0_213] : memref<4x1x32xf32, #tpu.memory_space<vmem>>, vector<1x1x32xf32>
    %547 = vector.shape_cast %546 : vector<1x1x32xf32> to vector<1x32xf32>
    %548 = vector.broadcast %547 : vector<1x32xf32> to vector<8x32xf32>
    %549 = arith.addf %545, %548 : vector<8x32xf32>
    %550 = arith.addf %290, %549 : vector<8x32xf32>
    %c1 = arith.constant 1 : index
    %c0_214 = arith.constant 0 : index
    %c0_215 = arith.constant 0 : index
    %551 = vector.load %arg15[%c1, %c0_214, %c0_215] : memref<3x1x32xf32, #tpu.memory_space<vmem>>, vector<1x1x32xf32>
    %552 = vector.shape_cast %551 : vector<1x1x32xf32> to vector<1x32xf32>
    %c1_216 = arith.constant 1 : index
    %c0_217 = arith.constant 0 : index
    %c0_218 = arith.constant 0 : index
    %553 = vector.load %arg16[%c1_216, %c0_217, %c0_218] : memref<3x1x32xf32, #tpu.memory_space<vmem>>, vector<1x1x32xf32>
    %554 = vector.shape_cast %553 : vector<1x1x32xf32> to vector<1x32xf32>
    %cst_219 = arith.constant dense<0.000000e+00> : vector<8xf32>
    %555 = vector.multi_reduction <add>, %550, %cst_219 [1] : vector<8x32xf32> to vector<8xf32>
    %556 = vector.shape_cast %555 : vector<8xf32> to vector<8x1xf32>
    %cst_220 = arith.constant 3.200000e+01 : f32
    %557 = vector.broadcast %cst_220 : f32 to vector<8x1xf32>
    %558 = arith.divf %556, %557 : vector<8x1xf32>
    %559 = vector.broadcast %558 : vector<8x1xf32> to vector<8x32xf32>
    %560 = arith.subf %550, %559 : vector<8x32xf32>
    %561 = arith.mulf %560, %560 : vector<8x32xf32>
    %cst_221 = arith.constant dense<0.000000e+00> : vector<8xf32>
    %562 = vector.multi_reduction <add>, %561, %cst_221 [1] : vector<8x32xf32> to vector<8xf32>
    %563 = vector.shape_cast %562 : vector<8xf32> to vector<8x1xf32>
    %cst_222 = arith.constant 3.200000e+01 : f32
    %564 = vector.broadcast %cst_222 : f32 to vector<8x1xf32>
    %565 = arith.divf %563, %564 : vector<8x1xf32>
    %566 = vector.broadcast %558 : vector<8x1xf32> to vector<8x32xf32>
    %567 = arith.subf %550, %566 : vector<8x32xf32>
    %cst_223 = arith.constant 9.99999974E-6 : f32
    %568 = vector.broadcast %cst_223 : f32 to vector<8x1xf32>
    %569 = arith.addf %565, %568 : vector<8x1xf32>
    %570 = math.rsqrt %569 : vector<8x1xf32>
    %571 = vector.broadcast %570 : vector<8x1xf32> to vector<8x32xf32>
    %572 = arith.mulf %567, %571 : vector<8x32xf32>
    %573 = vector.broadcast %552 : vector<1x32xf32> to vector<8x32xf32>
    %574 = arith.mulf %572, %573 : vector<8x32xf32>
    %575 = vector.broadcast %554 : vector<1x32xf32> to vector<8x32xf32>
    %576 = arith.addf %574, %575 : vector<8x32xf32>
    %577 = arith.truncf %576 : vector<8x32xf32> to vector<8x32xbf16>
    %c0_224 = arith.constant 0 : index
    %c0_225 = arith.constant 0 : index
    %578 = vector.load %arg11[%c0_224, %c0_225] : memref<32x64xbf16, #tpu.memory_space<vmem>>, vector<32x64xbf16>
    %cst_226 = arith.constant dense<0.000000e+00> : vector<8x64xf32>
    %579 = tpu.matmul %577, %578, %cst_226 {dimension_numbers = #tpu.dot_dimension_numbers<[1], [0], [0], [1], [0, 0, 1, 1], [], []>} : vector<8x32xbf16>, vector<32x64xbf16>, vector<8x64xf32> -> vector<8x64xf32>
    %c0_227 = arith.constant 0 : index
    %c0_228 = arith.constant 0 : index
    %580 = vector.load %arg12[%c0_227, %c0_228] : memref<1x64xf32, #tpu.memory_space<vmem>>, vector<1x64xf32>
    %581 = vector.broadcast %580 : vector<1x64xf32> to vector<8x64xf32>
    %582 = arith.addf %579, %581 : vector<8x64xf32>
    %cst_229 = arith.constant 0.000000e+00 : f32
    %583 = vector.broadcast %cst_229 : f32 to vector<8x64xf32>
    %584 = arith.maximumf %582, %583 : vector<8x64xf32>
    %585 = arith.truncf %584 : vector<8x64xf32> to vector<8x64xbf16>
    %c0_230 = arith.constant 0 : index
    %c0_231 = arith.constant 0 : index
    %586 = vector.load %arg13[%c0_230, %c0_231] : memref<64x32xbf16, #tpu.memory_space<vmem>>, vector<64x32xbf16>
    %cst_232 = arith.constant dense<0.000000e+00> : vector<8x32xf32>
    %587 = tpu.matmul %585, %586, %cst_232 {dimension_numbers = #tpu.dot_dimension_numbers<[1], [0], [0], [1], [0, 0, 1, 1], [], []>} : vector<8x64xbf16>, vector<64x32xbf16>, vector<8x32xf32> -> vector<8x32xf32>
    %c0_233 = arith.constant 0 : index
    %c0_234 = arith.constant 0 : index
    %588 = vector.load %arg14[%c0_233, %c0_234] : memref<1x32xf32, #tpu.memory_space<vmem>>, vector<1x32xf32>
    %589 = vector.broadcast %588 : vector<1x32xf32> to vector<8x32xf32>
    %590 = arith.addf %587, %589 : vector<8x32xf32>
    %591 = arith.addf %576, %590 : vector<8x32xf32>
    %c2_235 = arith.constant 2 : index
    %c0_236 = arith.constant 0 : index
    %c0_237 = arith.constant 0 : index
    %592 = vector.load %arg15[%c2_235, %c0_236, %c0_237] : memref<3x1x32xf32, #tpu.memory_space<vmem>>, vector<1x1x32xf32>
    %593 = vector.shape_cast %592 : vector<1x1x32xf32> to vector<1x32xf32>
    %c2_238 = arith.constant 2 : index
    %c0_239 = arith.constant 0 : index
    %c0_240 = arith.constant 0 : index
    %594 = vector.load %arg16[%c2_238, %c0_239, %c0_240] : memref<3x1x32xf32, #tpu.memory_space<vmem>>, vector<1x1x32xf32>
    %595 = vector.shape_cast %594 : vector<1x1x32xf32> to vector<1x32xf32>
    %cst_241 = arith.constant dense<0.000000e+00> : vector<8xf32>
    %596 = vector.multi_reduction <add>, %591, %cst_241 [1] : vector<8x32xf32> to vector<8xf32>
    %597 = vector.shape_cast %596 : vector<8xf32> to vector<8x1xf32>
    %cst_242 = arith.constant 3.200000e+01 : f32
    %598 = vector.broadcast %cst_242 : f32 to vector<8x1xf32>
    %599 = arith.divf %597, %598 : vector<8x1xf32>
    %600 = vector.broadcast %599 : vector<8x1xf32> to vector<8x32xf32>
    %601 = arith.subf %591, %600 : vector<8x32xf32>
    %602 = arith.mulf %601, %601 : vector<8x32xf32>
    %cst_243 = arith.constant dense<0.000000e+00> : vector<8xf32>
    %603 = vector.multi_reduction <add>, %602, %cst_243 [1] : vector<8x32xf32> to vector<8xf32>
    %604 = vector.shape_cast %603 : vector<8xf32> to vector<8x1xf32>
    %cst_244 = arith.constant 3.200000e+01 : f32
    %605 = vector.broadcast %cst_244 : f32 to vector<8x1xf32>
    %606 = arith.divf %604, %605 : vector<8x1xf32>
    %607 = vector.broadcast %599 : vector<8x1xf32> to vector<8x32xf32>
    %608 = arith.subf %591, %607 : vector<8x32xf32>
    %cst_245 = arith.constant 9.99999974E-6 : f32
    %609 = vector.broadcast %cst_245 : f32 to vector<8x1xf32>
    %610 = arith.addf %606, %609 : vector<8x1xf32>
    %611 = math.rsqrt %610 : vector<8x1xf32>
    %612 = vector.broadcast %611 : vector<8x1xf32> to vector<8x32xf32>
    %613 = arith.mulf %608, %612 : vector<8x32xf32>
    %614 = vector.broadcast %593 : vector<1x32xf32> to vector<8x32xf32>
    %615 = arith.mulf %613, %614 : vector<8x32xf32>
    %616 = vector.broadcast %595 : vector<1x32xf32> to vector<8x32xf32>
    %617 = arith.addf %615, %616 : vector<8x32xf32>
    %c0_246 = arith.constant 0 : index
    %c0_247 = arith.constant 0 : index
    %c0_248 = arith.constant 0 : index
    %618 = vector.load %arg17[%c0_246, %c0_247, %c0_248] : memref<1x8x32xf32, #tpu.memory_space<vmem>>, vector<1x8x32xf32>
    %619 = vector.shape_cast %618 : vector<1x8x32xf32> to vector<8x32xf32>
    %620 = vector.shape_cast %617 : vector<8x32xf32> to vector<1x8x32xf32>
    tpu.vector_store %arg17[%c0_246, %c0_247, %c0_248], %620 {strides = array<i32>} : memref<1x8x32xf32, #tpu.memory_space<vmem>>, vector<1x8x32xf32>,
    return
  }
  func.func @transform_0(%arg0: i32, %arg1: i32) -> (i32, i32, i32) {
    %c0_i32 = arith.constant 0 : i32
    %c0_i32_0 = arith.constant 0 : i32
    return %arg0, %arg1, %c0_i32 : i32, i32, i32
  }
  func.func @transform_1(%arg0: i32, %arg1: i32) -> (i32, i32, i32) {
    %c0_i32 = arith.constant 0 : i32
    %c0_i32_0 = arith.constant 0 : i32
    %c0_i32_1 = arith.constant 0 : i32
    return %arg0, %c0_i32, %c0_i32_0 : i32, i32, i32
  }
  func.func @transform_2(%arg0: i32, %arg1: i32) -> (i32, i32, i32) {
    %c0_i32 = arith.constant 0 : i32
    %c0_i32_0 = arith.constant 0 : i32
    %c0_i32_1 = arith.constant 0 : i32
    return %arg0, %c0_i32, %c0_i32_0 : i32, i32, i32
  }
  func.func @transform_3(%arg0: i32, %arg1: i32) -> (i32, i32, i32) {
    %c0_i32 = arith.constant 0 : i32
    %c0_i32_0 = arith.constant 0 : i32
    return %arg0, %arg1, %c0_i32 : i32, i32, i32
  }
  func.func @transform_4(%arg0: i32, %arg1: i32) -> (i32, i32, i32) {
    %c0_i32 = arith.constant 0 : i32
    %c0_i32_0 = arith.constant 0 : i32
    return %arg0, %arg1, %c0_i32 : i32, i32, i32
  }
  func.func @transform_5(%arg0: i32, %arg1: i32) -> (i32, i32, i32) {
    %c0_i32 = arith.constant 0 : i32
    %c0_i32_0 = arith.constant 0 : i32
    %c0_i32_1 = arith.constant 0 : i32
    %c0_i32_2 = arith.constant 0 : i32
    return %c0_i32, %c0_i32_0, %c0_i32_1 : i32, i32, i32
  }
  func.func @transform_6(%arg0: i32, %arg1: i32) -> (i32, i32, i32) {
    %c0_i32 = arith.constant 0 : i32
    %c0_i32_0 = arith.constant 0 : i32
    %c0_i32_1 = arith.constant 0 : i32
    %c0_i32_2 = arith.constant 0 : i32
    return %c0_i32, %c0_i32_0, %c0_i32_1 : i32, i32, i32
  }
  func.func @transform_7(%arg0: i32, %arg1: i32) -> (i32, i32, i32) {
    %c0_i32 = arith.constant 0 : i32
    %c0_i32_0 = arith.constant 0 : i32
    %c0_i32_1 = arith.constant 0 : i32
    %c0_i32_2 = arith.constant 0 : i32
    return %c0_i32, %c0_i32_0, %c0_i32_1 : i32, i32, i32
  }
  func.func @transform_8(%arg0: i32, %arg1: i32) -> (i32, i32, i32) {
    %c0_i32 = arith.constant 0 : i32
    %c0_i32_0 = arith.constant 0 : i32
    %c0_i32_1 = arith.constant 0 : i32
    %c0_i32_2 = arith.constant 0 : i32
    return %c0_i32, %c0_i32_0, %c0_i32_1 : i32, i32, i32
  }
  func.func @transform_9(%arg0: i32, %arg1: i32) -> (i32, i32) {
    %c0_i32 = arith.constant 0 : i32
    %c0_i32_0 = arith.constant 0 : i32
    %c0_i32_1 = arith.constant 0 : i32
    return %c0_i32, %c0_i32_0 : i32, i32
  }
  func.func @transform_10(%arg0: i32, %arg1: i32) -> (i32, i32) {
    %c0_i32 = arith.constant 0 : i32
    %c0_i32_0 = arith.constant 0 : i32
    %c0_i32_1 = arith.constant 0 : i32
    return %c0_i32, %c0_i32_0 : i32, i32
  }
  func.func @transform_11(%arg0: i32, %arg1: i32) -> (i32, i32) {
    %c0_i32 = arith.constant 0 : i32
    %c0_i32_0 = arith.constant 0 : i32
    %c0_i32_1 = arith.constant 0 : i32
    return %c0_i32, %c0_i32_0 : i32, i32
  }
  func.func @transform_12(%arg0: i32, %arg1: i32) -> (i32, i32) {
    %c0_i32 = arith.constant 0 : i32
    %c0_i32_0 = arith.constant 0 : i32
    %c0_i32_1 = arith.constant 0 : i32
    return %c0_i32, %c0_i32_0 : i32, i32
  }
  func.func @transform_13(%arg0: i32, %arg1: i32) -> (i32, i32, i32) {
    %c0_i32 = arith.constant 0 : i32
    %c0_i32_0 = arith.constant 0 : i32
    %c0_i32_1 = arith.constant 0 : i32
    %c0_i32_2 = arith.constant 0 : i32
    return %c0_i32, %c0_i32_0, %c0_i32_1 : i32, i32, i32
  }
  func.func @transform_14(%arg0: i32, %arg1: i32) -> (i32, i32, i32) {
    %c0_i32 = arith.constant 0 : i32
    %c0_i32_0 = arith.constant 0 : i32
    %c0_i32_1 = arith.constant 0 : i32
    %c0_i32_2 = arith.constant 0 : i32
    return %c0_i32, %c0_i32_0, %c0_i32_1 : i32, i32, i32
  }
  func.func @transform_15(%arg0: i32, %arg1: i32) -> (i32, i32, i32) {
    %c0_i32 = arith.constant 0 : i32
    %c0_i32_0 = arith.constant 0 : i32
    return %arg0, %arg1, %c0_i32 : i32, i32, i32
  }
}

</mosaic_0001>

<llo_original>
// kernel: tpu_custom_call.1
$region0: #{tpu_custom_call.1}
  #allocation0 [shape = 'u32[]', space=smem, size = 0x4, offset = 0x4, fixed_abs, tag = 'smem constant byte address 0x4 - core index']
  #allocation1 [shape = 'u32[144,128]{1,0:T(1,128)}', space=vmem, size = 0x12000, scoped, tag = 'internal scratch']
  #allocation2 [shape = 'bf16[8,32]{1,0:T(8,128)(2,1)}', space=vmem, size = 0x800, scoped, tag = 'scratch operand']
  #allocation3 [shape = 'bf16[8,32]{1,0:T(8,128)(2,1)}', space=vmem, size = 0x800, scoped, tag = 'scratch operand']
  #allocation4 [shape = 'bf16[8,32]{1,0:T(8,128)(2,1)}', space=vmem, size = 0x800, scoped, tag = 'scratch operand']
  #allocation5 [shape = 'bf16[8,32]{1,0:T(8,128)(2,1)}', space=vmem, size = 0x800, scoped, tag = 'scratch operand']
  %s0 = inlined_call_operand.hbm [shape: f32[2,8,32], index: 0, kind: input, shape index: {}]
  %s1 = inlined_call_operand.hbm [shape: bf16[2,8,32], index: 1, kind: input, shape index: {}]
  %s2 = inlined_call_operand.hbm [shape: bf16[2,8,32], index: 2, kind: input, shape index: {}]
  %s3 = inlined_call_operand.hbm [shape: bf16[2,8,8], index: 3, kind: input, shape index: {}]
  %s4 = inlined_call_operand.hbm [shape: bf16[2,8,8], index: 4, kind: input, shape index: {}]
  %s5 = inlined_call_operand.hbm [shape: bf16[4,32,32], index: 5, kind: input, shape index: {}]
  %s6 = inlined_call_operand.hbm [shape: f32[4,1,32], index: 6, kind: input, shape index: {}]
  %s7 = inlined_call_operand.hbm [shape: bf16[4,32,32], index: 7, kind: input, shape index: {}]
  %s8 = inlined_call_operand.hbm [shape: f32[4,1,32], index: 8, kind: input, shape index: {}]
  %s9 = inlined_call_operand.hbm [shape: bf16[32,64], index: 9, kind: input, shape index: {}]
  %s10 = inlined_call_operand.hbm [shape: f32[1,64], index: 10, kind: input, shape index: {}]
  %s11 = inlined_call_operand.hbm [shape: bf16[64,32], index: 11, kind: input, shape index: {}]
  %s12 = inlined_call_operand.hbm [shape: f32[1,32], index: 12, kind: input, shape index: {}]
  %s13 = inlined_call_operand.hbm [shape: f32[3,1,32], index: 13, kind: input, shape index: {}]
  %s14 = inlined_call_operand.hbm [shape: f32[3,1,32], index: 14, kind: input, shape index: {}]
  %s15 = inlined_call_operand.hbm [shape: f32[2,8,32], index: 15, kind: output, shape index: {}]
  %s16 = sld [smem:[#allocation0]]
  $region157: #{tpu_custom_call.1} parent=0
    _
  %s18 = ssub.s32 1, %s16
  %s19 = scalar_select 0, %s18, %s16
  $region1: #{tpu_custom_call.1} parent=0
    #allocation6 [shape = 'u8[8192]{0}', space=vmem, size = 0x2000, scoped, tag = 'input window, operand 0']
    #allocation7 [shape = 's32[2]{0}', space=sflag, size = 0x8, scoped, tag = 'scoped memory for tpu_custom_call.1']
    #allocation8 [shape = 's32[2]{0}', space=sflag, size = 0x8, scoped, tag = 'scoped memory for tpu_custom_call.1']
    #allocation9 [shape = 'u8[4096]{0}', space=vmem, size = 0x1000, scoped, tag = 'input window, operand 1']
    #allocation10 [shape = 's32[2]{0}', space=sflag, size = 0x8, scoped, tag = 'scoped memory for tpu_custom_call.1']
    #allocation11 [shape = 'u8[4096]{0}', space=vmem, size = 0x1000, scoped, tag = 'input window, operand 2']
    #allocation12 [shape = 'u8[4096]{0}', space=vmem, size = 0x1000, scoped, tag = 'input window, operand 3']
    #allocation13 [shape = 's32[2]{0}', space=sflag, size = 0x8, scoped, tag = 'scoped memory for tpu_custom_call.1']
    #allocation14 [shape = 'u8[4096]{0}', space=vmem, size = 0x1000, scoped, tag = 'input window, operand 4']
    #allocation15 [shape = 'u8[32768]{0}', space=vmem, size = 0x8000, scoped, tag = 'input window, operand 5, single buffered']
    #allocation16 [shape = 's32[1]{0}', space=sflag, size = 0x4, scoped, tag = 'scoped memory for tpu_custom_call.1']
    #allocation17 [shape = 'u8[2048]{0}', space=vmem, size = 0x800, scoped, tag = 'input window, operand 6, single buffered']
    #allocation18 [shape = 'u8[32768]{0}', space=vmem, size = 0x8000, scoped, tag = 'input window, operand 7, single buffered']
    #allocation19 [shape = 's32[1]{0}', space=sflag, size = 0x4, scoped, tag = 'scoped memory for tpu_custom_call.1']
    #allocation20 [shape = 'u8[2048]{0}', space=vmem, size = 0x800, scoped, tag = 'input window, operand 8, single buffered']
    #allocation21 [shape = 'u8[8192]{0}', space=vmem, size = 0x2000, scoped, tag = 'input window, operand 9, single buffered']
    #allocation22 [shape = 's32[1]{0}', space=sflag, size = 0x4, scoped, tag = 'scoped memory for tpu_custom_call.1']
    #allocation23 [shape = 'u8[512]{0}', space=vmem, size = 0x400, scoped, tag = 'input window, operand 10, single buffered']
    #allocation24 [shape = 'u8[16384]{0}', space=vmem, size = 0x4000, scoped, tag = 'input window, operand 11, single buffered']
    #allocation25 [shape = 's32[1]{0}', space=sflag, size = 0x4, scoped, tag = 'scoped memory for tpu_custom_call.1']
    #allocation26 [shape = 'u8[512]{0}', space=vmem, size = 0x400, scoped, tag = 'input window, operand 12, single buffered']
    #allocation27 [shape = 'u8[1536]{0}', space=vmem, size = 0x800, scoped, tag = 'input window, operand 13, single buffered']
    #allocation28 [shape = 's32[1]{0}', space=sflag, size = 0x4, scoped, tag = 'scoped memory for tpu_custom_call.1']
    #allocation29 [shape = 'u8[1536]{0}', space=vmem, size = 0x800, scoped, tag = 'input window, operand 14, single buffered']
    #allocation30 [shape = 'u8[8192]{0}', space=vmem, size = 0x2000, scoped, tag = 'output window, operand 0']
    %20 = vsyncpa [#allocation7], 0
    %s21 = scalar_lea.sflag [#allocation7], 1
    %22 = vsyncpa %s21, 0
    %23 = vsyncpa [#allocation10], 0
    %s24 = scalar_lea.sflag [#allocation10], 1
    %25 = vsyncpa %s24, 0
    %26 = vsyncpa [#allocation13], 0
    %s27 = scalar_lea.sflag [#allocation13], 1
    %28 = vsyncpa %s27, 0
    %29 = vsyncpa [#allocation16], 0
    %30 = vsyncpa [#allocation19], 0
    %31 = vsyncpa [#allocation22], 0
    %32 = vsyncpa [#allocation25], 0
    %33 = vsyncpa [#allocation28], 0
    %34 = vsyncpa [#allocation8], 0
    %s35 = scalar_lea.sflag [#allocation8], 1
    %36 = vsyncpa %s35, 0
    loop: start=0, step=1, limit=4
    $region2: #{tpu_custom_call.1} parent=1 // loop_pre_header
      _
    $region3: #{tpu_custom_call.1} parent=1 // loop_header
      %s38 = sphi 0, %s42
      %p39 = scmp.ge.s32.totalorder %s38, 4
      %s45 = sphi 0, %s57
      %s46 = sphi 0, %s53
      %s47 = sphi 0, %s45
      %s48 = sphi 0, %s46
      %s49 = sphi 0, %s47
      %s50 = sphi 0, %s48
      %s62 = sphi 0, %s64
      %s65 = sphi 0, %s62
      %s66 = sphi 0, %s65
      %s82 = sphi 0, %s66
      %s88 = sphi 0, %s90
      %s91 = sphi 0, %s88
      %s92 = sphi 0, %s91
      %s108 = sphi 0, %s92
      %s114 = sphi 0, %s116
      %s117 = sphi 0, %s114
      %s118 = sphi 0, %s117
      %s134 = sphi 0, %s118
      %s142 = sphi 0, %s144
      %s145 = sphi 0, %s142
      %s146 = sphi 0, %s145
      %s162 = sphi 0, %s146
      %s170 = sphi 0, %s172
      %s173 = sphi 0, %s170
      %s174 = sphi 0, %s173
      %s190 = sphi 0, %s174
      %s194 = sphi 0, %s194
      %s196 = sphi 0, %s194
      %s197 = sphi 0, %s196
      %s211 = sphi 0, %s197
      %s215 = sphi 0, %s215
      %s217 = sphi 0, %s215
      %s218 = sphi 0, %s217
      %s232 = sphi 0, %s218
      %s236 = sphi 0, %s236
      %s238 = sphi 0, %s236
      %s239 = sphi 0, %s238
      %s253 = sphi 0, %s239
      %s257 = sphi 0, %s257
      %s259 = sphi 0, %s257
      %s260 = sphi 0, %s259
      %s274 = sphi 0, %s260
      %s278 = sphi 0, %s278
      %s280 = sphi 0, %s278
      %s281 = sphi 0, %s280
      %s295 = sphi 0, %s281
      %s299 = sphi 0, %s299
      %s301 = sphi 0, %s299
      %s302 = sphi 0, %s301
      %s316 = sphi 0, %s302
      %s320 = sphi 0, %s320
      %s322 = sphi 0, %s320
      %s323 = sphi 0, %s322
      %s337 = sphi 0, %s323
      %s341 = sphi 0, %s341
      %s343 = sphi 0, %s341
      %s344 = sphi 0, %s343
      %s358 = sphi 0, %s344
      %s362 = sphi 0, %s362
      %s364 = sphi 0, %s362
      %s365 = sphi 0, %s364
      %s379 = sphi 0, %s365
      %s383 = sphi 0, %s383
      %s385 = sphi 0, %s383
      %s386 = sphi 0, %s385
      %s400 = sphi 0, %s386
      %s408 = sphi 0, %s410
      %s411 = sphi 0, %s408
      %s412 = sphi 0, %s411
      %s428 = sphi 0, %s412
    $region4: #{tpu_custom_call.1} parent=1 // loop_header_branch
      %41 = sbr.rel (%p39) target = $region8
    $region5: #{tpu_custom_call.1} parent=1 // loop_body
      %s43 = ssub.s32 %s38, 1
      %s44 = ssub.s32 %s38, 2
      %s51 = sadd.s32 1, %s46
      %p52 = scmp.ge.s32.totalorder %s51, 1
      %s53 = scalar_select %p52, 0, %s51
      %s54 = sadd.s32 1, %s45
      %s55 = scalar_select %p52, %s54, %s45
      %p56 = scmp.ge.s32.totalorder %s55, 2
      %s57 = scalar_select %p56, 0, %s55
      %s58 = ssub.s32 %s45, %s57
      %s59 = ssub.s32 %s46, %s53
      %s60 = sor.u32 %s58, %s59
      %p61 = scmp.eq.s32.totalorder %s60, 0
      %s63 = sadd.s32 %s62, 1
      %s64 = scalar_select %p61, %s62, %s63
      %p67 = pneg %p61
      %p68 = scmp.eq.s32.totalorder %s38, 1
      %p69 = por %p67, %p68
      %p70 = scmp.ne.s32.totalorder %s62, %s65
      %p71 = scmp.eq.s32.totalorder %s38, 0
      %p72 = por %p70, %p71
      %p73 = scmp.ne.s32.totalorder %s62, %s65
      %p74 = scmp.eq.s32.totalorder %s43, 1
      %p75 = por %p73, %p74
      %p76 = scmp.ne.s32.totalorder %s65, %s66
      %p77 = scmp.eq.s32.totalorder %s43, 0
      %p78 = por %p76, %p77
      %p79 = scmp.ne.s32.totalorder %s65, %s66
      %p80 = scmp.eq.s32.totalorder %s44, 1
      %p81 = por %p79, %p80
      %p83 = scmp.ne.s32.totalorder %s66, %s82
      %p84 = scmp.eq.s32.totalorder %s44, 0
      %p85 = por %p83, %p84
      %s86 = ssub.s32 %s45, %s57
      %p87 = scmp.eq.s32.totalorder %s86, 0
      %s89 = sadd.s32 %s88, 1
      %s90 = scalar_select %p87, %s88, %s89
      %p93 = pneg %p87
      %p94 = scmp.eq.s32.totalorder %s38, 1
      %p95 = por %p93, %p94
      %p96 = scmp.ne.s32.totalorder %s88, %s91
      %p97 = scmp.eq.s32.totalorder %s38, 0
      %p98 = por %p96, %p97
      %p99 = scmp.ne.s32.totalorder %s88, %s91
      %p100 = scmp.eq.s32.totalorder %s43, 1
      %p101 = por %p99, %p100
      %p102 = scmp.ne.s32.totalorder %s91, %s92
      %p103 = scmp.eq.s32.totalorder %s43, 0
      %p104 = por %p102, %p103
      %p105 = scmp.ne.s32.totalorder %s91, %s92
      %p106 = scmp.eq.s32.totalorder %s44, 1
      %p107 = por %p105, %p106
      %p109 = scmp.ne.s32.totalorder %s92, %s108
      %p110 = scmp.eq.s32.totalorder %s44, 0
      %p111 = por %p109, %p110
      %s112 = ssub.s32 %s45, %s57
      %p113 = scmp.eq.s32.totalorder %s112, 0
      %s115 = sadd.s32 %s114, 1
      %s116 = scalar_select %p113, %s114, %s115
      %p119 = pneg %p113
      %p120 = scmp.eq.s32.totalorder %s38, 1
      %p121 = por %p119, %p120
      %p122 = scmp.ne.s32.totalorder %s114, %s117
      %p123 = scmp.eq.s32.totalorder %s38, 0
      %p124 = por %p122, %p123
      %p125 = scmp.ne.s32.totalorder %s114, %s117
      %p126 = scmp.eq.s32.totalorder %s43, 1
      %p127 = por %p125, %p126
      %p128 = scmp.ne.s32.totalorder %s117, %s118
      %p129 = scmp.eq.s32.totalorder %s43, 0
      %p130 = por %p128, %p129
      %p131 = scmp.ne.s32.totalorder %s117, %s118
      %p132 = scmp.eq.s32.totalorder %s44, 1
      %p133 = por %p131, %p132
      %p135 = scmp.ne.s32.totalorder %s118, %s134
      %p136 = scmp.eq.s32.totalorder %s44, 0
      %p137 = por %p135, %p136
      %s138 = ssub.s32 %s45, %s57
      %s139 = ssub.s32 %s46, %s53
      %s140 = sor.u32 %s138, %s139
      %p141 = scmp.eq.s32.totalorder %s140, 0
      %s143 = sadd.s32 %s142, 1
      %s144 = scalar_select %p141, %s142, %s143
      %p147 = pneg %p141
      %p148 = scmp.eq.s32.totalorder %s38, 1
      %p149 = por %p147, %p148
      %p150 = scmp.ne.s32.totalorder %s142, %s145
      %p151 = scmp.eq.s32.totalorder %s38, 0
      %p152 = por %p150, %p151
      %p153 = scmp.ne.s32.totalorder %s142, %s145
      %p154 = scmp.eq.s32.totalorder %s43, 1
      %p155 = por %p153, %p154
      %p156 = scmp.ne.s32.totalorder %s145, %s146
      %p157 = scmp.eq.s32.totalorder %s43, 0
      %p158 = por %p156, %p157
      %p159 = scmp.ne.s32.totalorder %s145, %s146
      %p160 = scmp.eq.s32.totalorder %s44, 1
      %p161 = por %p159, %p160
      %p163 = scmp.ne.s32.totalorder %s146, %s162
      %p164 = scmp.eq.s32.totalorder %s44, 0
      %p165 = por %p163, %p164
      %s166 = ssub.s32 %s45, %s57
      %s167 = ssub.s32 %s46, %s53
      %s168 = sor.u32 %s166, %s167
      %p169 = scmp.eq.s32.totalorder %s168, 0
      %s171 = sadd.s32 %s170, 1
      %s172 = scalar_select %p169, %s170, %s171
      %p175 = pneg %p169
      %p176 = scmp.eq.s32.totalorder %s38, 1
      %p177 = por %p175, %p176
      %p178 = scmp.ne.s32.totalorder %s170, %s173
      %p179 = scmp.eq.s32.totalorder %s38, 0
      %p180 = por %p178, %p179
      %p181 = scmp.ne.s32.totalorder %s170, %s173
      %p182 = scmp.eq.s32.totalorder %s43, 1
      %p183 = por %p181, %p182
      %p184 = scmp.ne.s32.totalorder %s173, %s174
      %p185 = scmp.eq.s32.totalorder %s43, 0
      %p186 = por %p184, %p185
      %p187 = scmp.ne.s32.totalorder %s173, %s174
      %p188 = scmp.eq.s32.totalorder %s44, 1
      %p189 = por %p187, %p188
      %p191 = scmp.ne.s32.totalorder %s174, %s190
      %p192 = scmp.eq.s32.totalorder %s44, 0
      %p193 = por %p191, %p192
      %s195 = sadd.s32 %s194, 1
      %p198 = scmp.eq.s32.totalorder %s38, 1
      %p199 = scmp.ne.s32.totalorder %s194, %s196
      %p200 = scmp.eq.s32.totalorder %s38, 0
      %p201 = por %p199, %p200
      %p202 = scmp.ne.s32.totalorder %s194, %s196
      %p203 = scmp.eq.s32.totalorder %s43, 1
      %p204 = por %p202, %p203
      %p205 = scmp.ne.s32.totalorder %s196, %s197
      %p206 = scmp.eq.s32.totalorder %s43, 0
      %p207 = por %p205, %p206
      %p208 = scmp.ne.s32.totalorder %s196, %s197
      %p209 = scmp.eq.s32.totalorder %s44, 1
      %p210 = por %p208, %p209
      %p212 = scmp.ne.s32.totalorder %s197, %s211
      %p213 = scmp.eq.s32.totalorder %s44, 0
      %p214 = por %p212, %p213
      %s216 = sadd.s32 %s215, 1
      %p219 = scmp.eq.s32.totalorder %s38, 1
      %p220 = scmp.ne.s32.totalorder %s215, %s217
      %p221 = scmp.eq.s32.totalorder %s38, 0
      %p222 = por %p220, %p221
      %p223 = scmp.ne.s32.totalorder %s215, %s217
      %p224 = scmp.eq.s32.totalorder %s43, 1
      %p225 = por %p223, %p224
      %p226 = scmp.ne.s32.totalorder %s217, %s218
      %p227 = scmp.eq.s32.totalorder %s43, 0
      %p228 = por %p226, %p227
      %p229 = scmp.ne.s32.totalorder %s217, %s218
      %p230 = scmp.eq.s32.totalorder %s44, 1
      %p231 = por %p229, %p230
      %p233 = scmp.ne.s32.totalorder %s218, %s232
      %p234 = scmp.eq.s32.totalorder %s44, 0
      %p235 = por %p233, %p234
      %s237 = sadd.s32 %s236, 1
      %p240 = scmp.eq.s32.totalorder %s38, 1
      %p241 = scmp.ne.s32.totalorder %s236, %s238
      %p242 = scmp.eq.s32.totalorder %s38, 0
      %p243 = por %p241, %p242
      %p244 = scmp.ne.s32.totalorder %s236, %s238
      %p245 = scmp.eq.s32.totalorder %s43, 1
      %p246 = por %p244, %p245
      %p247 = scmp.ne.s32.totalorder %s238, %s239
      %p248 = scmp.eq.s32.totalorder %s43, 0
      %p249 = por %p247, %p248
      %p250 = scmp.ne.s32.totalorder %s238, %s239
      %p251 = scmp.eq.s32.totalorder %s44, 1
      %p252 = por %p250, %p251
      %p254 = scmp.ne.s32.totalorder %s239, %s253
      %p255 = scmp.eq.s32.totalorder %s44, 0
      %p256 = por %p254, %p255
      %s258 = sadd.s32 %s257, 1
      %p261 = scmp.eq.s32.totalorder %s38, 1
      %p262 = scmp.ne.s32.totalorder %s257, %s259
      %p263 = scmp.eq.s32.totalorder %s38, 0
      %p264 = por %p262, %p263
      %p265 = scmp.ne.s32.totalorder %s257, %s259
      %p266 = scmp.eq.s32.totalorder %s43, 1
      %p267 = por %p265, %p266
      %p268 = scmp.ne.s32.totalorder %s259, %s260
      %p269 = scmp.eq.s32.totalorder %s43, 0
      %p270 = por %p268, %p269
      %p271 = scmp.ne.s32.totalorder %s259, %s260
      %p272 = scmp.eq.s32.totalorder %s44, 1
      %p273 = por %p271, %p272
      %p275 = scmp.ne.s32.totalorder %s260, %s274
      %p276 = scmp.eq.s32.totalorder %s44, 0
      %p277 = por %p275, %p276
      %s279 = sadd.s32 %s278, 1
      %p282 = scmp.eq.s32.totalorder %s38, 1
      %p283 = scmp.ne.s32.totalorder %s278, %s280
      %p284 = scmp.eq.s32.totalorder %s38, 0
      %p285 = por %p283, %p284
      %p286 = scmp.ne.s32.totalorder %s278, %s280
      %p287 = scmp.eq.s32.totalorder %s43, 1
      %p288 = por %p286, %p287
      %p289 = scmp.ne.s32.totalorder %s280, %s281
      %p290 = scmp.eq.s32.totalorder %s43, 0
      %p291 = por %p289, %p290
      %p292 = scmp.ne.s32.totalorder %s280, %s281
      %p293 = scmp.eq.s32.totalorder %s44, 1
      %p294 = por %p292, %p293
      %p296 = scmp.ne.s32.totalorder %s281, %s295
      %p297 = scmp.eq.s32.totalorder %s44, 0
      %p298 = por %p296, %p297
      %s300 = sadd.s32 %s299, 1
      %p303 = scmp.eq.s32.totalorder %s38, 1
      %p304 = scmp.ne.s32.totalorder %s299, %s301
      %p305 = scmp.eq.s32.totalorder %s38, 0
      %p306 = por %p304, %p305
      %p307 = scmp.ne.s32.totalorder %s299, %s301
      %p308 = scmp.eq.s32.totalorder %s43, 1
      %p309 = por %p307, %p308
      %p310 = scmp.ne.s32.totalorder %s301, %s302
      %p311 = scmp.eq.s32.totalorder %s43, 0
      %p312 = por %p310, %p311
      %p313 = scmp.ne.s32.totalorder %s301, %s302
      %p314 = scmp.eq.s32.totalorder %s44, 1
      %p315 = por %p313, %p314
      %p317 = scmp.ne.s32.totalorder %s302, %s316
      %p318 = scmp.eq.s32.totalorder %s44, 0
      %p319 = por %p317, %p318
      %s321 = sadd.s32 %s320, 1
      %p324 = scmp.eq.s32.totalorder %s38, 1
      %p325 = scmp.ne.s32.totalorder %s320, %s322
      %p326 = scmp.eq.s32.totalorder %s38, 0
      %p327 = por %p325, %p326
      %p328 = scmp.ne.s32.totalorder %s320, %s322
      %p329 = scmp.eq.s32.totalorder %s43, 1
      %p330 = por %p328, %p329
      %p331 = scmp.ne.s32.totalorder %s322, %s323
      %p332 = scmp.eq.s32.totalorder %s43, 0
      %p333 = por %p331, %p332
      %p334 = scmp.ne.s32.totalorder %s322, %s323
      %p335 = scmp.eq.s32.totalorder %s44, 1
      %p336 = por %p334, %p335
      %p338 = scmp.ne.s32.totalorder %s323, %s337
      %p339 = scmp.eq.s32.totalorder %s44, 0
      %p340 = por %p338, %p339
      %s342 = sadd.s32 %s341, 1
      %p345 = scmp.eq.s32.totalorder %s38, 1
      %p346 = scmp.ne.s32.totalorder %s341, %s343
      %p347 = scmp.eq.s32.totalorder %s38, 0
      %p348 = por %p346, %p347
      %p349 = scmp.ne.s32.totalorder %s341, %s343
      %p350 = scmp.eq.s32.totalorder %s43, 1
      %p351 = por %p349, %p350
      %p352 = scmp.ne.s32.totalorder %s343, %s344
      %p353 = scmp.eq.s32.totalorder %s43, 0
      %p354 = por %p352, %p353
      %p355 = scmp.ne.s32.totalorder %s343, %s344
      %p356 = scmp.eq.s32.totalorder %s44, 1
      %p357 = por %p355, %p356
      %p359 = scmp.ne.s32.totalorder %s344, %s358
      %p360 = scmp.eq.s32.totalorder %s44, 0
      %p361 = por %p359, %p360
      %s363 = sadd.s32 %s362, 1
      %p366 = scmp.eq.s32.totalorder %s38, 1
      %p367 = scmp.ne.s32.totalorder %s362, %s364
      %p368 = scmp.eq.s32.totalorder %s38, 0
      %p369 = por %p367, %p368
      %p370 = scmp.ne.s32.totalorder %s362, %s364
      %p371 = scmp.eq.s32.totalorder %s43, 1
      %p372 = por %p370, %p371
      %p373 = scmp.ne.s32.totalorder %s364, %s365
      %p374 = scmp.eq.s32.totalorder %s43, 0
      %p375 = por %p373, %p374
      %p376 = scmp.ne.s32.totalorder %s364, %s365
      %p377 = scmp.eq.s32.totalorder %s44, 1
      %p378 = por %p376, %p377
      %p380 = scmp.ne.s32.totalorder %s365, %s379
      %p381 = scmp.eq.s32.totalorder %s44, 0
      %p382 = por %p380, %p381
      %s384 = sadd.s32 %s383, 1
      %p387 = scmp.eq.s32.totalorder %s38, 1
      %p388 = scmp.ne.s32.totalorder %s383, %s385
      %p389 = scmp.eq.s32.totalorder %s38, 0
      %p390 = por %p388, %p389
      %p391 = scmp.ne.s32.totalorder %s383, %s385
      %p392 = scmp.eq.s32.totalorder %s43, 1
      %p393 = por %p391, %p392
      %p394 = scmp.ne.s32.totalorder %s385, %s386
      %p395 = scmp.eq.s32.totalorder %s43, 0
      %p396 = por %p394, %p395
      %p397 = scmp.ne.s32.totalorder %s385, %s386
      %p398 = scmp.eq.s32.totalorder %s44, 1
      %p399 = por %p397, %p398
      %p401 = scmp.ne.s32.totalorder %s386, %s400
      %p402 = scmp.eq.s32.totalorder %s44, 0
      %p403 = por %p401, %p402
      %s404 = ssub.s32 %s45, %s57
      %s405 = ssub.s32 %s46, %s53
      %s406 = sor.u32 %s404, %s405
      %p407 = scmp.eq.s32.totalorder %s406, 0
      %s409 = sadd.s32 %s408, 1
      %s410 = scalar_select %p407, %s408, %s409
      %p413 = pneg %p407
      %p414 = scmp.eq.s32.totalorder %s38, 1
      %p415 = por %p413, %p414
      %p416 = scmp.ne.s32.totalorder %s408, %s411
      %p417 = scmp.eq.s32.totalorder %s38, 0
      %p418 = por %p416, %p417
      %p419 = scmp.ne.s32.totalorder %s408, %s411
      %p420 = scmp.eq.s32.totalorder %s43, 1
      %p421 = por %p419, %p420
      %p422 = scmp.ne.s32.totalorder %s411, %s412
      %p423 = scmp.eq.s32.totalorder %s43, 0
      %p424 = por %p422, %p423
      %p425 = scmp.ne.s32.totalorder %s411, %s412
      %p426 = scmp.eq.s32.totalorder %s44, 1
      %p427 = por %p425, %p426
      %p429 = scmp.ne.s32.totalorder %s412, %s428
      %p430 = scmp.eq.s32.totalorder %s44, 0
      %p431 = por %p429, %p430
      %p432 = scmp.le.s32.totalorder 1, %s38
      %p433 = scmp.lt.s32.totalorder %s38, 3
      %p434 = pnand %p432, %p433
      %p435 = pneg %p434
      // Predicated region
      $region9: #{tpu_custom_call.1} parent=5 // pred_check
        _
      $region10: #{tpu_custom_call.1} parent=5 // pred_check_branch
        %437 = sbr.rel (%p434) target = $region12
      $region11: #{tpu_custom_call.1} parent=5 // pred_region
        %s438 = ssub.s32 %s38, 1
        // Predicated region
        $region13: #{tpu_custom_call.1} parent=11 // pred_check
          %p439 = pneg %p207
        $region14: #{tpu_custom_call.1} parent=11 // pred_check_branch
          %441 = sbr.rel (%p439) target = $region16
        $region15: #{tpu_custom_call.1} parent=11 // pred_region
          %s443 = ssub.s32 1024, 1024
          %444 = vsyncadd [#allocation16], %s443
          %s445 = sshll.u32 [#allocation15], 4
          %s446 = int_to_ptr.vmem [resolvable:$true] %s445
          %451 = dma.hbm_to_vmem [thread:$0]  %s5, 1024, %s446, [#allocation16], 64, 64, 4
        $region16: #{tpu_custom_call.1} parent=11 // pred_fallthru
          _
        // Predicated region
        $region17: #{tpu_custom_call.1} parent=11 // pred_check
          %p452 = pneg %p228
        $region18: #{tpu_custom_call.1} parent=11 // pred_check_branch
          %454 = sbr.rel (%p452) target = $region20
        $region19: #{tpu_custom_call.1} parent=11 // pred_region
          %s456 = ssub.s32 64, 64
          %457 = vsyncadd [#allocation16], %s456
          %s458 = sshll.u32 [#allocation17], 4
          %s459 = int_to_ptr.vmem [resolvable:$true] %s458
          %464 = dma.hbm_to_vmem [thread:$0]  %s6, 64, %s459, [#allocation16], 16, 16, 1
        $region20: #{tpu_custom_call.1} parent=11 // pred_fallthru
          _
        // Predicated region
        $region21: #{tpu_custom_call.1} parent=11 // pred_check
          %p465 = pneg %p249
        $region22: #{tpu_custom_call.1} parent=11 // pred_check_branch
          %467 = sbr.rel (%p465) target = $region24
        $region23: #{tpu_custom_call.1} parent=11 // pred_region
          %s469 = ssub.s32 1024, 1024
          %470 = vsyncadd [#allocation19], %s469
          %s471 = sshll.u32 [#allocation18], 4
          %s472 = int_to_ptr.vmem [resolvable:$true] %s471
          %477 = dma.hbm_to_vmem [thread:$0]  %s7, 1024, %s472, [#allocation19], 64, 64, 4
        $region24: #{tpu_custom_call.1} parent=11 // pred_fallthru
          _
        // Predicated region
        $region25: #{tpu_custom_call.1} parent=11 // pred_check
          %p478 = pneg %p270
        $region26: #{tpu_custom_call.1} parent=11 // pred_check_branch
          %480 = sbr.rel (%p478) target = $region28
        $region27: #{tpu_custom_call.1} parent=11 // pred_region
          %s482 = ssub.s32 64, 64
          %483 = vsyncadd [#allocation19], %s482
          %s484 = sshll.u32 [#allocation20], 4
          %s485 = int_to_ptr.vmem [resolvable:$true] %s484
          %490 = dma.hbm_to_vmem [thread:$0]  %s8, 64, %s485, [#allocation19], 16, 16, 1
        $region28: #{tpu_custom_call.1} parent=11 // pred_fallthru
          _
        // Predicated region
        $region29: #{tpu_custom_call.1} parent=11 // pred_check
          %p491 = pneg %p291
        $region30: #{tpu_custom_call.1} parent=11 // pred_check_branch
          %493 = sbr.rel (%p491) target = $region32
        $region31: #{tpu_custom_call.1} parent=11 // pred_region
          %s495 = ssub.s32 256, 256
          %496 = vsyncadd [#allocation22], %s495
          %s497 = sshll.u32 [#allocation21], 4
          %s498 = int_to_ptr.vmem [resolvable:$true] %s497
          %503 = dma.hbm_to_vmem [thread:$0]  %s9, 256, %s498, [#allocation22], 64, 64, 4
        $region32: #{tpu_custom_call.1} parent=11 // pred_fallthru
          _
        // Predicated region
        $region33: #{tpu_custom_call.1} parent=11 // pred_check
          %p504 = pneg %p312
        $region34: #{tpu_custom_call.1} parent=11 // pred_check_branch
          %506 = sbr.rel (%p504) target = $region36
        $region35: #{tpu_custom_call.1} parent=11 // pred_region
          %s508 = ssub.s32 16, 16
          %509 = vsyncadd [#allocation22], %s508
          %s511 = sshll.u32 [#allocation23], 4
          %s512 = int_to_ptr.vmem [resolvable:$true] %s511
          %514 = dma.hbm_to_vmem [thread:$0]  %s10, 16, %s512, [#allocation22]
        $region36: #{tpu_custom_call.1} parent=11 // pred_fallthru
          _
        // Predicated region
        $region37: #{tpu_custom_call.1} parent=11 // pred_check
          %p515 = pneg %p333
        $region38: #{tpu_custom_call.1} parent=11 // pred_check_branch
          %517 = sbr.rel (%p515) target = $region40
        $region39: #{tpu_custom_call.1} parent=11 // pred_region
          %s519 = ssub.s32 512, 512
          %520 = vsyncadd [#allocation25], %s519
          %s521 = sshll.u32 [#allocation24], 4
          %s522 = int_to_ptr.vmem [resolvable:$true] %s521
          %527 = dma.hbm_to_vmem [thread:$0]  %s11, 512, %s522, [#allocation25], 64, 64, 4
        $region40: #{tpu_custom_call.1} parent=11 // pred_fallthru
          _
        // Predicated region
        $region41: #{tpu_custom_call.1} parent=11 // pred_check
          %p528 = pneg %p354
        $region42: #{tpu_custom_call.1} parent=11 // pred_check_branch
          %530 = sbr.rel (%p528) target = $region44
        $region43: #{tpu_custom_call.1} parent=11 // pred_region
          %s532 = ssub.s32 16, 16
          %533 = vsyncadd [#allocation25], %s532
          %s535 = sshll.u32 [#allocation26], 4
          %s536 = int_to_ptr.vmem [resolvable:$true] %s535
          %538 = dma.hbm_to_vmem [thread:$0]  %s12, 16, %s536, [#allocation25]
        $region44: #{tpu_custom_call.1} parent=11 // pred_fallthru
          _
        // Predicated region
        $region45: #{tpu_custom_call.1} parent=11 // pred_check
          %p539 = pneg %p375
        $region46: #{tpu_custom_call.1} parent=11 // pred_check_branch
          %541 = sbr.rel (%p539) target = $region48
        $region47: #{tpu_custom_call.1} parent=11 // pred_region
          %s543 = ssub.s32 48, 48
          %544 = vsyncadd [#allocation28], %s543
          %s545 = sshll.u32 [#allocation27], 4
          %s546 = int_to_ptr.vmem [resolvable:$true] %s545
          %551 = dma.hbm_to_vmem [thread:$0]  %s13, 48, %s546, [#allocation28], 16, 16, 1
        $region48: #{tpu_custom_call.1} parent=11 // pred_fallthru
          _
        // Predicated region
        $region49: #{tpu_custom_call.1} parent=11 // pred_check
          %p552 = pneg %p396
        $region50: #{tpu_custom_call.1} parent=11 // pred_check_branch
          %554 = sbr.rel (%p552) target = $region52
        $region51: #{tpu_custom_call.1} parent=11 // pred_region
          %s556 = ssub.s32 48, 48
          %557 = vsyncadd [#allocation28], %s556
          %s558 = sshll.u32 [#allocation29], 4
          %s559 = int_to_ptr.vmem [resolvable:$true] %s558
          %564 = dma.hbm_to_vmem [thread:$0]  %s14, 48, %s559, [#allocation28], 16, 16, 1
        $region52: #{tpu_custom_call.1} parent=11 // pred_fallthru
          _
      $region12: #{tpu_custom_call.1} parent=5 // pred_fallthru
        _
      %p565 = scmp.lt.s32.totalorder %s38, 2
      // Predicated region
      $region53: #{tpu_custom_call.1} parent=5 // pred_check
        %p566 = pneg %p565
      $region54: #{tpu_custom_call.1} parent=5 // pred_check_branch
        %568 = sbr.rel (%p566) target = $region56
      $region55: #{tpu_custom_call.1} parent=5 // pred_region
        // Predicated region
        $region57: #{tpu_custom_call.1} parent=55 // pred_check
          %p569 = pneg %p72
        $region58: #{tpu_custom_call.1} parent=55 // pred_check_branch
          %571 = sbr.rel (%p569) target = $region60
        $region59: #{tpu_custom_call.1} parent=55 // pred_region
          %s572 = sand.u32 %s62, 1
          %s573 = scalar_lea.sflag [#allocation7], %s572
          %s574 = sand.u32 %s62, 1
          %s575 = smul.addr %s574, 8
          %s576 = scalar_lea.vmem [#allocation6], %s575
          %s578 = ssub.s32 128, 128
          %579 = vsyncadd %s573, %s578
          %s580 = sadd.s32 %s46, %s45
          %s581 = smul.addr %s580, 128
          %s582 = scalar_lea.hbm %s0, %s581
          %s584 = sshll.u32 %s576, 4
          %s585 = int_to_ptr.vmem [resolvable:$true] %s584
          %587 = dma.hbm_to_vmem [thread:$0]  %s582, 128, %s585, %s573
        $region60: #{tpu_custom_call.1} parent=55 // pred_fallthru
          _
        // Predicated region
        $region61: #{tpu_custom_call.1} parent=55 // pred_check
          %p588 = pneg %p98
        $region62: #{tpu_custom_call.1} parent=55 // pred_check_branch
          %590 = sbr.rel (%p588) target = $region64
        $region63: #{tpu_custom_call.1} parent=55 // pred_region
          %s591 = sand.u32 %s38, 1
          %s592 = scalar_lea.sflag [#allocation10], %s591
          %s593 = sand.u32 %s88, 1
          %s594 = smul.addr %s593, 4
          %s595 = scalar_lea.vmem [#allocation9], %s594
          %s597 = ssub.s32 64, 64
          %598 = vsyncadd %s592, %s597
          %s599 = smul.addr %s45, 64
          %s600 = scalar_lea.hbm %s1, %s599
          %s602 = sshll.u32 %s595, 4
          %s603 = int_to_ptr.vmem [resolvable:$true] %s602
          %605 = dma.hbm_to_vmem [thread:$0]  %s600, 64, %s603, %s592
        $region64: #{tpu_custom_call.1} parent=55 // pred_fallthru
          _
        // Predicated region
        $region65: #{tpu_custom_call.1} parent=55 // pred_check
          %p606 = pneg %p124
        $region66: #{tpu_custom_call.1} parent=55 // pred_check_branch
          %608 = sbr.rel (%p606) target = $region68
        $region67: #{tpu_custom_call.1} parent=55 // pred_region
          %s609 = sand.u32 %s38, 1
          %s610 = scalar_lea.sflag [#allocation10], %s609
          %s611 = sand.u32 %s114, 1
          %s612 = smul.addr %s611, 4
          %s613 = scalar_lea.vmem [#allocation11], %s612
          %s615 = ssub.s32 64, 64
          %616 = vsyncadd %s610, %s615
          %s617 = smul.addr %s45, 64
          %s618 = scalar_lea.hbm %s2, %s617
          %s620 = sshll.u32 %s613, 4
          %s621 = int_to_ptr.vmem [resolvable:$true] %s620
          %623 = dma.hbm_to_vmem [thread:$0]  %s618, 64, %s621, %s610
        $region68: #{tpu_custom_call.1} parent=55 // pred_fallthru
          _
        // Predicated region
        $region69: #{tpu_custom_call.1} parent=55 // pred_check
          %p624 = pneg %p152
        $region70: #{tpu_custom_call.1} parent=55 // pred_check_branch
          %626 = sbr.rel (%p624) target = $region72
        $region71: #{tpu_custom_call.1} parent=55 // pred_region
          %s627 = sand.u32 %s38, 1
          %s628 = scalar_lea.sflag [#allocation13], %s627
          %s629 = sand.u32 %s142, 1
          %s630 = smul.addr %s629, 4
          %s631 = scalar_lea.vmem [#allocation12], %s630
          %s633 = ssub.s32 64, 64
          %634 = vsyncadd %s628, %s633
          %s635 = sadd.s32 %s46, %s45
          %s636 = smul.addr %s635, 64
          %s637 = scalar_lea.hbm %s3, %s636
          %s639 = sshll.u32 %s631, 4
          %s640 = int_to_ptr.vmem [resolvable:$true] %s639
          %642 = dma.hbm_to_vmem [thread:$0]  %s637, 64, %s640, %s628
        $region72: #{tpu_custom_call.1} parent=55 // pred_fallthru
          _
        // Predicated region
        $region73: #{tpu_custom_call.1} parent=55 // pred_check
          %p643 = pneg %p180
        $region74: #{tpu_custom_call.1} parent=55 // pred_check_branch
          %645 = sbr.rel (%p643) target = $region76
        $region75: #{tpu_custom_call.1} parent=55 // pred_region
          %s646 = sand.u32 %s38, 1
          %s647 = scalar_lea.sflag [#allocation13], %s646
          %s648 = sand.u32 %s170, 1
          %s649 = smul.addr %s648, 4
          %s650 = scalar_lea.vmem [#allocation14], %s649
          %s652 = ssub.s32 64, 64
          %653 = vsyncadd %s647, %s652
          %s654 = sadd.s32 %s46, %s45
          %s655 = smul.addr %s654, 64
          %s656 = scalar_lea.hbm %s4, %s655
          %s658 = sshll.u32 %s650, 4
          %s659 = int_to_ptr.vmem [resolvable:$true] %s658
          %661 = dma.hbm_to_vmem [thread:$0]  %s656, 64, %s659, %s647
        $region76: #{tpu_custom_call.1} parent=55 // pred_fallthru
          _
      $region56: #{tpu_custom_call.1} parent=5 // pred_fallthru
        _
      %p662 = scmp.le.s32.totalorder 1, %s38
      %p663 = scmp.lt.s32.totalorder %s38, 3
      %p664 = pnand %p662, %p663
      %p665 = pneg %p664
      // Predicated region
      $region77: #{tpu_custom_call.1} parent=5 // pred_check
        _
      $region78: #{tpu_custom_call.1} parent=5 // pred_check_branch
        %667 = sbr.rel (%p664) target = $region80
      $region79: #{tpu_custom_call.1} parent=5 // pred_region
        %s668 = ssub.s32 %s38, 1
        %s669 = sand.u32 %s65, 1
        %s670 = scalar_lea.sflag [#allocation7], %s669
        %s671 = sand.u32 %s65, 1
        %s672 = smul.addr %s671, 8
        %s673 = scalar_lea.vmem [#allocation6], %s672
        // Predicated region
        $region81: #{tpu_custom_call.1} parent=79 // pred_check
          %p674 = pneg %p78
        $region82: #{tpu_custom_call.1} parent=79 // pred_check_branch
          %676 = sbr.rel (%p674) target = $region84
        $region83: #{tpu_custom_call.1} parent=79 // pred_region
          %677 = dma.done %s670, 128
        $region84: #{tpu_custom_call.1} parent=79 // pred_fallthru
          _
        %s678 = sand.u32 %s43, 1
        %s679 = scalar_lea.sflag [#allocation10], %s678
        %s680 = sand.u32 %s91, 1
        %s681 = smul.addr %s680, 4
        %s682 = scalar_lea.vmem [#allocation9], %s681
        // Predicated region
        $region85: #{tpu_custom_call.1} parent=79 // pred_check
          %p683 = pneg %p104
        $region86: #{tpu_custom_call.1} parent=79 // pred_check_branch
          %685 = sbr.rel (%p683) target = $region88
        $region87: #{tpu_custom_call.1} parent=79 // pred_region
          %686 = dma.done %s679, 64
        $region88: #{tpu_custom_call.1} parent=79 // pred_fallthru
          _
        %s687 = sand.u32 %s43, 1
        %s688 = scalar_lea.sflag [#allocation10], %s687
        %s689 = sand.u32 %s117, 1
        %s690 = smul.addr %s689, 4
        %s691 = scalar_lea.vmem [#allocation11], %s690
        // Predicated region
        $region89: #{tpu_custom_call.1} parent=79 // pred_check
          %p692 = pneg %p130
        $region90: #{tpu_custom_call.1} parent=79 // pred_check_branch
          %694 = sbr.rel (%p692) target = $region92
        $region91: #{tpu_custom_call.1} parent=79 // pred_region
          %695 = dma.done %s688, 64
        $region92: #{tpu_custom_call.1} parent=79 // pred_fallthru
          _
        %s696 = sand.u32 %s43, 1
        %s697 = scalar_lea.sflag [#allocation13], %s696
        %s698 = sand.u32 %s145, 1
        %s699 = smul.addr %s698, 4
        %s700 = scalar_lea.vmem [#allocation12], %s699
        // Predicated region
        $region93: #{tpu_custom_call.1} parent=79 // pred_check
          %p701 = pneg %p158
        $region94: #{tpu_custom_call.1} parent=79 // pred_check_branch
          %703 = sbr.rel (%p701) target = $region96
        $region95: #{tpu_custom_call.1} parent=79 // pred_region
          %704 = dma.done %s697, 64
        $region96: #{tpu_custom_call.1} parent=79 // pred_fallthru
          _
        %s705 = sand.u32 %s43, 1
        %s706 = scalar_lea.sflag [#allocation13], %s705
        %s707 = sand.u32 %s173, 1
        %s708 = smul.addr %s707, 4
        %s709 = scalar_lea.vmem [#allocation14], %s708
        // Predicated region
        $region97: #{tpu_custom_call.1} parent=79 // pred_check
          %p710 = pneg %p186
        $region98: #{tpu_custom_call.1} parent=79 // pred_check_branch
          %712 = sbr.rel (%p710) target = $region100
        $region99: #{tpu_custom_call.1} parent=79 // pred_region
          %713 = dma.done %s706, 64
        $region100: #{tpu_custom_call.1} parent=79 // pred_fallthru
          _
        // Predicated region
        $region101: #{tpu_custom_call.1} parent=79 // pred_check
          %p714 = pneg %p207
        $region102: #{tpu_custom_call.1} parent=79 // pred_check_branch
          %716 = sbr.rel (%p714) target = $region104
        $region103: #{tpu_custom_call.1} parent=79 // pred_region
          %717 = dma.done [#allocation16], 1024
        $region104: #{tpu_custom_call.1} parent=79 // pred_fallthru
          _
        // Predicated region
        $region105: #{tpu_custom_call.1} parent=79 // pred_check
          %p718 = pneg %p228
        $region106: #{tpu_custom_call.1} parent=79 // pred_check_branch
          %720 = sbr.rel (%p718) target = $region108
        $region107: #{tpu_custom_call.1} parent=79 // pred_region
          %721 = dma.done [#allocation16], 64
        $region108: #{tpu_custom_call.1} parent=79 // pred_fallthru
          _
        // Predicated region
        $region109: #{tpu_custom_call.1} parent=79 // pred_check
          %p722 = pneg %p249
        $region110: #{tpu_custom_call.1} parent=79 // pred_check_branch
          %724 = sbr.rel (%p722) target = $region112
        $region111: #{tpu_custom_call.1} parent=79 // pred_region
          %725 = dma.done [#allocation19], 1024
        $region112: #{tpu_custom_call.1} parent=79 // pred_fallthru
          _
        // Predicated region
        $region113: #{tpu_custom_call.1} parent=79 // pred_check
          %p726 = pneg %p270
        $region114: #{tpu_custom_call.1} parent=79 // pred_check_branch
          %728 = sbr.rel (%p726) target = $region116
        $region115: #{tpu_custom_call.1} parent=79 // pred_region
          %729 = dma.done [#allocation19], 64
        $region116: #{tpu_custom_call.1} parent=79 // pred_fallthru
          _
        // Predicated region
        $region117: #{tpu_custom_call.1} parent=79 // pred_check
          %p730 = pneg %p291
        $region118: #{tpu_custom_call.1} parent=79 // pred_check_branch
          %732 = sbr.rel (%p730) target = $region120
        $region119: #{tpu_custom_call.1} parent=79 // pred_region
          %733 = dma.done [#allocation22], 256
        $region120: #{tpu_custom_call.1} parent=79 // pred_fallthru
          _
        // Predicated region
        $region121: #{tpu_custom_call.1} parent=79 // pred_check
          %p734 = pneg %p312
        $region122: #{tpu_custom_call.1} parent=79 // pred_check_branch
          %736 = sbr.rel (%p734) target = $region124
        $region123: #{tpu_custom_call.1} parent=79 // pred_region
          %737 = dma.done [#allocation22], 16
        $region124: #{tpu_custom_call.1} parent=79 // pred_fallthru
          _
        // Predicated region
        $region125: #{tpu_custom_call.1} parent=79 // pred_check
          %p738 = pneg %p333
        $region126: #{tpu_custom_call.1} parent=79 // pred_check_branch
          %740 = sbr.rel (%p738) target = $region128
        $region127: #{tpu_custom_call.1} parent=79 // pred_region
          %741 = dma.done [#allocation25], 512
        $region128: #{tpu_custom_call.1} parent=79 // pred_fallthru
          _
        // Predicated region
        $region129: #{tpu_custom_call.1} parent=79 // pred_check
          %p742 = pneg %p354
        $region130: #{tpu_custom_call.1} parent=79 // pred_check_branch
          %744 = sbr.rel (%p742) target = $region132
        $region131: #{tpu_custom_call.1} parent=79 // pred_region
          %745 = dma.done [#allocation25], 16
        $region132: #{tpu_custom_call.1} parent=79 // pred_fallthru
          _
        // Predicated region
        $region133: #{tpu_custom_call.1} parent=79 // pred_check
          %p746 = pneg %p375
        $region134: #{tpu_custom_call.1} parent=79 // pred_check_branch
          %748 = sbr.rel (%p746) target = $region136
        $region135: #{tpu_custom_call.1} parent=79 // pred_region
          %749 = dma.done [#allocation28], 48
        $region136: #{tpu_custom_call.1} parent=79 // pred_fallthru
          _
        // Predicated region
        $region137: #{tpu_custom_call.1} parent=79 // pred_check
          %p750 = pneg %p396
        $region138: #{tpu_custom_call.1} parent=79 // pred_check_branch
          %752 = sbr.rel (%p750) target = $region140
        $region139: #{tpu_custom_call.1} parent=79 // pred_region
          %753 = dma.done [#allocation28], 48
        $region140: #{tpu_custom_call.1} parent=79 // pred_fallthru
          _
        %s754 = sand.u32 %s65, 1
        %s755 = scalar_lea.sflag [#allocation7], %s754
        %s756 = sand.u32 %s65, 1
        %s757 = smul.addr %s756, 8
        %s758 = scalar_lea.vmem [#allocation6], %s757
        %p759 = pneg %p78
        %p760 = pneg %p75
        %s761 = sand.u32 %s43, 1
        %s762 = scalar_lea.sflag [#allocation10], %s761
        %s763 = sand.u32 %s91, 1
        %s764 = smul.addr %s763, 4
        %s765 = scalar_lea.vmem [#allocation9], %s764
        %p766 = pneg %p104
        %p767 = pneg %p101
        %s768 = sand.u32 %s43, 1
        %s769 = scalar_lea.sflag [#allocation10], %s768
        %s770 = sand.u32 %s117, 1
        %s771 = smul.addr %s770, 4
        %s772 = scalar_lea.vmem [#allocation11], %s771
        %p773 = pneg %p130
        %p774 = pneg %p127
        %s775 = sand.u32 %s43, 1
        %s776 = scalar_lea.sflag [#allocation13], %s775
        %s777 = sand.u32 %s145, 1
        %s778 = smul.addr %s777, 4
        %s779 = scalar_lea.vmem [#allocation12], %s778
        %p780 = pneg %p158
        %p781 = pneg %p155
        %s782 = sand.u32 %s43, 1
        %s783 = scalar_lea.sflag [#allocation13], %s782
        %s784 = sand.u32 %s173, 1
        %s785 = smul.addr %s784, 4
        %s786 = scalar_lea.vmem [#allocation14], %s785
        %p787 = pneg %p186
        %p788 = pneg %p183
        %p789 = pneg %p207
        %p790 = pneg %p204
        %p791 = pneg %p228
        %p792 = pneg %p225
        %p793 = pneg %p249
        %p794 = pneg %p246
        %p795 = pneg %p270
        %p796 = pneg %p267
        %p797 = pneg %p291
        %p798 = pneg %p288
        %p799 = pneg %p312
        %p800 = pneg %p309
        %p801 = pneg %p333
        %p802 = pneg %p330
        %p803 = pneg %p354
        %p804 = pneg %p351
        %p805 = pneg %p375
        %p806 = pneg %p372
        %p807 = pneg %p396
        %p808 = pneg %p393
        %p809 = pneg %p424
        %p810 = pneg %p421
        %s811 = sand.u32 %s411, 1
        %s812 = scalar_lea.sflag [#allocation8], %s811
        %s813 = sand.u32 %s411, 1
        %s814 = smul.addr %s813, 8
        %s815 = scalar_lea.vmem [#allocation30], %s814
        %p817 = scmp.eq.s32.totalorder %s48, 0
        // Predicated region
        $region141: #{tpu_custom_call.1} parent=79 // pred_check
          %p818 = pneg %p817
        $region142: #{tpu_custom_call.1} parent=79 // pred_check_branch
          %820 = sbr.rel (%p818) target = $region144
        $region143: #{tpu_custom_call.1} parent=79 // pred_region
          %v821 = vld [vmem:[%s682] sm:$0xf]
          %v822 = vld [vmem:[%s691] sm:$0xf]
          %s823 = scalar_lea.vmem [#allocation15], 16
          %v824 = vld [vmem:[%s823] sm:$0xf]
          %v825 = vld [vmem:[%s823 + $0x4] sm:$0xf]
          %v826 = vld [vmem:[%s823 + $0x8] sm:$0xf]
          %v827 = vld [vmem:[%s823 + $0xc] sm:$0xf]
          %s828 = scalar_lea.vmem [#allocation17], 1
          %v829 = vld [vmem:[%s828] sm:$0x1]
          %v831 = vlaneseq
          %v832 = vshrl.u32 %v831, 7
          %v833 = vsub.s32 0, %v832
          %v834 = vrot.slane %v829, %v833
          %v840 = vunpack.c.l.b16 %v824
          %v841 = vunpack.c.l.b16 %v825
          %v842 = vunpack.c.l.b16 %v826
          %v843 = vunpack.c.l.b16 %v827
          %v844 = vpack.c.b16 %v841, %v840
          %v845 = vpack.c.b16 %v843, %v842
          %vm848 = vcmask 261120
          %v850 = vsel %vm848, %v821, 0
          %852 = vmatprep.subr.bf16.mxu0 0
          %853 = vmatpush1.bf16.msra.mxu0 %v844
          %854 = vmatprep.subr.bf16.mxu0 0
          %855 = vmatpush1.bf16.msra.mxu0 %v845
          %856 = vmatprep.subr.bf16.mxu0 0
          %857 = vmatpush1.bf16.msra.mxu0 0
          %858 = vmatprep.subr.bf16.mxu0 0
          %859 = vmatpush1.bf16.msra.mxu0 0
          %860 = vmatprep.subr.bf16.mxu0 0
          %861 = vmatpush1.bf16.msra.mxu0 0
          %862 = vmatprep.subr.bf16.mxu0 0
          %863 = vmatpush1.bf16.msra.mxu0 0
          %864 = vmatprep.subr.bf16.mxu0 0
          %865 = vmatpush1.bf16.msra.mxu0 0
          %866 = vmatprep.subr.bf16.mxu0 0
          %867 = vmatpush1.bf16.msra.mxu0 0
          %868 = vmatprep.subr.bf16.mxu0 0
          %869 = vmatpush1.bf16.msra.mxu0 0
          %870 = vmatprep.subr.bf16.mxu0 0
          %871 = vmatpush1.bf16.msra.mxu0 0
          %872 = vmatprep.subr.bf16.mxu0 0
          %873 = vmatpush1.bf16.msra.mxu0 0
          %874 = vmatprep.subr.bf16.mxu0 0
          %875 = vmatpush1.bf16.msra.mxu0 0
          %876 = vmatprep.subr.bf16.mxu0 0
          %877 = vmatpush1.bf16.msra.mxu0 0
          %878 = vmatprep.subr.bf16.mxu0 0
          %879 = vmatpush1.bf16.msra.mxu0 0
          %880 = vmatprep.subr.bf16.mxu0 0
          %881 = vmatpush1.bf16.msra.mxu0 0
          %882 = vmatprep.subr.bf16.mxu0 0
          %883 = vmatpush1.bf16.msra.mxu0 0
          %884 = vmatprep.mubr.bf16.mxu0 0
          %885 = vmatmul.mubr.bf16.gmra.mrb[0].mxu0 %v850
          %v886 = vpop.f32.mrb[0].mxu0
          %v887 = vadd.f32 %v834, %v886
          %v888 = vpop.f32.mrb[0].mxu0
          %v889 = vpop.f32.mrb[0].mxu0
          %v890 = vpop.f32.mrb[0].mxu0
          %891 = vdwg.mxu0
          %v892 = vpack.c.bf16 %v887, %v887
          %vm893 = vcmask 257024
          %894 = vst.msk [vmem:[#allocation2] sm:$0xf] %vm893, %v892
          %v895 = vld [vmem:[#allocation15] sm:$0xf]
          %v896 = vld [vmem:[#allocation15 + $0x4] sm:$0xf]
          %v897 = vld [vmem:[#allocation15 + $0x8] sm:$0xf]
          %v898 = vld [vmem:[#allocation15 + $0xc] sm:$0xf]
          %v899 = vld [vmem:[#allocation17] sm:$0x1]
          %v901 = vlaneseq
          %v902 = vshrl.u32 %v901, 7
          %v903 = vsub.s32 0, %v902
          %v904 = vrot.slane %v899, %v903
          %v910 = vunpack.c.l.b16 %v895
          %v911 = vunpack.c.l.b16 %v896
          %v912 = vunpack.c.l.b16 %v897
          %v913 = vunpack.c.l.b16 %v898
          %v914 = vpack.c.b16 %v911, %v910
          %v915 = vpack.c.b16 %v913, %v912
          %918 = vmatprep.subr.bf16.mxu0 0
          %919 = vmatpush1.bf16.msra.mxu0 %v914
          %920 = vmatprep.subr.bf16.mxu0 0
          %921 = vmatpush1.bf16.msra.mxu0 %v915
          %922 = vmatprep.subr.bf16.mxu0 0
          %923 = vmatpush1.bf16.msra.mxu0 0
          %924 = vmatprep.subr.bf16.mxu0 0
          %925 = vmatpush1.bf16.msra.mxu0 0
          %926 = vmatprep.subr.bf16.mxu0 0
          %927 = vmatpush1.bf16.msra.mxu0 0
          %928 = vmatprep.subr.bf16.mxu0 0
          %929 = vmatpush1.bf16.msra.mxu0 0
          %930 = vmatprep.subr.bf16.mxu0 0
          %931 = vmatpush1.bf16.msra.mxu0 0
          %932 = vmatprep.subr.bf16.mxu0 0
          %933 = vmatpush1.bf16.msra.mxu0 0
          %934 = vmatprep.subr.bf16.mxu0 0
          %935 = vmatpush1.bf16.msra.mxu0 0
          %936 = vmatprep.subr.bf16.mxu0 0
          %937 = vmatpush1.bf16.msra.mxu0 0
          %938 = vmatprep.subr.bf16.mxu0 0
          %939 = vmatpush1.bf16.msra.mxu0 0
          %940 = vmatprep.subr.bf16.mxu0 0
          %941 = vmatpush1.bf16.msra.mxu0 0
          %942 = vmatprep.subr.bf16.mxu0 0
          %943 = vmatpush1.bf16.msra.mxu0 0
          %944 = vmatprep.subr.bf16.mxu0 0
          %945 = vmatpush1.bf16.msra.mxu0 0
          %946 = vmatprep.subr.bf16.mxu0 0
          %947 = vmatpush1.bf16.msra.mxu0 0
          %948 = vmatprep.subr.bf16.mxu0 0
          %949 = vmatpush1.bf16.msra.mxu0 0
          %950 = vmatprep.mubr.bf16.mxu0 0
          %951 = vmatmul.mubr.bf16.gmra.mrb[0].mxu0 %v850
          %v952 = vpop.f32.mrb[0].mxu0
          %v953 = vadd.f32 %v904, %v952
          %v954 = vpop.f32.mrb[0].mxu0
          %v955 = vpop.f32.mrb[0].mxu0
          %v956 = vpop.f32.mrb[0].mxu0
          %957 = vdwg.mxu0
          %v958 = vpack.c.bf16 %v953, %v953
          %959 = vst.msk [vmem:[#allocation3] sm:$0xf] %vm893, %v958
          %s960 = scalar_lea.vmem [#allocation18], 16
          %v961 = vld [vmem:[%s960] sm:$0xf]
          %v962 = vld [vmem:[%s960 + $0x4] sm:$0xf]
          %v963 = vld [vmem:[%s960 + $0x8] sm:$0xf]
          %v964 = vld [vmem:[%s960 + $0xc] sm:$0xf]
          %s965 = scalar_lea.vmem [#allocation20], 1
          %v966 = vld [vmem:[%s965] sm:$0x1]
          %v968 = vlaneseq
          %v969 = vshrl.u32 %v968, 7
          %v970 = vsub.s32 0, %v969
          %v971 = vrot.slane %v966, %v970
          %v977 = vunpack.c.l.b16 %v961
          %v978 = vunpack.c.l.b16 %v962
          %v979 = vunpack.c.l.b16 %v963
          %v980 = vunpack.c.l.b16 %v964
          %v981 = vpack.c.b16 %v978, %v977
          %v982 = vpack.c.b16 %v980, %v979
          %v986 = vsel %vm848, %v822, 0
          %988 = vmatprep.subr.bf16.mxu0 0
          %989 = vmatpush1.bf16.msra.mxu0 %v981
          %990 = vmatprep.subr.bf16.mxu0 0
          %991 = vmatpush1.bf16.msra.mxu0 %v982
          %992 = vmatprep.subr.bf16.mxu0 0
          %993 = vmatpush1.bf16.msra.mxu0 0
          %994 = vmatprep.subr.bf16.mxu0 0
          %995 = vmatpush1.bf16.msra.mxu0 0
          %996 = vmatprep.subr.bf16.mxu0 0
          %997 = vmatpush1.bf16.msra.mxu0 0
          %998 = vmatprep.subr.bf16.mxu0 0
          %999 = vmatpush1.bf16.msra.mxu0 0
          %1000 = vmatprep.subr.bf16.mxu0 0
          %1001 = vmatpush1.bf16.msra.mxu0 0
          %1002 = vmatprep.subr.bf16.mxu0 0
          %1003 = vmatpush1.bf16.msra.mxu0 0
          %1004 = vmatprep.subr.bf16.mxu0 0
          %1005 = vmatpush1.bf16.msra.mxu0 0
          %1006 = vmatprep.subr.bf16.mxu0 0
          %1007 = vmatpush1.bf16.msra.mxu0 0
          %1008 = vmatprep.subr.bf16.mxu0 0
          %1009 = vmatpush1.bf16.msra.mxu0 0
          %1010 = vmatprep.subr.bf16.mxu0 0
          %1011 = vmatpush1.bf16.msra.mxu0 0
          %1012 = vmatprep.subr.bf16.mxu0 0
          %1013 = vmatpush1.bf16.msra.mxu0 0
          %1014 = vmatprep.subr.bf16.mxu0 0
          %1015 = vmatpush1.bf16.msra.mxu0 0
          %1016 = vmatprep.subr.bf16.mxu0 0
          %1017 = vmatpush1.bf16.msra.mxu0 0
          %1018 = vmatprep.subr.bf16.mxu0 0
          %1019 = vmatpush1.bf16.msra.mxu0 0
          %1020 = vmatprep.mubr.bf16.mxu0 0
          %1021 = vmatmul.mubr.bf16.gmra.mrb[0].mxu0 %v986
          %v1022 = vpop.f32.mrb[0].mxu0
          %v1023 = vadd.f32 %v971, %v1022
          %v1024 = vpop.f32.mrb[0].mxu0
          %v1025 = vpop.f32.mrb[0].mxu0
          %v1026 = vpop.f32.mrb[0].mxu0
          %1027 = vdwg.mxu0
          %v1028 = vpack.c.bf16 %v1023, %v1023
          %1029 = vst.msk [vmem:[#allocation4] sm:$0xf] %vm893, %v1028
          %v1030 = vld [vmem:[#allocation18] sm:$0xf]
          %v1031 = vld [vmem:[#allocation18 + $0x4] sm:$0xf]
          %v1032 = vld [vmem:[#allocation18 + $0x8] sm:$0xf]
          %v1033 = vld [vmem:[#allocation18 + $0xc] sm:$0xf]
          %v1034 = vld [vmem:[#allocation20] sm:$0x1]
          %v1036 = vlaneseq
          %v1037 = vshrl.u32 %v1036, 7
          %v1038 = vsub.s32 0, %v1037
          %v1039 = vrot.slane %v1034, %v1038
          %v1045 = vunpack.c.l.b16 %v1030
          %v1046 = vunpack.c.l.b16 %v1031
          %v1047 = vunpack.c.l.b16 %v1032
          %v1048 = vunpack.c.l.b16 %v1033
          %v1049 = vpack.c.b16 %v1046, %v1045
          %v1050 = vpack.c.b16 %v1048, %v1047
          %1053 = vmatprep.subr.bf16.mxu0 0
          %1054 = vmatpush1.bf16.msra.mxu0 %v1049
          %1055 = vmatprep.subr.bf16.mxu0 0
          %1056 = vmatpush1.bf16.msra.mxu0 %v1050
          %1057 = vmatprep.subr.bf16.mxu0 0
          %1058 = vmatpush1.bf16.msra.mxu0 0
          %1059 = vmatprep.subr.bf16.mxu0 0
          %1060 = vmatpush1.bf16.msra.mxu0 0
          %1061 = vmatprep.subr.bf16.mxu0 0
          %1062 = vmatpush1.bf16.msra.mxu0 0
          %1063 = vmatprep.subr.bf16.mxu0 0
          %1064 = vmatpush1.bf16.msra.mxu0 0
          %1065 = vmatprep.subr.bf16.mxu0 0
          %1066 = vmatpush1.bf16.msra.mxu0 0
          %1067 = vmatprep.subr.bf16.mxu0 0
          %1068 = vmatpush1.bf16.msra.mxu0 0
          %1069 = vmatprep.subr.bf16.mxu0 0
          %1070 = vmatpush1.bf16.msra.mxu0 0
          %1071 = vmatprep.subr.bf16.mxu0 0
          %1072 = vmatpush1.bf16.msra.mxu0 0
          %1073 = vmatprep.subr.bf16.mxu0 0
          %1074 = vmatpush1.bf16.msra.mxu0 0
          %1075 = vmatprep.subr.bf16.mxu0 0
          %1076 = vmatpush1.bf16.msra.mxu0 0
          %1077 = vmatprep.subr.bf16.mxu0 0
          %1078 = vmatpush1.bf16.msra.mxu0 0
          %1079 = vmatprep.subr.bf16.mxu0 0
          %1080 = vmatpush1.bf16.msra.mxu0 0
          %1081 = vmatprep.subr.bf16.mxu0 0
          %1082 = vmatpush1.bf16.msra.mxu0 0
          %1083 = vmatprep.subr.bf16.mxu0 0
          %1084 = vmatpush1.bf16.msra.mxu0 0
          %1085 = vmatprep.mubr.bf16.mxu0 0
          %1086 = vmatmul.mubr.bf16.gmra.mrb[0].mxu0 %v986
          %v1087 = vpop.f32.mrb[0].mxu0
          %v1088 = vadd.f32 %v1039, %v1087
          %v1089 = vpop.f32.mrb[0].mxu0
          %v1090 = vpop.f32.mrb[0].mxu0
          %v1091 = vpop.f32.mrb[0].mxu0
          %1092 = vdwg.mxu0
          %v1093 = vpack.c.bf16 %v1088, %v1088
          %1094 = vst.msk [vmem:[#allocation5] sm:$0xf] %vm893, %v1093
        $region144: #{tpu_custom_call.1} parent=79 // pred_fallthru
          _
        %v1095 = vld [vmem:[%s673] sm:$0xff]
        %v1096 = vpack.c.bf16 %v1095, %v1095
        %s1097 = scalar_lea.vmem [#allocation15], 32
        %v1098 = vld [vmem:[%s1097] sm:$0xf]
        %v1099 = vld [vmem:[%s1097 + $0x4] sm:$0xf]
        %v1100 = vld [vmem:[%s1097 + $0x8] sm:$0xf]
        %v1101 = vld [vmem:[%s1097 + $0xc] sm:$0xf]
        %s1102 = scalar_lea.vmem [#allocation17], 2
        %v1103 = vld [vmem:[%s1102] sm:$0x1]
        %v1105 = vlaneseq
        %v1106 = vshrl.u32 %v1105, 7
        %v1107 = vsub.s32 0, %v1106
        %v1108 = vrot.slane %v1103, %v1107
        %v1114 = vunpack.c.l.b16 %v1098
        %v1115 = vunpack.c.l.b16 %v1099
        %v1116 = vunpack.c.l.b16 %v1100
        %v1117 = vunpack.c.l.b16 %v1101
        %v1118 = vpack.c.b16 %v1115, %v1114
        %v1119 = vpack.c.b16 %v1117, %v1116
        %vm1122 = vcmask 261120
        %v1124 = vsel %vm1122, %v1096, 0
        %1126 = vmatprep.subr.bf16.mxu0 0
        %1127 = vmatpush1.bf16.msra.mxu0 %v1118
        %1128 = vmatprep.subr.bf16.mxu0 0
        %1129 = vmatpush1.bf16.msra.mxu0 %v1119
        %1130 = vmatprep.subr.bf16.mxu0 0
        %1131 = vmatpush1.bf16.msra.mxu0 0
        %1132 = vmatprep.subr.bf16.mxu0 0
        %1133 = vmatpush1.bf16.msra.mxu0 0
        %1134 = vmatprep.subr.bf16.mxu0 0
        %1135 = vmatpush1.bf16.msra.mxu0 0
        %1136 = vmatprep.subr.bf16.mxu0 0
        %1137 = vmatpush1.bf16.msra.mxu0 0
        %1138 = vmatprep.subr.bf16.mxu0 0
        %1139 = vmatpush1.bf16.msra.mxu0 0
        %1140 = vmatprep.subr.bf16.mxu0 0
        %1141 = vmatpush1.bf16.msra.mxu0 0
        %1142 = vmatprep.subr.bf16.mxu0 0
        %1143 = vmatpush1.bf16.msra.mxu0 0
        %1144 = vmatprep.subr.bf16.mxu0 0
        %1145 = vmatpush1.bf16.msra.mxu0 0
        %1146 = vmatprep.subr.bf16.mxu0 0
        %1147 = vmatpush1.bf16.msra.mxu0 0
        %1148 = vmatprep.subr.bf16.mxu0 0
        %1149 = vmatpush1.bf16.msra.mxu0 0
        %1150 = vmatprep.subr.bf16.mxu0 0
        %1151 = vmatpush1.bf16.msra.mxu0 0
        %1152 = vmatprep.subr.bf16.mxu0 0
        %1153 = vmatpush1.bf16.msra.mxu0 0
        %1154 = vmatprep.subr.bf16.mxu0 0
        %1155 = vmatpush1.bf16.msra.mxu0 0
        %1156 = vmatprep.subr.bf16.mxu0 0
        %1157 = vmatpush1.bf16.msra.mxu0 0
        %1158 = vmatprep.mubr.bf16.mxu0 0
        %1159 = vmatmul.mubr.bf16.gmra.mrb[0].mxu0 %v1124
        %v1160 = vpop.f32.mrb[0].mxu0
        %v1161 = vadd.f32 %v1108, %v1160
        %v1162 = vpop.f32.mrb[0].mxu0
        %v1163 = vpop.f32.mrb[0].mxu0
        %v1164 = vpop.f32.mrb[0].mxu0
        %1165 = vdwg.mxu0
        %v1166 = vld [vmem:[%s700] sm:$0xf]
        %v1167 = vpack.c.bf16 %v1161, %v1161
        %v1168 = vld [vmem:[#allocation2] sm:$0xf]
        %v1169 = vld [vmem:[#allocation3] sm:$0xf]
        %v1170 = vunpack.c.l.bf16 %v1166
        %vm1171 = vcmask 31744
        %v1173 = vsel %vm1171, %v1167, 0
        %v1176 = vsel %vm1171, %v1168, 0
        %1178 = vmatprep.subr.bf16.mxu0 0
        %1179 = vmatpush1.bf16.xpose.msra.mxu0 %v1176
        %1180 = vmatprep.subr.bf16.mxu0 0
        %1181 = vmatpush1.bf16.xpose.msra.mxu0 0
        %1182 = vmatprep.subr.bf16.mxu0 0
        %1183 = vmatpush1.bf16.xpose.msra.mxu0 0
        %1184 = vmatprep.subr.bf16.mxu0 0
        %1185 = vmatpush1.bf16.xpose.msra.mxu0 0
        %1186 = vmatprep.subr.bf16.mxu0 0
        %1187 = vmatpush1.bf16.xpose.msra.mxu0 0
        %1188 = vmatprep.subr.bf16.mxu0 0
        %1189 = vmatpush1.bf16.xpose.msra.mxu0 0
        %1190 = vmatprep.subr.bf16.mxu0 0
        %1191 = vmatpush1.bf16.xpose.msra.mxu0 0
        %1192 = vmatprep.subr.bf16.mxu0 0
        %1193 = vmatpush1.bf16.xpose.msra.mxu0 0
        %1194 = vmatprep.subr.bf16.mxu0 0
        %1195 = vmatpush1.bf16.xpose.msra.mxu0 0
        %1196 = vmatprep.subr.bf16.mxu0 0
        %1197 = vmatpush1.bf16.xpose.msra.mxu0 0
        %1198 = vmatprep.subr.bf16.mxu0 0
        %1199 = vmatpush1.bf16.xpose.msra.mxu0 0
        %1200 = vmatprep.subr.bf16.mxu0 0
        %1201 = vmatpush1.bf16.xpose.msra.mxu0 0
        %1202 = vmatprep.subr.bf16.mxu0 0
        %1203 = vmatpush1.bf16.xpose.msra.mxu0 0
        %1204 = vmatprep.subr.bf16.mxu0 0
        %1205 = vmatpush1.bf16.xpose.msra.mxu0 0
        %1206 = vmatprep.subr.bf16.mxu0 0
        %1207 = vmatpush1.bf16.xpose.msra.mxu0 0
        %1208 = vmatprep.subr.bf16.mxu0 0
        %1209 = vmatpush1.bf16.xpose.msra.mxu0 0
        %1210 = vmatprep.mubr.bf16.mxu0 0
        %1211 = vmatmul.mubr.bf16.gmra.mrb[0].mxu0 %v1173
        %v1212 = vpop.f32.mrb[0].mxu0
        %v1213 = vadd.f32 %v1170, %v1212
        %v1214 = vpop.f32.mrb[0].mxu0
        %v1215 = vpop.f32.mrb[0].mxu0
        %v1216 = vpop.f32.mrb[0].mxu0
        %1217 = vdwg.mxu0
        %vm1218 = vcmask 64512
        %v1219 = vsel %vm1218, %v1213, -inf
        %1220 = vmax.xlane.f32.xlu0 %v1219
        %v1221 = vpop.xlane.xlu0 %1220
        %v1222 = vmax.f32 %v1221, -1e+30
        %v1223 = vsub.f32 -1e+30, %v1222
        %v1224 = vmul.f32 %v1223, 1.442695
        %v1225 = vpow.pop %v1224
        %v1226 = vsub.f32 %v1213, %v1222
        %v1227 = vmul.f32 %v1226, 1.442695
        %v1228 = vpow.pop %v1227
        %v1229 = vmul.f32 %v1225, 0.0
        %v1230 = vsel %vm1218, %v1228, 0.0
        %1231 = vadd.xlane.f32.xlu0 %v1230
        %v1232 = vpop.xlane.xlu0 %1231
        %v1233 = vadd.f32 %v1229, %v1232
        %v1234 = vpack.c.bf16 %v1228, %v1228
        %v1236 = vsel %vm1218, %v1234, 0
        %vm1238 = vcmask 1043456
        %v1240 = vsel %vm1238, %v1169, 0
        %1242 = vmatprep.subr.bf16.mxu0 0
        %1243 = vmatpush1.bf16.msra.mxu0 %v1240
        %1244 = vmatprep.subr.bf16.mxu0 0
        %1245 = vmatpush1.bf16.msra.mxu0 0
        %1246 = vmatprep.subr.bf16.mxu0 0
        %1247 = vmatpush1.bf16.msra.mxu0 0
        %1248 = vmatprep.subr.bf16.mxu0 0
        %1249 = vmatpush1.bf16.msra.mxu0 0
        %1250 = vmatprep.subr.bf16.mxu0 0
        %1251 = vmatpush1.bf16.msra.mxu0 0
        %1252 = vmatprep.subr.bf16.mxu0 0
        %1253 = vmatpush1.bf16.msra.mxu0 0
        %1254 = vmatprep.subr.bf16.mxu0 0
        %1255 = vmatpush1.bf16.msra.mxu0 0
        %1256 = vmatprep.subr.bf16.mxu0 0
        %1257 = vmatpush1.bf16.msra.mxu0 0
        %1258 = vmatprep.subr.bf16.mxu0 0
        %1259 = vmatpush1.bf16.msra.mxu0 0
        %1260 = vmatprep.subr.bf16.mxu0 0
        %1261 = vmatpush1.bf16.msra.mxu0 0
        %1262 = vmatprep.subr.bf16.mxu0 0
        %1263 = vmatpush1.bf16.msra.mxu0 0
        %1264 = vmatprep.subr.bf16.mxu0 0
        %1265 = vmatpush1.bf16.msra.mxu0 0
        %1266 = vmatprep.subr.bf16.mxu0 0
        %1267 = vmatpush1.bf16.msra.mxu0 0
        %1268 = vmatprep.subr.bf16.mxu0 0
        %1269 = vmatpush1.bf16.msra.mxu0 0
        %1270 = vmatprep.subr.bf16.mxu0 0
        %1271 = vmatpush1.bf16.msra.mxu0 0
        %1272 = vmatprep.subr.bf16.mxu0 0
        %1273 = vmatpush1.bf16.msra.mxu0 0
        %1274 = vmatprep.mubr.bf16.mxu0 0
        %1275 = vmatmul.mubr.bf16.gmra.mrb[0].mxu0 %v1236
        %v1276 = vpop.f32.mrb[0].mxu0
        %v1277 = vadd.f32 0.0, %v1276
        %v1278 = vpop.f32.mrb[0].mxu0
        %v1279 = vpop.f32.mrb[0].mxu0
        %v1280 = vpop.f32.mrb[0].mxu0
        %1281 = vdwg.mxu0
        %v1282 = vadd.f32 %v1229, %v1277
        %v1283 = vrcp.pop %v1233
        %v1284 = vmul.f32 %v1282, %v1283
        %1286 = vrot.lane.b32.xlu0 %v1167, 124
        %v1287 = vpop.permute.xlu0 %1286
        %v1289 = vunpack.c.l.b16 %v1168
        %v1290 = vpack.c.b16 %v1289, %v1289
        %1291 = vrot.lane.b32.xlu0 %v1290, 124
        %v1292 = vpop.permute.xlu0 %1291
        %v1294 = vsel %vm1171, %v1287, 0
        %v1297 = vsel %vm1171, %v1292, 0
        %1299 = vmatprep.subr.bf16.mxu0 0
        %1300 = vmatpush1.bf16.xpose.msra.mxu0 %v1297
        %1301 = vmatprep.subr.bf16.mxu0 0
        %1302 = vmatpush1.bf16.xpose.msra.mxu0 0
        %1303 = vmatprep.subr.bf16.mxu0 0
        %1304 = vmatpush1.bf16.xpose.msra.mxu0 0
        %1305 = vmatprep.subr.bf16.mxu0 0
        %1306 = vmatpush1.bf16.xpose.msra.mxu0 0
        %1307 = vmatprep.subr.bf16.mxu0 0
        %1308 = vmatpush1.bf16.xpose.msra.mxu0 0
        %1309 = vmatprep.subr.bf16.mxu0 0
        %1310 = vmatpush1.bf16.xpose.msra.mxu0 0
        %1311 = vmatprep.subr.bf16.mxu0 0
        %1312 = vmatpush1.bf16.xpose.msra.mxu0 0
        %1313 = vmatprep.subr.bf16.mxu0 0
        %1314 = vmatpush1.bf16.xpose.msra.mxu0 0
        %1315 = vmatprep.subr.bf16.mxu0 0
        %1316 = vmatpush1.bf16.xpose.msra.mxu0 0
        %1317 = vmatprep.subr.bf16.mxu0 0
        %1318 = vmatpush1.bf16.xpose.msra.mxu0 0
        %1319 = vmatprep.subr.bf16.mxu0 0
        %1320 = vmatpush1.bf16.xpose.msra.mxu0 0
        %1321 = vmatprep.subr.bf16.mxu0 0
        %1322 = vmatpush1.bf16.xpose.msra.mxu0 0
        %1323 = vmatprep.subr.bf16.mxu0 0
        %1324 = vmatpush1.bf16.xpose.msra.mxu0 0
        %1325 = vmatprep.subr.bf16.mxu0 0
        %1326 = vmatpush1.bf16.xpose.msra.mxu0 0
        %1327 = vmatprep.subr.bf16.mxu0 0
        %1328 = vmatpush1.bf16.xpose.msra.mxu0 0
        %1329 = vmatprep.subr.bf16.mxu0 0
        %1330 = vmatpush1.bf16.xpose.msra.mxu0 0
        %1331 = vmatprep.mubr.bf16.mxu0 0
        %1332 = vmatmul.mubr.bf16.gmra.mrb[0].mxu0 %v1294
        %v1333 = vpop.f32.mrb[0].mxu0
        %v1334 = vadd.f32 %v1170, %v1333
        %v1335 = vpop.f32.mrb[0].mxu0
        %v1336 = vpop.f32.mrb[0].mxu0
        %v1337 = vpop.f32.mrb[0].mxu0
        %1338 = vdwg.mxu0
        %v1339 = vsel %vm1218, %v1334, -inf
        %1340 = vmax.xlane.f32.xlu0 %v1339
        %v1341 = vpop.xlane.xlu0 %1340
        %v1342 = vmax.f32 %v1341, -1e+30
        %v1343 = vsub.f32 -1e+30, %v1342
        %v1344 = vmul.f32 %v1343, 1.442695
        %v1345 = vpow.pop %v1344
        %v1346 = vsub.f32 %v1334, %v1342
        %v1347 = vmul.f32 %v1346, 1.442695
        %v1348 = vpow.pop %v1347
        %v1349 = vmul.f32 %v1345, 0.0
        %v1350 = vsel %vm1218, %v1348, 0.0
        %1351 = vadd.xlane.f32.xlu0 %v1350
        %v1352 = vpop.xlane.xlu0 %1351
        %v1353 = vadd.f32 %v1349, %v1352
        %v1354 = vpack.c.bf16 %v1348, %v1348
        %v1356 = vunpack.c.l.b16 %v1169
        %v1357 = vpack.c.b16 %v1356, %v1356
        %1358 = vrot.lane.b32.xlu0 %v1357, 124
        %v1359 = vpop.permute.xlu0 %1358
        %v1361 = vsel %vm1218, %v1354, 0
        %v1364 = vsel %vm1238, %v1359, 0
        %1366 = vmatprep.subr.bf16.mxu0 0
        %1367 = vmatpush1.bf16.msra.mxu0 %v1364
        %1368 = vmatprep.subr.bf16.mxu0 0
        %1369 = vmatpush1.bf16.msra.mxu0 0
        %1370 = vmatprep.subr.bf16.mxu0 0
        %1371 = vmatpush1.bf16.msra.mxu0 0
        %1372 = vmatprep.subr.bf16.mxu0 0
        %1373 = vmatpush1.bf16.msra.mxu0 0
        %1374 = vmatprep.subr.bf16.mxu0 0
        %1375 = vmatpush1.bf16.msra.mxu0 0
        %1376 = vmatprep.subr.bf16.mxu0 0
        %1377 = vmatpush1.bf16.msra.mxu0 0
        %1378 = vmatprep.subr.bf16.mxu0 0
        %1379 = vmatpush1.bf16.msra.mxu0 0
        %1380 = vmatprep.subr.bf16.mxu0 0
        %1381 = vmatpush1.bf16.msra.mxu0 0
        %1382 = vmatprep.subr.bf16.mxu0 0
        %1383 = vmatpush1.bf16.msra.mxu0 0
        %1384 = vmatprep.subr.bf16.mxu0 0
        %1385 = vmatpush1.bf16.msra.mxu0 0
        %1386 = vmatprep.subr.bf16.mxu0 0
        %1387 = vmatpush1.bf16.msra.mxu0 0
        %1388 = vmatprep.subr.bf16.mxu0 0
        %1389 = vmatpush1.bf16.msra.mxu0 0
        %1390 = vmatprep.subr.bf16.mxu0 0
        %1391 = vmatpush1.bf16.msra.mxu0 0
        %1392 = vmatprep.subr.bf16.mxu0 0
        %1393 = vmatpush1.bf16.msra.mxu0 0
        %1394 = vmatprep.subr.bf16.mxu0 0
        %1395 = vmatpush1.bf16.msra.mxu0 0
        %1396 = vmatprep.subr.bf16.mxu0 0
        %1397 = vmatpush1.bf16.msra.mxu0 0
        %1398 = vmatprep.mubr.bf16.mxu0 0
        %1399 = vmatmul.mubr.bf16.gmra.mrb[0].mxu0 %v1361
        %v1400 = vpop.f32.mrb[0].mxu0
        %v1401 = vadd.f32 0.0, %v1400
        %v1402 = vpop.f32.mrb[0].mxu0
        %v1403 = vpop.f32.mrb[0].mxu0
        %v1404 = vpop.f32.mrb[0].mxu0
        %1405 = vdwg.mxu0
        %v1406 = vadd.f32 %v1349, %v1401
        %v1407 = vrcp.pop %v1353
        %v1408 = vmul.f32 %v1406, %v1407
        %1409 = vrot.lane.b32.xlu0 %v1167, 120
        %v1410 = vpop.permute.xlu0 %1409
        %1411 = vrot.lane.b32.xlu0 %v1290, 120
        %v1412 = vpop.permute.xlu0 %1411
        %v1414 = vsel %vm1171, %v1410, 0
        %v1417 = vsel %vm1171, %v1412, 0
        %1419 = vmatprep.subr.bf16.mxu0 0
        %1420 = vmatpush1.bf16.xpose.msra.mxu0 %v1417
        %1421 = vmatprep.subr.bf16.mxu0 0
        %1422 = vmatpush1.bf16.xpose.msra.mxu0 0
        %1423 = vmatprep.subr.bf16.mxu0 0
        %1424 = vmatpush1.bf16.xpose.msra.mxu0 0
        %1425 = vmatprep.subr.bf16.mxu0 0
        %1426 = vmatpush1.bf16.xpose.msra.mxu0 0
        %1427 = vmatprep.subr.bf16.mxu0 0
        %1428 = vmatpush1.bf16.xpose.msra.mxu0 0
        %1429 = vmatprep.subr.bf16.mxu0 0
        %1430 = vmatpush1.bf16.xpose.msra.mxu0 0
        %1431 = vmatprep.subr.bf16.mxu0 0
        %1432 = vmatpush1.bf16.xpose.msra.mxu0 0
        %1433 = vmatprep.subr.bf16.mxu0 0
        %1434 = vmatpush1.bf16.xpose.msra.mxu0 0
        %1435 = vmatprep.subr.bf16.mxu0 0
        %1436 = vmatpush1.bf16.xpose.msra.mxu0 0
        %1437 = vmatprep.subr.bf16.mxu0 0
        %1438 = vmatpush1.bf16.xpose.msra.mxu0 0
        %1439 = vmatprep.subr.bf16.mxu0 0
        %1440 = vmatpush1.bf16.xpose.msra.mxu0 0
        %1441 = vmatprep.subr.bf16.mxu0 0
        %1442 = vmatpush1.bf16.xpose.msra.mxu0 0
        %1443 = vmatprep.subr.bf16.mxu0 0
        %1444 = vmatpush1.bf16.xpose.msra.mxu0 0
        %1445 = vmatprep.subr.bf16.mxu0 0
        %1446 = vmatpush1.bf16.xpose.msra.mxu0 0
        %1447 = vmatprep.subr.bf16.mxu0 0
        %1448 = vmatpush1.bf16.xpose.msra.mxu0 0
        %1449 = vmatprep.subr.bf16.mxu0 0
        %1450 = vmatpush1.bf16.xpose.msra.mxu0 0
        %1451 = vmatprep.mubr.bf16.mxu0 0
        %1452 = vmatmul.mubr.bf16.gmra.mrb[0].mxu0 %v1414
        %v1453 = vpop.f32.mrb[0].mxu0
        %v1454 = vadd.f32 %v1170, %v1453
        %v1455 = vpop.f32.mrb[0].mxu0
        %v1456 = vpop.f32.mrb[0].mxu0
        %v1457 = vpop.f32.mrb[0].mxu0
        %1458 = vdwg.mxu0
        %v1459 = vsel %vm1218, %v1454, -inf
        %1460 = vmax.xlane.f32.xlu0 %v1459
        %v1461 = vpop.xlane.xlu0 %1460
        %v1462 = vmax.f32 %v1461, -1e+30
        %v1463 = vsub.f32 -1e+30, %v1462
        %v1464 = vmul.f32 %v1463, 1.442695
        %v1465 = vpow.pop %v1464
        %v1466 = vsub.f32 %v1454, %v1462
        %v1467 = vmul.f32 %v1466, 1.442695
        %v1468 = vpow.pop %v1467
        %v1469 = vmul.f32 %v1465, 0.0
        %v1470 = vsel %vm1218, %v1468, 0.0
        %1471 = vadd.xlane.f32.xlu0 %v1470
        %v1472 = vpop.xlane.xlu0 %1471
        %v1473 = vadd.f32 %v1469, %v1472
        %v1474 = vpack.c.bf16 %v1468, %v1468
        %1475 = vrot.lane.b32.xlu0 %v1357, 120
        %v1476 = vpop.permute.xlu0 %1475
        %v1478 = vsel %vm1218, %v1474, 0
        %v1481 = vsel %vm1238, %v1476, 0
        %1483 = vmatprep.subr.bf16.mxu0 0
        %1484 = vmatpush1.bf16.msra.mxu0 %v1481
        %1485 = vmatprep.subr.bf16.mxu0 0
        %1486 = vmatpush1.bf16.msra.mxu0 0
        %1487 = vmatprep.subr.bf16.mxu0 0
        %1488 = vmatpush1.bf16.msra.mxu0 0
        %1489 = vmatprep.subr.bf16.mxu0 0
        %1490 = vmatpush1.bf16.msra.mxu0 0
        %1491 = vmatprep.subr.bf16.mxu0 0
        %1492 = vmatpush1.bf16.msra.mxu0 0
        %1493 = vmatprep.subr.bf16.mxu0 0
        %1494 = vmatpush1.bf16.msra.mxu0 0
        %1495 = vmatprep.subr.bf16.mxu0 0
        %1496 = vmatpush1.bf16.msra.mxu0 0
        %1497 = vmatprep.subr.bf16.mxu0 0
        %1498 = vmatpush1.bf16.msra.mxu0 0
        %1499 = vmatprep.subr.bf16.mxu0 0
        %1500 = vmatpush1.bf16.msra.mxu0 0
        %1501 = vmatprep.subr.bf16.mxu0 0
        %1502 = vmatpush1.bf16.msra.mxu0 0
        %1503 = vmatprep.subr.bf16.mxu0 0
        %1504 = vmatpush1.bf16.msra.mxu0 0
        %1505 = vmatprep.subr.bf16.mxu0 0
        %1506 = vmatpush1.bf16.msra.mxu0 0
        %1507 = vmatprep.subr.bf16.mxu0 0
        %1508 = vmatpush1.bf16.msra.mxu0 0
        %1509 = vmatprep.subr.bf16.mxu0 0
        %1510 = vmatpush1.bf16.msra.mxu0 0
        %1511 = vmatprep.subr.bf16.mxu0 0
        %1512 = vmatpush1.bf16.msra.mxu0 0
        %1513 = vmatprep.subr.bf16.mxu0 0
        %1514 = vmatpush1.bf16.msra.mxu0 0
        %1515 = vmatprep.mubr.bf16.mxu0 0
        %1516 = vmatmul.mubr.bf16.gmra.mrb[0].mxu0 %v1478
        %v1517 = vpop.f32.mrb[0].mxu0
        %v1518 = vadd.f32 0.0, %v1517
        %v1519 = vpop.f32.mrb[0].mxu0
        %v1520 = vpop.f32.mrb[0].mxu0
        %v1521 = vpop.f32.mrb[0].mxu0
        %1522 = vdwg.mxu0
        %v1523 = vadd.f32 %v1469, %v1518
        %v1524 = vrcp.pop %v1473
        %v1525 = vmul.f32 %v1523, %v1524
        %1526 = vrot.lane.b32.xlu0 %v1167, 116
        %v1527 = vpop.permute.xlu0 %1526
        %1528 = vrot.lane.b32.xlu0 %v1290, 116
        %v1529 = vpop.permute.xlu0 %1528
        %v1531 = vsel %vm1171, %v1527, 0
        %v1534 = vsel %vm1171, %v1529, 0
        %1536 = vmatprep.subr.bf16.mxu0 0
        %1537 = vmatpush1.bf16.xpose.msra.mxu0 %v1534
        %1538 = vmatprep.subr.bf16.mxu0 0
        %1539 = vmatpush1.bf16.xpose.msra.mxu0 0
        %1540 = vmatprep.subr.bf16.mxu0 0
        %1541 = vmatpush1.bf16.xpose.msra.mxu0 0
        %1542 = vmatprep.subr.bf16.mxu0 0
        %1543 = vmatpush1.bf16.xpose.msra.mxu0 0
        %1544 = vmatprep.subr.bf16.mxu0 0
        %1545 = vmatpush1.bf16.xpose.msra.mxu0 0
        %1546 = vmatprep.subr.bf16.mxu0 0
        %1547 = vmatpush1.bf16.xpose.msra.mxu0 0
        %1548 = vmatprep.subr.bf16.mxu0 0
        %1549 = vmatpush1.bf16.xpose.msra.mxu0 0
        %1550 = vmatprep.subr.bf16.mxu0 0
        %1551 = vmatpush1.bf16.xpose.msra.mxu0 0
        %1552 = vmatprep.subr.bf16.mxu0 0
        %1553 = vmatpush1.bf16.xpose.msra.mxu0 0
        %1554 = vmatprep.subr.bf16.mxu0 0
        %1555 = vmatpush1.bf16.xpose.msra.mxu0 0
        %1556 = vmatprep.subr.bf16.mxu0 0
        %1557 = vmatpush1.bf16.xpose.msra.mxu0 0
        %1558 = vmatprep.subr.bf16.mxu0 0
        %1559 = vmatpush1.bf16.xpose.msra.mxu0 0
        %1560 = vmatprep.subr.bf16.mxu0 0
        %1561 = vmatpush1.bf16.xpose.msra.mxu0 0
        %1562 = vmatprep.subr.bf16.mxu0 0
        %1563 = vmatpush1.bf16.xpose.msra.mxu0 0
        %1564 = vmatprep.subr.bf16.mxu0 0
        %1565 = vmatpush1.bf16.xpose.msra.mxu0 0
        %1566 = vmatprep.subr.bf16.mxu0 0
        %1567 = vmatpush1.bf16.xpose.msra.mxu0 0
        %1568 = vmatprep.mubr.bf16.mxu0 0
        %1569 = vmatmul.mubr.bf16.gmra.mrb[0].mxu0 %v1531
        %v1570 = vpop.f32.mrb[0].mxu0
        %v1571 = vadd.f32 %v1170, %v1570
        %v1572 = vpop.f32.mrb[0].mxu0
        %v1573 = vpop.f32.mrb[0].mxu0
        %v1574 = vpop.f32.mrb[0].mxu0
        %1575 = vdwg.mxu0
        %v1576 = vsel %vm1218, %v1571, -inf
        %1577 = vmax.xlane.f32.xlu0 %v1576
        %v1578 = vpop.xlane.xlu0 %1577
        %v1579 = vmax.f32 %v1578, -1e+30
        %v1580 = vsub.f32 -1e+30, %v1579
        %v1581 = vmul.f32 %v1580, 1.442695
        %v1582 = vpow.pop %v1581
        %v1583 = vsub.f32 %v1571, %v1579
        %v1584 = vmul.f32 %v1583, 1.442695
        %v1585 = vpow.pop %v1584
        %v1586 = vmul.f32 %v1582, 0.0
        %v1587 = vsel %vm1218, %v1585, 0.0
        %1588 = vadd.xlane.f32.xlu0 %v1587
        %v1589 = vpop.xlane.xlu0 %1588
        %v1590 = vadd.f32 %v1586, %v1589
        %v1591 = vpack.c.bf16 %v1585, %v1585
        %1592 = vrot.lane.b32.xlu0 %v1357, 116
        %v1593 = vpop.permute.xlu0 %1592
        %v1595 = vsel %vm1218, %v1591, 0
        %v1598 = vsel %vm1238, %v1593, 0
        %1600 = vmatprep.subr.bf16.mxu0 0
        %1601 = vmatpush1.bf16.msra.mxu0 %v1598
        %1602 = vmatprep.subr.bf16.mxu0 0
        %1603 = vmatpush1.bf16.msra.mxu0 0
        %1604 = vmatprep.subr.bf16.mxu0 0
        %1605 = vmatpush1.bf16.msra.mxu0 0
        %1606 = vmatprep.subr.bf16.mxu0 0
        %1607 = vmatpush1.bf16.msra.mxu0 0
        %1608 = vmatprep.subr.bf16.mxu0 0
        %1609 = vmatpush1.bf16.msra.mxu0 0
        %1610 = vmatprep.subr.bf16.mxu0 0
        %1611 = vmatpush1.bf16.msra.mxu0 0
        %1612 = vmatprep.subr.bf16.mxu0 0
        %1613 = vmatpush1.bf16.msra.mxu0 0
        %1614 = vmatprep.subr.bf16.mxu0 0
        %1615 = vmatpush1.bf16.msra.mxu0 0
        %1616 = vmatprep.subr.bf16.mxu0 0
        %1617 = vmatpush1.bf16.msra.mxu0 0
        %1618 = vmatprep.subr.bf16.mxu0 0
        %1619 = vmatpush1.bf16.msra.mxu0 0
        %1620 = vmatprep.subr.bf16.mxu0 0
        %1621 = vmatpush1.bf16.msra.mxu0 0
        %1622 = vmatprep.subr.bf16.mxu0 0
        %1623 = vmatpush1.bf16.msra.mxu0 0
        %1624 = vmatprep.subr.bf16.mxu0 0
        %1625 = vmatpush1.bf16.msra.mxu0 0
        %1626 = vmatprep.subr.bf16.mxu0 0
        %1627 = vmatpush1.bf16.msra.mxu0 0
        %1628 = vmatprep.subr.bf16.mxu0 0
        %1629 = vmatpush1.bf16.msra.mxu0 0
        %1630 = vmatprep.subr.bf16.mxu0 0
        %1631 = vmatpush1.bf16.msra.mxu0 0
        %1632 = vmatprep.mubr.bf16.mxu0 0
        %1633 = vmatmul.mubr.bf16.gmra.mrb[0].mxu0 %v1595
        %v1634 = vpop.f32.mrb[0].mxu0
        %v1635 = vadd.f32 0.0, %v1634
        %v1636 = vpop.f32.mrb[0].mxu0
        %v1637 = vpop.f32.mrb[0].mxu0
        %v1638 = vpop.f32.mrb[0].mxu0
        %1639 = vdwg.mxu0
        %v1640 = vadd.f32 %v1586, %v1635
        %v1641 = vrcp.pop %v1590
        %v1642 = vmul.f32 %v1640, %v1641
        %1643 = vrot.lane.b32.xlu0 %v1167, 112
        %v1644 = vpop.permute.xlu0 %1643
        %1645 = vrot.lane.b32.xlu0 %v1290, 112
        %v1646 = vpop.permute.xlu0 %1645
        %v1648 = vsel %vm1171, %v1644, 0
        %v1651 = vsel %vm1171, %v1646, 0
        %1653 = vmatprep.subr.bf16.mxu0 0
        %1654 = vmatpush1.bf16.xpose.msra.mxu0 %v1651
        %1655 = vmatprep.subr.bf16.mxu0 0
        %1656 = vmatpush1.bf16.xpose.msra.mxu0 0
        %1657 = vmatprep.subr.bf16.mxu0 0
        %1658 = vmatpush1.bf16.xpose.msra.mxu0 0
        %1659 = vmatprep.subr.bf16.mxu0 0
        %1660 = vmatpush1.bf16.xpose.msra.mxu0 0
        %1661 = vmatprep.subr.bf16.mxu0 0
        %1662 = vmatpush1.bf16.xpose.msra.mxu0 0
        %1663 = vmatprep.subr.bf16.mxu0 0
        %1664 = vmatpush1.bf16.xpose.msra.mxu0 0
        %1665 = vmatprep.subr.bf16.mxu0 0
        %1666 = vmatpush1.bf16.xpose.msra.mxu0 0
        %1667 = vmatprep.subr.bf16.mxu0 0
        %1668 = vmatpush1.bf16.xpose.msra.mxu0 0
        %1669 = vmatprep.subr.bf16.mxu0 0
        %1670 = vmatpush1.bf16.xpose.msra.mxu0 0
        %1671 = vmatprep.subr.bf16.mxu0 0
        %1672 = vmatpush1.bf16.xpose.msra.mxu0 0
        %1673 = vmatprep.subr.bf16.mxu0 0
        %1674 = vmatpush1.bf16.xpose.msra.mxu0 0
        %1675 = vmatprep.subr.bf16.mxu0 0
        %1676 = vmatpush1.bf16.xpose.msra.mxu0 0
        %1677 = vmatprep.subr.bf16.mxu0 0
        %1678 = vmatpush1.bf16.xpose.msra.mxu0 0
        %1679 = vmatprep.subr.bf16.mxu0 0
        %1680 = vmatpush1.bf16.xpose.msra.mxu0 0
        %1681 = vmatprep.subr.bf16.mxu0 0
        %1682 = vmatpush1.bf16.xpose.msra.mxu0 0
        %1683 = vmatprep.subr.bf16.mxu0 0
        %1684 = vmatpush1.bf16.xpose.msra.mxu0 0
        %1685 = vmatprep.mubr.bf16.mxu0 0
        %1686 = vmatmul.mubr.bf16.gmra.mrb[0].mxu0 %v1648
        %v1687 = vpop.f32.mrb[0].mxu0
        %v1688 = vadd.f32 %v1170, %v1687
        %v1689 = vpop.f32.mrb[0].mxu0
        %v1690 = vpop.f32.mrb[0].mxu0
        %v1691 = vpop.f32.mrb[0].mxu0
        %1692 = vdwg.mxu0
        %v1693 = vsel %vm1218, %v1688, -inf
        %1694 = vmax.xlane.f32.xlu0 %v1693
        %v1695 = vpop.xlane.xlu0 %1694
        %v1696 = vmax.f32 %v1695, -1e+30
        %v1697 = vsub.f32 -1e+30, %v1696
        %v1698 = vmul.f32 %v1697, 1.442695
        %v1699 = vpow.pop %v1698
        %v1700 = vsub.f32 %v1688, %v1696
        %v1701 = vmul.f32 %v1700, 1.442695
        %v1702 = vpow.pop %v1701
        %v1703 = vmul.f32 %v1699, 0.0
        %v1704 = vsel %vm1218, %v1702, 0.0
        %1705 = vadd.xlane.f32.xlu0 %v1704
        %v1706 = vpop.xlane.xlu0 %1705
        %v1707 = vadd.f32 %v1703, %v1706
        %v1708 = vpack.c.bf16 %v1702, %v1702
        %1709 = vrot.lane.b32.xlu0 %v1357, 112
        %v1710 = vpop.permute.xlu0 %1709
        %v1712 = vsel %vm1218, %v1708, 0
        %v1715 = vsel %vm1238, %v1710, 0
        %1717 = vmatprep.subr.bf16.mxu0 0
        %1718 = vmatpush1.bf16.msra.mxu0 %v1715
        %1719 = vmatprep.subr.bf16.mxu0 0
        %1720 = vmatpush1.bf16.msra.mxu0 0
        %1721 = vmatprep.subr.bf16.mxu0 0
        %1722 = vmatpush1.bf16.msra.mxu0 0
        %1723 = vmatprep.subr.bf16.mxu0 0
        %1724 = vmatpush1.bf16.msra.mxu0 0
        %1725 = vmatprep.subr.bf16.mxu0 0
        %1726 = vmatpush1.bf16.msra.mxu0 0
        %1727 = vmatprep.subr.bf16.mxu0 0
        %1728 = vmatpush1.bf16.msra.mxu0 0
        %1729 = vmatprep.subr.bf16.mxu0 0
        %1730 = vmatpush1.bf16.msra.mxu0 0
        %1731 = vmatprep.subr.bf16.mxu0 0
        %1732 = vmatpush1.bf16.msra.mxu0 0
        %1733 = vmatprep.subr.bf16.mxu0 0
        %1734 = vmatpush1.bf16.msra.mxu0 0
        %1735 = vmatprep.subr.bf16.mxu0 0
        %1736 = vmatpush1.bf16.msra.mxu0 0
        %1737 = vmatprep.subr.bf16.mxu0 0
        %1738 = vmatpush1.bf16.msra.mxu0 0
        %1739 = vmatprep.subr.bf16.mxu0 0
        %1740 = vmatpush1.bf16.msra.mxu0 0
        %1741 = vmatprep.subr.bf16.mxu0 0
        %1742 = vmatpush1.bf16.msra.mxu0 0
        %1743 = vmatprep.subr.bf16.mxu0 0
        %1744 = vmatpush1.bf16.msra.mxu0 0
        %1745 = vmatprep.subr.bf16.mxu0 0
        %1746 = vmatpush1.bf16.msra.mxu0 0
        %1747 = vmatprep.subr.bf16.mxu0 0
        %1748 = vmatpush1.bf16.msra.mxu0 0
        %1749 = vmatprep.mubr.bf16.mxu0 0
        %1750 = vmatmul.mubr.bf16.gmra.mrb[0].mxu0 %v1712
        %v1751 = vpop.f32.mrb[0].mxu0
        %v1752 = vadd.f32 0.0, %v1751
        %v1753 = vpop.f32.mrb[0].mxu0
        %v1754 = vpop.f32.mrb[0].mxu0
        %v1755 = vpop.f32.mrb[0].mxu0
        %1756 = vdwg.mxu0
        %v1757 = vadd.f32 %v1703, %v1752
        %v1758 = vrcp.pop %v1707
        %v1759 = vmul.f32 %v1757, %v1758
        %1760 = vrot.lane.b32.xlu0 %v1167, 108
        %v1761 = vpop.permute.xlu0 %1760
        %1762 = vrot.lane.b32.xlu0 %v1290, 108
        %v1763 = vpop.permute.xlu0 %1762
        %v1765 = vsel %vm1171, %v1761, 0
        %v1768 = vsel %vm1171, %v1763, 0
        %1770 = vmatprep.subr.bf16.mxu0 0
        %1771 = vmatpush1.bf16.xpose.msra.mxu0 %v1768
        %1772 = vmatprep.subr.bf16.mxu0 0
        %1773 = vmatpush1.bf16.xpose.msra.mxu0 0
        %1774 = vmatprep.subr.bf16.mxu0 0
        %1775 = vmatpush1.bf16.xpose.msra.mxu0 0
        %1776 = vmatprep.subr.bf16.mxu0 0
        %1777 = vmatpush1.bf16.xpose.msra.mxu0 0
        %1778 = vmatprep.subr.bf16.mxu0 0
        %1779 = vmatpush1.bf16.xpose.msra.mxu0 0
        %1780 = vmatprep.subr.bf16.mxu0 0
        %1781 = vmatpush1.bf16.xpose.msra.mxu0 0
        %1782 = vmatprep.subr.bf16.mxu0 0
        %1783 = vmatpush1.bf16.xpose.msra.mxu0 0
        %1784 = vmatprep.subr.bf16.mxu0 0
        %1785 = vmatpush1.bf16.xpose.msra.mxu0 0
        %1786 = vmatprep.subr.bf16.mxu0 0
        %1787 = vmatpush1.bf16.xpose.msra.mxu0 0
        %1788 = vmatprep.subr.bf16.mxu0 0
        %1789 = vmatpush1.bf16.xpose.msra.mxu0 0
        %1790 = vmatprep.subr.bf16.mxu0 0
        %1791 = vmatpush1.bf16.xpose.msra.mxu0 0
        %1792 = vmatprep.subr.bf16.mxu0 0
        %1793 = vmatpush1.bf16.xpose.msra.mxu0 0
        %1794 = vmatprep.subr.bf16.mxu0 0
        %1795 = vmatpush1.bf16.xpose.msra.mxu0 0
        %1796 = vmatprep.subr.bf16.mxu0 0
        %1797 = vmatpush1.bf16.xpose.msra.mxu0 0
        %1798 = vmatprep.subr.bf16.mxu0 0
        %1799 = vmatpush1.bf16.xpose.msra.mxu0 0
        %1800 = vmatprep.subr.bf16.mxu0 0
        %1801 = vmatpush1.bf16.xpose.msra.mxu0 0
        %1802 = vmatprep.mubr.bf16.mxu0 0
        %1803 = vmatmul.mubr.bf16.gmra.mrb[0].mxu0 %v1765
        %v1804 = vpop.f32.mrb[0].mxu0
        %v1805 = vadd.f32 %v1170, %v1804
        %v1806 = vpop.f32.mrb[0].mxu0
        %v1807 = vpop.f32.mrb[0].mxu0
        %v1808 = vpop.f32.mrb[0].mxu0
        %1809 = vdwg.mxu0
        %v1810 = vsel %vm1218, %v1805, -inf
        %1811 = vmax.xlane.f32.xlu0 %v1810
        %v1812 = vpop.xlane.xlu0 %1811
        %v1813 = vmax.f32 %v1812, -1e+30
        %v1814 = vsub.f32 -1e+30, %v1813
        %v1815 = vmul.f32 %v1814, 1.442695
        %v1816 = vpow.pop %v1815
        %v1817 = vsub.f32 %v1805, %v1813
        %v1818 = vmul.f32 %v1817, 1.442695
        %v1819 = vpow.pop %v1818
        %v1820 = vmul.f32 %v1816, 0.0
        %v1821 = vsel %vm1218, %v1819, 0.0
        %1822 = vadd.xlane.f32.xlu0 %v1821
        %v1823 = vpop.xlane.xlu0 %1822
        %v1824 = vadd.f32 %v1820, %v1823
        %v1825 = vpack.c.bf16 %v1819, %v1819
        %1826 = vrot.lane.b32.xlu0 %v1357, 108
        %v1827 = vpop.permute.xlu0 %1826
        %v1829 = vsel %vm1218, %v1825, 0
        %v1832 = vsel %vm1238, %v1827, 0
        %1834 = vmatprep.subr.bf16.mxu0 0
        %1835 = vmatpush1.bf16.msra.mxu0 %v1832
        %1836 = vmatprep.subr.bf16.mxu0 0
        %1837 = vmatpush1.bf16.msra.mxu0 0
        %1838 = vmatprep.subr.bf16.mxu0 0
        %1839 = vmatpush1.bf16.msra.mxu0 0
        %1840 = vmatprep.subr.bf16.mxu0 0
        %1841 = vmatpush1.bf16.msra.mxu0 0
        %1842 = vmatprep.subr.bf16.mxu0 0
        %1843 = vmatpush1.bf16.msra.mxu0 0
        %1844 = vmatprep.subr.bf16.mxu0 0
        %1845 = vmatpush1.bf16.msra.mxu0 0
        %1846 = vmatprep.subr.bf16.mxu0 0
        %1847 = vmatpush1.bf16.msra.mxu0 0
        %1848 = vmatprep.subr.bf16.mxu0 0
        %1849 = vmatpush1.bf16.msra.mxu0 0
        %1850 = vmatprep.subr.bf16.mxu0 0
        %1851 = vmatpush1.bf16.msra.mxu0 0
        %1852 = vmatprep.subr.bf16.mxu0 0
        %1853 = vmatpush1.bf16.msra.mxu0 0
        %1854 = vmatprep.subr.bf16.mxu0 0
        %1855 = vmatpush1.bf16.msra.mxu0 0
        %1856 = vmatprep.subr.bf16.mxu0 0
        %1857 = vmatpush1.bf16.msra.mxu0 0
        %1858 = vmatprep.subr.bf16.mxu0 0
        %1859 = vmatpush1.bf16.msra.mxu0 0
        %1860 = vmatprep.subr.bf16.mxu0 0
        %1861 = vmatpush1.bf16.msra.mxu0 0
        %1862 = vmatprep.subr.bf16.mxu0 0
        %1863 = vmatpush1.bf16.msra.mxu0 0
        %1864 = vmatprep.subr.bf16.mxu0 0
        %1865 = vmatpush1.bf16.msra.mxu0 0
        %1866 = vmatprep.mubr.bf16.mxu0 0
        %1867 = vmatmul.mubr.bf16.gmra.mrb[0].mxu0 %v1829
        %v1868 = vpop.f32.mrb[0].mxu0
        %v1869 = vadd.f32 0.0, %v1868
        %v1870 = vpop.f32.mrb[0].mxu0
        %v1871 = vpop.f32.mrb[0].mxu0
        %v1872 = vpop.f32.mrb[0].mxu0
        %1873 = vdwg.mxu0
        %v1874 = vadd.f32 %v1820, %v1869
        %v1875 = vrcp.pop %v1824
        %v1876 = vmul.f32 %v1874, %v1875
        %1877 = vrot.lane.b32.xlu0 %v1167, 104
        %v1878 = vpop.permute.xlu0 %1877
        %1879 = vrot.lane.b32.xlu0 %v1290, 104
        %v1880 = vpop.permute.xlu0 %1879
        %v1882 = vsel %vm1171, %v1878, 0
        %v1885 = vsel %vm1171, %v1880, 0
        %1887 = vmatprep.subr.bf16.mxu0 0
        %1888 = vmatpush1.bf16.xpose.msra.mxu0 %v1885
        %1889 = vmatprep.subr.bf16.mxu0 0
        %1890 = vmatpush1.bf16.xpose.msra.mxu0 0
        %1891 = vmatprep.subr.bf16.mxu0 0
        %1892 = vmatpush1.bf16.xpose.msra.mxu0 0
        %1893 = vmatprep.subr.bf16.mxu0 0
        %1894 = vmatpush1.bf16.xpose.msra.mxu0 0
        %1895 = vmatprep.subr.bf16.mxu0 0
        %1896 = vmatpush1.bf16.xpose.msra.mxu0 0
        %1897 = vmatprep.subr.bf16.mxu0 0
        %1898 = vmatpush1.bf16.xpose.msra.mxu0 0
        %1899 = vmatprep.subr.bf16.mxu0 0
        %1900 = vmatpush1.bf16.xpose.msra.mxu0 0
        %1901 = vmatprep.subr.bf16.mxu0 0
        %1902 = vmatpush1.bf16.xpose.msra.mxu0 0
        %1903 = vmatprep.subr.bf16.mxu0 0
        %1904 = vmatpush1.bf16.xpose.msra.mxu0 0
        %1905 = vmatprep.subr.bf16.mxu0 0
        %1906 = vmatpush1.bf16.xpose.msra.mxu0 0
        %1907 = vmatprep.subr.bf16.mxu0 0
        %1908 = vmatpush1.bf16.xpose.msra.mxu0 0
        %1909 = vmatprep.subr.bf16.mxu0 0
        %1910 = vmatpush1.bf16.xpose.msra.mxu0 0
        %1911 = vmatprep.subr.bf16.mxu0 0
        %1912 = vmatpush1.bf16.xpose.msra.mxu0 0
        %1913 = vmatprep.subr.bf16.mxu0 0
        %1914 = vmatpush1.bf16.xpose.msra.mxu0 0
        %1915 = vmatprep.subr.bf16.mxu0 0
        %1916 = vmatpush1.bf16.xpose.msra.mxu0 0
        %1917 = vmatprep.subr.bf16.mxu0 0
        %1918 = vmatpush1.bf16.xpose.msra.mxu0 0
        %1919 = vmatprep.mubr.bf16.mxu0 0
        %1920 = vmatmul.mubr.bf16.gmra.mrb[0].mxu0 %v1882
        %v1921 = vpop.f32.mrb[0].mxu0
        %v1922 = vadd.f32 %v1170, %v1921
        %v1923 = vpop.f32.mrb[0].mxu0
        %v1924 = vpop.f32.mrb[0].mxu0
        %v1925 = vpop.f32.mrb[0].mxu0
        %1926 = vdwg.mxu0
        %v1927 = vsel %vm1218, %v1922, -inf
        %1928 = vmax.xlane.f32.xlu0 %v1927
        %v1929 = vpop.xlane.xlu0 %1928
        %v1930 = vmax.f32 %v1929, -1e+30
        %v1931 = vsub.f32 -1e+30, %v1930
        %v1932 = vmul.f32 %v1931, 1.442695
        %v1933 = vpow.pop %v1932
        %v1934 = vsub.f32 %v1922, %v1930
        %v1935 = vmul.f32 %v1934, 1.442695
        %v1936 = vpow.pop %v1935
        %v1937 = vmul.f32 %v1933, 0.0
        %v1938 = vsel %vm1218, %v1936, 0.0
        %1939 = vadd.xlane.f32.xlu0 %v1938
        %v1940 = vpop.xlane.xlu0 %1939
        %v1941 = vadd.f32 %v1937, %v1940
        %v1942 = vpack.c.bf16 %v1936, %v1936
        %1943 = vrot.lane.b32.xlu0 %v1357, 104
        %v1944 = vpop.permute.xlu0 %1943
        %v1946 = vsel %vm1218, %v1942, 0
        %v1949 = vsel %vm1238, %v1944, 0
        %1951 = vmatprep.subr.bf16.mxu0 0
        %1952 = vmatpush1.bf16.msra.mxu0 %v1949
        %1953 = vmatprep.subr.bf16.mxu0 0
        %1954 = vmatpush1.bf16.msra.mxu0 0
        %1955 = vmatprep.subr.bf16.mxu0 0
        %1956 = vmatpush1.bf16.msra.mxu0 0
        %1957 = vmatprep.subr.bf16.mxu0 0
        %1958 = vmatpush1.bf16.msra.mxu0 0
        %1959 = vmatprep.subr.bf16.mxu0 0
        %1960 = vmatpush1.bf16.msra.mxu0 0
        %1961 = vmatprep.subr.bf16.mxu0 0
        %1962 = vmatpush1.bf16.msra.mxu0 0
        %1963 = vmatprep.subr.bf16.mxu0 0
        %1964 = vmatpush1.bf16.msra.mxu0 0
        %1965 = vmatprep.subr.bf16.mxu0 0
        %1966 = vmatpush1.bf16.msra.mxu0 0
        %1967 = vmatprep.subr.bf16.mxu0 0
        %1968 = vmatpush1.bf16.msra.mxu0 0
        %1969 = vmatprep.subr.bf16.mxu0 0
        %1970 = vmatpush1.bf16.msra.mxu0 0
        %1971 = vmatprep.subr.bf16.mxu0 0
        %1972 = vmatpush1.bf16.msra.mxu0 0
        %1973 = vmatprep.subr.bf16.mxu0 0
        %1974 = vmatpush1.bf16.msra.mxu0 0
        %1975 = vmatprep.subr.bf16.mxu0 0
        %1976 = vmatpush1.bf16.msra.mxu0 0
        %1977 = vmatprep.subr.bf16.mxu0 0
        %1978 = vmatpush1.bf16.msra.mxu0 0
        %1979 = vmatprep.subr.bf16.mxu0 0
        %1980 = vmatpush1.bf16.msra.mxu0 0
        %1981 = vmatprep.subr.bf16.mxu0 0
        %1982 = vmatpush1.bf16.msra.mxu0 0
        %1983 = vmatprep.mubr.bf16.mxu0 0
        %1984 = vmatmul.mubr.bf16.gmra.mrb[0].mxu0 %v1946
        %v1985 = vpop.f32.mrb[0].mxu0
        %v1986 = vadd.f32 0.0, %v1985
        %v1987 = vpop.f32.mrb[0].mxu0
        %v1988 = vpop.f32.mrb[0].mxu0
        %v1989 = vpop.f32.mrb[0].mxu0
        %1990 = vdwg.mxu0
        %v1991 = vadd.f32 %v1937, %v1986
        %v1992 = vrcp.pop %v1941
        %v1993 = vmul.f32 %v1991, %v1992
        %1994 = vrot.lane.b32.xlu0 %v1167, 100
        %v1995 = vpop.permute.xlu0 %1994
        %1996 = vrot.lane.b32.xlu0 %v1290, 100
        %v1997 = vpop.permute.xlu0 %1996
        %v1999 = vsel %vm1171, %v1995, 0
        %v2002 = vsel %vm1171, %v1997, 0
        %2004 = vmatprep.subr.bf16.mxu0 0
        %2005 = vmatpush1.bf16.xpose.msra.mxu0 %v2002
        %2006 = vmatprep.subr.bf16.mxu0 0
        %2007 = vmatpush1.bf16.xpose.msra.mxu0 0
        %2008 = vmatprep.subr.bf16.mxu0 0
        %2009 = vmatpush1.bf16.xpose.msra.mxu0 0
        %2010 = vmatprep.subr.bf16.mxu0 0
        %2011 = vmatpush1.bf16.xpose.msra.mxu0 0
        %2012 = vmatprep.subr.bf16.mxu0 0
        %2013 = vmatpush1.bf16.xpose.msra.mxu0 0
        %2014 = vmatprep.subr.bf16.mxu0 0
        %2015 = vmatpush1.bf16.xpose.msra.mxu0 0
        %2016 = vmatprep.subr.bf16.mxu0 0
        %2017 = vmatpush1.bf16.xpose.msra.mxu0 0
        %2018 = vmatprep.subr.bf16.mxu0 0
        %2019 = vmatpush1.bf16.xpose.msra.mxu0 0
        %2020 = vmatprep.subr.bf16.mxu0 0
        %2021 = vmatpush1.bf16.xpose.msra.mxu0 0
        %2022 = vmatprep.subr.bf16.mxu0 0
        %2023 = vmatpush1.bf16.xpose.msra.mxu0 0
        %2024 = vmatprep.subr.bf16.mxu0 0
        %2025 = vmatpush1.bf16.xpose.msra.mxu0 0
        %2026 = vmatprep.subr.bf16.mxu0 0
        %2027 = vmatpush1.bf16.xpose.msra.mxu0 0
        %2028 = vmatprep.subr.bf16.mxu0 0
        %2029 = vmatpush1.bf16.xpose.msra.mxu0 0
        %2030 = vmatprep.subr.bf16.mxu0 0
        %2031 = vmatpush1.bf16.xpose.msra.mxu0 0
        %2032 = vmatprep.subr.bf16.mxu0 0
        %2033 = vmatpush1.bf16.xpose.msra.mxu0 0
        %2034 = vmatprep.subr.bf16.mxu0 0
        %2035 = vmatpush1.bf16.xpose.msra.mxu0 0
        %2036 = vmatprep.mubr.bf16.mxu0 0
        %2037 = vmatmul.mubr.bf16.gmra.mrb[0].mxu0 %v1999
        %v2038 = vpop.f32.mrb[0].mxu0
        %v2039 = vadd.f32 %v1170, %v2038
        %v2040 = vpop.f32.mrb[0].mxu0
        %v2041 = vpop.f32.mrb[0].mxu0
        %v2042 = vpop.f32.mrb[0].mxu0
        %2043 = vdwg.mxu0
        %v2044 = vsel %vm1218, %v2039, -inf
        %2045 = vmax.xlane.f32.xlu0 %v2044
        %v2046 = vpop.xlane.xlu0 %2045
        %v2047 = vmax.f32 %v2046, -1e+30
        %v2048 = vsub.f32 -1e+30, %v2047
        %v2049 = vmul.f32 %v2048, 1.442695
        %v2050 = vpow.pop %v2049
        %v2051 = vsub.f32 %v2039, %v2047
        %v2052 = vmul.f32 %v2051, 1.442695
        %v2053 = vpow.pop %v2052
        %v2054 = vmul.f32 %v2050, 0.0
        %v2055 = vsel %vm1218, %v2053, 0.0
        %2056 = vadd.xlane.f32.xlu0 %v2055
        %v2057 = vpop.xlane.xlu0 %2056
        %v2058 = vadd.f32 %v2054, %v2057
        %v2059 = vpack.c.bf16 %v2053, %v2053
        %2060 = vrot.lane.b32.xlu0 %v1357, 100
        %v2061 = vpop.permute.xlu0 %2060
        %v2063 = vsel %vm1218, %v2059, 0
        %v2066 = vsel %vm1238, %v2061, 0
        %2068 = vmatprep.subr.bf16.mxu0 0
        %2069 = vmatpush1.bf16.msra.mxu0 %v2066
        %2070 = vmatprep.subr.bf16.mxu0 0
        %2071 = vmatpush1.bf16.msra.mxu0 0
        %2072 = vmatprep.subr.bf16.mxu0 0
        %2073 = vmatpush1.bf16.msra.mxu0 0
        %2074 = vmatprep.subr.bf16.mxu0 0
        %2075 = vmatpush1.bf16.msra.mxu0 0
        %2076 = vmatprep.subr.bf16.mxu0 0
        %2077 = vmatpush1.bf16.msra.mxu0 0
        %2078 = vmatprep.subr.bf16.mxu0 0
        %2079 = vmatpush1.bf16.msra.mxu0 0
        %2080 = vmatprep.subr.bf16.mxu0 0
        %2081 = vmatpush1.bf16.msra.mxu0 0
        %2082 = vmatprep.subr.bf16.mxu0 0
        %2083 = vmatpush1.bf16.msra.mxu0 0
        %2084 = vmatprep.subr.bf16.mxu0 0
        %2085 = vmatpush1.bf16.msra.mxu0 0
        %2086 = vmatprep.subr.bf16.mxu0 0
        %2087 = vmatpush1.bf16.msra.mxu0 0
        %2088 = vmatprep.subr.bf16.mxu0 0
        %2089 = vmatpush1.bf16.msra.mxu0 0
        %2090 = vmatprep.subr.bf16.mxu0 0
        %2091 = vmatpush1.bf16.msra.mxu0 0
        %2092 = vmatprep.subr.bf16.mxu0 0
        %2093 = vmatpush1.bf16.msra.mxu0 0
        %2094 = vmatprep.subr.bf16.mxu0 0
        %2095 = vmatpush1.bf16.msra.mxu0 0
        %2096 = vmatprep.subr.bf16.mxu0 0
        %2097 = vmatpush1.bf16.msra.mxu0 0
        %2098 = vmatprep.subr.bf16.mxu0 0
        %2099 = vmatpush1.bf16.msra.mxu0 0
        %2100 = vmatprep.mubr.bf16.mxu0 0
        %2101 = vmatmul.mubr.bf16.gmra.mrb[0].mxu0 %v2063
        %v2102 = vpop.f32.mrb[0].mxu0
        %v2103 = vadd.f32 0.0, %v2102
        %v2104 = vpop.f32.mrb[0].mxu0
        %v2105 = vpop.f32.mrb[0].mxu0
        %v2106 = vpop.f32.mrb[0].mxu0
        %2107 = vdwg.mxu0
        %v2108 = vadd.f32 %v2054, %v2103
        %v2109 = vrcp.pop %v2058
        %v2110 = vmul.f32 %v2108, %v2109
        %2112 = vrot.lane.b32.xlu0 %v1408, 4
        %v2113 = vpop.permute.xlu0 %2112
        %2116 = vrot.lane.b32.xlu0 %v1525, 8
        %v2117 = vpop.permute.xlu0 %2116
        %2120 = vrot.lane.b32.xlu0 %v1642, 12
        %v2121 = vpop.permute.xlu0 %2120
        %2124 = vrot.lane.b32.xlu0 %v1759, 16
        %v2125 = vpop.permute.xlu0 %2124
        %2128 = vrot.lane.b32.xlu0 %v1876, 20
        %v2129 = vpop.permute.xlu0 %2128
        %2132 = vrot.lane.b32.xlu0 %v1993, 24
        %v2133 = vpop.permute.xlu0 %2132
        %2136 = vrot.lane.b32.xlu0 %v2110, 28
        %v2137 = vpop.permute.xlu0 %2136
        %v2139 = vsel %vm1171, %v1284, %v2113
        %v2140 = vsel %vm1218, %v2139, %v2117
        %vm2141 = vcmask 97280
        %v2142 = vsel %vm2141, %v2140, %v2121
        %vm2143 = vcmask 130048
        %v2144 = vsel %vm2143, %v2142, %v2125
        %vm2145 = vcmask 162816
        %v2146 = vsel %vm2145, %v2144, %v2129
        %vm2147 = vcmask 195584
        %v2148 = vsel %vm2147, %v2146, %v2133
        %vm2149 = vcmask 228352
        %v2150 = vsel %vm2149, %v2148, %v2137
        %v2151 = vpack.c.bf16 %v2150, %v2150
        %s2152 = scalar_lea.vmem [#allocation15], 48
        %v2153 = vld [vmem:[%s2152] sm:$0xf]
        %v2154 = vld [vmem:[%s2152 + $0x4] sm:$0xf]
        %v2155 = vld [vmem:[%s2152 + $0x8] sm:$0xf]
        %v2156 = vld [vmem:[%s2152 + $0xc] sm:$0xf]
        %s2157 = scalar_lea.vmem [#allocation17], 3
        %v2158 = vld [vmem:[%s2157] sm:$0x1]
        %v2160 = vlaneseq
        %v2161 = vshrl.u32 %v2160, 7
        %v2162 = vsub.s32 0, %v2161
        %v2163 = vrot.slane %v2158, %v2162
        %v2169 = vunpack.c.l.b16 %v2153
        %v2170 = vunpack.c.l.b16 %v2154
        %v2171 = vunpack.c.l.b16 %v2155
        %v2172 = vunpack.c.l.b16 %v2156
        %v2173 = vpack.c.b16 %v2170, %v2169
        %v2174 = vpack.c.b16 %v2172, %v2171
        %v2178 = vsel %vm1122, %v2151, 0
        %2180 = vmatprep.subr.bf16.mxu0 0
        %2181 = vmatpush1.bf16.msra.mxu0 %v2173
        %2182 = vmatprep.subr.bf16.mxu0 0
        %2183 = vmatpush1.bf16.msra.mxu0 %v2174
        %2184 = vmatprep.subr.bf16.mxu0 0
        %2185 = vmatpush1.bf16.msra.mxu0 0
        %2186 = vmatprep.subr.bf16.mxu0 0
        %2187 = vmatpush1.bf16.msra.mxu0 0
        %2188 = vmatprep.subr.bf16.mxu0 0
        %2189 = vmatpush1.bf16.msra.mxu0 0
        %2190 = vmatprep.subr.bf16.mxu0 0
        %2191 = vmatpush1.bf16.msra.mxu0 0
        %2192 = vmatprep.subr.bf16.mxu0 0
        %2193 = vmatpush1.bf16.msra.mxu0 0
        %2194 = vmatprep.subr.bf16.mxu0 0
        %2195 = vmatpush1.bf16.msra.mxu0 0
        %2196 = vmatprep.subr.bf16.mxu0 0
        %2197 = vmatpush1.bf16.msra.mxu0 0
        %2198 = vmatprep.subr.bf16.mxu0 0
        %2199 = vmatpush1.bf16.msra.mxu0 0
        %2200 = vmatprep.subr.bf16.mxu0 0
        %2201 = vmatpush1.bf16.msra.mxu0 0
        %2202 = vmatprep.subr.bf16.mxu0 0
        %2203 = vmatpush1.bf16.msra.mxu0 0
        %2204 = vmatprep.subr.bf16.mxu0 0
        %2205 = vmatpush1.bf16.msra.mxu0 0
        %2206 = vmatprep.subr.bf16.mxu0 0
        %2207 = vmatpush1.bf16.msra.mxu0 0
        %2208 = vmatprep.subr.bf16.mxu0 0
        %2209 = vmatpush1.bf16.msra.mxu0 0
        %2210 = vmatprep.subr.bf16.mxu0 0
        %2211 = vmatpush1.bf16.msra.mxu0 0
        %2212 = vmatprep.mubr.bf16.mxu0 0
        %2213 = vmatmul.mubr.bf16.gmra.mrb[0].mxu0 %v2178
        %v2214 = vpop.f32.mrb[0].mxu0
        %v2215 = vadd.f32 %v2163, %v2214
        %v2216 = vpop.f32.mrb[0].mxu0
        %v2217 = vpop.f32.mrb[0].mxu0
        %v2218 = vpop.f32.mrb[0].mxu0
        %2219 = vdwg.mxu0
        %v2220 = vadd.f32 %v1095, %v2215
        %v2221 = vld [vmem:[#allocation27] sm:$0x1]
        %v2222 = vld [vmem:[#allocation29] sm:$0x1]
        %v2223 = vsel %vm1122, %v2220, 0.0
        %2224 = vadd.xlane.f32.xlu0 %v2223
        %v2225 = vpop.xlane.xlu0 %2224
        %v2226 = vrcp.pop 32.0
        %v2227 = vmul.f32 %v2225, %v2226
        %v2228 = vsub.f32 %v2220, %v2227
        %v2229 = vmul.f32 %v2228, %v2228
        %v2230 = vsel %vm1122, %v2229, 0.0
        %2231 = vadd.xlane.f32.xlu0 %v2230
        %v2232 = vpop.xlane.xlu0 %2231
        %v2233 = vmul.f32 %v2232, %v2226
        %v2234 = vadd.f32 %v2233, 1e-05
        %v2235 = vrsqrt.pop %v2234
        %v2236 = vmul.f32 %v2228, %v2235
        %v2238 = vlaneseq
        %v2239 = vshrl.u32 %v2238, 7
        %v2240 = vsub.s32 0, %v2239
        %v2241 = vrot.slane %v2221, %v2240
        %v2243 = vmul.f32 %v2236, %v2241
        %v2245 = vlaneseq
        %v2246 = vshrl.u32 %v2245, 7
        %v2247 = vsub.s32 0, %v2246
        %v2248 = vrot.slane %v2222, %v2247
        %v2250 = vadd.f32 %v2243, %v2248
        %v2251 = vpack.c.bf16 %v2250, %v2250
        %s2252 = scalar_lea.vmem [#allocation18], 32
        %v2253 = vld [vmem:[%s2252] sm:$0xf]
        %v2254 = vld [vmem:[%s2252 + $0x4] sm:$0xf]
        %v2255 = vld [vmem:[%s2252 + $0x8] sm:$0xf]
        %v2256 = vld [vmem:[%s2252 + $0xc] sm:$0xf]
        %s2257 = scalar_lea.vmem [#allocation20], 2
        %v2258 = vld [vmem:[%s2257] sm:$0x1]
        %v2260 = vlaneseq
        %v2261 = vshrl.u32 %v2260, 7
        %v2262 = vsub.s32 0, %v2261
        %v2263 = vrot.slane %v2258, %v2262
        %v2269 = vunpack.c.l.b16 %v2253
        %v2270 = vunpack.c.l.b16 %v2254
        %v2271 = vunpack.c.l.b16 %v2255
        %v2272 = vunpack.c.l.b16 %v2256
        %v2273 = vpack.c.b16 %v2270, %v2269
        %v2274 = vpack.c.b16 %v2272, %v2271
        %v2278 = vsel %vm1122, %v2251, 0
        %2280 = vmatprep.subr.bf16.mxu0 0
        %2281 = vmatpush1.bf16.msra.mxu0 %v2273
        %2282 = vmatprep.subr.bf16.mxu0 0
        %2283 = vmatpush1.bf16.msra.mxu0 %v2274
        %2284 = vmatprep.subr.bf16.mxu0 0
        %2285 = vmatpush1.bf16.msra.mxu0 0
        %2286 = vmatprep.subr.bf16.mxu0 0
        %2287 = vmatpush1.bf16.msra.mxu0 0
        %2288 = vmatprep.subr.bf16.mxu0 0
        %2289 = vmatpush1.bf16.msra.mxu0 0
        %2290 = vmatprep.subr.bf16.mxu0 0
        %2291 = vmatpush1.bf16.msra.mxu0 0
        %2292 = vmatprep.subr.bf16.mxu0 0
        %2293 = vmatpush1.bf16.msra.mxu0 0
        %2294 = vmatprep.subr.bf16.mxu0 0
        %2295 = vmatpush1.bf16.msra.mxu0 0
        %2296 = vmatprep.subr.bf16.mxu0 0
        %2297 = vmatpush1.bf16.msra.mxu0 0
        %2298 = vmatprep.subr.bf16.mxu0 0
        %2299 = vmatpush1.bf16.msra.mxu0 0
        %2300 = vmatprep.subr.bf16.mxu0 0
        %2301 = vmatpush1.bf16.msra.mxu0 0
        %2302 = vmatprep.subr.bf16.mxu0 0
        %2303 = vmatpush1.bf16.msra.mxu0 0
        %2304 = vmatprep.subr.bf16.mxu0 0
        %2305 = vmatpush1.bf16.msra.mxu0 0
        %2306 = vmatprep.subr.bf16.mxu0 0
        %2307 = vmatpush1.bf16.msra.mxu0 0
        %2308 = vmatprep.subr.bf16.mxu0 0
        %2309 = vmatpush1.bf16.msra.mxu0 0
        %2310 = vmatprep.subr.bf16.mxu0 0
        %2311 = vmatpush1.bf16.msra.mxu0 0
        %2312 = vmatprep.mubr.bf16.mxu0 0
        %2313 = vmatmul.mubr.bf16.gmra.mrb[0].mxu0 %v2278
        %v2314 = vpop.f32.mrb[0].mxu0
        %v2315 = vadd.f32 %v2263, %v2314
        %v2316 = vpop.f32.mrb[0].mxu0
        %v2317 = vpop.f32.mrb[0].mxu0
        %v2318 = vpop.f32.mrb[0].mxu0
        %2319 = vdwg.mxu0
        %v2320 = vld [vmem:[%s709] sm:$0xf]
        %v2321 = vpack.c.bf16 %v2315, %v2315
        %v2322 = vld [vmem:[#allocation4] sm:$0xf]
        %v2323 = vld [vmem:[#allocation5] sm:$0xf]
        %v2324 = vunpack.c.l.bf16 %v2320
        %v2326 = vsel %vm1171, %v2321, 0
        %v2329 = vsel %vm1171, %v2322, 0
        %2331 = vmatprep.subr.bf16.mxu0 0
        %2332 = vmatpush1.bf16.xpose.msra.mxu0 %v2329
        %2333 = vmatprep.subr.bf16.mxu0 0
        %2334 = vmatpush1.bf16.xpose.msra.mxu0 0
        %2335 = vmatprep.subr.bf16.mxu0 0
        %2336 = vmatpush1.bf16.xpose.msra.mxu0 0
        %2337 = vmatprep.subr.bf16.mxu0 0
        %2338 = vmatpush1.bf16.xpose.msra.mxu0 0
        %2339 = vmatprep.subr.bf16.mxu0 0
        %2340 = vmatpush1.bf16.xpose.msra.mxu0 0
        %2341 = vmatprep.subr.bf16.mxu0 0
        %2342 = vmatpush1.bf16.xpose.msra.mxu0 0
        %2343 = vmatprep.subr.bf16.mxu0 0
        %2344 = vmatpush1.bf16.xpose.msra.mxu0 0
        %2345 = vmatprep.subr.bf16.mxu0 0
        %2346 = vmatpush1.bf16.xpose.msra.mxu0 0
        %2347 = vmatprep.subr.bf16.mxu0 0
        %2348 = vmatpush1.bf16.xpose.msra.mxu0 0
        %2349 = vmatprep.subr.bf16.mxu0 0
        %2350 = vmatpush1.bf16.xpose.msra.mxu0 0
        %2351 = vmatprep.subr.bf16.mxu0 0
        %2352 = vmatpush1.bf16.xpose.msra.mxu0 0
        %2353 = vmatprep.subr.bf16.mxu0 0
        %2354 = vmatpush1.bf16.xpose.msra.mxu0 0
        %2355 = vmatprep.subr.bf16.mxu0 0
        %2356 = vmatpush1.bf16.xpose.msra.mxu0 0
        %2357 = vmatprep.subr.bf16.mxu0 0
        %2358 = vmatpush1.bf16.xpose.msra.mxu0 0
        %2359 = vmatprep.subr.bf16.mxu0 0
        %2360 = vmatpush1.bf16.xpose.msra.mxu0 0
        %2361 = vmatprep.subr.bf16.mxu0 0
        %2362 = vmatpush1.bf16.xpose.msra.mxu0 0
        %2363 = vmatprep.mubr.bf16.mxu0 0
        %2364 = vmatmul.mubr.bf16.gmra.mrb[0].mxu0 %v2326
        %v2365 = vpop.f32.mrb[0].mxu0
        %v2366 = vadd.f32 %v2324, %v2365
        %v2367 = vpop.f32.mrb[0].mxu0
        %v2368 = vpop.f32.mrb[0].mxu0
        %v2369 = vpop.f32.mrb[0].mxu0
        %2370 = vdwg.mxu0
        %v2371 = vsel %vm1218, %v2366, -inf
        %2372 = vmax.xlane.f32.xlu0 %v2371
        %v2373 = vpop.xlane.xlu0 %2372
        %v2374 = vmax.f32 %v2373, -1e+30
        %v2375 = vsub.f32 -1e+30, %v2374
        %v2376 = vmul.f32 %v2375, 1.442695
        %v2377 = vpow.pop %v2376
        %v2378 = vsub.f32 %v2366, %v2374
        %v2379 = vmul.f32 %v2378, 1.442695
        %v2380 = vpow.pop %v2379
        %v2381 = vmul.f32 %v2377, 0.0
        %v2382 = vsel %vm1218, %v2380, 0.0
        %2383 = vadd.xlane.f32.xlu0 %v2382
        %v2384 = vpop.xlane.xlu0 %2383
        %v2385 = vadd.f32 %v2381, %v2384
        %v2386 = vpack.c.bf16 %v2380, %v2380
        %v2388 = vsel %vm1218, %v2386, 0
        %v2391 = vsel %vm1238, %v2323, 0
        %2393 = vmatprep.subr.bf16.mxu0 0
        %2394 = vmatpush1.bf16.msra.mxu0 %v2391
        %2395 = vmatprep.subr.bf16.mxu0 0
        %2396 = vmatpush1.bf16.msra.mxu0 0
        %2397 = vmatprep.subr.bf16.mxu0 0
        %2398 = vmatpush1.bf16.msra.mxu0 0
        %2399 = vmatprep.subr.bf16.mxu0 0
        %2400 = vmatpush1.bf16.msra.mxu0 0
        %2401 = vmatprep.subr.bf16.mxu0 0
        %2402 = vmatpush1.bf16.msra.mxu0 0
        %2403 = vmatprep.subr.bf16.mxu0 0
        %2404 = vmatpush1.bf16.msra.mxu0 0
        %2405 = vmatprep.subr.bf16.mxu0 0
        %2406 = vmatpush1.bf16.msra.mxu0 0
        %2407 = vmatprep.subr.bf16.mxu0 0
        %2408 = vmatpush1.bf16.msra.mxu0 0
        %2409 = vmatprep.subr.bf16.mxu0 0
        %2410 = vmatpush1.bf16.msra.mxu0 0
        %2411 = vmatprep.subr.bf16.mxu0 0
        %2412 = vmatpush1.bf16.msra.mxu0 0
        %2413 = vmatprep.subr.bf16.mxu0 0
        %2414 = vmatpush1.bf16.msra.mxu0 0
        %2415 = vmatprep.subr.bf16.mxu0 0
        %2416 = vmatpush1.bf16.msra.mxu0 0
        %2417 = vmatprep.subr.bf16.mxu0 0
        %2418 = vmatpush1.bf16.msra.mxu0 0
        %2419 = vmatprep.subr.bf16.mxu0 0
        %2420 = vmatpush1.bf16.msra.mxu0 0
        %2421 = vmatprep.subr.bf16.mxu0 0
        %2422 = vmatpush1.bf16.msra.mxu0 0
        %2423 = vmatprep.subr.bf16.mxu0 0
        %2424 = vmatpush1.bf16.msra.mxu0 0
        %2425 = vmatprep.mubr.bf16.mxu0 0
        %2426 = vmatmul.mubr.bf16.gmra.mrb[0].mxu0 %v2388
        %v2427 = vpop.f32.mrb[0].mxu0
        %v2428 = vadd.f32 0.0, %v2427
        %v2429 = vpop.f32.mrb[0].mxu0
        %v2430 = vpop.f32.mrb[0].mxu0
        %v2431 = vpop.f32.mrb[0].mxu0
        %2432 = vdwg.mxu0
        %v2433 = vadd.f32 %v2381, %v2428
        %v2434 = vrcp.pop %v2385
        %v2435 = vmul.f32 %v2433, %v2434
        %2437 = vrot.lane.b32.xlu0 %v2321, 124
        %v2438 = vpop.permute.xlu0 %2437
        %v2440 = vunpack.c.l.b16 %v2322
        %v2441 = vpack.c.b16 %v2440, %v2440
        %2442 = vrot.lane.b32.xlu0 %v2441, 124
        %v2443 = vpop.permute.xlu0 %2442
        %v2445 = vsel %vm1171, %v2438, 0
        %v2448 = vsel %vm1171, %v2443, 0
        %2450 = vmatprep.subr.bf16.mxu0 0
        %2451 = vmatpush1.bf16.xpose.msra.mxu0 %v2448
        %2452 = vmatprep.subr.bf16.mxu0 0
        %2453 = vmatpush1.bf16.xpose.msra.mxu0 0
        %2454 = vmatprep.subr.bf16.mxu0 0
        %2455 = vmatpush1.bf16.xpose.msra.mxu0 0
        %2456 = vmatprep.subr.bf16.mxu0 0
        %2457 = vmatpush1.bf16.xpose.msra.mxu0 0
        %2458 = vmatprep.subr.bf16.mxu0 0
        %2459 = vmatpush1.bf16.xpose.msra.mxu0 0
        %2460 = vmatprep.subr.bf16.mxu0 0
        %2461 = vmatpush1.bf16.xpose.msra.mxu0 0
        %2462 = vmatprep.subr.bf16.mxu0 0
        %2463 = vmatpush1.bf16.xpose.msra.mxu0 0
        %2464 = vmatprep.subr.bf16.mxu0 0
        %2465 = vmatpush1.bf16.xpose.msra.mxu0 0
        %2466 = vmatprep.subr.bf16.mxu0 0
        %2467 = vmatpush1.bf16.xpose.msra.mxu0 0
        %2468 = vmatprep.subr.bf16.mxu0 0
        %2469 = vmatpush1.bf16.xpose.msra.mxu0 0
        %2470 = vmatprep.subr.bf16.mxu0 0
        %2471 = vmatpush1.bf16.xpose.msra.mxu0 0
        %2472 = vmatprep.subr.bf16.mxu0 0
        %2473 = vmatpush1.bf16.xpose.msra.mxu0 0
        %2474 = vmatprep.subr.bf16.mxu0 0
        %2475 = vmatpush1.bf16.xpose.msra.mxu0 0
        %2476 = vmatprep.subr.bf16.mxu0 0
        %2477 = vmatpush1.bf16.xpose.msra.mxu0 0
        %2478 = vmatprep.subr.bf16.mxu0 0
        %2479 = vmatpush1.bf16.xpose.msra.mxu0 0
        %2480 = vmatprep.subr.bf16.mxu0 0
        %2481 = vmatpush1.bf16.xpose.msra.mxu0 0
        %2482 = vmatprep.mubr.bf16.mxu0 0
        %2483 = vmatmul.mubr.bf16.gmra.mrb[0].mxu0 %v2445
        %v2484 = vpop.f32.mrb[0].mxu0
        %v2485 = vadd.f32 %v2324, %v2484
        %v2486 = vpop.f32.mrb[0].mxu0
        %v2487 = vpop.f32.mrb[0].mxu0
        %v2488 = vpop.f32.mrb[0].mxu0
        %2489 = vdwg.mxu0
        %v2490 = vsel %vm1218, %v2485, -inf
        %2491 = vmax.xlane.f32.xlu0 %v2490
        %v2492 = vpop.xlane.xlu0 %2491
        %v2493 = vmax.f32 %v2492, -1e+30
        %v2494 = vsub.f32 -1e+30, %v2493
        %v2495 = vmul.f32 %v2494, 1.442695
        %v2496 = vpow.pop %v2495
        %v2497 = vsub.f32 %v2485, %v2493
        %v2498 = vmul.f32 %v2497, 1.442695
        %v2499 = vpow.pop %v2498
        %v2500 = vmul.f32 %v2496, 0.0
        %v2501 = vsel %vm1218, %v2499, 0.0
        %2502 = vadd.xlane.f32.xlu0 %v2501
        %v2503 = vpop.xlane.xlu0 %2502
        %v2504 = vadd.f32 %v2500, %v2503
        %v2505 = vpack.c.bf16 %v2499, %v2499
        %v2507 = vunpack.c.l.b16 %v2323
        %v2508 = vpack.c.b16 %v2507, %v2507
        %2509 = vrot.lane.b32.xlu0 %v2508, 124
        %v2510 = vpop.permute.xlu0 %2509
        %v2512 = vsel %vm1218, %v2505, 0
        %v2515 = vsel %vm1238, %v2510, 0
        %2517 = vmatprep.subr.bf16.mxu0 0
        %2518 = vmatpush1.bf16.msra.mxu0 %v2515
        %2519 = vmatprep.subr.bf16.mxu0 0
        %2520 = vmatpush1.bf16.msra.mxu0 0
        %2521 = vmatprep.subr.bf16.mxu0 0
        %2522 = vmatpush1.bf16.msra.mxu0 0
        %2523 = vmatprep.subr.bf16.mxu0 0
        %2524 = vmatpush1.bf16.msra.mxu0 0
        %2525 = vmatprep.subr.bf16.mxu0 0
        %2526 = vmatpush1.bf16.msra.mxu0 0
        %2527 = vmatprep.subr.bf16.mxu0 0
        %2528 = vmatpush1.bf16.msra.mxu0 0
        %2529 = vmatprep.subr.bf16.mxu0 0
        %2530 = vmatpush1.bf16.msra.mxu0 0
        %2531 = vmatprep.subr.bf16.mxu0 0
        %2532 = vmatpush1.bf16.msra.mxu0 0
        %2533 = vmatprep.subr.bf16.mxu0 0
        %2534 = vmatpush1.bf16.msra.mxu0 0
        %2535 = vmatprep.subr.bf16.mxu0 0
        %2536 = vmatpush1.bf16.msra.mxu0 0
        %2537 = vmatprep.subr.bf16.mxu0 0
        %2538 = vmatpush1.bf16.msra.mxu0 0
        %2539 = vmatprep.subr.bf16.mxu0 0
        %2540 = vmatpush1.bf16.msra.mxu0 0
        %2541 = vmatprep.subr.bf16.mxu0 0
        %2542 = vmatpush1.bf16.msra.mxu0 0
        %2543 = vmatprep.subr.bf16.mxu0 0
        %2544 = vmatpush1.bf16.msra.mxu0 0
        %2545 = vmatprep.subr.bf16.mxu0 0
        %2546 = vmatpush1.bf16.msra.mxu0 0
        %2547 = vmatprep.subr.bf16.mxu0 0
        %2548 = vmatpush1.bf16.msra.mxu0 0
        %2549 = vmatprep.mubr.bf16.mxu0 0
        %2550 = vmatmul.mubr.bf16.gmra.mrb[0].mxu0 %v2512
        %v2551 = vpop.f32.mrb[0].mxu0
        %v2552 = vadd.f32 0.0, %v2551
        %v2553 = vpop.f32.mrb[0].mxu0
        %v2554 = vpop.f32.mrb[0].mxu0
        %v2555 = vpop.f32.mrb[0].mxu0
        %2556 = vdwg.mxu0
        %v2557 = vadd.f32 %v2500, %v2552
        %v2558 = vrcp.pop %v2504
        %v2559 = vmul.f32 %v2557, %v2558
        %2560 = vrot.lane.b32.xlu0 %v2321, 120
        %v2561 = vpop.permute.xlu0 %2560
        %2562 = vrot.lane.b32.xlu0 %v2441, 120
        %v2563 = vpop.permute.xlu0 %2562
        %v2565 = vsel %vm1171, %v2561, 0
        %v2568 = vsel %vm1171, %v2563, 0
        %2570 = vmatprep.subr.bf16.mxu0 0
        %2571 = vmatpush1.bf16.xpose.msra.mxu0 %v2568
        %2572 = vmatprep.subr.bf16.mxu0 0
        %2573 = vmatpush1.bf16.xpose.msra.mxu0 0
        %2574 = vmatprep.subr.bf16.mxu0 0
        %2575 = vmatpush1.bf16.xpose.msra.mxu0 0
        %2576 = vmatprep.subr.bf16.mxu0 0
        %2577 = vmatpush1.bf16.xpose.msra.mxu0 0
        %2578 = vmatprep.subr.bf16.mxu0 0
        %2579 = vmatpush1.bf16.xpose.msra.mxu0 0
        %2580 = vmatprep.subr.bf16.mxu0 0
        %2581 = vmatpush1.bf16.xpose.msra.mxu0 0
        %2582 = vmatprep.subr.bf16.mxu0 0
        %2583 = vmatpush1.bf16.xpose.msra.mxu0 0
        %2584 = vmatprep.subr.bf16.mxu0 0
        %2585 = vmatpush1.bf16.xpose.msra.mxu0 0
        %2586 = vmatprep.subr.bf16.mxu0 0
        %2587 = vmatpush1.bf16.xpose.msra.mxu0 0
        %2588 = vmatprep.subr.bf16.mxu0 0
        %2589 = vmatpush1.bf16.xpose.msra.mxu0 0
        %2590 = vmatprep.subr.bf16.mxu0 0
        %2591 = vmatpush1.bf16.xpose.msra.mxu0 0
        %2592 = vmatprep.subr.bf16.mxu0 0
        %2593 = vmatpush1.bf16.xpose.msra.mxu0 0
        %2594 = vmatprep.subr.bf16.mxu0 0
        %2595 = vmatpush1.bf16.xpose.msra.mxu0 0
        %2596 = vmatprep.subr.bf16.mxu0 0
        %2597 = vmatpush1.bf16.xpose.msra.mxu0 0
        %2598 = vmatprep.subr.bf16.mxu0 0
        %2599 = vmatpush1.bf16.xpose.msra.mxu0 0
        %2600 = vmatprep.subr.bf16.mxu0 0
        %2601 = vmatpush1.bf16.xpose.msra.mxu0 0
        %2602 = vmatprep.mubr.bf16.mxu0 0
        %2603 = vmatmul.mubr.bf16.gmra.mrb[0].mxu0 %v2565
        %v2604 = vpop.f32.mrb[0].mxu0
        %v2605 = vadd.f32 %v2324, %v2604
        %v2606 = vpop.f32.mrb[0].mxu0
        %v2607 = vpop.f32.mrb[0].mxu0
        %v2608 = vpop.f32.mrb[0].mxu0
        %2609 = vdwg.mxu0
        %v2610 = vsel %vm1218, %v2605, -inf
        %2611 = vmax.xlane.f32.xlu0 %v2610
        %v2612 = vpop.xlane.xlu0 %2611
        %v2613 = vmax.f32 %v2612, -1e+30
        %v2614 = vsub.f32 -1e+30, %v2613
        %v2615 = vmul.f32 %v2614, 1.442695
        %v2616 = vpow.pop %v2615
        %v2617 = vsub.f32 %v2605, %v2613
        %v2618 = vmul.f32 %v2617, 1.442695
        %v2619 = vpow.pop %v2618
        %v2620 = vmul.f32 %v2616, 0.0
        %v2621 = vsel %vm1218, %v2619, 0.0
        %2622 = vadd.xlane.f32.xlu0 %v2621
        %v2623 = vpop.xlane.xlu0 %2622
        %v2624 = vadd.f32 %v2620, %v2623
        %v2625 = vpack.c.bf16 %v2619, %v2619
        %2626 = vrot.lane.b32.xlu0 %v2508, 120
        %v2627 = vpop.permute.xlu0 %2626
        %v2629 = vsel %vm1218, %v2625, 0
        %v2632 = vsel %vm1238, %v2627, 0
        %2634 = vmatprep.subr.bf16.mxu0 0
        %2635 = vmatpush1.bf16.msra.mxu0 %v2632
        %2636 = vmatprep.subr.bf16.mxu0 0
        %2637 = vmatpush1.bf16.msra.mxu0 0
        %2638 = vmatprep.subr.bf16.mxu0 0
        %2639 = vmatpush1.bf16.msra.mxu0 0
        %2640 = vmatprep.subr.bf16.mxu0 0
        %2641 = vmatpush1.bf16.msra.mxu0 0
        %2642 = vmatprep.subr.bf16.mxu0 0
        %2643 = vmatpush1.bf16.msra.mxu0 0
        %2644 = vmatprep.subr.bf16.mxu0 0
        %2645 = vmatpush1.bf16.msra.mxu0 0
        %2646 = vmatprep.subr.bf16.mxu0 0
        %2647 = vmatpush1.bf16.msra.mxu0 0
        %2648 = vmatprep.subr.bf16.mxu0 0
        %2649 = vmatpush1.bf16.msra.mxu0 0
        %2650 = vmatprep.subr.bf16.mxu0 0
        %2651 = vmatpush1.bf16.msra.mxu0 0
        %2652 = vmatprep.subr.bf16.mxu0 0
        %2653 = vmatpush1.bf16.msra.mxu0 0
        %2654 = vmatprep.subr.bf16.mxu0 0
        %2655 = vmatpush1.bf16.msra.mxu0 0
        %2656 = vmatprep.subr.bf16.mxu0 0
        %2657 = vmatpush1.bf16.msra.mxu0 0
        %2658 = vmatprep.subr.bf16.mxu0 0
        %2659 = vmatpush1.bf16.msra.mxu0 0
        %2660 = vmatprep.subr.bf16.mxu0 0
        %2661 = vmatpush1.bf16.msra.mxu0 0
        %2662 = vmatprep.subr.bf16.mxu0 0
        %2663 = vmatpush1.bf16.msra.mxu0 0
        %2664 = vmatprep.subr.bf16.mxu0 0
        %2665 = vmatpush1.bf16.msra.mxu0 0
        %2666 = vmatprep.mubr.bf16.mxu0 0
        %2667 = vmatmul.mubr.bf16.gmra.mrb[0].mxu0 %v2629
        %v2668 = vpop.f32.mrb[0].mxu0
        %v2669 = vadd.f32 0.0, %v2668
        %v2670 = vpop.f32.mrb[0].mxu0
        %v2671 = vpop.f32.mrb[0].mxu0
        %v2672 = vpop.f32.mrb[0].mxu0
        %2673 = vdwg.mxu0
        %v2674 = vadd.f32 %v2620, %v2669
        %v2675 = vrcp.pop %v2624
        %v2676 = vmul.f32 %v2674, %v2675
        %2677 = vrot.lane.b32.xlu0 %v2321, 116
        %v2678 = vpop.permute.xlu0 %2677
        %2679 = vrot.lane.b32.xlu0 %v2441, 116
        %v2680 = vpop.permute.xlu0 %2679
        %v2682 = vsel %vm1171, %v2678, 0
        %v2685 = vsel %vm1171, %v2680, 0
        %2687 = vmatprep.subr.bf16.mxu0 0
        %2688 = vmatpush1.bf16.xpose.msra.mxu0 %v2685
        %2689 = vmatprep.subr.bf16.mxu0 0
        %2690 = vmatpush1.bf16.xpose.msra.mxu0 0
        %2691 = vmatprep.subr.bf16.mxu0 0
        %2692 = vmatpush1.bf16.xpose.msra.mxu0 0
        %2693 = vmatprep.subr.bf16.mxu0 0
        %2694 = vmatpush1.bf16.xpose.msra.mxu0 0
        %2695 = vmatprep.subr.bf16.mxu0 0
        %2696 = vmatpush1.bf16.xpose.msra.mxu0 0
        %2697 = vmatprep.subr.bf16.mxu0 0
        %2698 = vmatpush1.bf16.xpose.msra.mxu0 0
        %2699 = vmatprep.subr.bf16.mxu0 0
        %2700 = vmatpush1.bf16.xpose.msra.mxu0 0
        %2701 = vmatprep.subr.bf16.mxu0 0
        %2702 = vmatpush1.bf16.xpose.msra.mxu0 0
        %2703 = vmatprep.subr.bf16.mxu0 0
        %2704 = vmatpush1.bf16.xpose.msra.mxu0 0
        %2705 = vmatprep.subr.bf16.mxu0 0
        %2706 = vmatpush1.bf16.xpose.msra.mxu0 0
        %2707 = vmatprep.subr.bf16.mxu0 0
        %2708 = vmatpush1.bf16.xpose.msra.mxu0 0
        %2709 = vmatprep.subr.bf16.mxu0 0
        %2710 = vmatpush1.bf16.xpose.msra.mxu0 0
        %2711 = vmatprep.subr.bf16.mxu0 0
        %2712 = vmatpush1.bf16.xpose.msra.mxu0 0
        %2713 = vmatprep.subr.bf16.mxu0 0
        %2714 = vmatpush1.bf16.xpose.msra.mxu0 0
        %2715 = vmatprep.subr.bf16.mxu0 0
        %2716 = vmatpush1.bf16.xpose.msra.mxu0 0
        %2717 = vmatprep.subr.bf16.mxu0 0
        %2718 = vmatpush1.bf16.xpose.msra.mxu0 0
        %2719 = vmatprep.mubr.bf16.mxu0 0
        %2720 = vmatmul.mubr.bf16.gmra.mrb[0].mxu0 %v2682
        %v2721 = vpop.f32.mrb[0].mxu0
        %v2722 = vadd.f32 %v2324, %v2721
        %v2723 = vpop.f32.mrb[0].mxu0
        %v2724 = vpop.f32.mrb[0].mxu0
        %v2725 = vpop.f32.mrb[0].mxu0
        %2726 = vdwg.mxu0
        %v2727 = vsel %vm1218, %v2722, -inf
        %2728 = vmax.xlane.f32.xlu0 %v2727
        %v2729 = vpop.xlane.xlu0 %2728
        %v2730 = vmax.f32 %v2729, -1e+30
        %v2731 = vsub.f32 -1e+30, %v2730
        %v2732 = vmul.f32 %v2731, 1.442695
        %v2733 = vpow.pop %v2732
        %v2734 = vsub.f32 %v2722, %v2730
        %v2735 = vmul.f32 %v2734, 1.442695
        %v2736 = vpow.pop %v2735
        %v2737 = vmul.f32 %v2733, 0.0
        %v2738 = vsel %vm1218, %v2736, 0.0
        %2739 = vadd.xlane.f32.xlu0 %v2738
        %v2740 = vpop.xlane.xlu0 %2739
        %v2741 = vadd.f32 %v2737, %v2740
        %v2742 = vpack.c.bf16 %v2736, %v2736
        %2743 = vrot.lane.b32.xlu0 %v2508, 116
        %v2744 = vpop.permute.xlu0 %2743
        %v2746 = vsel %vm1218, %v2742, 0
        %v2749 = vsel %vm1238, %v2744, 0
        %2751 = vmatprep.subr.bf16.mxu0 0
        %2752 = vmatpush1.bf16.msra.mxu0 %v2749
        %2753 = vmatprep.subr.bf16.mxu0 0
        %2754 = vmatpush1.bf16.msra.mxu0 0
        %2755 = vmatprep.subr.bf16.mxu0 0
        %2756 = vmatpush1.bf16.msra.mxu0 0
        %2757 = vmatprep.subr.bf16.mxu0 0
        %2758 = vmatpush1.bf16.msra.mxu0 0
        %2759 = vmatprep.subr.bf16.mxu0 0
        %2760 = vmatpush1.bf16.msra.mxu0 0
        %2761 = vmatprep.subr.bf16.mxu0 0
        %2762 = vmatpush1.bf16.msra.mxu0 0
        %2763 = vmatprep.subr.bf16.mxu0 0
        %2764 = vmatpush1.bf16.msra.mxu0 0
        %2765 = vmatprep.subr.bf16.mxu0 0
        %2766 = vmatpush1.bf16.msra.mxu0 0
        %2767 = vmatprep.subr.bf16.mxu0 0
        %2768 = vmatpush1.bf16.msra.mxu0 0
        %2769 = vmatprep.subr.bf16.mxu0 0
        %2770 = vmatpush1.bf16.msra.mxu0 0
        %2771 = vmatprep.subr.bf16.mxu0 0
        %2772 = vmatpush1.bf16.msra.mxu0 0
        %2773 = vmatprep.subr.bf16.mxu0 0
        %2774 = vmatpush1.bf16.msra.mxu0 0
        %2775 = vmatprep.subr.bf16.mxu0 0
        %2776 = vmatpush1.bf16.msra.mxu0 0
        %2777 = vmatprep.subr.bf16.mxu0 0
        %2778 = vmatpush1.bf16.msra.mxu0 0
        %2779 = vmatprep.subr.bf16.mxu0 0
        %2780 = vmatpush1.bf16.msra.mxu0 0
        %2781 = vmatprep.subr.bf16.mxu0 0
        %2782 = vmatpush1.bf16.msra.mxu0 0
        %2783 = vmatprep.mubr.bf16.mxu0 0
        %2784 = vmatmul.mubr.bf16.gmra.mrb[0].mxu0 %v2746
        %v2785 = vpop.f32.mrb[0].mxu0
        %v2786 = vadd.f32 0.0, %v2785
        %v2787 = vpop.f32.mrb[0].mxu0
        %v2788 = vpop.f32.mrb[0].mxu0
        %v2789 = vpop.f32.mrb[0].mxu0
        %2790 = vdwg.mxu0
        %v2791 = vadd.f32 %v2737, %v2786
        %v2792 = vrcp.pop %v2741
        %v2793 = vmul.f32 %v2791, %v2792
        %2794 = vrot.lane.b32.xlu0 %v2321, 112
        %v2795 = vpop.permute.xlu0 %2794
        %2796 = vrot.lane.b32.xlu0 %v2441, 112
        %v2797 = vpop.permute.xlu0 %2796
        %v2799 = vsel %vm1171, %v2795, 0
        %v2802 = vsel %vm1171, %v2797, 0
        %2804 = vmatprep.subr.bf16.mxu0 0
        %2805 = vmatpush1.bf16.xpose.msra.mxu0 %v2802
        %2806 = vmatprep.subr.bf16.mxu0 0
        %2807 = vmatpush1.bf16.xpose.msra.mxu0 0
        %2808 = vmatprep.subr.bf16.mxu0 0
        %2809 = vmatpush1.bf16.xpose.msra.mxu0 0
        %2810 = vmatprep.subr.bf16.mxu0 0
        %2811 = vmatpush1.bf16.xpose.msra.mxu0 0
        %2812 = vmatprep.subr.bf16.mxu0 0
        %2813 = vmatpush1.bf16.xpose.msra.mxu0 0
        %2814 = vmatprep.subr.bf16.mxu0 0
        %2815 = vmatpush1.bf16.xpose.msra.mxu0 0
        %2816 = vmatprep.subr.bf16.mxu0 0
        %2817 = vmatpush1.bf16.xpose.msra.mxu0 0
        %2818 = vmatprep.subr.bf16.mxu0 0
        %2819 = vmatpush1.bf16.xpose.msra.mxu0 0
        %2820 = vmatprep.subr.bf16.mxu0 0
        %2821 = vmatpush1.bf16.xpose.msra.mxu0 0
        %2822 = vmatprep.subr.bf16.mxu0 0
        %2823 = vmatpush1.bf16.xpose.msra.mxu0 0
        %2824 = vmatprep.subr.bf16.mxu0 0
        %2825 = vmatpush1.bf16.xpose.msra.mxu0 0
        %2826 = vmatprep.subr.bf16.mxu0 0
        %2827 = vmatpush1.bf16.xpose.msra.mxu0 0
        %2828 = vmatprep.subr.bf16.mxu0 0
        %2829 = vmatpush1.bf16.xpose.msra.mxu0 0
        %2830 = vmatprep.subr.bf16.mxu0 0
        %2831 = vmatpush1.bf16.xpose.msra.mxu0 0
        %2832 = vmatprep.subr.bf16.mxu0 0
        %2833 = vmatpush1.bf16.xpose.msra.mxu0 0
        %2834 = vmatprep.subr.bf16.mxu0 0
        %2835 = vmatpush1.bf16.xpose.msra.mxu0 0
        %2836 = vmatprep.mubr.bf16.mxu0 0
        %2837 = vmatmul.mubr.bf16.gmra.mrb[0].mxu0 %v2799
        %v2838 = vpop.f32.mrb[0].mxu0
        %v2839 = vadd.f32 %v2324, %v2838
        %v2840 = vpop.f32.mrb[0].mxu0
        %v2841 = vpop.f32.mrb[0].mxu0
        %v2842 = vpop.f32.mrb[0].mxu0
        %2843 = vdwg.mxu0
        %v2844 = vsel %vm1218, %v2839, -inf
        %2845 = vmax.xlane.f32.xlu0 %v2844
        %v2846 = vpop.xlane.xlu0 %2845
        %v2847 = vmax.f32 %v2846, -1e+30
        %v2848 = vsub.f32 -1e+30, %v2847
        %v2849 = vmul.f32 %v2848, 1.442695
        %v2850 = vpow.pop %v2849
        %v2851 = vsub.f32 %v2839, %v2847
        %v2852 = vmul.f32 %v2851, 1.442695
        %v2853 = vpow.pop %v2852
        %v2854 = vmul.f32 %v2850, 0.0
        %v2855 = vsel %vm1218, %v2853, 0.0
        %2856 = vadd.xlane.f32.xlu0 %v2855
        %v2857 = vpop.xlane.xlu0 %2856
        %v2858 = vadd.f32 %v2854, %v2857
        %v2859 = vpack.c.bf16 %v2853, %v2853
        %2860 = vrot.lane.b32.xlu0 %v2508, 112
        %v2861 = vpop.permute.xlu0 %2860
        %v2863 = vsel %vm1218, %v2859, 0
        %v2866 = vsel %vm1238, %v2861, 0
        %2868 = vmatprep.subr.bf16.mxu0 0
        %2869 = vmatpush1.bf16.msra.mxu0 %v2866
        %2870 = vmatprep.subr.bf16.mxu0 0
        %2871 = vmatpush1.bf16.msra.mxu0 0
        %2872 = vmatprep.subr.bf16.mxu0 0
        %2873 = vmatpush1.bf16.msra.mxu0 0
        %2874 = vmatprep.subr.bf16.mxu0 0
        %2875 = vmatpush1.bf16.msra.mxu0 0
        %2876 = vmatprep.subr.bf16.mxu0 0
        %2877 = vmatpush1.bf16.msra.mxu0 0
        %2878 = vmatprep.subr.bf16.mxu0 0
        %2879 = vmatpush1.bf16.msra.mxu0 0
        %2880 = vmatprep.subr.bf16.mxu0 0
        %2881 = vmatpush1.bf16.msra.mxu0 0
        %2882 = vmatprep.subr.bf16.mxu0 0
        %2883 = vmatpush1.bf16.msra.mxu0 0
        %2884 = vmatprep.subr.bf16.mxu0 0
        %2885 = vmatpush1.bf16.msra.mxu0 0
        %2886 = vmatprep.subr.bf16.mxu0 0
        %2887 = vmatpush1.bf16.msra.mxu0 0
        %2888 = vmatprep.subr.bf16.mxu0 0
        %2889 = vmatpush1.bf16.msra.mxu0 0
        %2890 = vmatprep.subr.bf16.mxu0 0
        %2891 = vmatpush1.bf16.msra.mxu0 0
        %2892 = vmatprep.subr.bf16.mxu0 0
        %2893 = vmatpush1.bf16.msra.mxu0 0
        %2894 = vmatprep.subr.bf16.mxu0 0
        %2895 = vmatpush1.bf16.msra.mxu0 0
        %2896 = vmatprep.subr.bf16.mxu0 0
        %2897 = vmatpush1.bf16.msra.mxu0 0
        %2898 = vmatprep.subr.bf16.mxu0 0
        %2899 = vmatpush1.bf16.msra.mxu0 0
        %2900 = vmatprep.mubr.bf16.mxu0 0
        %2901 = vmatmul.mubr.bf16.gmra.mrb[0].mxu0 %v2863
        %v2902 = vpop.f32.mrb[0].mxu0
        %v2903 = vadd.f32 0.0, %v2902
        %v2904 = vpop.f32.mrb[0].mxu0
        %v2905 = vpop.f32.mrb[0].mxu0
        %v2906 = vpop.f32.mrb[0].mxu0
        %2907 = vdwg.mxu0
        %v2908 = vadd.f32 %v2854, %v2903
        %v2909 = vrcp.pop %v2858
        %v2910 = vmul.f32 %v2908, %v2909
        %2911 = vrot.lane.b32.xlu0 %v2321, 108
        %v2912 = vpop.permute.xlu0 %2911
        %2913 = vrot.lane.b32.xlu0 %v2441, 108
        %v2914 = vpop.permute.xlu0 %2913
        %v2916 = vsel %vm1171, %v2912, 0
        %v2919 = vsel %vm1171, %v2914, 0
        %2921 = vmatprep.subr.bf16.mxu0 0
        %2922 = vmatpush1.bf16.xpose.msra.mxu0 %v2919
        %2923 = vmatprep.subr.bf16.mxu0 0
        %2924 = vmatpush1.bf16.xpose.msra.mxu0 0
        %2925 = vmatprep.subr.bf16.mxu0 0
        %2926 = vmatpush1.bf16.xpose.msra.mxu0 0
        %2927 = vmatprep.subr.bf16.mxu0 0
        %2928 = vmatpush1.bf16.xpose.msra.mxu0 0
        %2929 = vmatprep.subr.bf16.mxu0 0
        %2930 = vmatpush1.bf16.xpose.msra.mxu0 0
        %2931 = vmatprep.subr.bf16.mxu0 0
        %2932 = vmatpush1.bf16.xpose.msra.mxu0 0
        %2933 = vmatprep.subr.bf16.mxu0 0
        %2934 = vmatpush1.bf16.xpose.msra.mxu0 0
        %2935 = vmatprep.subr.bf16.mxu0 0
        %2936 = vmatpush1.bf16.xpose.msra.mxu0 0
        %2937 = vmatprep.subr.bf16.mxu0 0
        %2938 = vmatpush1.bf16.xpose.msra.mxu0 0
        %2939 = vmatprep.subr.bf16.mxu0 0
        %2940 = vmatpush1.bf16.xpose.msra.mxu0 0
        %2941 = vmatprep.subr.bf16.mxu0 0
        %2942 = vmatpush1.bf16.xpose.msra.mxu0 0
        %2943 = vmatprep.subr.bf16.mxu0 0
        %2944 = vmatpush1.bf16.xpose.msra.mxu0 0
        %2945 = vmatprep.subr.bf16.mxu0 0
        %2946 = vmatpush1.bf16.xpose.msra.mxu0 0
        %2947 = vmatprep.subr.bf16.mxu0 0
        %2948 = vmatpush1.bf16.xpose.msra.mxu0 0
        %2949 = vmatprep.subr.bf16.mxu0 0
        %2950 = vmatpush1.bf16.xpose.msra.mxu0 0
        %2951 = vmatprep.subr.bf16.mxu0 0
        %2952 = vmatpush1.bf16.xpose.msra.mxu0 0
        %2953 = vmatprep.mubr.bf16.mxu0 0
        %2954 = vmatmul.mubr.bf16.gmra.mrb[0].mxu0 %v2916
        %v2955 = vpop.f32.mrb[0].mxu0
        %v2956 = vadd.f32 %v2324, %v2955
        %v2957 = vpop.f32.mrb[0].mxu0
        %v2958 = vpop.f32.mrb[0].mxu0
        %v2959 = vpop.f32.mrb[0].mxu0
        %2960 = vdwg.mxu0
        %v2961 = vsel %vm1218, %v2956, -inf
        %2962 = vmax.xlane.f32.xlu0 %v2961
        %v2963 = vpop.xlane.xlu0 %2962
        %v2964 = vmax.f32 %v2963, -1e+30
        %v2965 = vsub.f32 -1e+30, %v2964
        %v2966 = vmul.f32 %v2965, 1.442695
        %v2967 = vpow.pop %v2966
        %v2968 = vsub.f32 %v2956, %v2964
        %v2969 = vmul.f32 %v2968, 1.442695
        %v2970 = vpow.pop %v2969
        %v2971 = vmul.f32 %v2967, 0.0
        %v2972 = vsel %vm1218, %v2970, 0.0
        %2973 = vadd.xlane.f32.xlu0 %v2972
        %v2974 = vpop.xlane.xlu0 %2973
        %v2975 = vadd.f32 %v2971, %v2974
        %v2976 = vpack.c.bf16 %v2970, %v2970
        %2977 = vrot.lane.b32.xlu0 %v2508, 108
        %v2978 = vpop.permute.xlu0 %2977
        %v2980 = vsel %vm1218, %v2976, 0
        %v2983 = vsel %vm1238, %v2978, 0
        %2985 = vmatprep.subr.bf16.mxu0 0
        %2986 = vmatpush1.bf16.msra.mxu0 %v2983
        %2987 = vmatprep.subr.bf16.mxu0 0
        %2988 = vmatpush1.bf16.msra.mxu0 0
        %2989 = vmatprep.subr.bf16.mxu0 0
        %2990 = vmatpush1.bf16.msra.mxu0 0
        %2991 = vmatprep.subr.bf16.mxu0 0
        %2992 = vmatpush1.bf16.msra.mxu0 0
        %2993 = vmatprep.subr.bf16.mxu0 0
        %2994 = vmatpush1.bf16.msra.mxu0 0
        %2995 = vmatprep.subr.bf16.mxu0 0
        %2996 = vmatpush1.bf16.msra.mxu0 0
        %2997 = vmatprep.subr.bf16.mxu0 0
        %2998 = vmatpush1.bf16.msra.mxu0 0
        %2999 = vmatprep.subr.bf16.mxu0 0
        %3000 = vmatpush1.bf16.msra.mxu0 0
        %3001 = vmatprep.subr.bf16.mxu0 0
        %3002 = vmatpush1.bf16.msra.mxu0 0
        %3003 = vmatprep.subr.bf16.mxu0 0
        %3004 = vmatpush1.bf16.msra.mxu0 0
        %3005 = vmatprep.subr.bf16.mxu0 0
        %3006 = vmatpush1.bf16.msra.mxu0 0
        %3007 = vmatprep.subr.bf16.mxu0 0
        %3008 = vmatpush1.bf16.msra.mxu0 0
        %3009 = vmatprep.subr.bf16.mxu0 0
        %3010 = vmatpush1.bf16.msra.mxu0 0
        %3011 = vmatprep.subr.bf16.mxu0 0
        %3012 = vmatpush1.bf16.msra.mxu0 0
        %3013 = vmatprep.subr.bf16.mxu0 0
        %3014 = vmatpush1.bf16.msra.mxu0 0
        %3015 = vmatprep.subr.bf16.mxu0 0
        %3016 = vmatpush1.bf16.msra.mxu0 0
        %3017 = vmatprep.mubr.bf16.mxu0 0
        %3018 = vmatmul.mubr.bf16.gmra.mrb[0].mxu0 %v2980
        %v3019 = vpop.f32.mrb[0].mxu0
        %v3020 = vadd.f32 0.0, %v3019
        %v3021 = vpop.f32.mrb[0].mxu0
        %v3022 = vpop.f32.mrb[0].mxu0
        %v3023 = vpop.f32.mrb[0].mxu0
        %3024 = vdwg.mxu0
        %v3025 = vadd.f32 %v2971, %v3020
        %v3026 = vrcp.pop %v2975
        %v3027 = vmul.f32 %v3025, %v3026
        %3028 = vrot.lane.b32.xlu0 %v2321, 104
        %v3029 = vpop.permute.xlu0 %3028
        %3030 = vrot.lane.b32.xlu0 %v2441, 104
        %v3031 = vpop.permute.xlu0 %3030
        %v3033 = vsel %vm1171, %v3029, 0
        %v3036 = vsel %vm1171, %v3031, 0
        %3038 = vmatprep.subr.bf16.mxu0 0
        %3039 = vmatpush1.bf16.xpose.msra.mxu0 %v3036
        %3040 = vmatprep.subr.bf16.mxu0 0
        %3041 = vmatpush1.bf16.xpose.msra.mxu0 0
        %3042 = vmatprep.subr.bf16.mxu0 0
        %3043 = vmatpush1.bf16.xpose.msra.mxu0 0
        %3044 = vmatprep.subr.bf16.mxu0 0
        %3045 = vmatpush1.bf16.xpose.msra.mxu0 0
        %3046 = vmatprep.subr.bf16.mxu0 0
        %3047 = vmatpush1.bf16.xpose.msra.mxu0 0
        %3048 = vmatprep.subr.bf16.mxu0 0
        %3049 = vmatpush1.bf16.xpose.msra.mxu0 0
        %3050 = vmatprep.subr.bf16.mxu0 0
        %3051 = vmatpush1.bf16.xpose.msra.mxu0 0
        %3052 = vmatprep.subr.bf16.mxu0 0
        %3053 = vmatpush1.bf16.xpose.msra.mxu0 0
        %3054 = vmatprep.subr.bf16.mxu0 0
        %3055 = vmatpush1.bf16.xpose.msra.mxu0 0
        %3056 = vmatprep.subr.bf16.mxu0 0
        %3057 = vmatpush1.bf16.xpose.msra.mxu0 0
        %3058 = vmatprep.subr.bf16.mxu0 0
        %3059 = vmatpush1.bf16.xpose.msra.mxu0 0
        %3060 = vmatprep.subr.bf16.mxu0 0
        %3061 = vmatpush1.bf16.xpose.msra.mxu0 0
        %3062 = vmatprep.subr.bf16.mxu0 0
        %3063 = vmatpush1.bf16.xpose.msra.mxu0 0
        %3064 = vmatprep.subr.bf16.mxu0 0
        %3065 = vmatpush1.bf16.xpose.msra.mxu0 0
        %3066 = vmatprep.subr.bf16.mxu0 0
        %3067 = vmatpush1.bf16.xpose.msra.mxu0 0
        %3068 = vmatprep.subr.bf16.mxu0 0
        %3069 = vmatpush1.bf16.xpose.msra.mxu0 0
        %3070 = vmatprep.mubr.bf16.mxu0 0
        %3071 = vmatmul.mubr.bf16.gmra.mrb[0].mxu0 %v3033
        %v3072 = vpop.f32.mrb[0].mxu0
        %v3073 = vadd.f32 %v2324, %v3072
        %v3074 = vpop.f32.mrb[0].mxu0
        %v3075 = vpop.f32.mrb[0].mxu0
        %v3076 = vpop.f32.mrb[0].mxu0
        %3077 = vdwg.mxu0
        %v3078 = vsel %vm1218, %v3073, -inf
        %3079 = vmax.xlane.f32.xlu0 %v3078
        %v3080 = vpop.xlane.xlu0 %3079
        %v3081 = vmax.f32 %v3080, -1e+30
        %v3082 = vsub.f32 -1e+30, %v3081
        %v3083 = vmul.f32 %v3082, 1.442695
        %v3084 = vpow.pop %v3083
        %v3085 = vsub.f32 %v3073, %v3081
        %v3086 = vmul.f32 %v3085, 1.442695
        %v3087 = vpow.pop %v3086
        %v3088 = vmul.f32 %v3084, 0.0
        %v3089 = vsel %vm1218, %v3087, 0.0
        %3090 = vadd.xlane.f32.xlu0 %v3089
        %v3091 = vpop.xlane.xlu0 %3090
        %v3092 = vadd.f32 %v3088, %v3091
        %v3093 = vpack.c.bf16 %v3087, %v3087
        %3094 = vrot.lane.b32.xlu0 %v2508, 104
        %v3095 = vpop.permute.xlu0 %3094
        %v3097 = vsel %vm1218, %v3093, 0
        %v3100 = vsel %vm1238, %v3095, 0
        %3102 = vmatprep.subr.bf16.mxu0 0
        %3103 = vmatpush1.bf16.msra.mxu0 %v3100
        %3104 = vmatprep.subr.bf16.mxu0 0
        %3105 = vmatpush1.bf16.msra.mxu0 0
        %3106 = vmatprep.subr.bf16.mxu0 0
        %3107 = vmatpush1.bf16.msra.mxu0 0
        %3108 = vmatprep.subr.bf16.mxu0 0
        %3109 = vmatpush1.bf16.msra.mxu0 0
        %3110 = vmatprep.subr.bf16.mxu0 0
        %3111 = vmatpush1.bf16.msra.mxu0 0
        %3112 = vmatprep.subr.bf16.mxu0 0
        %3113 = vmatpush1.bf16.msra.mxu0 0
        %3114 = vmatprep.subr.bf16.mxu0 0
        %3115 = vmatpush1.bf16.msra.mxu0 0
        %3116 = vmatprep.subr.bf16.mxu0 0
        %3117 = vmatpush1.bf16.msra.mxu0 0
        %3118 = vmatprep.subr.bf16.mxu0 0
        %3119 = vmatpush1.bf16.msra.mxu0 0
        %3120 = vmatprep.subr.bf16.mxu0 0
        %3121 = vmatpush1.bf16.msra.mxu0 0
        %3122 = vmatprep.subr.bf16.mxu0 0
        %3123 = vmatpush1.bf16.msra.mxu0 0
        %3124 = vmatprep.subr.bf16.mxu0 0
        %3125 = vmatpush1.bf16.msra.mxu0 0
        %3126 = vmatprep.subr.bf16.mxu0 0
        %3127 = vmatpush1.bf16.msra.mxu0 0
        %3128 = vmatprep.subr.bf16.mxu0 0
        %3129 = vmatpush1.bf16.msra.mxu0 0
        %3130 = vmatprep.subr.bf16.mxu0 0
        %3131 = vmatpush1.bf16.msra.mxu0 0
        %3132 = vmatprep.subr.bf16.mxu0 0
        %3133 = vmatpush1.bf16.msra.mxu0 0
        %3134 = vmatprep.mubr.bf16.mxu0 0
        %3135 = vmatmul.mubr.bf16.gmra.mrb[0].mxu0 %v3097
        %v3136 = vpop.f32.mrb[0].mxu0
        %v3137 = vadd.f32 0.0, %v3136
        %v3138 = vpop.f32.mrb[0].mxu0
        %v3139 = vpop.f32.mrb[0].mxu0
        %v3140 = vpop.f32.mrb[0].mxu0
        %3141 = vdwg.mxu0
        %v3142 = vadd.f32 %v3088, %v3137
        %v3143 = vrcp.pop %v3092
        %v3144 = vmul.f32 %v3142, %v3143
        %3145 = vrot.lane.b32.xlu0 %v2321, 100
        %v3146 = vpop.permute.xlu0 %3145
        %3147 = vrot.lane.b32.xlu0 %v2441, 100
        %v3148 = vpop.permute.xlu0 %3147
        %v3150 = vsel %vm1171, %v3146, 0
        %v3153 = vsel %vm1171, %v3148, 0
        %3155 = vmatprep.subr.bf16.mxu0 0
        %3156 = vmatpush1.bf16.xpose.msra.mxu0 %v3153
        %3157 = vmatprep.subr.bf16.mxu0 0
        %3158 = vmatpush1.bf16.xpose.msra.mxu0 0
        %3159 = vmatprep.subr.bf16.mxu0 0
        %3160 = vmatpush1.bf16.xpose.msra.mxu0 0
        %3161 = vmatprep.subr.bf16.mxu0 0
        %3162 = vmatpush1.bf16.xpose.msra.mxu0 0
        %3163 = vmatprep.subr.bf16.mxu0 0
        %3164 = vmatpush1.bf16.xpose.msra.mxu0 0
        %3165 = vmatprep.subr.bf16.mxu0 0
        %3166 = vmatpush1.bf16.xpose.msra.mxu0 0
        %3167 = vmatprep.subr.bf16.mxu0 0
        %3168 = vmatpush1.bf16.xpose.msra.mxu0 0
        %3169 = vmatprep.subr.bf16.mxu0 0
        %3170 = vmatpush1.bf16.xpose.msra.mxu0 0
        %3171 = vmatprep.subr.bf16.mxu0 0
        %3172 = vmatpush1.bf16.xpose.msra.mxu0 0
        %3173 = vmatprep.subr.bf16.mxu0 0
        %3174 = vmatpush1.bf16.xpose.msra.mxu0 0
        %3175 = vmatprep.subr.bf16.mxu0 0
        %3176 = vmatpush1.bf16.xpose.msra.mxu0 0
        %3177 = vmatprep.subr.bf16.mxu0 0
        %3178 = vmatpush1.bf16.xpose.msra.mxu0 0
        %3179 = vmatprep.subr.bf16.mxu0 0
        %3180 = vmatpush1.bf16.xpose.msra.mxu0 0
        %3181 = vmatprep.subr.bf16.mxu0 0
        %3182 = vmatpush1.bf16.xpose.msra.mxu0 0
        %3183 = vmatprep.subr.bf16.mxu0 0
        %3184 = vmatpush1.bf16.xpose.msra.mxu0 0
        %3185 = vmatprep.subr.bf16.mxu0 0
        %3186 = vmatpush1.bf16.xpose.msra.mxu0 0
        %3187 = vmatprep.mubr.bf16.mxu0 0
        %3188 = vmatmul.mubr.bf16.gmra.mrb[0].mxu0 %v3150
        %v3189 = vpop.f32.mrb[0].mxu0
        %v3190 = vadd.f32 %v2324, %v3189
        %v3191 = vpop.f32.mrb[0].mxu0
        %v3192 = vpop.f32.mrb[0].mxu0
        %v3193 = vpop.f32.mrb[0].mxu0
        %3194 = vdwg.mxu0
        %v3195 = vsel %vm1218, %v3190, -inf
        %3196 = vmax.xlane.f32.xlu0 %v3195
        %v3197 = vpop.xlane.xlu0 %3196
        %v3198 = vmax.f32 %v3197, -1e+30
        %v3199 = vsub.f32 -1e+30, %v3198
        %v3200 = vmul.f32 %v3199, 1.442695
        %v3201 = vpow.pop %v3200
        %v3202 = vsub.f32 %v3190, %v3198
        %v3203 = vmul.f32 %v3202, 1.442695
        %v3204 = vpow.pop %v3203
        %v3205 = vmul.f32 %v3201, 0.0
        %v3206 = vsel %vm1218, %v3204, 0.0
        %3207 = vadd.xlane.f32.xlu0 %v3206
        %v3208 = vpop.xlane.xlu0 %3207
        %v3209 = vadd.f32 %v3205, %v3208
        %v3210 = vpack.c.bf16 %v3204, %v3204
        %3211 = vrot.lane.b32.xlu0 %v2508, 100
        %v3212 = vpop.permute.xlu0 %3211
        %v3214 = vsel %vm1218, %v3210, 0
        %v3217 = vsel %vm1238, %v3212, 0
        %3219 = vmatprep.subr.bf16.mxu0 0
        %3220 = vmatpush1.bf16.msra.mxu0 %v3217
        %3221 = vmatprep.subr.bf16.mxu0 0
        %3222 = vmatpush1.bf16.msra.mxu0 0
        %3223 = vmatprep.subr.bf16.mxu0 0
        %3224 = vmatpush1.bf16.msra.mxu0 0
        %3225 = vmatprep.subr.bf16.mxu0 0
        %3226 = vmatpush1.bf16.msra.mxu0 0
        %3227 = vmatprep.subr.bf16.mxu0 0
        %3228 = vmatpush1.bf16.msra.mxu0 0
        %3229 = vmatprep.subr.bf16.mxu0 0
        %3230 = vmatpush1.bf16.msra.mxu0 0
        %3231 = vmatprep.subr.bf16.mxu0 0
        %3232 = vmatpush1.bf16.msra.mxu0 0
        %3233 = vmatprep.subr.bf16.mxu0 0
        %3234 = vmatpush1.bf16.msra.mxu0 0
        %3235 = vmatprep.subr.bf16.mxu0 0
        %3236 = vmatpush1.bf16.msra.mxu0 0
        %3237 = vmatprep.subr.bf16.mxu0 0
        %3238 = vmatpush1.bf16.msra.mxu0 0
        %3239 = vmatprep.subr.bf16.mxu0 0
        %3240 = vmatpush1.bf16.msra.mxu0 0
        %3241 = vmatprep.subr.bf16.mxu0 0
        %3242 = vmatpush1.bf16.msra.mxu0 0
        %3243 = vmatprep.subr.bf16.mxu0 0
        %3244 = vmatpush1.bf16.msra.mxu0 0
        %3245 = vmatprep.subr.bf16.mxu0 0
        %3246 = vmatpush1.bf16.msra.mxu0 0
        %3247 = vmatprep.subr.bf16.mxu0 0
        %3248 = vmatpush1.bf16.msra.mxu0 0
        %3249 = vmatprep.subr.bf16.mxu0 0
        %3250 = vmatpush1.bf16.msra.mxu0 0
        %3251 = vmatprep.mubr.bf16.mxu0 0
        %3252 = vmatmul.mubr.bf16.gmra.mrb[0].mxu0 %v3214
        %v3253 = vpop.f32.mrb[0].mxu0
        %v3254 = vadd.f32 0.0, %v3253
        %v3255 = vpop.f32.mrb[0].mxu0
        %v3256 = vpop.f32.mrb[0].mxu0
        %v3257 = vpop.f32.mrb[0].mxu0
        %3258 = vdwg.mxu0
        %v3259 = vadd.f32 %v3205, %v3254
        %v3260 = vrcp.pop %v3209
        %v3261 = vmul.f32 %v3259, %v3260
        %3263 = vrot.lane.b32.xlu0 %v2559, 4
        %v3264 = vpop.permute.xlu0 %3263
        %3267 = vrot.lane.b32.xlu0 %v2676, 8
        %v3268 = vpop.permute.xlu0 %3267
        %3271 = vrot.lane.b32.xlu0 %v2793, 12
        %v3272 = vpop.permute.xlu0 %3271
        %3275 = vrot.lane.b32.xlu0 %v2910, 16
        %v3276 = vpop.permute.xlu0 %3275
        %3279 = vrot.lane.b32.xlu0 %v3027, 20
        %v3280 = vpop.permute.xlu0 %3279
        %3283 = vrot.lane.b32.xlu0 %v3144, 24
        %v3284 = vpop.permute.xlu0 %3283
        %3287 = vrot.lane.b32.xlu0 %v3261, 28
        %v3288 = vpop.permute.xlu0 %3287
        %v3290 = vsel %vm1171, %v2435, %v3264
        %v3291 = vsel %vm1218, %v3290, %v3268
        %v3292 = vsel %vm2141, %v3291, %v3272
        %v3293 = vsel %vm2143, %v3292, %v3276
        %v3294 = vsel %vm2145, %v3293, %v3280
        %v3295 = vsel %vm2147, %v3294, %v3284
        %v3296 = vsel %vm2149, %v3295, %v3288
        %v3297 = vpack.c.bf16 %v3296, %v3296
        %s3298 = scalar_lea.vmem [#allocation18], 48
        %v3299 = vld [vmem:[%s3298] sm:$0xf]
        %v3300 = vld [vmem:[%s3298 + $0x4] sm:$0xf]
        %v3301 = vld [vmem:[%s3298 + $0x8] sm:$0xf]
        %v3302 = vld [vmem:[%s3298 + $0xc] sm:$0xf]
        %s3303 = scalar_lea.vmem [#allocation20], 3
        %v3304 = vld [vmem:[%s3303] sm:$0x1]
        %v3306 = vlaneseq
        %v3307 = vshrl.u32 %v3306, 7
        %v3308 = vsub.s32 0, %v3307
        %v3309 = vrot.slane %v3304, %v3308
        %v3315 = vunpack.c.l.b16 %v3299
        %v3316 = vunpack.c.l.b16 %v3300
        %v3317 = vunpack.c.l.b16 %v3301
        %v3318 = vunpack.c.l.b16 %v3302
        %v3319 = vpack.c.b16 %v3316, %v3315
        %v3320 = vpack.c.b16 %v3318, %v3317
        %v3324 = vsel %vm1122, %v3297, 0
        %3326 = vmatprep.subr.bf16.mxu0 0
        %3327 = vmatpush1.bf16.msra.mxu0 %v3319
        %3328 = vmatprep.subr.bf16.mxu0 0
        %3329 = vmatpush1.bf16.msra.mxu0 %v3320
        %3330 = vmatprep.subr.bf16.mxu0 0
        %3331 = vmatpush1.bf16.msra.mxu0 0
        %3332 = vmatprep.subr.bf16.mxu0 0
        %3333 = vmatpush1.bf16.msra.mxu0 0
        %3334 = vmatprep.subr.bf16.mxu0 0
        %3335 = vmatpush1.bf16.msra.mxu0 0
        %3336 = vmatprep.subr.bf16.mxu0 0
        %3337 = vmatpush1.bf16.msra.mxu0 0
        %3338 = vmatprep.subr.bf16.mxu0 0
        %3339 = vmatpush1.bf16.msra.mxu0 0
        %3340 = vmatprep.subr.bf16.mxu0 0
        %3341 = vmatpush1.bf16.msra.mxu0 0
        %3342 = vmatprep.subr.bf16.mxu0 0
        %3343 = vmatpush1.bf16.msra.mxu0 0
        %3344 = vmatprep.subr.bf16.mxu0 0
        %3345 = vmatpush1.bf16.msra.mxu0 0
        %3346 = vmatprep.subr.bf16.mxu0 0
        %3347 = vmatpush1.bf16.msra.mxu0 0
        %3348 = vmatprep.subr.bf16.mxu0 0
        %3349 = vmatpush1.bf16.msra.mxu0 0
        %3350 = vmatprep.subr.bf16.mxu0 0
        %3351 = vmatpush1.bf16.msra.mxu0 0
        %3352 = vmatprep.subr.bf16.mxu0 0
        %3353 = vmatpush1.bf16.msra.mxu0 0
        %3354 = vmatprep.subr.bf16.mxu0 0
        %3355 = vmatpush1.bf16.msra.mxu0 0
        %3356 = vmatprep.subr.bf16.mxu0 0
        %3357 = vmatpush1.bf16.msra.mxu0 0
        %3358 = vmatprep.mubr.bf16.mxu0 0
        %3359 = vmatmul.mubr.bf16.gmra.mrb[0].mxu0 %v3324
        %v3360 = vpop.f32.mrb[0].mxu0
        %v3361 = vadd.f32 %v3309, %v3360
        %v3362 = vpop.f32.mrb[0].mxu0
        %v3363 = vpop.f32.mrb[0].mxu0
        %v3364 = vpop.f32.mrb[0].mxu0
        %3365 = vdwg.mxu0
        %v3366 = vadd.f32 %v2250, %v3361
        %s3367 = scalar_lea.vmem [#allocation27], 1
        %v3368 = vld [vmem:[%s3367] sm:$0x1]
        %s3369 = scalar_lea.vmem [#allocation29], 1
        %v3370 = vld [vmem:[%s3369] sm:$0x1]
        %v3371 = vsel %vm1122, %v3366, 0.0
        %3372 = vadd.xlane.f32.xlu0 %v3371
        %v3373 = vpop.xlane.xlu0 %3372
        %v3374 = vmul.f32 %v3373, %v2226
        %v3375 = vsub.f32 %v3366, %v3374
        %v3376 = vmul.f32 %v3375, %v3375
        %v3377 = vsel %vm1122, %v3376, 0.0
        %3378 = vadd.xlane.f32.xlu0 %v3377
        %v3379 = vpop.xlane.xlu0 %3378
        %v3380 = vmul.f32 %v3379, %v2226
        %v3381 = vadd.f32 %v3380, 1e-05
        %v3382 = vrsqrt.pop %v3381
        %v3383 = vmul.f32 %v3375, %v3382
        %v3385 = vlaneseq
        %v3386 = vshrl.u32 %v3385, 7
        %v3387 = vsub.s32 0, %v3386
        %v3388 = vrot.slane %v3368, %v3387
        %v3390 = vmul.f32 %v3383, %v3388
        %v3392 = vlaneseq
        %v3393 = vshrl.u32 %v3392, 7
        %v3394 = vsub.s32 0, %v3393
        %v3395 = vrot.slane %v3370, %v3394
        %v3397 = vadd.f32 %v3390, %v3395
        %v3398 = vpack.c.bf16 %v3397, %v3397
        %v3399 = vld [vmem:[#allocation21] sm:$0xf]
        %v3400 = vld [vmem:[#allocation21 + $0x4] sm:$0xf]
        %v3401 = vld [vmem:[#allocation21 + $0x8] sm:$0xf]
        %v3402 = vld [vmem:[#allocation21 + $0xc] sm:$0xf]
        %v3403 = vld [vmem:[#allocation23] sm:$0x1]
        %v3405 = vlaneseq
        %v3406 = vshrl.u32 %v3405, 7
        %v3407 = vsub.s32 0, %v3406
        %v3408 = vrot.slane %v3403, %v3407
        %v3414 = vunpack.c.l.b16 %v3399
        %v3415 = vunpack.c.l.b16 %v3400
        %v3416 = vunpack.c.l.b16 %v3401
        %v3417 = vunpack.c.l.b16 %v3402
        %v3418 = vpack.c.b16 %v3415, %v3414
        %v3419 = vpack.c.b16 %v3417, %v3416
        %v3423 = vsel %vm1122, %v3398, 0
        %3425 = vmatprep.subr.bf16.mxu0 0
        %3426 = vmatpush1.bf16.msra.mxu0 %v3418
        %3427 = vmatprep.subr.bf16.mxu0 0
        %3428 = vmatpush1.bf16.msra.mxu0 %v3419
        %3429 = vmatprep.subr.bf16.mxu0 0
        %3430 = vmatpush1.bf16.msra.mxu0 0
        %3431 = vmatprep.subr.bf16.mxu0 0
        %3432 = vmatpush1.bf16.msra.mxu0 0
        %3433 = vmatprep.subr.bf16.mxu0 0
        %3434 = vmatpush1.bf16.msra.mxu0 0
        %3435 = vmatprep.subr.bf16.mxu0 0
        %3436 = vmatpush1.bf16.msra.mxu0 0
        %3437 = vmatprep.subr.bf16.mxu0 0
        %3438 = vmatpush1.bf16.msra.mxu0 0
        %3439 = vmatprep.subr.bf16.mxu0 0
        %3440 = vmatpush1.bf16.msra.mxu0 0
        %3441 = vmatprep.subr.bf16.mxu0 0
        %3442 = vmatpush1.bf16.msra.mxu0 0
        %3443 = vmatprep.subr.bf16.mxu0 0
        %3444 = vmatpush1.bf16.msra.mxu0 0
        %3445 = vmatprep.subr.bf16.mxu0 0
        %3446 = vmatpush1.bf16.msra.mxu0 0
        %3447 = vmatprep.subr.bf16.mxu0 0
        %3448 = vmatpush1.bf16.msra.mxu0 0
        %3449 = vmatprep.subr.bf16.mxu0 0
        %3450 = vmatpush1.bf16.msra.mxu0 0
        %3451 = vmatprep.subr.bf16.mxu0 0
        %3452 = vmatpush1.bf16.msra.mxu0 0
        %3453 = vmatprep.subr.bf16.mxu0 0
        %3454 = vmatpush1.bf16.msra.mxu0 0
        %3455 = vmatprep.subr.bf16.mxu0 0
        %3456 = vmatpush1.bf16.msra.mxu0 0
        %3457 = vmatprep.mubr.bf16.mxu0 0
        %3458 = vmatmul.mubr.bf16.gmra.mrb[0].mxu0 %v3423
        %v3459 = vpop.f32.mrb[0].mxu0
        %v3460 = vadd.f32 %v3408, %v3459
        %v3461 = vpop.f32.mrb[0].mxu0
        %v3462 = vpop.f32.mrb[0].mxu0
        %v3463 = vpop.f32.mrb[0].mxu0
        %3464 = vdwg.mxu0
        %v3465 = vmax.f32 %v3460, 0.0
        %v3466 = vpack.c.bf16 %v3465, %v3465
        %v3467 = vld [vmem:[#allocation24] sm:$0xf]
        %v3468 = vld [vmem:[#allocation24 + $0x4] sm:$0xf]
        %v3469 = vld [vmem:[#allocation24 + $0x8] sm:$0xf]
        %v3470 = vld [vmem:[#allocation24 + $0xc] sm:$0xf]
        %v3471 = vld [vmem:[#allocation24 + $0x10] sm:$0xf]
        %v3472 = vld [vmem:[#allocation24 + $0x14] sm:$0xf]
        %v3473 = vld [vmem:[#allocation24 + $0x18] sm:$0xf]
        %v3474 = vld [vmem:[#allocation24 + $0x1c] sm:$0xf]
        %v3475 = vld [vmem:[#allocation26] sm:$0x1]
        %v3477 = vlaneseq
        %v3478 = vshrl.u32 %v3477, 7
        %v3479 = vsub.s32 0, %v3478
        %v3480 = vrot.slane %v3475, %v3479
        %v3490 = vunpack.c.l.b16 %v3467
        %v3491 = vunpack.c.l.b16 %v3468
        %v3492 = vunpack.c.l.b16 %v3469
        %v3493 = vunpack.c.l.b16 %v3470
        %v3494 = vunpack.c.l.b16 %v3471
        %v3495 = vunpack.c.l.b16 %v3472
        %v3496 = vunpack.c.l.b16 %v3473
        %v3497 = vunpack.c.l.b16 %v3474
        %v3498 = vpack.c.b16 %v3491, %v3490
        %v3499 = vpack.c.b16 %v3493, %v3492
        %v3500 = vpack.c.b16 %v3495, %v3494
        %v3501 = vpack.c.b16 %v3497, %v3496
        %vm3506 = vcmask 523264
        %v3508 = vsel %vm3506, %v3466, 0
        %3510 = vmatprep.subr.bf16.mxu0 0
        %3511 = vmatpush1.bf16.msra.mxu0 %v3498
        %3512 = vmatprep.subr.bf16.mxu0 0
        %3513 = vmatpush1.bf16.msra.mxu0 %v3499
        %3514 = vmatprep.subr.bf16.mxu0 0
        %3515 = vmatpush1.bf16.msra.mxu0 %v3500
        %3516 = vmatprep.subr.bf16.mxu0 0
        %3517 = vmatpush1.bf16.msra.mxu0 %v3501
        %3518 = vmatprep.subr.bf16.mxu0 0
        %3519 = vmatpush1.bf16.msra.mxu0 0
        %3520 = vmatprep.subr.bf16.mxu0 0
        %3521 = vmatpush1.bf16.msra.mxu0 0
        %3522 = vmatprep.subr.bf16.mxu0 0
        %3523 = vmatpush1.bf16.msra.mxu0 0
        %3524 = vmatprep.subr.bf16.mxu0 0
        %3525 = vmatpush1.bf16.msra.mxu0 0
        %3526 = vmatprep.subr.bf16.mxu0 0
        %3527 = vmatpush1.bf16.msra.mxu0 0
        %3528 = vmatprep.subr.bf16.mxu0 0
        %3529 = vmatpush1.bf16.msra.mxu0 0
        %3530 = vmatprep.subr.bf16.mxu0 0
        %3531 = vmatpush1.bf16.msra.mxu0 0
        %3532 = vmatprep.subr.bf16.mxu0 0
        %3533 = vmatpush1.bf16.msra.mxu0 0
        %3534 = vmatprep.subr.bf16.mxu0 0
        %3535 = vmatpush1.bf16.msra.mxu0 0
        %3536 = vmatprep.subr.bf16.mxu0 0
        %3537 = vmatpush1.bf16.msra.mxu0 0
        %3538 = vmatprep.subr.bf16.mxu0 0
        %3539 = vmatpush1.bf16.msra.mxu0 0
        %3540 = vmatprep.subr.bf16.mxu0 0
        %3541 = vmatpush1.bf16.msra.mxu0 0
        %3542 = vmatprep.mubr.bf16.mxu0 0
        %3543 = vmatmul.mubr.bf16.gmra.mrb[0].mxu0 %v3508
        %v3544 = vpop.f32.mrb[0].mxu0
        %v3545 = vadd.f32 %v3480, %v3544
        %v3546 = vpop.f32.mrb[0].mxu0
        %v3547 = vpop.f32.mrb[0].mxu0
        %v3548 = vpop.f32.mrb[0].mxu0
        %3549 = vdwg.mxu0
        %v3550 = vadd.f32 %v3397, %v3545
        %s3551 = scalar_lea.vmem [#allocation27], 2
        %v3552 = vld [vmem:[%s3551] sm:$0x1]
        %s3553 = scalar_lea.vmem [#allocation29], 2
        %v3554 = vld [vmem:[%s3553] sm:$0x1]
        %v3555 = vsel %vm1122, %v3550, 0.0
        %3556 = vadd.xlane.f32.xlu0 %v3555
        %v3557 = vpop.xlane.xlu0 %3556
        %v3558 = vmul.f32 %v3557, %v2226
        %v3559 = vsub.f32 %v3550, %v3558
        %v3560 = vmul.f32 %v3559, %v3559
        %v3561 = vsel %vm1122, %v3560, 0.0
        %3562 = vadd.xlane.f32.xlu0 %v3561
        %v3563 = vpop.xlane.xlu0 %3562
        %v3564 = vmul.f32 %v3563, %v2226
        %v3565 = vadd.f32 %v3564, 1e-05
        %v3566 = vrsqrt.pop %v3565
        %v3567 = vmul.f32 %v3559, %v3566
        %v3569 = vlaneseq
        %v3570 = vshrl.u32 %v3569, 7
        %v3571 = vsub.s32 0, %v3570
        %v3572 = vrot.slane %v3552, %v3571
        %v3574 = vmul.f32 %v3567, %v3572
        %v3576 = vlaneseq
        %v3577 = vshrl.u32 %v3576, 7
        %v3578 = vsub.s32 0, %v3577
        %v3579 = vrot.slane %v3554, %v3578
        %v3581 = vadd.f32 %v3574, %v3579
        %3582 = vst.msk [vmem:[%s815] sm:$0xff] %vm1122, %v3581
        %s3583 = sand.u32 %s411, 1
        %s3584 = scalar_lea.sflag [#allocation8], %s3583
        %s3585 = sand.u32 %s411, 1
        %s3586 = smul.addr %s3585, 8
        %s3587 = scalar_lea.vmem [#allocation30], %s3586
        // Predicated region
        $region145: #{tpu_custom_call.1} parent=79 // pred_check
          %p3588 = pneg %p421
        $region146: #{tpu_custom_call.1} parent=79 // pred_check_branch
          %3590 = sbr.rel (%p3588) target = $region148
        $region147: #{tpu_custom_call.1} parent=79 // pred_region
          %s3592 = ssub.s32 128, 128
          %3593 = vsyncadd %s3584, %s3592
          %s3594 = sadd.s32 %s48, %s47
          %s3595 = smul.addr %s3594, 128
          %s3596 = scalar_lea.hbm %s15, %s3595
          %s3598 = sshll.u32 %s3587, 4
          %s3599 = int_to_ptr.vmem [resolvable:$true] %s3598
          %3601 = dma.vmem_to_hbm [thread:$0]  %s3599, 128, %s3596, %s3584
        $region148: #{tpu_custom_call.1} parent=79 // pred_fallthru
          _
      $region80: #{tpu_custom_call.1} parent=5 // pred_fallthru
        _
      %p3602 = scmp.le.s32.totalorder 2, %s38
      // Predicated region
      $region149: #{tpu_custom_call.1} parent=5 // pred_check
        %p3603 = pneg %p3602
      $region150: #{tpu_custom_call.1} parent=5 // pred_check_branch
        %3605 = sbr.rel (%p3603) target = $region152
      $region151: #{tpu_custom_call.1} parent=5 // pred_region
        %s3606 = ssub.s32 %s38, 2
        // Predicated region
        $region153: #{tpu_custom_call.1} parent=151 // pred_check
          %p3607 = pneg %p427
        $region154: #{tpu_custom_call.1} parent=151 // pred_check_branch
          %3609 = sbr.rel (%p3607) target = $region156
        $region155: #{tpu_custom_call.1} parent=151 // pred_region
          %s3610 = sand.u32 %s412, 1
          %s3611 = scalar_lea.sflag [#allocation8], %s3610
          %s3612 = sand.u32 %s412, 1
          %s3613 = smul.addr %s3612, 8
          %s3614 = scalar_lea.vmem [#allocation30], %s3613
          %3615 = dma.done %s3611, 128
        $region156: #{tpu_custom_call.1} parent=151 // pred_fallthru
          _
      $region152: #{tpu_custom_call.1} parent=5 // pred_fallthru
        _
    $region6: #{tpu_custom_call.1} parent=1 // loop_footer
      %s42 = sadd.s32 1, %s38
    $region7: #{tpu_custom_call.1} parent=1 // loop_footer_branch
      %37 = sbr.rel target = $region3
    $region8: #{tpu_custom_call.1} parent=1 // loop_exit
      _
    %3616 = vsyncpa [#allocation7], 1
    %s3617 = scalar_lea.sflag [#allocation7], 1
    %3618 = vsyncpa %s3617, 1
    %3619 = vsyncpa [#allocation10], 1
    %s3620 = scalar_lea.sflag [#allocation10], 1
    %3621 = vsyncpa %s3620, 1
    %3622 = vsyncpa [#allocation13], 1
    %s3623 = scalar_lea.sflag [#allocation13], 1
    %3624 = vsyncpa %s3623, 1
    %3625 = vsyncpa [#allocation16], 1
    %3626 = vsyncpa [#allocation19], 1
    %3627 = vsyncpa [#allocation22], 1
    %3628 = vsyncpa [#allocation25], 1
    %3629 = vsyncpa [#allocation28], 1
    %3630 = vsyncpa [#allocation8], 1
    %s3631 = scalar_lea.sflag [#allocation8], 1
    %3632 = vsyncpa %s3631, 1

// kernel: tpu_custom_call.1
$region0: #{tpu_custom_call.1}
  #allocation0 [shape = 'u32[]', space=smem, size = 0x4, offset = 0x4, fixed_abs, tag = 'smem constant byte address 0x4 - core index']
  #allocation1 [shape = 'u32[144,128]{1,0:T(1,128)}', space=vmem, size = 0x12000, scoped, tag = 'internal scratch']
  #allocation2 [shape = 'bf16[8,32]{1,0:T(8,128)(2,1)}', space=vmem, size = 0x800, scoped, tag = 'scratch operand']
  #allocation3 [shape = 'bf16[8,32]{1,0:T(8,128)(2,1)}', space=vmem, size = 0x800, scoped, tag = 'scratch operand']
  #allocation4 [shape = 'bf16[8,32]{1,0:T(8,128)(2,1)}', space=vmem, size = 0x800, scoped, tag = 'scratch operand']
  #allocation5 [shape = 'bf16[8,32]{1,0:T(8,128)(2,1)}', space=vmem, size = 0x800, scoped, tag = 'scratch operand']
  %s0 = inlined_call_operand.hbm [shape: f32[2,8,32], index: 0, kind: input, shape index: {}]
  %s1 = inlined_call_operand.hbm [shape: bf16[2,8,32], index: 1, kind: input, shape index: {}]
  %s2 = inlined_call_operand.hbm [shape: bf16[2,8,32], index: 2, kind: input, shape index: {}]
  %s3 = inlined_call_operand.hbm [shape: bf16[2,8,8], index: 3, kind: input, shape index: {}]
  %s4 = inlined_call_operand.hbm [shape: bf16[2,8,8], index: 4, kind: input, shape index: {}]
  %s5 = inlined_call_operand.hbm [shape: bf16[4,32,32], index: 5, kind: input, shape index: {}]
  %s6 = inlined_call_operand.hbm [shape: f32[4,1,32], index: 6, kind: input, shape index: {}]
  %s7 = inlined_call_operand.hbm [shape: bf16[4,32,32], index: 7, kind: input, shape index: {}]
  %s8 = inlined_call_operand.hbm [shape: f32[4,1,32], index: 8, kind: input, shape index: {}]
  %s9 = inlined_call_operand.hbm [shape: bf16[32,64], index: 9, kind: input, shape index: {}]
  %s10 = inlined_call_operand.hbm [shape: f32[1,64], index: 10, kind: input, shape index: {}]
  %s11 = inlined_call_operand.hbm [shape: bf16[64,32], index: 11, kind: input, shape index: {}]
  %s12 = inlined_call_operand.hbm [shape: f32[1,32], index: 12, kind: input, shape index: {}]
  %s13 = inlined_call_operand.hbm [shape: f32[3,1,32], index: 13, kind: input, shape index: {}]
  %s14 = inlined_call_operand.hbm [shape: f32[3,1,32], index: 14, kind: input, shape index: {}]
  %s15 = inlined_call_operand.hbm [shape: f32[2,8,32], index: 15, kind: output, shape index: {}]
  %s16 = sld [smem:[#allocation0]]
  $region157: #{tpu_custom_call.1} parent=0
    _
  %s18 = ssub.s32 1, %s16
  %s19 = scalar_select 0, %s18, %s16
  $region1: #{tpu_custom_call.1} parent=0
    #allocation6 [shape = 'u8[8192]{0}', space=vmem, size = 0x2000, scoped, tag = 'input window, operand 0']
    #allocation7 [shape = 's32[2]{0}', space=sflag, size = 0x8, scoped, tag = 'scoped memory for tpu_custom_call.1']
    #allocation8 [shape = 's32[2]{0}', space=sflag, size = 0x8, scoped, tag = 'scoped memory for tpu_custom_call.1']
    #allocation9 [shape = 'u8[4096]{0}', space=vmem, size = 0x1000, scoped, tag = 'input window, operand 1']
    #allocation10 [shape = 's32[2]{0}', space=sflag, size = 0x8, scoped, tag = 'scoped memory for tpu_custom_call.1']
    #allocation11 [shape = 'u8[4096]{0}', space=vmem, size = 0x1000, scoped, tag = 'input window, operand 2']
    #allocation12 [shape = 'u8[4096]{0}', space=vmem, size = 0x1000, scoped, tag = 'input window, operand 3']
    #allocation13 [shape = 's32[2]{0}', space=sflag, size = 0x8, scoped, tag = 'scoped memory for tpu_custom_call.1']
    #allocation14 [shape = 'u8[4096]{0}', space=vmem, size = 0x1000, scoped, tag = 'input window, operand 4']
    #allocation15 [shape = 'u8[32768]{0}', space=vmem, size = 0x8000, scoped, tag = 'input window, operand 5, single buffered']
    #allocation16 [shape = 's32[1]{0}', space=sflag, size = 0x4, scoped, tag = 'scoped memory for tpu_custom_call.1']
    #allocation17 [shape = 'u8[2048]{0}', space=vmem, size = 0x800, scoped, tag = 'input window, operand 6, single buffered']
    #allocation18 [shape = 'u8[32768]{0}', space=vmem, size = 0x8000, scoped, tag = 'input window, operand 7, single buffered']
    #allocation19 [shape = 's32[1]{0}', space=sflag, size = 0x4, scoped, tag = 'scoped memory for tpu_custom_call.1']
    #allocation20 [shape = 'u8[2048]{0}', space=vmem, size = 0x800, scoped, tag = 'input window, operand 8, single buffered']
    #allocation21 [shape = 'u8[8192]{0}', space=vmem, size = 0x2000, scoped, tag = 'input window, operand 9, single buffered']
    #allocation22 [shape = 's32[1]{0}', space=sflag, size = 0x4, scoped, tag = 'scoped memory for tpu_custom_call.1']
    #allocation23 [shape = 'u8[512]{0}', space=vmem, size = 0x400, scoped, tag = 'input window, operand 10, single buffered']
    #allocation24 [shape = 'u8[16384]{0}', space=vmem, size = 0x4000, scoped, tag = 'input window, operand 11, single buffered']
    #allocation25 [shape = 's32[1]{0}', space=sflag, size = 0x4, scoped, tag = 'scoped memory for tpu_custom_call.1']
    #allocation26 [shape = 'u8[512]{0}', space=vmem, size = 0x400, scoped, tag = 'input window, operand 12, single buffered']
    #allocation27 [shape = 'u8[1536]{0}', space=vmem, size = 0x800, scoped, tag = 'input window, operand 13, single buffered']
    #allocation28 [shape = 's32[1]{0}', space=sflag, size = 0x4, scoped, tag = 'scoped memory for tpu_custom_call.1']
    #allocation29 [shape = 'u8[1536]{0}', space=vmem, size = 0x800, scoped, tag = 'input window, operand 14, single buffered']
    #allocation30 [shape = 'u8[8192]{0}', space=vmem, size = 0x2000, scoped, tag = 'output window, operand 0']
    %20 = vsyncpa [#allocation7], 0
    %s21 = scalar_lea.sflag [#allocation7], 1
    %22 = vsyncpa %s21, 0
    %23 = vsyncpa [#allocation10], 0
    %s24 = scalar_lea.sflag [#allocation10], 1
    %25 = vsyncpa %s24, 0
    %26 = vsyncpa [#allocation13], 0
    %s27 = scalar_lea.sflag [#allocation13], 1
    %28 = vsyncpa %s27, 0
    %29 = vsyncpa [#allocation16], 0
    %30 = vsyncpa [#allocation19], 0
    %31 = vsyncpa [#allocation22], 0
    %32 = vsyncpa [#allocation25], 0
    %33 = vsyncpa [#allocation28], 0
    %34 = vsyncpa [#allocation8], 0
    %s35 = scalar_lea.sflag [#allocation8], 1
    %36 = vsyncpa %s35, 0
    loop: start=0, step=1, limit=4
    $region2: #{tpu_custom_call.1} parent=1 // loop_pre_header
      _
    $region3: #{tpu_custom_call.1} parent=1 // loop_header
      %s38 = sphi 0, %s42
      %p39 = scmp.ge.s32.totalorder %s38, 4
      %s45 = sphi 0, %s57
      %s46 = sphi 0, %s53
      %s47 = sphi 0, %s45
      %s48 = sphi 0, %s46
      %s49 = sphi 0, %s47
      %s50 = sphi 0, %s48
      %s62 = sphi 0, %s64
      %s65 = sphi 0, %s62
      %s66 = sphi 0, %s65
      %s82 = sphi 0, %s66
      %s88 = sphi 0, %s90
      %s91 = sphi 0, %s88
      %s92 = sphi 0, %s91
      %s108 = sphi 0, %s92
      %s114 = sphi 0, %s116
      %s117 = sphi 0, %s114
      %s118 = sphi 0, %s117
      %s134 = sphi 0, %s118
      %s142 = sphi 0, %s144
      %s145 = sphi 0, %s142
      %s146 = sphi 0, %s145
      %s162 = sphi 0, %s146
      %s170 = sphi 0, %s172
      %s173 = sphi 0, %s170
      %s174 = sphi 0, %s173
      %s190 = sphi 0, %s174
      %s194 = sphi 0, %s194
      %s196 = sphi 0, %s194
      %s197 = sphi 0, %s196
      %s211 = sphi 0, %s197
      %s215 = sphi 0, %s215
      %s217 = sphi 0, %s215
      %s218 = sphi 0, %s217
      %s232 = sphi 0, %s218
      %s236 = sphi 0, %s236
      %s238 = sphi 0, %s236
      %s239 = sphi 0, %s238
      %s253 = sphi 0, %s239
      %s257 = sphi 0, %s257
      %s259 = sphi 0, %s257
      %s260 = sphi 0, %s259
      %s274 = sphi 0, %s260
      %s278 = sphi 0, %s278
      %s280 = sphi 0, %s278
      %s281 = sphi 0, %s280
      %s295 = sphi 0, %s281
      %s299 = sphi 0, %s299
      %s301 = sphi 0, %s299
      %s302 = sphi 0, %s301
      %s316 = sphi 0, %s302
      %s320 = sphi 0, %s320
      %s322 = sphi 0, %s320
      %s323 = sphi 0, %s322
      %s337 = sphi 0, %s323
      %s341 = sphi 0, %s341
      %s343 = sphi 0, %s341
      %s344 = sphi 0, %s343
      %s358 = sphi 0, %s344
      %s362 = sphi 0, %s362
      %s364 = sphi 0, %s362
      %s365 = sphi 0, %s364
      %s379 = sphi 0, %s365
      %s383 = sphi 0, %s383
      %s385 = sphi 0, %s383
      %s386 = sphi 0, %s385
      %s400 = sphi 0, %s386
      %s408 = sphi 0, %s410
      %s411 = sphi 0, %s408
      %s412 = sphi 0, %s411
      %s428 = sphi 0, %s412
    $region4: #{tpu_custom_call.1} parent=1 // loop_header_branch
      %41 = sbr.rel (%p39) target = $region8
    $region5: #{tpu_custom_call.1} parent=1 // loop_body
      %s43 = ssub.s32 %s38, 1
      %s44 = ssub.s32 %s38, 2
      %s51 = sadd.s32 1, %s46
      %p52 = scmp.ge.s32.totalorder %s51, 1
      %s53 = scalar_select %p52, 0, %s51
      %s54 = sadd.s32 1, %s45
      %s55 = scalar_select %p52, %s54, %s45
      %p56 = scmp.ge.s32.totalorder %s55, 2
      %s57 = scalar_select %p56, 0, %s55
      %s58 = ssub.s32 %s45, %s57
      %s59 = ssub.s32 %s46, %s53
      %s60 = sor.u32 %s58, %s59
      %p61 = scmp.eq.s32.totalorder %s60, 0
      %s63 = sadd.s32 %s62, 1
      %s64 = scalar_select %p61, %s62, %s63
      %p67 = pneg %p61
      %p68 = scmp.eq.s32.totalorder %s38, 1
      %p69 = por %p67, %p68
      %p70 = scmp.ne.s32.totalorder %s62, %s65
      %p71 = scmp.eq.s32.totalorder %s38, 0
      %p72 = por %p70, %p71
      %p73 = scmp.ne.s32.totalorder %s62, %s65
      %p74 = scmp.eq.s32.totalorder %s43, 1
      %p75 = por %p73, %p74
      %p76 = scmp.ne.s32.totalorder %s65, %s66
      %p77 = scmp.eq.s32.totalorder %s43, 0
      %p78 = por %p76, %p77
      %p79 = scmp.ne.s32.totalorder %s65, %s66
      %p80 = scmp.eq.s32.totalorder %s44, 1
      %p81 = por %p79, %p80
      %p83 = scmp.ne.s32.totalorder %s66, %s82
      %p84 = scmp.eq.s32.totalorder %s44, 0
      %p85 = por %p83, %p84
      %s86 = ssub.s32 %s45, %s57
      %p87 = scmp.eq.s32.totalorder %s86, 0
      %s89 = sadd.s32 %s88, 1
      %s90 = scalar_select %p87, %s88, %s89
      %p93 = pneg %p87
      %p94 = scmp.eq.s32.totalorder %s38, 1
      %p95 = por %p93, %p94
      %p96 = scmp.ne.s32.totalorder %s88, %s91
      %p97 = scmp.eq.s32.totalorder %s38, 0
      %p98 = por %p96, %p97
      %p99 = scmp.ne.s32.totalorder %s88, %s91
      %p100 = scmp.eq.s32.totalorder %s43, 1
      %p101 = por %p99, %p100
      %p102 = scmp.ne.s32.totalorder %s91, %s92
      %p103 = scmp.eq.s32.totalorder %s43, 0
      %p104 = por %p102, %p103
      %p105 = scmp.ne.s32.totalorder %s91, %s92
      %p106 = scmp.eq.s32.totalorder %s44, 1
      %p107 = por %p105, %p106
      %p109 = scmp.ne.s32.totalorder %s92, %s108
      %p110 = scmp.eq.s32.totalorder %s44, 0
      %p111 = por %p109, %p110
      %s112 = ssub.s32 %s45, %s57
      %p113 = scmp.eq.s32.totalorder %s112, 0
      %s115 = sadd.s32 %s114, 1
      %s116 = scalar_select %p113, %s114, %s115
      %p119 = pneg %p113
      %p120 = scmp.eq.s32.totalorder %s38, 1
      %p121 = por %p119, %p120
      %p122 = scmp.ne.s32.totalorder %s114, %s117
      %p123 = scmp.eq.s32.totalorder %s38, 0
      %p124 = por %p122, %p123
      %p125 = scmp.ne.s32.totalorder %s114, %s117
      %p126 = scmp.eq.s32.totalorder %s43, 1
      %p127 = por %p125, %p126
      %p128 = scmp.ne.s32.totalorder %s117, %s118
      %p129 = scmp.eq.s32.totalorder %s43, 0
      %p130 = por %p128, %p129
      %p131 = scmp.ne.s32.totalorder %s117, %s118
      %p132 = scmp.eq.s32.totalorder %s44, 1
      %p133 = por %p131, %p132
      %p135 = scmp.ne.s32.totalorder %s118, %s134
      %p136 = scmp.eq.s32.totalorder %s44, 0
      %p137 = por %p135, %p136
      %s138 = ssub.s32 %s45, %s57
      %s139 = ssub.s32 %s46, %s53
      %s140 = sor.u32 %s138, %s139
      %p141 = scmp.eq.s32.totalorder %s140, 0
      %s143 = sadd.s32 %s142, 1
      %s144 = scalar_select %p141, %s142, %s143
      %p147 = pneg %p141
      %p148 = scmp.eq.s32.totalorder %s38, 1
      %p149 = por %p147, %p148
      %p150 = scmp.ne.s32.totalorder %s142, %s145
      %p151 = scmp.eq.s32.totalorder %s38, 0
      %p152 = por %p150, %p151
      %p153 = scmp.ne.s32.totalorder %s142, %s145
      %p154 = scmp.eq.s32.totalorder %s43, 1
      %p155 = por %p153, %p154
      %p156 = scmp.ne.s32.totalorder %s145, %s146
      %p157 = scmp.eq.s32.totalorder %s43, 0
      %p158 = por %p156, %p157
      %p159 = scmp.ne.s32.totalorder %s145, %s146
      %p160 = scmp.eq.s32.totalorder %s44, 1
      %p161 = por %p159, %p160
      %p163 = scmp.ne.s32.totalorder %s146, %s162
      %p164 = scmp.eq.s32.totalorder %s44, 0
      %p165 = por %p163, %p164
      %s166 = ssub.s32 %s45, %s57
      %s167 = ssub.s32 %s46, %s53
      %s168 = sor.u32 %s166, %s167
      %p169 = scmp.eq.s32.totalorder %s168, 0
      %s171 = sadd.s32 %s170, 1
      %s172 = scalar_select %p169, %s170, %s171
      %p175 = pneg %p169
      %p176 = scmp.eq.s32.totalorder %s38, 1
      %p177 = por %p175, %p176
      %p178 = scmp.ne.s32.totalorder %s170, %s173
      %p179 = scmp.eq.s32.totalorder %s38, 0
      %p180 = por %p178, %p179
      %p181 = scmp.ne.s32.totalorder %s170, %s173
      %p182 = scmp.eq.s32.totalorder %s43, 1
      %p183 = por %p181, %p182
      %p184 = scmp.ne.s32.totalorder %s173, %s174
      %p185 = scmp.eq.s32.totalorder %s43, 0
      %p186 = por %p184, %p185
      %p187 = scmp.ne.s32.totalorder %s173, %s174
      %p188 = scmp.eq.s32.totalorder %s44, 1
      %p189 = por %p187, %p188
      %p191 = scmp.ne.s32.totalorder %s174, %s190
      %p192 = scmp.eq.s32.totalorder %s44, 0
      %p193 = por %p191, %p192
      %s195 = sadd.s32 %s194, 1
      %p198 = scmp.eq.s32.totalorder %s38, 1
      %p199 = scmp.ne.s32.totalorder %s194, %s196
      %p200 = scmp.eq.s32.totalorder %s38, 0
      %p201 = por %p199, %p200
      %p202 = scmp.ne.s32.totalorder %s194, %s196
      %p203 = scmp.eq.s32.totalorder %s43, 1
      %p204 = por %p202, %p203
      %p205 = scmp.ne.s32.totalorder %s196, %s197
      %p206 = scmp.eq.s32.totalorder %s43, 0
      %p207 = por %p205, %p206
      %p208 = scmp.ne.s32.totalorder %s196, %s197
      %p209 = scmp.eq.s32.totalorder %s44, 1
      %p210 = por %p208, %p209
      %p212 = scmp.ne.s32.totalorder %s197, %s211
      %p213 = scmp.eq.s32.totalorder %s44, 0
      %p214 = por %p212, %p213
      %s216 = sadd.s32 %s215, 1
      %p219 = scmp.eq.s32.totalorder %s38, 1
      %p220 = scmp.ne.s32.totalorder %s215, %s217
      %p221 = scmp.eq.s32.totalorder %s38, 0
      %p222 = por %p220, %p221
      %p223 = scmp.ne.s32.totalorder %s215, %s217
      %p224 = scmp.eq.s32.totalorder %s43, 1
      %p225 = por %p223, %p224
      %p226 = scmp.ne.s32.totalorder %s217, %s218
      %p227 = scmp.eq.s32.totalorder %s43, 0
      %p228 = por %p226, %p227
      %p229 = scmp.ne.s32.totalorder %s217, %s218
      %p230 = scmp.eq.s32.totalorder %s44, 1
      %p231 = por %p229, %p230
      %p233 = scmp.ne.s32.totalorder %s218, %s232
      %p234 = scmp.eq.s32.totalorder %s44, 0
      %p235 = por %p233, %p234
      %s237 = sadd.s32 %s236, 1
      %p240 = scmp.eq.s32.totalorder %s38, 1
      %p241 = scmp.ne.s32.totalorder %s236, %s238
      %p242 = scmp.eq.s32.totalorder %s38, 0
      %p243 = por %p241, %p242
      %p244 = scmp.ne.s32.totalorder %s236, %s238
      %p245 = scmp.eq.s32.totalorder %s43, 1
      %p246 = por %p244, %p245
      %p247 = scmp.ne.s32.totalorder %s238, %s239
      %p248 = scmp.eq.s32.totalorder %s43, 0
      %p249 = por %p247, %p248
      %p250 = scmp.ne.s32.totalorder %s238, %s239
      %p251 = scmp.eq.s32.totalorder %s44, 1
      %p252 = por %p250, %p251
      %p254 = scmp.ne.s32.totalorder %s239, %s253
      %p255 = scmp.eq.s32.totalorder %s44, 0
      %p256 = por %p254, %p255
      %s258 = sadd.s32 %s257, 1
      %p261 = scmp.eq.s32.totalorder %s38, 1
      %p262 = scmp.ne.s32.totalorder %s257, %s259
      %p263 = scmp.eq.s32.totalorder %s38, 0
      %p264 = por %p262, %p263
      %p265 = scmp.ne.s32.totalorder %s257, %s259
      %p266 = scmp.eq.s32.totalorder %s43, 1
      %p267 = por %p265, %p266
      %p268 = scmp.ne.s32.totalorder %s259, %s260
      %p269 = scmp.eq.s32.totalorder %s43, 0
      %p270 = por %p268, %p269
      %p271 = scmp.ne.s32.totalorder %s259, %s260
      %p272 = scmp.eq.s32.totalorder %s44, 1
      %p273 = por %p271, %p272
      %p275 = scmp.ne.s32.totalorder %s260, %s274
      %p276 = scmp.eq.s32.totalorder %s44, 0
      %p277 = por %p275, %p276
      %s279 = sadd.s32 %s278, 1
      %p282 = scmp.eq.s32.totalorder %s38, 1
      %p283 = scmp.ne.s32.totalorder %s278, %s280
      %p284 = scmp.eq.s32.totalorder %s38, 0
      %p285 = por %p283, %p284
      %p286 = scmp.ne.s32.totalorder %s278, %s280
      %p287 = scmp.eq.s32.totalorder %s43, 1
      %p288 = por %p286, %p287
      %p289 = scmp.ne.s32.totalorder %s280, %s281
      %p290 = scmp.eq.s32.totalorder %s43, 0
      %p291 = por %p289, %p290
      %p292 = scmp.ne.s32.totalorder %s280, %s281
      %p293 = scmp.eq.s32.totalorder %s44, 1
      %p294 = por %p292, %p293
      %p296 = scmp.ne.s32.totalorder %s281, %s295
      %p297 = scmp.eq.s32.totalorder %s44, 0
      %p298 = por %p296, %p297
      %s300 = sadd.s32 %s299, 1
      %p303 = scmp.eq.s32.totalorder %s38, 1
      %p304 = scmp.ne.s32.totalorder %s299, %s301
      %p305 = scmp.eq.s32.totalorder %s38, 0
      %p306 = por %p304, %p305
      %p307 = scmp.ne.s32.totalorder %s299, %s301
      %p308 = scmp.eq.s32.totalorder %s43, 1
      %p309 = por %p307, %p308
      %p310 = scmp.ne.s32.totalorder %s301, %s302
      %p311 = scmp.eq.s32.totalorder %s43, 0
      %p312 = por %p310, %p311
      %p313 = scmp.ne.s32.totalorder %s301, %s302
      %p314 = scmp.eq.s32.totalorder %s44, 1
      %p315 = por %p313, %p314
      %p317 = scmp.ne.s32.totalorder %s302, %s316
      %p318 = scmp.eq.s32.totalorder %s44, 0
      %p319 = por %p317, %p318
      %s321 = sadd.s32 %s320, 1
      %p324 = scmp.eq.s32.totalorder %s38, 1
      %p325 = scmp.ne.s32.totalorder %s320, %s322
      %p326 = scmp.eq.s32.totalorder %s38, 0
      %p327 = por %p325, %p326
      %p328 = scmp.ne.s32.totalorder %s320, %s322
      %p329 = scmp.eq.s32.totalorder %s43, 1
      %p330 = por %p328, %p329
      %p331 = scmp.ne.s32.totalorder %s322, %s323
      %p332 = scmp.eq.s32.totalorder %s43, 0
      %p333 = por %p331, %p332
      %p334 = scmp.ne.s32.totalorder %s322, %s323
      %p335 = scmp.eq.s32.totalorder %s44, 1
      %p336 = por %p334, %p335
      %p338 = scmp.ne.s32.totalorder %s323, %s337
      %p339 = scmp.eq.s32.totalorder %s44, 0
      %p340 = por %p338, %p339
      %s342 = sadd.s32 %s341, 1
      %p345 = scmp.eq.s32.totalorder %s38, 1
      %p346 = scmp.ne.s32.totalorder %s341, %s343
      %p347 = scmp.eq.s32.totalorder %s38, 0
      %p348 = por %p346, %p347
      %p349 = scmp.ne.s32.totalorder %s341, %s343
      %p350 = scmp.eq.s32.totalorder %s43, 1
      %p351 = por %p349, %p350
      %p352 = scmp.ne.s32.totalorder %s343, %s344
      %p353 = scmp.eq.s32.totalorder %s43, 0
      %p354 = por %p352, %p353
      %p355 = scmp.ne.s32.totalorder %s343, %s344
      %p356 = scmp.eq.s32.totalorder %s44, 1
      %p357 = por %p355, %p356
      %p359 = scmp.ne.s32.totalorder %s344, %s358
      %p360 = scmp.eq.s32.totalorder %s44, 0
      %p361 = por %p359, %p360
      %s363 = sadd.s32 %s362, 1
      %p366 = scmp.eq.s32.totalorder %s38, 1
      %p367 = scmp.ne.s32.totalorder %s362, %s364
      %p368 = scmp.eq.s32.totalorder %s38, 0
      %p369 = por %p367, %p368
      %p370 = scmp.ne.s32.totalorder %s362, %s364
      %p371 = scmp.eq.s32.totalorder %s43, 1
      %p372 = por %p370, %p371
      %p373 = scmp.ne.s32.totalorder %s364, %s365
      %p374 = scmp.eq.s32.totalorder %s43, 0
      %p375 = por %p373, %p374
      %p376 = scmp.ne.s32.totalorder %s364, %s365
      %p377 = scmp.eq.s32.totalorder %s44, 1
      %p378 = por %p376, %p377
      %p380 = scmp.ne.s32.totalorder %s365, %s379
      %p381 = scmp.eq.s32.totalorder %s44, 0
      %p382 = por %p380, %p381
      %s384 = sadd.s32 %s383, 1
      %p387 = scmp.eq.s32.totalorder %s38, 1
      %p388 = scmp.ne.s32.totalorder %s383, %s385
      %p389 = scmp.eq.s32.totalorder %s38, 0
      %p390 = por %p388, %p389
      %p391 = scmp.ne.s32.totalorder %s383, %s385
      %p392 = scmp.eq.s32.totalorder %s43, 1
      %p393 = por %p391, %p392
      %p394 = scmp.ne.s32.totalorder %s385, %s386
      %p395 = scmp.eq.s32.totalorder %s43, 0
      %p396 = por %p394, %p395
      %p397 = scmp.ne.s32.totalorder %s385, %s386
      %p398 = scmp.eq.s32.totalorder %s44, 1
      %p399 = por %p397, %p398
      %p401 = scmp.ne.s32.totalorder %s386, %s400
      %p402 = scmp.eq.s32.totalorder %s44, 0
      %p403 = por %p401, %p402
      %s404 = ssub.s32 %s45, %s57
      %s405 = ssub.s32 %s46, %s53
      %s406 = sor.u32 %s404, %s405
      %p407 = scmp.eq.s32.totalorder %s406, 0
      %s409 = sadd.s32 %s408, 1
      %s410 = scalar_select %p407, %s408, %s409
      %p413 = pneg %p407
      %p414 = scmp.eq.s32.totalorder %s38, 1
      %p415 = por %p413, %p414
      %p416 = scmp.ne.s32.totalorder %s408, %s411
      %p417 = scmp.eq.s32.totalorder %s38, 0
      %p418 = por %p416, %p417
      %p419 = scmp.ne.s32.totalorder %s408, %s411
      %p420 = scmp.eq.s32.totalorder %s43, 1
      %p421 = por %p419, %p420
      %p422 = scmp.ne.s32.totalorder %s411, %s412
      %p423 = scmp.eq.s32.totalorder %s43, 0
      %p424 = por %p422, %p423
      %p425 = scmp.ne.s32.totalorder %s411, %s412
      %p426 = scmp.eq.s32.totalorder %s44, 1
      %p427 = por %p425, %p426
      %p429 = scmp.ne.s32.totalorder %s412, %s428
      %p430 = scmp.eq.s32.totalorder %s44, 0
      %p431 = por %p429, %p430
      %p432 = scmp.le.s32.totalorder 1, %s38
      %p433 = scmp.lt.s32.totalorder %s38, 3
      %p434 = pnand %p432, %p433
      %p435 = pneg %p434
      // Predicated region
      $region9: #{tpu_custom_call.1} parent=5 // pred_check
        _
      $region10: #{tpu_custom_call.1} parent=5 // pred_check_branch
        %437 = sbr.rel (%p434) target = $region12
      $region11: #{tpu_custom_call.1} parent=5 // pred_region
        %s438 = ssub.s32 %s38, 1
        // Predicated region
        $region13: #{tpu_custom_call.1} parent=11 // pred_check
          %p439 = pneg %p207
        $region14: #{tpu_custom_call.1} parent=11 // pred_check_branch
          %441 = sbr.rel (%p439) target = $region16
        $region15: #{tpu_custom_call.1} parent=11 // pred_region
          %s443 = ssub.s32 1024, 1024
          %444 = vsyncadd [#allocation16], %s443
          %s445 = sshll.u32 [#allocation15], 4
          %s446 = int_to_ptr.vmem [resolvable:$true] %s445
          %451 = dma.hbm_to_vmem [thread:$0]  %s5, 1024, %s446, [#allocation16], 64, 64, 4
        $region16: #{tpu_custom_call.1} parent=11 // pred_fallthru
          _
        // Predicated region
        $region17: #{tpu_custom_call.1} parent=11 // pred_check
          %p452 = pneg %p228
        $region18: #{tpu_custom_call.1} parent=11 // pred_check_branch
          %454 = sbr.rel (%p452) target = $region20
        $region19: #{tpu_custom_call.1} parent=11 // pred_region
          %s456 = ssub.s32 64, 64
          %457 = vsyncadd [#allocation16], %s456
          %s458 = sshll.u32 [#allocation17], 4
          %s459 = int_to_ptr.vmem [resolvable:$true] %s458
          %464 = dma.hbm_to_vmem [thread:$0]  %s6, 64, %s459, [#allocation16], 16, 16, 1
        $region20: #{tpu_custom_call.1} parent=11 // pred_fallthru
          _
        // Predicated region
        $region21: #{tpu_custom_call.1} parent=11 // pred_check
          %p465 = pneg %p249
        $region22: #{tpu_custom_call.1} parent=11 // pred_check_branch
          %467 = sbr.rel (%p465) target = $region24
        $region23: #{tpu_custom_call.1} parent=11 // pred_region
          %s469 = ssub.s32 1024, 1024
          %470 = vsyncadd [#allocation19], %s469
          %s471 = sshll.u32 [#allocation18], 4
          %s472 = int_to_ptr.vmem [resolvable:$true] %s471
          %477 = dma.hbm_to_vmem [thread:$0]  %s7, 1024, %s472, [#allocation19], 64, 64, 4
        $region24: #{tpu_custom_call.1} parent=11 // pred_fallthru
          _
        // Predicated region
        $region25: #{tpu_custom_call.1} parent=11 // pred_check
          %p478 = pneg %p270
        $region26: #{tpu_custom_call.1} parent=11 // pred_check_branch
          %480 = sbr.rel (%p478) target = $region28
        $region27: #{tpu_custom_call.1} parent=11 // pred_region
          %s482 = ssub.s32 64, 64
          %483 = vsyncadd [#allocation19], %s482
          %s484 = sshll.u32 [#allocation20], 4
          %s485 = int_to_ptr.vmem [resolvable:$true] %s484
          %490 = dma.hbm_to_vmem [thread:$0]  %s8, 64, %s485, [#allocation19], 16, 16, 1
        $region28: #{tpu_custom_call.1} parent=11 // pred_fallthru
          _
        // Predicated region
        $region29: #{tpu_custom_call.1} parent=11 // pred_check
          %p491 = pneg %p291
        $region30: #{tpu_custom_call.1} parent=11 // pred_check_branch
          %493 = sbr.rel (%p491) target = $region32
        $region31: #{tpu_custom_call.1} parent=11 // pred_region
          %s495 = ssub.s32 256, 256
          %496 = vsyncadd [#allocation22], %s495
          %s497 = sshll.u32 [#allocation21], 4
          %s498 = int_to_ptr.vmem [resolvable:$true] %s497
          %503 = dma.hbm_to_vmem [thread:$0]  %s9, 256, %s498, [#allocation22], 64, 64, 4
        $region32: #{tpu_custom_call.1} parent=11 // pred_fallthru
          _
        // Predicated region
        $region33: #{tpu_custom_call.1} parent=11 // pred_check
          %p504 = pneg %p312
        $region34: #{tpu_custom_call.1} parent=11 // pred_check_branch
          %506 = sbr.rel (%p504) target = $region36
        $region35: #{tpu_custom_call.1} parent=11 // pred_region
          %s508 = ssub.s32 16, 16
          %509 = vsyncadd [#allocation22], %s508
          %s511 = sshll.u32 [#allocation23], 4
          %s512 = int_to_ptr.vmem [resolvable:$true] %s511
          %514 = dma.hbm_to_vmem [thread:$0]  %s10, 16, %s512, [#allocation22]
        $region36: #{tpu_custom_call.1} parent=11 // pred_fallthru
          _
        // Predicated region
        $region37: #{tpu_custom_call.1} parent=11 // pred_check
          %p515 = pneg %p333
        $region38: #{tpu_custom_call.1} parent=11 // pred_check_branch
          %517 = sbr.rel (%p515) target = $region40
        $region39: #{tpu_custom_call.1} parent=11 // pred_region
          %s519 = ssub.s32 512, 512
          %520 = vsyncadd [#allocation25], %s519
          %s521 = sshll.u32 [#allocation24], 4
          %s522 = int_to_ptr.vmem [resolvable:$true] %s521
          %527 = dma.hbm_to_vmem [thread:$0]  %s11, 512, %s522, [#allocation25], 64, 64, 4
        $region40: #{tpu_custom_call.1} parent=11 // pred_fallthru
          _
        // Predicated region
        $region41: #{tpu_custom_call.1} parent=11 // pred_check
          %p528 = pneg %p354
        $region42: #{tpu_custom_call.1} parent=11 // pred_check_branch
          %530 = sbr.rel (%p528) target = $region44
        $region43: #{tpu_custom_call.1} parent=11 // pred_region
          %s532 = ssub.s32 16, 16
          %533 = vsyncadd [#allocation25], %s532
          %s535 = sshll.u32 [#allocation26], 4
          %s536 = int_to_ptr.vmem [resolvable:$true] %s535
          %538 = dma.hbm_to_vmem [thread:$0]  %s12, 16, %s536, [#allocation25]
        $region44: #{tpu_custom_call.1} parent=11 // pred_fallthru
          _
        // Predicated region
        $region45: #{tpu_custom_call.1} parent=11 // pred_check
          %p539 = pneg %p375
        $region46: #{tpu_custom_call.1} parent=11 // pred_check_branch
          %541 = sbr.rel (%p539) target = $region48
        $region47: #{tpu_custom_call.1} parent=11 // pred_region
          %s543 = ssub.s32 48, 48
          %544 = vsyncadd [#allocation28], %s543
          %s545 = sshll.u32 [#allocation27], 4
          %s546 = int_to_ptr.vmem [resolvable:$true] %s545
          %551 = dma.hbm_to_vmem [thread:$0]  %s13, 48, %s546, [#allocation28], 16, 16, 1
        $region48: #{tpu_custom_call.1} parent=11 // pred_fallthru
          _
        // Predicated region
        $region49: #{tpu_custom_call.1} parent=11 // pred_check
          %p552 = pneg %p396
        $region50: #{tpu_custom_call.1} parent=11 // pred_check_branch
          %554 = sbr.rel (%p552) target = $region52
        $region51: #{tpu_custom_call.1} parent=11 // pred_region
          %s556 = ssub.s32 48, 48
          %557 = vsyncadd [#allocation28], %s556
          %s558 = sshll.u32 [#allocation29], 4
          %s559 = int_to_ptr.vmem [resolvable:$true] %s558
          %564 = dma.hbm_to_vmem [thread:$0]  %s14, 48, %s559, [#allocation28], 16, 16, 1
        $region52: #{tpu_custom_call.1} parent=11 // pred_fallthru
          _
      $region12: #{tpu_custom_call.1} parent=5 // pred_fallthru
        _
      %p565 = scmp.lt.s32.totalorder %s38, 2
      // Predicated region
      $region53: #{tpu_custom_call.1} parent=5 // pred_check
        %p566 = pneg %p565
      $region54: #{tpu_custom_call.1} parent=5 // pred_check_branch
        %568 = sbr.rel (%p566) target = $region56
      $region55: #{tpu_custom_call.1} parent=5 // pred_region
        // Predicated region
        $region57: #{tpu_custom_call.1} parent=55 // pred_check
          %p569 = pneg %p72
        $region58: #{tpu_custom_call.1} parent=55 // pred_check_branch
          %571 = sbr.rel (%p569) target = $region60
        $region59: #{tpu_custom_call.1} parent=55 // pred_region
          %s572 = sand.u32 %s62, 1
          %s573 = scalar_lea.sflag [#allocation7], %s572
          %s574 = sand.u32 %s62, 1
          %s575 = smul.addr %s574, 8
          %s576 = scalar_lea.vmem [#allocation6], %s575
          %s578 = ssub.s32 128, 128
          %579 = vsyncadd %s573, %s578
          %s580 = sadd.s32 %s46, %s45
          %s581 = smul.addr %s580, 128
          %s582 = scalar_lea.hbm %s0, %s581
          %s584 = sshll.u32 %s576, 4
          %s585 = int_to_ptr.vmem [resolvable:$true] %s584
          %587 = dma.hbm_to_vmem [thread:$0]  %s582, 128, %s585, %s573
        $region60: #{tpu_custom_call.1} parent=55 // pred_fallthru
          _
        // Predicated region
        $region61: #{tpu_custom_call.1} parent=55 // pred_check
          %p588 = pneg %p98
        $region62: #{tpu_custom_call.1} parent=55 // pred_check_branch
          %590 = sbr.rel (%p588) target = $region64
        $region63: #{tpu_custom_call.1} parent=55 // pred_region
          %s591 = sand.u32 %s38, 1
          %s592 = scalar_lea.sflag [#allocation10], %s591
          %s593 = sand.u32 %s88, 1
          %s594 = smul.addr %s593, 4
          %s595 = scalar_lea.vmem [#allocation9], %s594
          %s597 = ssub.s32 64, 64
          %598 = vsyncadd %s592, %s597
          %s599 = smul.addr %s45, 64
          %s600 = scalar_lea.hbm %s1, %s599
          %s602 = sshll.u32 %s595, 4
          %s603 = int_to_ptr.vmem [resolvable:$true] %s602
          %605 = dma.hbm_to_vmem [thread:$0]  %s600, 64, %s603, %s592
        $region64: #{tpu_custom_call.1} parent=55 // pred_fallthru
          _
        // Predicated region
        $region65: #{tpu_custom_call.1} parent=55 // pred_check
          %p606 = pneg %p124
        $region66: #{tpu_custom_call.1} parent=55 // pred_check_branch
          %608 = sbr.rel (%p606) target = $region68
        $region67: #{tpu_custom_call.1} parent=55 // pred_region
          %s609 = sand.u32 %s38, 1
          %s610 = scalar_lea.sflag [#allocation10], %s609
          %s611 = sand.u32 %s114, 1
          %s612 = smul.addr %s611, 4
          %s613 = scalar_lea.vmem [#allocation11], %s612
          %s615 = ssub.s32 64, 64
          %616 = vsyncadd %s610, %s615
          %s617 = smul.addr %s45, 64
          %s618 = scalar_lea.hbm %s2, %s617
          %s620 = sshll.u32 %s613, 4
          %s621 = int_to_ptr.vmem [resolvable:$true] %s620
          %623 = dma.hbm_to_vmem [thread:$0]  %s618, 64, %s621, %s610
        $region68: #{tpu_custom_call.1} parent=55 // pred_fallthru
          _
        // Predicated region
        $region69: #{tpu_custom_call.1} parent=55 // pred_check
          %p624 = pneg %p152
        $region70: #{tpu_custom_call.1} parent=55 // pred_check_branch
          %626 = sbr.rel (%p624) target = $region72
        $region71: #{tpu_custom_call.1} parent=55 // pred_region
          %s627 = sand.u32 %s38, 1
          %s628 = scalar_lea.sflag [#allocation13], %s627
          %s629 = sand.u32 %s142, 1
          %s630 = smul.addr %s629, 4
          %s631 = scalar_lea.vmem [#allocation12], %s630
          %s633 = ssub.s32 64, 64
          %634 = vsyncadd %s628, %s633
          %s635 = sadd.s32 %s46, %s45
          %s636 = smul.addr %s635, 64
          %s637 = scalar_lea.hbm %s3, %s636
          %s639 = sshll.u32 %s631, 4
          %s640 = int_to_ptr.vmem [resolvable:$true] %s639
          %642 = dma.hbm_to_vmem [thread:$0]  %s637, 64, %s640, %s628
        $region72: #{tpu_custom_call.1} parent=55 // pred_fallthru
          _
        // Predicated region
        $region73: #{tpu_custom_call.1} parent=55 // pred_check
          %p643 = pneg %p180
        $region74: #{tpu_custom_call.1} parent=55 // pred_check_branch
          %645 = sbr.rel (%p643) target = $region76
        $region75: #{tpu_custom_call.1} parent=55 // pred_region
          %s646 = sand.u32 %s38, 1
          %s647 = scalar_lea.sflag [#allocation13], %s646
          %s648 = sand.u32 %s170, 1
          %s649 = smul.addr %s648, 4
          %s650 = scalar_lea.vmem [#allocation14], %s649
          %s652 = ssub.s32 64, 64
          %653 = vsyncadd %s647, %s652
          %s654 = sadd.s32 %s46, %s45
          %s655 = smul.addr %s654, 64
          %s656 = scalar_lea.hbm %s4, %s655
          %s658 = sshll.u32 %s650, 4
          %s659 = int_to_ptr.vmem [resolvable:$true] %s658
          %661 = dma.hbm_to_vmem [thread:$0]  %s656, 64, %s659, %s647
        $region76: #{tpu_custom_call.1} parent=55 // pred_fallthru
          _
      $region56: #{tpu_custom_call.1} parent=5 // pred_fallthru
        _
      %p662 = scmp.le.s32.totalorder 1, %s38
      %p663 = scmp.lt.s32.totalorder %s38, 3
      %p664 = pnand %p662, %p663
      %p665 = pneg %p664
      // Predicated region
      $region77: #{tpu_custom_call.1} parent=5 // pred_check
        _
      $region78: #{tpu_custom_call.1} parent=5 // pred_check_branch
        %667 = sbr.rel (%p664) target = $region80
      $region79: #{tpu_custom_call.1} parent=5 // pred_region
        %s668 = ssub.s32 %s38, 1
        %s669 = sand.u32 %s65, 1
        %s670 = scalar_lea.sflag [#allocation7], %s669
        %s671 = sand.u32 %s65, 1
        %s672 = smul.addr %s671, 8
        %s673 = scalar_lea.vmem [#allocation6], %s672
        // Predicated region
        $region81: #{tpu_custom_call.1} parent=79 // pred_check
          %p674 = pneg %p78
        $region82: #{tpu_custom_call.1} parent=79 // pred_check_branch
          %676 = sbr.rel (%p674) target = $region84
        $region83: #{tpu_custom_call.1} parent=79 // pred_region
          %677 = dma.done %s670, 128
        $region84: #{tpu_custom_call.1} parent=79 // pred_fallthru
          _
        %s678 = sand.u32 %s43, 1
        %s679 = scalar_lea.sflag [#allocation10], %s678
        %s680 = sand.u32 %s91, 1
        %s681 = smul.addr %s680, 4
        %s682 = scalar_lea.vmem [#allocation9], %s681
        // Predicated region
        $region85: #{tpu_custom_call.1} parent=79 // pred_check
          %p683 = pneg %p104
        $region86: #{tpu_custom_call.1} parent=79 // pred_check_branch
          %685 = sbr.rel (%p683) target = $region88
        $region87: #{tpu_custom_call.1} parent=79 // pred_region
          %686 = dma.done %s679, 64
        $region88: #{tpu_custom_call.1} parent=79 // pred_fallthru
          _
        %s687 = sand.u32 %s43, 1
        %s688 = scalar_lea.sflag [#allocation10], %s687
        %s689 = sand.u32 %s117, 1
        %s690 = smul.addr %s689, 4
        %s691 = scalar_lea.vmem [#allocation11], %s690
        // Predicated region
        $region89: #{tpu_custom_call.1} parent=79 // pred_check
          %p692 = pneg %p130
        $region90: #{tpu_custom_call.1} parent=79 // pred_check_branch
          %694 = sbr.rel (%p692) target = $region92
        $region91: #{tpu_custom_call.1} parent=79 // pred_region
          %695 = dma.done %s688, 64
        $region92: #{tpu_custom_call.1} parent=79 // pred_fallthru
          _
        %s696 = sand.u32 %s43, 1
        %s697 = scalar_lea.sflag [#allocation13], %s696
        %s698 = sand.u32 %s145, 1
        %s699 = smul.addr %s698, 4
        %s700 = scalar_lea.vmem [#allocation12], %s699
        // Predicated region
        $region93: #{tpu_custom_call.1} parent=79 // pred_check
          %p701 = pneg %p158
        $region94: #{tpu_custom_call.1} parent=79 // pred_check_branch
          %703 = sbr.rel (%p701) target = $region96
        $region95: #{tpu_custom_call.1} parent=79 // pred_region
          %704 = dma.done %s697, 64
        $region96: #{tpu_custom_call.1} parent=79 // pred_fallthru
          _
        %s705 = sand.u32 %s43, 1
        %s706 = scalar_lea.sflag [#allocation13], %s705
        %s707 = sand.u32 %s173, 1
        %s708 = smul.addr %s707, 4
        %s709 = scalar_lea.vmem [#allocation14], %s708
        // Predicated region
        $region97: #{tpu_custom_call.1} parent=79 // pred_check
          %p710 = pneg %p186
        $region98: #{tpu_custom_call.1} parent=79 // pred_check_branch
          %712 = sbr.rel (%p710) target = $region100
        $region99: #{tpu_custom_call.1} parent=79 // pred_region
          %713 = dma.done %s706, 64
        $region100: #{tpu_custom_call.1} parent=79 // pred_fallthru
          _
        // Predicated region
        $region101: #{tpu_custom_call.1} parent=79 // pred_check
          %p714 = pneg %p207
        $region102: #{tpu_custom_call.1} parent=79 // pred_check_branch
          %716 = sbr.rel (%p714) target = $region104
        $region103: #{tpu_custom_call.1} parent=79 // pred_region
          %717 = dma.done [#allocation16], 1024
        $region104: #{tpu_custom_call.1} parent=79 // pred_fallthru
          _
        // Predicated region
        $region105: #{tpu_custom_call.1} parent=79 // pred_check
          %p718 = pneg %p228
        $region106: #{tpu_custom_call.1} parent=79 // pred_check_branch
          %720 = sbr.rel (%p718) target = $region108
        $region107: #{tpu_custom_call.1} parent=79 // pred_region
          %721 = dma.done [#allocation16], 64
        $region108: #{tpu_custom_call.1} parent=79 // pred_fallthru
          _
        // Predicated region
        $region109: #{tpu_custom_call.1} parent=79 // pred_check
          %p722 = pneg %p249
        $region110: #{tpu_custom_call.1} parent=79 // pred_check_branch
          %724 = sbr.rel (%p722) target = $region112
        $region111: #{tpu_custom_call.1} parent=79 // pred_region
          %725 = dma.done [#allocation19], 1024
        $region112: #{tpu_custom_call.1} parent=79 // pred_fallthru
          _
        // Predicated region
        $region113: #{tpu_custom_call.1} parent=79 // pred_check
          %p726 = pneg %p270
        $region114: #{tpu_custom_call.1} parent=79 // pred_check_branch
          %728 = sbr.rel (%p726) target = $region116
        $region115: #{tpu_custom_call.1} parent=79 // pred_region
          %729 = dma.done [#allocation19], 64
        $region116: #{tpu_custom_call.1} parent=79 // pred_fallthru
          _
        // Predicated region
        $region117: #{tpu_custom_call.1} parent=79 // pred_check
          %p730 = pneg %p291
        $region118: #{tpu_custom_call.1} parent=79 // pred_check_branch
          %732 = sbr.rel (%p730) target = $region120
        $region119: #{tpu_custom_call.1} parent=79 // pred_region
          %733 = dma.done [#allocation22], 256
        $region120: #{tpu_custom_call.1} parent=79 // pred_fallthru
          _
        // Predicated region
        $region121: #{tpu_custom_call.1} parent=79 // pred_check
          %p734 = pneg %p312
        $region122: #{tpu_custom_call.1} parent=79 // pred_check_branch
          %736 = sbr.rel (%p734) target = $region124
        $region123: #{tpu_custom_call.1} parent=79 // pred_region
          %737 = dma.done [#allocation22], 16
        $region124: #{tpu_custom_call.1} parent=79 // pred_fallthru
          _
        // Predicated region
        $region125: #{tpu_custom_call.1} parent=79 // pred_check
          %p738 = pneg %p333
        $region126: #{tpu_custom_call.1} parent=79 // pred_check_branch
          %740 = sbr.rel (%p738) target = $region128
        $region127: #{tpu_custom_call.1} parent=79 // pred_region
          %741 = dma.done [#allocation25], 512
        $region128: #{tpu_custom_call.1} parent=79 // pred_fallthru
          _
        // Predicated region
        $region129: #{tpu_custom_call.1} parent=79 // pred_check
          %p742 = pneg %p354
        $region130: #{tpu_custom_call.1} parent=79 // pred_check_branch
          %744 = sbr.rel (%p742) target = $region132
        $region131: #{tpu_custom_call.1} parent=79 // pred_region
          %745 = dma.done [#allocation25], 16
        $region132: #{tpu_custom_call.1} parent=79 // pred_fallthru
          _
        // Predicated region
        $region133: #{tpu_custom_call.1} parent=79 // pred_check
          %p746 = pneg %p375
        $region134: #{tpu_custom_call.1} parent=79 // pred_check_branch
          %748 = sbr.rel (%p746) target = $region136
        $region135: #{tpu_custom_call.1} parent=79 // pred_region
          %749 = dma.done [#allocation28], 48
        $region136: #{tpu_custom_call.1} parent=79 // pred_fallthru
          _
        // Predicated region
        $region137: #{tpu_custom_call.1} parent=79 // pred_check
          %p750 = pneg %p396
        $region138: #{tpu_custom_call.1} parent=79 // pred_check_branch
          %752 = sbr.rel (%p750) target = $region140
        $region139: #{tpu_custom_call.1} parent=79 // pred_region
          %753 = dma.done [#allocation28], 48
        $region140: #{tpu_custom_call.1} parent=79 // pred_fallthru
          _
        %s754 = sand.u32 %s65, 1
        %s755 = scalar_lea.sflag [#allocation7], %s754
        %s756 = sand.u32 %s65, 1
        %s757 = smul.addr %s756, 8
        %s758 = scalar_lea.vmem [#allocation6], %s757
        %p759 = pneg %p78
        %p760 = pneg %p75
        %s761 = sand.u32 %s43, 1
        %s762 = scalar_lea.sflag [#allocation10], %s761
        %s763 = sand.u32 %s91, 1
        %s764 = smul.addr %s763, 4
        %s765 = scalar_lea.vmem [#allocation9], %s764
        %p766 = pneg %p104
        %p767 = pneg %p101
        %s768 = sand.u32 %s43, 1
        %s769 = scalar_lea.sflag [#allocation10], %s768
        %s770 = sand.u32 %s117, 1
        %s771 = smul.addr %s770, 4
        %s772 = scalar_lea.vmem [#allocation11], %s771
        %p773 = pneg %p130
        %p774 = pneg %p127
        %s775 = sand.u32 %s43, 1
        %s776 = scalar_lea.sflag [#allocation13], %s775
        %s777 = sand.u32 %s145, 1
        %s778 = smul.addr %s777, 4
        %s779 = scalar_lea.vmem [#allocation12], %s778
        %p780 = pneg %p158
        %p781 = pneg %p155
        %s782 = sand.u32 %s43, 1
        %s783 = scalar_lea.sflag [#allocation13], %s782
        %s784 = sand.u32 %s173, 1
        %s785 = smul.addr %s784, 4
        %s786 = scalar_lea.vmem [#allocation14], %s785
        %p787 = pneg %p186
        %p788 = pneg %p183
        %p789 = pneg %p207
        %p790 = pneg %p204
        %p791 = pneg %p228
        %p792 = pneg %p225
        %p793 = pneg %p249
        %p794 = pneg %p246
        %p795 = pneg %p270
        %p796 = pneg %p267
        %p797 = pneg %p291
        %p798 = pneg %p288
        %p799 = pneg %p312
        %p800 = pneg %p309
        %p801 = pneg %p333
        %p802 = pneg %p330
        %p803 = pneg %p354
        %p804 = pneg %p351
        %p805 = pneg %p375
        %p806 = pneg %p372
        %p807 = pneg %p396
        %p808 = pneg %p393
        %p809 = pneg %p424
        %p810 = pneg %p421
        %s811 = sand.u32 %s411, 1
        %s812 = scalar_lea.sflag [#allocation8], %s811
        %s813 = sand.u32 %s411, 1
        %s814 = smul.addr %s813, 8
        %s815 = scalar_lea.vmem [#allocation30], %s814
        %p817 = scmp.eq.s32.totalorder %s48, 0
        // Predicated region
        $region141: #{tpu_custom_call.1} parent=79 // pred_check
          %p818 = pneg %p817
        $region142: #{tpu_custom_call.1} parent=79 // pred_check_branch
          %820 = sbr.rel (%p818) target = $region144
        $region143: #{tpu_custom_call.1} parent=79 // pred_region
          %v821 = vld [vmem:[%s682] sm:$0xf]
          %v822 = vld [vmem:[%s691] sm:$0xf]
          %s823 = scalar_lea.vmem [#allocation15], 16
          %v824 = vld [vmem:[%s823] sm:$0xf]
          %v825 = vld [vmem:[%s823 + $0x4] sm:$0xf]
          %v826 = vld [vmem:[%s823 + $0x8] sm:$0xf]
          %v827 = vld [vmem:[%s823 + $0xc] sm:$0xf]
          %s828 = scalar_lea.vmem [#allocation17], 1
          %v829 = vld [vmem:[%s828] sm:$0x1]
          %v831 = vlaneseq
          %v832 = vshrl.u32 %v831, 7
          %v833 = vsub.s32 0, %v832
          %v834 = vrot.slane %v829, %v833
          %v840 = vunpack.c.l.b16 %v824
          %v841 = vunpack.c.l.b16 %v825
          %v842 = vunpack.c.l.b16 %v826
          %v843 = vunpack.c.l.b16 %v827
          %v844 = vpack.c.b16 %v841, %v840
          %v845 = vpack.c.b16 %v843, %v842
          %vm848 = vcmask 261120
          %v850 = vsel %vm848, %v821, 0
          %852 = vmatprep.subr.bf16.mxu0 0
          %853 = vmatpush1.bf16.msra.mxu0 %v844
          %854 = vmatprep.subr.bf16.mxu0 0
          %855 = vmatpush1.bf16.msra.mxu0 %v845
          %856 = vmatprep.subr.bf16.mxu0 0
          %857 = vmatpush1.bf16.msra.mxu0 0
          %858 = vmatprep.subr.bf16.mxu0 0
          %859 = vmatpush1.bf16.msra.mxu0 0
          %860 = vmatprep.subr.bf16.mxu0 0
          %861 = vmatpush1.bf16.msra.mxu0 0
          %862 = vmatprep.subr.bf16.mxu0 0
          %863 = vmatpush1.bf16.msra.mxu0 0
          %864 = vmatprep.subr.bf16.mxu0 0
          %865 = vmatpush1.bf16.msra.mxu0 0
          %866 = vmatprep.subr.bf16.mxu0 0
          %867 = vmatpush1.bf16.msra.mxu0 0
          %868 = vmatprep.subr.bf16.mxu0 0
          %869 = vmatpush1.bf16.msra.mxu0 0
          %870 = vmatprep.subr.bf16.mxu0 0
          %871 = vmatpush1.bf16.msra.mxu0 0
          %872 = vmatprep.subr.bf16.mxu0 0
          %873 = vmatpush1.bf16.msra.mxu0 0
          %874 = vmatprep.subr.bf16.mxu0 0
          %875 = vmatpush1.bf16.msra.mxu0 0
          %876 = vmatprep.subr.bf16.mxu0 0
          %877 = vmatpush1.bf16.msra.mxu0 0
          %878 = vmatprep.subr.bf16.mxu0 0
          %879 = vmatpush1.bf16.msra.mxu0 0
          %880 = vmatprep.subr.bf16.mxu0 0
          %881 = vmatpush1.bf16.msra.mxu0 0
          %882 = vmatprep.subr.bf16.mxu0 0
          %883 = vmatpush1.bf16.msra.mxu0 0
          %884 = vmatprep.mubr.bf16.mxu0 0
          %885 = vmatmul.mubr.bf16.gmra.mrb[0].mxu0 %v850
          %v886 = vpop.f32.mrb[0].mxu0
          %v887 = vadd.f32 %v834, %v886
          %v888 = vpop.f32.mrb[0].mxu0
          %v889 = vpop.f32.mrb[0].mxu0
          %v890 = vpop.f32.mrb[0].mxu0
          %891 = vdwg.mxu0
          %v892 = vpack.c.bf16 %v887, %v887
          %vm893 = vcmask 257024
          %894 = vst.msk [vmem:[#allocation2] sm:$0xf] %vm893, %v892
          %v895 = vld [vmem:[#allocation15] sm:$0xf]
          %v896 = vld [vmem:[#allocation15 + $0x4] sm:$0xf]
          %v897 = vld [vmem:[#allocation15 + $0x8] sm:$0xf]
          %v898 = vld [vmem:[#allocation15 + $0xc] sm:$0xf]
          %v899 = vld [vmem:[#allocation17] sm:$0x1]
          %v901 = vlaneseq
          %v902 = vshrl.u32 %v901, 7
          %v903 = vsub.s32 0, %v902
          %v904 = vrot.slane %v899, %v903
          %v910 = vunpack.c.l.b16 %v895
          %v911 = vunpack.c.l.b16 %v896
          %v912 = vunpack.c.l.b16 %v897
          %v913 = vunpack.c.l.b16 %v898
          %v914 = vpack.c.b16 %v911, %v910
          %v915 = vpack.c.b16 %v913, %v912
          %918 = vmatprep.subr.bf16.mxu0 0
          %919 = vmatpush1.bf16.msra.mxu0 %v914
          %920 = vmatprep.subr.bf16.mxu0 0
          %921 = vmatpush1.bf16.msra.mxu0 %v915
          %922 = vmatprep.subr.bf16.mxu0 0
          %923 = vmatpush1.bf16.msra.mxu0 0
          %924 = vmatprep.subr.bf16.mxu0 0
          %925 = vmatpush1.bf16.msra.mxu0 0
          %926 = vmatprep.subr.bf16.mxu0 0
          %927 = vmatpush1.bf16.msra.mxu0 0
          %928 = vmatprep.subr.bf16.mxu0 0
          %929 = vmatpush1.bf16.msra.mxu0 0
          %930 = vmatprep.subr.bf16.mxu0 0
          %931 = vmatpush1.bf16.msra.mxu0 0
          %932 = vmatprep.subr.bf16.mxu0 0
          %933 = vmatpush1.bf16.msra.mxu0 0
          %934 = vmatprep.subr.bf16.mxu0 0
          %935 = vmatpush1.bf16.msra.mxu0 0
          %936 = vmatprep.subr.bf16.mxu0 0
          %937 = vmatpush1.bf16.msra.mxu0 0
          %938 = vmatprep.subr.bf16.mxu0 0
          %939 = vmatpush1.bf16.msra.mxu0 0
          %940 = vmatprep.subr.bf16.mxu0 0
          %941 = vmatpush1.bf16.msra.mxu0 0
          %942 = vmatprep.subr.bf16.mxu0 0
          %943 = vmatpush1.bf16.msra.mxu0 0
          %944 = vmatprep.subr.bf16.mxu0 0
          %945 = vmatpush1.bf16.msra.mxu0 0
          %946 = vmatprep.subr.bf16.mxu0 0
          %947 = vmatpush1.bf16.msra.mxu0 0
          %948 = vmatprep.subr.bf16.mxu0 0
          %949 = vmatpush1.bf16.msra.mxu0 0
          %950 = vmatprep.mubr.bf16.mxu0 0
          %951 = vmatmul.mubr.bf16.gmra.mrb[0].mxu0 %v850
          %v952 = vpop.f32.mrb[0].mxu0
          %v953 = vadd.f32 %v904, %v952
          %v954 = vpop.f32.mrb[0].mxu0
          %v955 = vpop.f32.mrb[0].mxu0
          %v956 = vpop.f32.mrb[0].mxu0
          %957 = vdwg.mxu0
          %v958 = vpack.c.bf16 %v953, %v953
          %959 = vst.msk [vmem:[#allocation3] sm:$0xf] %vm893, %v958
          %s960 = scalar_lea.vmem [#allocation18], 16
          %v961 = vld [vmem:[%s960] sm:$0xf]
          %v962 = vld [vmem:[%s960 + $0x4] sm:$0xf]
          %v963 = vld [vmem:[%s960 + $0x8] sm:$0xf]
          %v964 = vld [vmem:[%s960 + $0xc] sm:$0xf]
          %s965 = scalar_lea.vmem [#allocation20], 1
          %v966 = vld [vmem:[%s965] sm:$0x1]
          %v968 = vlaneseq
          %v969 = vshrl.u32 %v968, 7
          %v970 = vsub.s32 0, %v969
          %v971 = vrot.slane %v966, %v970
          %v977 = vunpack.c.l.b16 %v961
          %v978 = vunpack.c.l.b16 %v962
          %v979 = vunpack.c.l.b16 %v963
          %v980 = vunpack.c.l.b16 %v964
          %v981 = vpack.c.b16 %v978, %v977
          %v982 = vpack.c.b16 %v980, %v979
          %v986 = vsel %vm848, %v822, 0
          %988 = vmatprep.subr.bf16.mxu0 0
          %989 = vmatpush1.bf16.msra.mxu0 %v981
          %990 = vmatprep.subr.bf16.mxu0 0
          %991 = vmatpush1.bf16.msra.mxu0 %v982
          %992 = vmatprep.subr.bf16.mxu0 0
          %993 = vmatpush1.bf16.msra.mxu0 0
          %994 = vmatprep.subr.bf16.mxu0 0
          %995 = vmatpush1.bf16.msra.mxu0 0
          %996 = vmatprep.subr.bf16.mxu0 0
          %997 = vmatpush1.bf16.msra.mxu0 0
          %998 = vmatprep.subr.bf16.mxu0 0
          %999 = vmatpush1.bf16.msra.mxu0 0
          %1000 = vmatprep.subr.bf16.mxu0 0
          %1001 = vmatpush1.bf16.msra.mxu0 0
          %1002 = vmatprep.subr.bf16.mxu0 0
          %1003 = vmatpush1.bf16.msra.mxu0 0
          %1004 = vmatprep.subr.bf16.mxu0 0
          %1005 = vmatpush1.bf16.msra.mxu0 0
          %1006 = vmatprep.subr.bf16.mxu0 0
          %1007 = vmatpush1.bf16.msra.mxu0 0
          %1008 = vmatprep.subr.bf16.mxu0 0
          %1009 = vmatpush1.bf16.msra.mxu0 0
          %1010 = vmatprep.subr.bf16.mxu0 0
          %1011 = vmatpush1.bf16.msra.mxu0 0
          %1012 = vmatprep.subr.bf16.mxu0 0
          %1013 = vmatpush1.bf16.msra.mxu0 0
          %1014 = vmatprep.subr.bf16.mxu0 0
          %1015 = vmatpush1.bf16.msra.mxu0 0
          %1016 = vmatprep.subr.bf16.mxu0 0
          %1017 = vmatpush1.bf16.msra.mxu0 0
          %1018 = vmatprep.subr.bf16.mxu0 0
          %1019 = vmatpush1.bf16.msra.mxu0 0
          %1020 = vmatprep.mubr.bf16.mxu0 0
          %1021 = vmatmul.mubr.bf16.gmra.mrb[0].mxu0 %v986
          %v1022 = vpop.f32.mrb[0].mxu0
          %v1023 = vadd.f32 %v971, %v1022
          %v1024 = vpop.f32.mrb[0].mxu0
          %v1025 = vpop.f32.mrb[0].mxu0
          %v1026 = vpop.f32.mrb[0].mxu0
          %1027 = vdwg.mxu0
          %v1028 = vpack.c.bf16 %v1023, %v1023
          %1029 = vst.msk [vmem:[#allocation4] sm:$0xf] %vm893, %v1028
          %v1030 = vld [vmem:[#allocation18] sm:$0xf]
          %v1031 = vld [vmem:[#allocation18 + $0x4] sm:$0xf]
          %v1032 = vld [vmem:[#allocation18 + $0x8] sm:$0xf]
          %v1033 = vld [vmem:[#allocation18 + $0xc] sm:$0xf]
          %v1034 = vld [vmem:[#allocation20] sm:$0x1]
          %v1036 = vlaneseq
          %v1037 = vshrl.u32 %v1036, 7
          %v1038 = vsub.s32 0, %v1037
          %v1039 = vrot.slane %v1034, %v1038
          %v1045 = vunpack.c.l.b16 %v1030
          %v1046 = vunpack.c.l.b16 %v1031
          %v1047 = vunpack.c.l.b16 %v1032
          %v1048 = vunpack.c.l.b16 %v1033
          %v1049 = vpack.c.b16 %v1046, %v1045
          %v1050 = vpack.c.b16 %v1048, %v1047
          %1053 = vmatprep.subr.bf16.mxu0 0
          %1054 = vmatpush1.bf16.msra.mxu0 %v1049
          %1055 = vmatprep.subr.bf16.mxu0 0
          %1056 = vmatpush1.bf16.msra.mxu0 %v1050
          %1057 = vmatprep.subr.bf16.mxu0 0
          %1058 = vmatpush1.bf16.msra.mxu0 0
          %1059 = vmatprep.subr.bf16.mxu0 0
          %1060 = vmatpush1.bf16.msra.mxu0 0
          %1061 = vmatprep.subr.bf16.mxu0 0
          %1062 = vmatpush1.bf16.msra.mxu0 0
          %1063 = vmatprep.subr.bf16.mxu0 0
          %1064 = vmatpush1.bf16.msra.mxu0 0
          %1065 = vmatprep.subr.bf16.mxu0 0
          %1066 = vmatpush1.bf16.msra.mxu0 0
          %1067 = vmatprep.subr.bf16.mxu0 0
          %1068 = vmatpush1.bf16.msra.mxu0 0
          %1069 = vmatprep.subr.bf16.mxu0 0
          %1070 = vmatpush1.bf16.msra.mxu0 0
          %1071 = vmatprep.subr.bf16.mxu0 0
          %1072 = vmatpush1.bf16.msra.mxu0 0
          %1073 = vmatprep.subr.bf16.mxu0 0
          %1074 = vmatpush1.bf16.msra.mxu0 0
          %1075 = vmatprep.subr.bf16.mxu0 0
          %1076 = vmatpush1.bf16.msra.mxu0 0
          %1077 = vmatprep.subr.bf16.mxu0 0
          %1078 = vmatpush1.bf16.msra.mxu0 0
          %1079 = vmatprep.subr.bf16.mxu0 0
          %1080 = vmatpush1.bf16.msra.mxu0 0
          %1081 = vmatprep.subr.bf16.mxu0 0
          %1082 = vmatpush1.bf16.msra.mxu0 0
          %1083 = vmatprep.subr.bf16.mxu0 0
          %1084 = vmatpush1.bf16.msra.mxu0 0
          %1085 = vmatprep.mubr.bf16.mxu0 0
          %1086 = vmatmul.mubr.bf16.gmra.mrb[0].mxu0 %v986
          %v1087 = vpop.f32.mrb[0].mxu0
          %v1088 = vadd.f32 %v1039, %v1087
          %v1089 = vpop.f32.mrb[0].mxu0
          %v1090 = vpop.f32.mrb[0].mxu0
          %v1091 = vpop.f32.mrb[0].mxu0
          %1092 = vdwg.mxu0
          %v1093 = vpack.c.bf16 %v1088, %v1088
          %1094 = vst.msk [vmem:[#allocation5] sm:$0xf] %vm893, %v1093
        $region144: #{tpu_custom_call.1} parent=79 // pred_fallthru
          _
        %v1095 = vld [vmem:[%s673] sm:$0xff]
        %v1096 = vpack.c.bf16 %v1095, %v1095
        %s1097 = scalar_lea.vmem [#allocation15], 32
        %v1098 = vld [vmem:[%s1097] sm:$0xf]
        %v1099 = vld [vmem:[%s1097 + $0x4] sm:$0xf]
        %v1100 = vld [vmem:[%s1097 + $0x8] sm:$0xf]
        %v1101 = vld [vmem:[%s1097 + $0xc] sm:$0xf]
        %s1102 = scalar_lea.vmem [#allocation17], 2
        %v1103 = vld [vmem:[%s1102] sm:$0x1]
        %v1105 = vlaneseq
        %v1106 = vshrl.u32 %v1105, 7
        %v1107 = vsub.s32 0, %v1106
        %v1108 = vrot.slane %v1103, %v1107
        %v1114 = vunpack.c.l.b16 %v1098
        %v1115 = vunpack.c.l.b16 %v1099
        %v1116 = vunpack.c.l.b16 %v1100
        %v1117 = vunpack.c.l.b16 %v1101
        %v1118 = vpack.c.b16 %v1115, %v1114
        %v1119 = vpack.c.b16 %v1117, %v1116
        %vm1122 = vcmask 261120
        %v1124 = vsel %vm1122, %v1096, 0
        %1126 = vmatprep.subr.bf16.mxu0 0
        %1127 = vmatpush1.bf16.msra.mxu0 %v1118
        %1128 = vmatprep.subr.bf16.mxu0 0
        %1129 = vmatpush1.bf16.msra.mxu0 %v1119
        %1130 = vmatprep.subr.bf16.mxu0 0
        %1131 = vmatpush1.bf16.msra.mxu0 0
        %1132 = vmatprep.subr.bf16.mxu0 0
        %1133 = vmatpush1.bf16.msra.mxu0 0
        %1134 = vmatprep.subr.bf16.mxu0 0
        %1135 = vmatpush1.bf16.msra.mxu0 0
        %1136 = vmatprep.subr.bf16.mxu0 0
        %1137 = vmatpush1.bf16.msra.mxu0 0
        %1138 = vmatprep.subr.bf16.mxu0 0
        %1139 = vmatpush1.bf16.msra.mxu0 0
        %1140 = vmatprep.subr.bf16.mxu0 0
        %1141 = vmatpush1.bf16.msra.mxu0 0
        %1142 = vmatprep.subr.bf16.mxu0 0
        %1143 = vmatpush1.bf16.msra.mxu0 0
        %1144 = vmatprep.subr.bf16.mxu0 0
        %1145 = vmatpush1.bf16.msra.mxu0 0
        %1146 = vmatprep.subr.bf16.mxu0 0
        %1147 = vmatpush1.bf16.msra.mxu0 0
        %1148 = vmatprep.subr.bf16.mxu0 0
        %1149 = vmatpush1.bf16.msra.mxu0 0
        %1150 = vmatprep.subr.bf16.mxu0 0
        %1151 = vmatpush1.bf16.msra.mxu0 0
        %1152 = vmatprep.subr.bf16.mxu0 0
        %1153 = vmatpush1.bf16.msra.mxu0 0
        %1154 = vmatprep.subr.bf16.mxu0 0
        %1155 = vmatpush1.bf16.msra.mxu0 0
        %1156 = vmatprep.subr.bf16.mxu0 0
        %1157 = vmatpush1.bf16.msra.mxu0 0
        %1158 = vmatprep.mubr.bf16.mxu0 0
        %1159 = vmatmul.mubr.bf16.gmra.mrb[0].mxu0 %v1124
        %v1160 = vpop.f32.mrb[0].mxu0
        %v1161 = vadd.f32 %v1108, %v1160
        %v1162 = vpop.f32.mrb[0].mxu0
        %v1163 = vpop.f32.mrb[0].mxu0
        %v1164 = vpop.f32.mrb[0].mxu0
        %1165 = vdwg.mxu0
        %v1166 = vld [vmem:[%s700] sm:$0xf]
        %v1167 = vpack.c.bf16 %v1161, %v1161
        %v1168 = vld [vmem:[#allocation2] sm:$0xf]
        %v1169 = vld [vmem:[#allocation3] sm:$0xf]
        %v1170 = vunpack.c.l.bf16 %v1166
        %vm1171 = vcmask 31744
        %v1173 = vsel %vm1171, %v1167, 0
        %v1176 = vsel %vm1171, %v1168, 0
        %1178 = vmatprep.subr.bf16.mxu0 0
        %1179 = vmatpush1.bf16.xpose.msra.mxu0 %v1176
        %1180 = vmatprep.subr.bf16.mxu0 0
        %1181 = vmatpush1.bf16.xpose.msra.mxu0 0
        %1182 = vmatprep.subr.bf16.mxu0 0
        %1183 = vmatpush1.bf16.xpose.msra.mxu0 0
        %1184 = vmatprep.subr.bf16.mxu0 0
        %1185 = vmatpush1.bf16.xpose.msra.mxu0 0
        %1186 = vmatprep.subr.bf16.mxu0 0
        %1187 = vmatpush1.bf16.xpose.msra.mxu0 0
        %1188 = vmatprep.subr.bf16.mxu0 0
        %1189 = vmatpush1.bf16.xpose.msra.mxu0 0
        %1190 = vmatprep.subr.bf16.mxu0 0
        %1191 = vmatpush1.bf16.xpose.msra.mxu0 0
        %1192 = vmatprep.subr.bf16.mxu0 0
        %1193 = vmatpush1.bf16.xpose.msra.mxu0 0
        %1194 = vmatprep.subr.bf16.mxu0 0
        %1195 = vmatpush1.bf16.xpose.msra.mxu0 0
        %1196 = vmatprep.subr.bf16.mxu0 0
        %1197 = vmatpush1.bf16.xpose.msra.mxu0 0
        %1198 = vmatprep.subr.bf16.mxu0 0
        %1199 = vmatpush1.bf16.xpose.msra.mxu0 0
        %1200 = vmatprep.subr.bf16.mxu0 0
        %1201 = vmatpush1.bf16.xpose.msra.mxu0 0
        %1202 = vmatprep.subr.bf16.mxu0 0
        %1203 = vmatpush1.bf16.xpose.msra.mxu0 0
        %1204 = vmatprep.subr.bf16.mxu0 0
        %1205 = vmatpush1.bf16.xpose.msra.mxu0 0
        %1206 = vmatprep.subr.bf16.mxu0 0
        %1207 = vmatpush1.bf16.xpose.msra.mxu0 0
        %1208 = vmatprep.subr.bf16.mxu0 0
        %1209 = vmatpush1.bf16.xpose.msra.mxu0 0
        %1210 = vmatprep.mubr.bf16.mxu0 0
        %1211 = vmatmul.mubr.bf16.gmra.mrb[0].mxu0 %v1173
        %v1212 = vpop.f32.mrb[0].mxu0
        %v1213 = vadd.f32 %v1170, %v1212
        %v1214 = vpop.f32.mrb[0].mxu0
        %v1215 = vpop.f32.mrb[0].mxu0
        %v1216 = vpop.f32.mrb[0].mxu0
        %1217 = vdwg.mxu0
        %vm1218 = vcmask 64512
        %v1219 = vsel %vm1218, %v1213, -inf
        %1220 = vmax.xlane.f32.xlu0 %v1219
        %v1221 = vpop.xlane.xlu0 %1220
        %v1222 = vmax.f32 %v1221, -1e+30
        %v1223 = vsub.f32 -1e+30, %v1222
        %v1224 = vmul.f32 %v1223, 1.442695
        %v1225 = vpow.pop %v1224
        %v1226 = vsub.f32 %v1213, %v1222
        %v1227 = vmul.f32 %v1226, 1.442695
        %v1228 = vpow.pop %v1227
        %v1229 = vmul.f32 %v1225, 0.0
        %v1230 = vsel %vm1218, %v1228, 0.0
        %1231 = vadd.xlane.f32.xlu0 %v1230
        %v1232 = vpop.xlane.xlu0 %1231
        %v1233 = vadd.f32 %v1229, %v1232
        %v1234 = vpack.c.bf16 %v1228, %v1228
        %v1236 = vsel %vm1218, %v1234, 0
        %vm1238 = vcmask 1043456
        %v1240 = vsel %vm1238, %v1169, 0
        %1242 = vmatprep.subr.bf16.mxu0 0
        %1243 = vmatpush1.bf16.msra.mxu0 %v1240
        %1244 = vmatprep.subr.bf16.mxu0 0
        %1245 = vmatpush1.bf16.msra.mxu0 0
        %1246 = vmatprep.subr.bf16.mxu0 0
        %1247 = vmatpush1.bf16.msra.mxu0 0
        %1248 = vmatprep.subr.bf16.mxu0 0
        %1249 = vmatpush1.bf16.msra.mxu0 0
        %1250 = vmatprep.subr.bf16.mxu0 0
        %1251 = vmatpush1.bf16.msra.mxu0 0
        %1252 = vmatprep.subr.bf16.mxu0 0
        %1253 = vmatpush1.bf16.msra.mxu0 0
        %1254 = vmatprep.subr.bf16.mxu0 0
        %1255 = vmatpush1.bf16.msra.mxu0 0
        %1256 = vmatprep.subr.bf16.mxu0 0
        %1257 = vmatpush1.bf16.msra.mxu0 0
        %1258 = vmatprep.subr.bf16.mxu0 0
        %1259 = vmatpush1.bf16.msra.mxu0 0
        %1260 = vmatprep.subr.bf16.mxu0 0
        %1261 = vmatpush1.bf16.msra.mxu0 0
        %1262 = vmatprep.subr.bf16.mxu0 0
        %1263 = vmatpush1.bf16.msra.mxu0 0
        %1264 = vmatprep.subr.bf16.mxu0 0
        %1265 = vmatpush1.bf16.msra.mxu0 0
        %1266 = vmatprep.subr.bf16.mxu0 0
        %1267 = vmatpush1.bf16.msra.mxu0 0
        %1268 = vmatprep.subr.bf16.mxu0 0
        %1269 = vmatpush1.bf16.msra.mxu0 0
        %1270 = vmatprep.subr.bf16.mxu0 0
        %1271 = vmatpush1.bf16.msra.mxu0 0
        %1272 = vmatprep.subr.bf16.mxu0 0
        %1273 = vmatpush1.bf16.msra.mxu0 0
        %1274 = vmatprep.mubr.bf16.mxu0 0
        %1275 = vmatmul.mubr.bf16.gmra.mrb[0].mxu0 %v1236
        %v1276 = vpop.f32.mrb[0].mxu0
        %v1277 = vadd.f32 0.0, %v1276
        %v1278 = vpop.f32.mrb[0].mxu0
        %v1279 = vpop.f32.mrb[0].mxu0
        %v1280 = vpop.f32.mrb[0].mxu0
        %1281 = vdwg.mxu0
        %v1282 = vadd.f32 %v1229, %v1277
        %v1283 = vrcp.pop %v1233
        %v1284 = vmul.f32 %v1282, %v1283
        %1286 = vrot.lane.b32.xlu0 %v1167, 124
        %v1287 = vpop.permute.xlu0 %1286
        %v1289 = vunpack.c.l.b16 %v1168
        %v1290 = vpack.c.b16 %v1289, %v1289
        %1291 = vrot.lane.b32.xlu0 %v1290, 124
        %v1292 = vpop.permute.xlu0 %1291
        %v1294 = vsel %vm1171, %v1287, 0
        %v1297 = vsel %vm1171, %v1292, 0
        %1299 = vmatprep.subr.bf16.mxu0 0
        %1300 = vmatpush1.bf16.xpose.msra.mxu0 %v1297
        %1301 = vmatprep.subr.bf16.mxu0 0
        %1302 = vmatpush1.bf16.xpose.msra.mxu0 0
        %1303 = vmatprep.subr.bf16.mxu0 0
        %1304 = vmatpush1.bf16.xpose.msra.mxu0 0
        %1305 = vmatprep.subr.bf16.mxu0 0
        %1306 = vmatpush1.bf16.xpose.msra.mxu0 0
        %1307 = vmatprep.subr.bf16.mxu0 0
        %1308 = vmatpush1.bf16.xpose.msra.mxu0 0
        %1309 = vmatprep.subr.bf16.mxu0 0
        %1310 = vmatpush1.bf16.xpose.msra.mxu0 0
        %1311 = vmatprep.subr.bf16.mxu0 0
        %1312 = vmatpush1.bf16.xpose.msra.mxu0 0
        %1313 = vmatprep.subr.bf16.mxu0 0
        %1314 = vmatpush1.bf16.xpose.msra.mxu0 0
        %1315 = vmatprep.subr.bf16.mxu0 0
        %1316 = vmatpush1.bf16.xpose.msra.mxu0 0
        %1317 = vmatprep.subr.bf16.mxu0 0
        %1318 = vmatpush1.bf16.xpose.msra.mxu0 0
        %1319 = vmatprep.subr.bf16.mxu0 0
        %1320 = vmatpush1.bf16.xpose.msra.mxu0 0
        %1321 = vmatprep.subr.bf16.mxu0 0
        %1322 = vmatpush1.bf16.xpose.msra.mxu0 0
        %1323 = vmatprep.subr.bf16.mxu0 0
        %1324 = vmatpush1.bf16.xpose.msra.mxu0 0
        %1325 = vmatprep.subr.bf16.mxu0 0
        %1326 = vmatpush1.bf16.xpose.msra.mxu0 0
        %1327 = vmatprep.subr.bf16.mxu0 0
        %1328 = vmatpush1.bf16.xpose.msra.mxu0 0
        %1329 = vmatprep.subr.bf16.mxu0 0
        %1330 = vmatpush1.bf16.xpose.msra.mxu0 0
        %1331 = vmatprep.mubr.bf16.mxu0 0
        %1332 = vmatmul.mubr.bf16.gmra.mrb[0].mxu0 %v1294
        %v1333 = vpop.f32.mrb[0].mxu0
        %v1334 = vadd.f32 %v1170, %v1333
        %v1335 = vpop.f32.mrb[0].mxu0
        %v1336 = vpop.f32.mrb[0].mxu0
        %v1337 = vpop.f32.mrb[0].mxu0
        %1338 = vdwg.mxu0
        %v1339 = vsel %vm1218, %v1334, -inf
        %1340 = vmax.xlane.f32.xlu0 %v1339
        %v1341 = vpop.xlane.xlu0 %1340
        %v1342 = vmax.f32 %v1341, -1e+30
        %v1343 = vsub.f32 -1e+30, %v1342
        %v1344 = vmul.f32 %v1343, 1.442695
        %v1345 = vpow.pop %v1344
        %v1346 = vsub.f32 %v1334, %v1342
        %v1347 = vmul.f32 %v1346, 1.442695
        %v1348 = vpow.pop %v1347
        %v1349 = vmul.f32 %v1345, 0.0
        %v1350 = vsel %vm1218, %v1348, 0.0
        %1351 = vadd.xlane.f32.xlu0 %v1350
        %v1352 = vpop.xlane.xlu0 %1351
        %v1353 = vadd.f32 %v1349, %v1352
        %v1354 = vpack.c.bf16 %v1348, %v1348
        %v1356 = vunpack.c.l.b16 %v1169
        %v1357 = vpack.c.b16 %v1356, %v1356
        %1358 = vrot.lane.b32.xlu0 %v1357, 124
        %v1359 = vpop.permute.xlu0 %1358
        %v1361 = vsel %vm1218, %v1354, 0
        %v1364 = vsel %vm1238, %v1359, 0
        %1366 = vmatprep.subr.bf16.mxu0 0
        %1367 = vmatpush1.bf16.msra.mxu0 %v1364
        %1368 = vmatprep.subr.bf16.mxu0 0
        %1369 = vmatpush1.bf16.msra.mxu0 0
        %1370 = vmatprep.subr.bf16.mxu0 0
        %1371 = vmatpush1.bf16.msra.mxu0 0
        %1372 = vmatprep.subr.bf16.mxu0 0
        %1373 = vmatpush1.bf16.msra.mxu0 0
        %1374 = vmatprep.subr.bf16.mxu0 0
        %1375 = vmatpush1.bf16.msra.mxu0 0
        %1376 = vmatprep.subr.bf16.mxu0 0
        %1377 = vmatpush1.bf16.msra.mxu0 0
        %1378 = vmatprep.subr.bf16.mxu0 0
        %1379 = vmatpush1.bf16.msra.mxu0 0
        %1380 = vmatprep.subr.bf16.mxu0 0
        %1381 = vmatpush1.bf16.msra.mxu0 0
        %1382 = vmatprep.subr.bf16.mxu0 0
        %1383 = vmatpush1.bf16.msra.mxu0 0
        %1384 = vmatprep.subr.bf16.mxu0 0
        %1385 = vmatpush1.bf16.msra.mxu0 0
        %1386 = vmatprep.subr.bf16.mxu0 0
        %1387 = vmatpush1.bf16.msra.mxu0 0
        %1388 = vmatprep.subr.bf16.mxu0 0
        %1389 = vmatpush1.bf16.msra.mxu0 0
        %1390 = vmatprep.subr.bf16.mxu0 0
        %1391 = vmatpush1.bf16.msra.mxu0 0
        %1392 = vmatprep.subr.bf16.mxu0 0
        %1393 = vmatpush1.bf16.msra.mxu0 0
        %1394 = vmatprep.subr.bf16.mxu0 0
        %1395 = vmatpush1.bf16.msra.mxu0 0
        %1396 = vmatprep.subr.bf16.mxu0 0
        %1397 = vmatpush1.bf16.msra.mxu0 0
        %1398 = vmatprep.mubr.bf16.mxu0 0
        %1399 = vmatmul.mubr.bf16.gmra.mrb[0].mxu0 %v1361
        %v1400 = vpop.f32.mrb[0].mxu0
        %v1401 = vadd.f32 0.0, %v1400
        %v1402 = vpop.f32.mrb[0].mxu0
        %v1403 = vpop.f32.mrb[0].mxu0
        %v1404 = vpop.f32.mrb[0].mxu0
        %1405 = vdwg.mxu0
        %v1406 = vadd.f32 %v1349, %v1401
        %v1407 = vrcp.pop %v1353
        %v1408 = vmul.f32 %v1406, %v1407
        %1409 = vrot.lane.b32.xlu0 %v1167, 120
        %v1410 = vpop.permute.xlu0 %1409
        %1411 = vrot.lane.b32.xlu0 %v1290, 120
        %v1412 = vpop.permute.xlu0 %1411
        %v1414 = vsel %vm1171, %v1410, 0
        %v1417 = vsel %vm1171, %v1412, 0
        %1419 = vmatprep.subr.bf16.mxu0 0
        %1420 = vmatpush1.bf16.xpose.msra.mxu0 %v1417
        %1421 = vmatprep.subr.bf16.mxu0 0
        %1422 = vmatpush1.bf16.xpose.msra.mxu0 0
        %1423 = vmatprep.subr.bf16.mxu0 0
        %1424 = vmatpush1.bf16.xpose.msra.mxu0 0
        %1425 = vmatprep.subr.bf16.mxu0 0
        %1426 = vmatpush1.bf16.xpose.msra.mxu0 0
        %1427 = vmatprep.subr.bf16.mxu0 0
        %1428 = vmatpush1.bf16.xpose.msra.mxu0 0
        %1429 = vmatprep.subr.bf16.mxu0 0
        %1430 = vmatpush1.bf16.xpose.msra.mxu0 0
        %1431 = vmatprep.subr.bf16.mxu0 0
        %1432 = vmatpush1.bf16.xpose.msra.mxu0 0
        %1433 = vmatprep.subr.bf16.mxu0 0
        %1434 = vmatpush1.bf16.xpose.msra.mxu0 0
        %1435 = vmatprep.subr.bf16.mxu0 0
        %1436 = vmatpush1.bf16.xpose.msra.mxu0 0
        %1437 = vmatprep.subr.bf16.mxu0 0
        %1438 = vmatpush1.bf16.xpose.msra.mxu0 0
        %1439 = vmatprep.subr.bf16.mxu0 0
        %1440 = vmatpush1.bf16.xpose.msra.mxu0 0
        %1441 = vmatprep.subr.bf16.mxu0 0
        %1442 = vmatpush1.bf16.xpose.msra.mxu0 0
        %1443 = vmatprep.subr.bf16.mxu0 0
        %1444 = vmatpush1.bf16.xpose.msra.mxu0 0
        %1445 = vmatprep.subr.bf16.mxu0 0
        %1446 = vmatpush1.bf16.xpose.msra.mxu0 0
        %1447 = vmatprep.subr.bf16.mxu0 0
        %1448 = vmatpush1.bf16.xpose.msra.mxu0 0
        %1449 = vmatprep.subr.bf16.mxu0 0
        %1450 = vmatpush1.bf16.xpose.msra.mxu0 0
        %1451 = vmatprep.mubr.bf16.mxu0 0
        %1452 = vmatmul.mubr.bf16.gmra.mrb[0].mxu0 %v1414
        %v1453 = vpop.f32.mrb[0].mxu0
        %v1454 = vadd.f32 %v1170, %v1453
        %v1455 = vpop.f32.mrb[0].mxu0
        %v1456 = vpop.f32.mrb[0].mxu0
        %v1457 = vpop.f32.mrb[0].mxu0
        %1458 = vdwg.mxu0
        %v1459 = vsel %vm1218, %v1454, -inf
        %1460 = vmax.xlane.f32.xlu0 %v1459
        %v1461 = vpop.xlane.xlu0 %1460
        %v1462 = vmax.f32 %v1461, -1e+30
        %v1463 = vsub.f32 -1e+30, %v1462
        %v1464 = vmul.f32 %v1463, 1.442695
        %v1465 = vpow.pop %v1464
        %v1466 = vsub.f32 %v1454, %v1462
        %v1467 = vmul.f32 %v1466, 1.442695
        %v1468 = vpow.pop %v1467
        %v1469 = vmul.f32 %v1465, 0.0
        %v1470 = vsel %vm1218, %v1468, 0.0
        %1471 = vadd.xlane.f32.xlu0 %v1470
        %v1472 = vpop.xlane.xlu0 %1471
        %v1473 = vadd.f32 %v1469, %v1472
        %v1474 = vpack.c.bf16 %v1468, %v1468
        %1475 = vrot.lane.b32.xlu0 %v1357, 120
        %v1476 = vpop.permute.xlu0 %1475
        %v1478 = vsel %vm1218, %v1474, 0
        %v1481 = vsel %vm1238, %v1476, 0
        %1483 = vmatprep.subr.bf16.mxu0 0
        %1484 = vmatpush1.bf16.msra.mxu0 %v1481
        %1485 = vmatprep.subr.bf16.mxu0 0
        %1486 = vmatpush1.bf16.msra.mxu0 0
        %1487 = vmatprep.subr.bf16.mxu0 0
        %1488 = vmatpush1.bf16.msra.mxu0 0
        %1489 = vmatprep.subr.bf16.mxu0 0
        %1490 = vmatpush1.bf16.msra.mxu0 0
        %1491 = vmatprep.subr.bf16.mxu0 0
        %1492 = vmatpush1.bf16.msra.mxu0 0
        %1493 = vmatprep.subr.bf16.mxu0 0
        %1494 = vmatpush1.bf16.msra.mxu0 0
        %1495 = vmatprep.subr.bf16.mxu0 0
        %1496 = vmatpush1.bf16.msra.mxu0 0
        %1497 = vmatprep.subr.bf16.mxu0 0
        %1498 = vmatpush1.bf16.msra.mxu0 0
        %1499 = vmatprep.subr.bf16.mxu0 0
        %1500 = vmatpush1.bf16.msra.mxu0 0
        %1501 = vmatprep.subr.bf16.mxu0 0
        %1502 = vmatpush1.bf16.msra.mxu0 0
        %1503 = vmatprep.subr.bf16.mxu0 0
        %1504 = vmatpush1.bf16.msra.mxu0 0
        %1505 = vmatprep.subr.bf16.mxu0 0
        %1506 = vmatpush1.bf16.msra.mxu0 0
        %1507 = vmatprep.subr.bf16.mxu0 0
        %1508 = vmatpush1.bf16.msra.mxu0 0
        %1509 = vmatprep.subr.bf16.mxu0 0
        %1510 = vmatpush1.bf16.msra.mxu0 0
        %1511 = vmatprep.subr.bf16.mxu0 0
        %1512 = vmatpush1.bf16.msra.mxu0 0
        %1513 = vmatprep.subr.bf16.mxu0 0
        %1514 = vmatpush1.bf16.msra.mxu0 0
        %1515 = vmatprep.mubr.bf16.mxu0 0
        %1516 = vmatmul.mubr.bf16.gmra.mrb[0].mxu0 %v1478
        %v1517 = vpop.f32.mrb[0].mxu0
        %v1518 = vadd.f32 0.0, %v1517
        %v1519 = vpop.f32.mrb[0].mxu0
        %v1520 = vpop.f32.mrb[0].mxu0
        %v1521 = vpop.f32.mrb[0].mxu0
        %1522 = vdwg.mxu0
        %v1523 = vadd.f32 %v1469, %v1518
        %v1524 = vrcp.pop %v1473
        %v1525 = vmul.f32 %v1523, %v1524
        %1526 = vrot.lane.b32.xlu0 %v1167, 116
        %v1527 = vpop.permute.xlu0 %1526
        %1528 = vrot.lane.b32.xlu0 %v1290, 116
        %v1529 = vpop.permute.xlu0 %1528
        %v1531 = vsel %vm1171, %v1527, 0
        %v1534 = vsel %vm1171, %v1529, 0
        %1536 = vmatprep.subr.bf16.mxu0 0
        %1537 = vmatpush1.bf16.xpose.msra.mxu0 %v1534
        %1538 = vmatprep.subr.bf16.mxu0 0
        %1539 = vmatpush1.bf16.xpose.msra.mxu0 0
        %1540 = vmatprep.subr.bf16.mxu0 0
        %1541 = vmatpush1.bf16.xpose.msra.mxu0 0
        %1542 = vmatprep.subr.bf16.mxu0 0
        %1543 = vmatpush1.bf16.xpose.msra.mxu0 0
        %1544 = vmatprep.subr.bf16.mxu0 0
        %1545 = vmatpush1.bf16.xpose.msra.mxu0 0
        %1546 = vmatprep.subr.bf16.mxu0 0
        %1547 = vmatpush1.bf16.xpose.msra.mxu0 0
        %1548 = vmatprep.subr.bf16.mxu0 0
        %1549 = vmatpush1.bf16.xpose.msra.mxu0 0
        %1550 = vmatprep.subr.bf16.mxu0 0
        %1551 = vmatpush1.bf16.xpose.msra.mxu0 0
        %1552 = vmatprep.subr.bf16.mxu0 0
        %1553 = vmatpush1.bf16.xpose.msra.mxu0 0
        %1554 = vmatprep.subr.bf16.mxu0 0
        %1555 = vmatpush1.bf16.xpose.msra.mxu0 0
        %1556 = vmatprep.subr.bf16.mxu0 0
        %1557 = vmatpush1.bf16.xpose.msra.mxu0 0
        %1558 = vmatprep.subr.bf16.mxu0 0
        %1559 = vmatpush1.bf16.xpose.msra.mxu0 0
        %1560 = vmatprep.subr.bf16.mxu0 0
        %1561 = vmatpush1.bf16.xpose.msra.mxu0 0
        %1562 = vmatprep.subr.bf16.mxu0 0
        %1563 = vmatpush1.bf16.xpose.msra.mxu0 0
        %1564 = vmatprep.subr.bf16.mxu0 0
        %1565 = vmatpush1.bf16.xpose.msra.mxu0 0
        %1566 = vmatprep.subr.bf16.mxu0 0
        %1567 = vmatpush1.bf16.xpose.msra.mxu0 0
        %1568 = vmatprep.mubr.bf16.mxu0 0
        %1569 = vmatmul.mubr.bf16.gmra.mrb[0].mxu0 %v1531
        %v1570 = vpop.f32.mrb[0].mxu0
        %v1571 = vadd.f32 %v1170, %v1570
        %v1572 = vpop.f32.mrb[0].mxu0
        %v1573 = vpop.f32.mrb[0].mxu0
        %v1574 = vpop.f32.mrb[0].mxu0
        %1575 = vdwg.mxu0
        %v1576 = vsel %vm1218, %v1571, -inf
        %1577 = vmax.xlane.f32.xlu0 %v1576
        %v1578 = vpop.xlane.xlu0 %1577
        %v1579 = vmax.f32 %v1578, -1e+30
        %v1580 = vsub.f32 -1e+30, %v1579
        %v1581 = vmul.f32 %v1580, 1.442695
        %v1582 = vpow.pop %v1581
        %v1583 = vsub.f32 %v1571, %v1579
        %v1584 = vmul.f32 %v1583, 1.442695
        %v1585 = vpow.pop %v1584
        %v1586 = vmul.f32 %v1582, 0.0
        %v1587 = vsel %vm1218, %v1585, 0.0
        %1588 = vadd.xlane.f32.xlu0 %v1587
        %v1589 = vpop.xlane.xlu0 %1588
        %v1590 = vadd.f32 %v1586, %v1589
        %v1591 = vpack.c.bf16 %v1585, %v1585
        %1592 = vrot.lane.b32.xlu0 %v1357, 116
        %v1593 = vpop.permute.xlu0 %1592
        %v1595 = vsel %vm1218, %v1591, 0
        %v1598 = vsel %vm1238, %v1593, 0
        %1600 = vmatprep.subr.bf16.mxu0 0
        %1601 = vmatpush1.bf16.msra.mxu0 %v1598
        %1602 = vmatprep.subr.bf16.mxu0 0
        %1603 = vmatpush1.bf16.msra.mxu0 0
        %1604 = vmatprep.subr.bf16.mxu0 0
        %1605 = vmatpush1.bf16.msra.mxu0 0
        %1606 = vmatprep.subr.bf16.mxu0 0
        %1607 = vmatpush1.bf16.msra.mxu0 0
        %1608 = vmatprep.subr.bf16.mxu0 0
        %1609 = vmatpush1.bf16.msra.mxu0 0
        %1610 = vmatprep.subr.bf16.mxu0 0
        %1611 = vmatpush1.bf16.msra.mxu0 0
        %1612 = vmatprep.subr.bf16.mxu0 0
        %1613 = vmatpush1.bf16.msra.mxu0 0
        %1614 = vmatprep.subr.bf16.mxu0 0
        %1615 = vmatpush1.bf16.msra.mxu0 0
        %1616 = vmatprep.subr.bf16.mxu0 0
        %1617 = vmatpush1.bf16.msra.mxu0 0
        %1618 = vmatprep.subr.bf16.mxu0 0
        %1619 = vmatpush1.bf16.msra.mxu0 0
        %1620 = vmatprep.subr.bf16.mxu0 0
        %1621 = vmatpush1.bf16.msra.mxu0 0
        %1622 = vmatprep.subr.bf16.mxu0 0
        %1623 = vmatpush1.bf16.msra.mxu0 0
        %1624 = vmatprep.subr.bf16.mxu0 0
        %1625 = vmatpush1.bf16.msra.mxu0 0
        %1626 = vmatprep.subr.bf16.mxu0 0
        %1627 = vmatpush1.bf16.msra.mxu0 0
        %1628 = vmatprep.subr.bf16.mxu0 0
        %1629 = vmatpush1.bf16.msra.mxu0 0
        %1630 = vmatprep.subr.bf16.mxu0 0
        %1631 = vmatpush1.bf16.msra.mxu0 0
        %1632 = vmatprep.mubr.bf16.mxu0 0
        %1633 = vmatmul.mubr.bf16.gmra.mrb[0].mxu0 %v1595
        %v1634 = vpop.f32.mrb[0].mxu0
        %v1635 = vadd.f32 0.0, %v1634
        %v1636 = vpop.f32.mrb[0].mxu0
        %v1637 = vpop.f32.mrb[0].mxu0
        %v1638 = vpop.f32.mrb[0].mxu0
        %1639 = vdwg.mxu0
        %v1640 = vadd.f32 %v1586, %v1635
        %v1641 = vrcp.pop %v1590
        %v1642 = vmul.f32 %v1640, %v1641
        %1643 = vrot.lane.b32.xlu0 %v1167, 112
        %v1644 = vpop.permute.xlu0 %1643
        %1645 = vrot.lane.b32.xlu0 %v1290, 112
        %v1646 = vpop.permute.xlu0 %1645
        %v1648 = vsel %vm1171, %v1644, 0
        %v1651 = vsel %vm1171, %v1646, 0
        %1653 = vmatprep.subr.bf16.mxu0 0
        %1654 = vmatpush1.bf16.xpose.msra.mxu0 %v1651
        %1655 = vmatprep.subr.bf16.mxu0 0
        %1656 = vmatpush1.bf16.xpose.msra.mxu0 0
        %1657 = vmatprep.subr.bf16.mxu0 0
        %1658 = vmatpush1.bf16.xpose.msra.mxu0 0
        %1659 = vmatprep.subr.bf16.mxu0 0
        %1660 = vmatpush1.bf16.xpose.msra.mxu0 0
        %1661 = vmatprep.subr.bf16.mxu0 0
        %1662 = vmatpush1.bf16.xpose.msra.mxu0 0
        %1663 = vmatprep.subr.bf16.mxu0 0
        %1664 = vmatpush1.bf16.xpose.msra.mxu0 0
        %1665 = vmatprep.subr.bf16.mxu0 0
        %1666 = vmatpush1.bf16.xpose.msra.mxu0 0
        %1667 = vmatprep.subr.bf16.mxu0 0
        %1668 = vmatpush1.bf16.xpose.msra.mxu0 0
        %1669 = vmatprep.subr.bf16.mxu0 0
        %1670 = vmatpush1.bf16.xpose.msra.mxu0 0
        %1671 = vmatprep.subr.bf16.mxu0 0
        %1672 = vmatpush1.bf16.xpose.msra.mxu0 0
        %1673 = vmatprep.subr.bf16.mxu0 0
        %1674 = vmatpush1.bf16.xpose.msra.mxu0 0
        %1675 = vmatprep.subr.bf16.mxu0 0
        %1676 = vmatpush1.bf16.xpose.msra.mxu0 0
        %1677 = vmatprep.subr.bf16.mxu0 0
        %1678 = vmatpush1.bf16.xpose.msra.mxu0 0
        %1679 = vmatprep.subr.bf16.mxu0 0
        %1680 = vmatpush1.bf16.xpose.msra.mxu0 0
        %1681 = vmatprep.subr.bf16.mxu0 0
        %1682 = vmatpush1.bf16.xpose.msra.mxu0 0
        %1683 = vmatprep.subr.bf16.mxu0 0
        %1684 = vmatpush1.bf16.xpose.msra.mxu0 0
        %1685 = vmatprep.mubr.bf16.mxu0 0
        %1686 = vmatmul.mubr.bf16.gmra.mrb[0].mxu0 %v1648
        %v1687 = vpop.f32.mrb[0].mxu0
        %v1688 = vadd.f32 %v1170, %v1687
        %v1689 = vpop.f32.mrb[0].mxu0
        %v1690 = vpop.f32.mrb[0].mxu0
        %v1691 = vpop.f32.mrb[0].mxu0
        %1692 = vdwg.mxu0
        %v1693 = vsel %vm1218, %v1688, -inf
        %1694 = vmax.xlane.f32.xlu0 %v1693
        %v1695 = vpop.xlane.xlu0 %1694
        %v1696 = vmax.f32 %v1695, -1e+30
        %v1697 = vsub.f32 -1e+30, %v1696
        %v1698 = vmul.f32 %v1697, 1.442695
        %v1699 = vpow.pop %v1698
        %v1700 = vsub.f32 %v1688, %v1696
        %v1701 = vmul.f32 %v1700, 1.442695
        %v1702 = vpow.pop %v1701
        %v1703 = vmul.f32 %v1699, 0.0
        %v1704 = vsel %vm1218, %v1702, 0.0
        %1705 = vadd.xlane.f32.xlu0 %v1704
        %v1706 = vpop.xlane.xlu0 %1705
        %v1707 = vadd.f32 %v1703, %v1706
        %v1708 = vpack.c.bf16 %v1702, %v1702
        %1709 = vrot.lane.b32.xlu0 %v1357, 112
        %v1710 = vpop.permute.xlu0 %1709
        %v1712 = vsel %vm1218, %v1708, 0
        %v1715 = vsel %vm1238, %v1710, 0
        %1717 = vmatprep.subr.bf16.mxu0 0
        %1718 = vmatpush1.bf16.msra.mxu0 %v1715
        %1719 = vmatprep.subr.bf16.mxu0 0
        %1720 = vmatpush1.bf16.msra.mxu0 0
        %1721 = vmatprep.subr.bf16.mxu0 0
        %1722 = vmatpush1.bf16.msra.mxu0 0
        %1723 = vmatprep.subr.bf16.mxu0 0
        %1724 = vmatpush1.bf16.msra.mxu0 0
        %1725 = vmatprep.subr.bf16.mxu0 0
        %1726 = vmatpush1.bf16.msra.mxu0 0
        %1727 = vmatprep.subr.bf16.mxu0 0
        %1728 = vmatpush1.bf16.msra.mxu0 0
        %1729 = vmatprep.subr.bf16.mxu0 0
        %1730 = vmatpush1.bf16.msra.mxu0 0
        %1731 = vmatprep.subr.bf16.mxu0 0
        %1732 = vmatpush1.bf16.msra.mxu0 0
        %1733 = vmatprep.subr.bf16.mxu0 0
        %1734 = vmatpush1.bf16.msra.mxu0 0
        %1735 = vmatprep.subr.bf16.mxu0 0
        %1736 = vmatpush1.bf16.msra.mxu0 0
        %1737 = vmatprep.subr.bf16.mxu0 0
        %1738 = vmatpush1.bf16.msra.mxu0 0
        %1739 = vmatprep.subr.bf16.mxu0 0
        %1740 = vmatpush1.bf16.msra.mxu0 0
        %1741 = vmatprep.subr.bf16.mxu0 0
        %1742 = vmatpush1.bf16.msra.mxu0 0
        %1743 = vmatprep.subr.bf16.mxu0 0
        %1744 = vmatpush1.bf16.msra.mxu0 0
        %1745 = vmatprep.subr.bf16.mxu0 0
        %1746 = vmatpush1.bf16.msra.mxu0 0
        %1747 = vmatprep.subr.bf16.mxu0 0
        %1748 = vmatpush1.bf16.msra.mxu0 0
        %1749 = vmatprep.mubr.bf16.mxu0 0
        %1750 = vmatmul.mubr.bf16.gmra.mrb[0].mxu0 %v1712
        %v1751 = vpop.f32.mrb[0].mxu0
        %v1752 = vadd.f32 0.0, %v1751
        %v1753 = vpop.f32.mrb[0].mxu0
        %v1754 = vpop.f32.mrb[0].mxu0
        %v1755 = vpop.f32.mrb[0].mxu0
        %1756 = vdwg.mxu0
        %v1757 = vadd.f32 %v1703, %v1752
        %v1758 = vrcp.pop %v1707
        %v1759 = vmul.f32 %v1757, %v1758
        %1760 = vrot.lane.b32.xlu0 %v1167, 108
        %v1761 = vpop.permute.xlu0 %1760
        %1762 = vrot.lane.b32.xlu0 %v1290, 108
        %v1763 = vpop.permute.xlu0 %1762
        %v1765 = vsel %vm1171, %v1761, 0
        %v1768 = vsel %vm1171, %v1763, 0
        %1770 = vmatprep.subr.bf16.mxu0 0
        %1771 = vmatpush1.bf16.xpose.msra.mxu0 %v1768
        %1772 = vmatprep.subr.bf16.mxu0 0
        %1773 = vmatpush1.bf16.xpose.msra.mxu0 0
        %1774 = vmatprep.subr.bf16.mxu0 0
        %1775 = vmatpush1.bf16.xpose.msra.mxu0 0
        %1776 = vmatprep.subr.bf16.mxu0 0
        %1777 = vmatpush1.bf16.xpose.msra.mxu0 0
        %1778 = vmatprep.subr.bf16.mxu0 0
        %1779 = vmatpush1.bf16.xpose.msra.mxu0 0
        %1780 = vmatprep.subr.bf16.mxu0 0
        %1781 = vmatpush1.bf16.xpose.msra.mxu0 0
        %1782 = vmatprep.subr.bf16.mxu0 0
        %1783 = vmatpush1.bf16.xpose.msra.mxu0 0
        %1784 = vmatprep.subr.bf16.mxu0 0
        %1785 = vmatpush1.bf16.xpose.msra.mxu0 0
        %1786 = vmatprep.subr.bf16.mxu0 0
        %1787 = vmatpush1.bf16.xpose.msra.mxu0 0
        %1788 = vmatprep.subr.bf16.mxu0 0
        %1789 = vmatpush1.bf16.xpose.msra.mxu0 0
        %1790 = vmatprep.subr.bf16.mxu0 0
        %1791 = vmatpush1.bf16.xpose.msra.mxu0 0
        %1792 = vmatprep.subr.bf16.mxu0 0
        %1793 = vmatpush1.bf16.xpose.msra.mxu0 0
        %1794 = vmatprep.subr.bf16.mxu0 0
        %1795 = vmatpush1.bf16.xpose.msra.mxu0 0
        %1796 = vmatprep.subr.bf16.mxu0 0
        %1797 = vmatpush1.bf16.xpose.msra.mxu0 0
        %1798 = vmatprep.subr.bf16.mxu0 0
        %1799 = vmatpush1.bf16.xpose.msra.mxu0 0
        %1800 = vmatprep.subr.bf16.mxu0 0
        %1801 = vmatpush1.bf16.xpose.msra.mxu0 0
        %1802 = vmatprep.mubr.bf16.mxu0 0
        %1803 = vmatmul.mubr.bf16.gmra.mrb[0].mxu0 %v1765
        %v1804 = vpop.f32.mrb[0].mxu0
        %v1805 = vadd.f32 %v1170, %v1804
        %v1806 = vpop.f32.mrb[0].mxu0
        %v1807 = vpop.f32.mrb[0].mxu0
        %v1808 = vpop.f32.mrb[0].mxu0
        %1809 = vdwg.mxu0
        %v1810 = vsel %vm1218, %v1805, -inf
        %1811 = vmax.xlane.f32.xlu0 %v1810
        %v1812 = vpop.xlane.xlu0 %1811
        %v1813 = vmax.f32 %v1812, -1e+30
        %v1814 = vsub.f32 -1e+30, %v1813
        %v1815 = vmul.f32 %v1814, 1.442695
        %v1816 = vpow.pop %v1815
        %v1817 = vsub.f32 %v1805, %v1813
        %v1818 = vmul.f32 %v1817, 1.442695
        %v1819 = vpow.pop %v1818
        %v1820 = vmul.f32 %v1816, 0.0
        %v1821 = vsel %vm1218, %v1819, 0.0
        %1822 = vadd.xlane.f32.xlu0 %v1821
        %v1823 = vpop.xlane.xlu0 %1822
        %v1824 = vadd.f32 %v1820, %v1823
        %v1825 = vpack.c.bf16 %v1819, %v1819
        %1826 = vrot.lane.b32.xlu0 %v1357, 108
        %v1827 = vpop.permute.xlu0 %1826
        %v1829 = vsel %vm1218, %v1825, 0
        %v1832 = vsel %vm1238, %v1827, 0
        %1834 = vmatprep.subr.bf16.mxu0 0
        %1835 = vmatpush1.bf16.msra.mxu0 %v1832
        %1836 = vmatprep.subr.bf16.mxu0 0
        %1837 = vmatpush1.bf16.msra.mxu0 0
        %1838 = vmatprep.subr.bf16.mxu0 0
        %1839 = vmatpush1.bf16.msra.mxu0 0
        %1840 = vmatprep.subr.bf16.mxu0 0
        %1841 = vmatpush1.bf16.msra.mxu0 0
        %1842 = vmatprep.subr.bf16.mxu0 0
        %1843 = vmatpush1.bf16.msra.mxu0 0
        %1844 = vmatprep.subr.bf16.mxu0 0
        %1845 = vmatpush1.bf16.msra.mxu0 0
        %1846 = vmatprep.subr.bf16.mxu0 0
        %1847 = vmatpush1.bf16.msra.mxu0 0
        %1848 = vmatprep.subr.bf16.mxu0 0
        %1849 = vmatpush1.bf16.msra.mxu0 0
        %1850 = vmatprep.subr.bf16.mxu0 0
        %1851 = vmatpush1.bf16.msra.mxu0 0
        %1852 = vmatprep.subr.bf16.mxu0 0
        %1853 = vmatpush1.bf16.msra.mxu0 0
        %1854 = vmatprep.subr.bf16.mxu0 0
        %1855 = vmatpush1.bf16.msra.mxu0 0
        %1856 = vmatprep.subr.bf16.mxu0 0
        %1857 = vmatpush1.bf16.msra.mxu0 0
        %1858 = vmatprep.subr.bf16.mxu0 0
        %1859 = vmatpush1.bf16.msra.mxu0 0
        %1860 = vmatprep.subr.bf16.mxu0 0
        %1861 = vmatpush1.bf16.msra.mxu0 0
        %1862 = vmatprep.subr.bf16.mxu0 0
        %1863 = vmatpush1.bf16.msra.mxu0 0
        %1864 = vmatprep.subr.bf16.mxu0 0
        %1865 = vmatpush1.bf16.msra.mxu0 0
        %1866 = vmatprep.mubr.bf16.mxu0 0
        %1867 = vmatmul.mubr.bf16.gmra.mrb[0].mxu0 %v1829
        %v1868 = vpop.f32.mrb[0].mxu0
        %v1869 = vadd.f32 0.0, %v1868
        %v1870 = vpop.f32.mrb[0].mxu0
        %v1871 = vpop.f32.mrb[0].mxu0
        %v1872 = vpop.f32.mrb[0].mxu0
        %1873 = vdwg.mxu0
        %v1874 = vadd.f32 %v1820, %v1869
        %v1875 = vrcp.pop %v1824
        %v1876 = vmul.f32 %v1874, %v1875
        %1877 = vrot.lane.b32.xlu0 %v1167, 104
        %v1878 = vpop.permute.xlu0 %1877
        %1879 = vrot.lane.b32.xlu0 %v1290, 104
        %v1880 = vpop.permute.xlu0 %1879
        %v1882 = vsel %vm1171, %v1878, 0
        %v1885 = vsel %vm1171, %v1880, 0
        %1887 = vmatprep.subr.bf16.mxu0 0
        %1888 = vmatpush1.bf16.xpose.msra.mxu0 %v1885
        %1889 = vmatprep.subr.bf16.mxu0 0
        %1890 = vmatpush1.bf16.xpose.msra.mxu0 0
        %1891 = vmatprep.subr.bf16.mxu0 0
        %1892 = vmatpush1.bf16.xpose.msra.mxu0 0
        %1893 = vmatprep.subr.bf16.mxu0 0
        %1894 = vmatpush1.bf16.xpose.msra.mxu0 0
        %1895 = vmatprep.subr.bf16.mxu0 0
        %1896 = vmatpush1.bf16.xpose.msra.mxu0 0
        %1897 = vmatprep.subr.bf16.mxu0 0
        %1898 = vmatpush1.bf16.xpose.msra.mxu0 0
        %1899 = vmatprep.subr.bf16.mxu0 0
        %1900 = vmatpush1.bf16.xpose.msra.mxu0 0
        %1901 = vmatprep.subr.bf16.mxu0 0
        %1902 = vmatpush1.bf16.xpose.msra.mxu0 0
        %1903 = vmatprep.subr.bf16.mxu0 0
        %1904 = vmatpush1.bf16.xpose.msra.mxu0 0
        %1905 = vmatprep.subr.bf16.mxu0 0
        %1906 = vmatpush1.bf16.xpose.msra.mxu0 0
        %1907 = vmatprep.subr.bf16.mxu0 0
        %1908 = vmatpush1.bf16.xpose.msra.mxu0 0
        %1909 = vmatprep.subr.bf16.mxu0 0
        %1910 = vmatpush1.bf16.xpose.msra.mxu0 0
        %1911 = vmatprep.subr.bf16.mxu0 0
        %1912 = vmatpush1.bf16.xpose.msra.mxu0 0
        %1913 = vmatprep.subr.bf16.mxu0 0
        %1914 = vmatpush1.bf16.xpose.msra.mxu0 0
        %1915 = vmatprep.subr.bf16.mxu0 0
        %1916 = vmatpush1.bf16.xpose.msra.mxu0 0
        %1917 = vmatprep.subr.bf16.mxu0 0
        %1918 = vmatpush1.bf16.xpose.msra.mxu0 0
        %1919 = vmatprep.mubr.bf16.mxu0 0
        %1920 = vmatmul.mubr.bf16.gmra.mrb[0].mxu0 %v1882
        %v1921 = vpop.f32.mrb[0].mxu0
        %v1922 = vadd.f32 %v1170, %v1921
        %v1923 = vpop.f32.mrb[0].mxu0
        %v1924 = vpop.f32.mrb[0].mxu0
        %v1925 = vpop.f32.mrb[0].mxu0
        %1926 = vdwg.mxu0
        %v1927 = vsel %vm1218, %v1922, -inf
        %1928 = vmax.xlane.f32.xlu0 %v1927
        %v1929 = vpop.xlane.xlu0 %1928
        %v1930 = vmax.f32 %v1929, -1e+30
        %v1931 = vsub.f32 -1e+30, %v1930
        %v1932 = vmul.f32 %v1931, 1.442695
        %v1933 = vpow.pop %v1932
        %v1934 = vsub.f32 %v1922, %v1930
        %v1935 = vmul.f32 %v1934, 1.442695
        %v1936 = vpow.pop %v1935
        %v1937 = vmul.f32 %v1933, 0.0
        %v1938 = vsel %vm1218, %v1936, 0.0
        %1939 = vadd.xlane.f32.xlu0 %v1938
        %v1940 = vpop.xlane.xlu0 %1939
        %v1941 = vadd.f32 %v1937, %v1940
        %v1942 = vpack.c.bf16 %v1936, %v1936
        %1943 = vrot.lane.b32.xlu0 %v1357, 104
        %v1944 = vpop.permute.xlu0 %1943
        %v1946 = vsel %vm1218, %v1942, 0
        %v1949 = vsel %vm1238, %v1944, 0
        %1951 = vmatprep.subr.bf16.mxu0 0
        %1952 = vmatpush1.bf16.msra.mxu0 %v1949
        %1953 = vmatprep.subr.bf16.mxu0 0
        %1954 = vmatpush1.bf16.msra.mxu0 0
        %1955 = vmatprep.subr.bf16.mxu0 0
        %1956 = vmatpush1.bf16.msra.mxu0 0
        %1957 = vmatprep.subr.bf16.mxu0 0
        %1958 = vmatpush1.bf16.msra.mxu0 0
        %1959 = vmatprep.subr.bf16.mxu0 0
        %1960 = vmatpush1.bf16.msra.mxu0 0
        %1961 = vmatprep.subr.bf16.mxu0 0
        %1962 = vmatpush1.bf16.msra.mxu0 0
        %1963 = vmatprep.subr.bf16.mxu0 0
        %1964 = vmatpush1.bf16.msra.mxu0 0
        %1965 = vmatprep.subr.bf16.mxu0 0
        %1966 = vmatpush1.bf16.msra.mxu0 0
        %1967 = vmatprep.subr.bf16.mxu0 0
        %1968 = vmatpush1.bf16.msra.mxu0 0
        %1969 = vmatprep.subr.bf16.mxu0 0
        %1970 = vmatpush1.bf16.msra.mxu0 0
        %1971 = vmatprep.subr.bf16.mxu0 0
        %1972 = vmatpush1.bf16.msra.mxu0 0
        %1973 = vmatprep.subr.bf16.mxu0 0
        %1974 = vmatpush1.bf16.msra.mxu0 0
        %1975 = vmatprep.subr.bf16.mxu0 0
        %1976 = vmatpush1.bf16.msra.mxu0 0
        %1977 = vmatprep.subr.bf16.mxu0 0
        %1978 = vmatpush1.bf16.msra.mxu0 0
        %1979 = vmatprep.subr.bf16.mxu0 0
        %1980 = vmatpush1.bf16.msra.mxu0 0
        %1981 = vmatprep.subr.bf16.mxu0 0
        %1982 = vmatpush1.bf16.msra.mxu0 0
        %1983 = vmatprep.mubr.bf16.mxu0 0
        %1984 = vmatmul.mubr.bf16.gmra.mrb[0].mxu0 %v1946
        %v1985 = vpop.f32.mrb[0].mxu0
        %v1986 = vadd.f32 0.0, %v1985
        %v1987 = vpop.f32.mrb[0].mxu0
        %v1988 = vpop.f32.mrb[0].mxu0
        %v1989 = vpop.f32.mrb[0].mxu0
        %1990 = vdwg.mxu0
        %v1991 = vadd.f32 %v1937, %v1986
        %v1992 = vrcp.pop %v1941
        %v1993 = vmul.f32 %v1991, %v1992
        %1994 = vrot.lane.b32.xlu0 %v1167, 100
        %v1995 = vpop.permute.xlu0 %1994
        %1996 = vrot.lane.b32.xlu0 %v1290, 100
        %v1997 = vpop.permute.xlu0 %1996
        %v1999 = vsel %vm1171, %v1995, 0
        %v2002 = vsel %vm1171, %v1997, 0
        %2004 = vmatprep.subr.bf16.mxu0 0
        %2005 = vmatpush1.bf16.xpose.msra.mxu0 %v2002
        %2006 = vmatprep.subr.bf16.mxu0 0
        %2007 = vmatpush1.bf16.xpose.msra.mxu0 0
        %2008 = vmatprep.subr.bf16.mxu0 0
        %2009 = vmatpush1.bf16.xpose.msra.mxu0 0
        %2010 = vmatprep.subr.bf16.mxu0 0
        %2011 = vmatpush1.bf16.xpose.msra.mxu0 0
        %2012 = vmatprep.subr.bf16.mxu0 0
        %2013 = vmatpush1.bf16.xpose.msra.mxu0 0
        %2014 = vmatprep.subr.bf16.mxu0 0
        %2015 = vmatpush1.bf16.xpose.msra.mxu0 0
        %2016 = vmatprep.subr.bf16.mxu0 0
        %2017 = vmatpush1.bf16.xpose.msra.mxu0 0
        %2018 = vmatprep.subr.bf16.mxu0 0
        %2019 = vmatpush1.bf16.xpose.msra.mxu0 0
        %2020 = vmatprep.subr.bf16.mxu0 0
        %2021 = vmatpush1.bf16.xpose.msra.mxu0 0
        %2022 = vmatprep.subr.bf16.mxu0 0
        %2023 = vmatpush1.bf16.xpose.msra.mxu0 0
        %2024 = vmatprep.subr.bf16.mxu0 0
        %2025 = vmatpush1.bf16.xpose.msra.mxu0 0
        %2026 = vmatprep.subr.bf16.mxu0 0
        %2027 = vmatpush1.bf16.xpose.msra.mxu0 0
        %2028 = vmatprep.subr.bf16.mxu0 0
        %2029 = vmatpush1.bf16.xpose.msra.mxu0 0
        %2030 = vmatprep.subr.bf16.mxu0 0
        %2031 = vmatpush1.bf16.xpose.msra.mxu0 0
        %2032 = vmatprep.subr.bf16.mxu0 0
        %2033 = vmatpush1.bf16.xpose.msra.mxu0 0
        %2034 = vmatprep.subr.bf16.mxu0 0
        %2035 = vmatpush1.bf16.xpose.msra.mxu0 0
        %2036 = vmatprep.mubr.bf16.mxu0 0
        %2037 = vmatmul.mubr.bf16.gmra.mrb[0].mxu0 %v1999
        %v2038 = vpop.f32.mrb[0].mxu0
        %v2039 = vadd.f32 %v1170, %v2038
        %v2040 = vpop.f32.mrb[0].mxu0
        %v2041 = vpop.f32.mrb[0].mxu0
        %v2042 = vpop.f32.mrb[0].mxu0
        %2043 = vdwg.mxu0
        %v2044 = vsel %vm1218, %v2039, -inf
        %2045 = vmax.xlane.f32.xlu0 %v2044
        %v2046 = vpop.xlane.xlu0 %2045
        %v2047 = vmax.f32 %v2046, -1e+30
        %v2048 = vsub.f32 -1e+30, %v2047
        %v2049 = vmul.f32 %v2048, 1.442695
        %v2050 = vpow.pop %v2049
        %v2051 = vsub.f32 %v2039, %v2047
        %v2052 = vmul.f32 %v2051, 1.442695
        %v2053 = vpow.pop %v2052
        %v2054 = vmul.f32 %v2050, 0.0
        %v2055 = vsel %vm1218, %v2053, 0.0
        %2056 = vadd.xlane.f32.xlu0 %v2055
        %v2057 = vpop.xlane.xlu0 %2056
        %v2058 = vadd.f32 %v2054, %v2057
        %v2059 = vpack.c.bf16 %v2053, %v2053
        %2060 = vrot.lane.b32.xlu0 %v1357, 100
        %v2061 = vpop.permute.xlu0 %2060
        %v2063 = vsel %vm1218, %v2059, 0
        %v2066 = vsel %vm1238, %v2061, 0
        %2068 = vmatprep.subr.bf16.mxu0 0
        %2069 = vmatpush1.bf16.msra.mxu0 %v2066
        %2070 = vmatprep.subr.bf16.mxu0 0
        %2071 = vmatpush1.bf16.msra.mxu0 0
        %2072 = vmatprep.subr.bf16.mxu0 0
        %2073 = vmatpush1.bf16.msra.mxu0 0
        %2074 = vmatprep.subr.bf16.mxu0 0
        %2075 = vmatpush1.bf16.msra.mxu0 0
        %2076 = vmatprep.subr.bf16.mxu0 0
        %2077 = vmatpush1.bf16.msra.mxu0 0
        %2078 = vmatprep.subr.bf16.mxu0 0
        %2079 = vmatpush1.bf16.msra.mxu0 0
        %2080 = vmatprep.subr.bf16.mxu0 0
        %2081 = vmatpush1.bf16.msra.mxu0 0
        %2082 = vmatprep.subr.bf16.mxu0 0
        %2083 = vmatpush1.bf16.msra.mxu0 0
        %2084 = vmatprep.subr.bf16.mxu0 0
        %2085 = vmatpush1.bf16.msra.mxu0 0
        %2086 = vmatprep.subr.bf16.mxu0 0
        %2087 = vmatpush1.bf16.msra.mxu0 0
        %2088 = vmatprep.subr.bf16.mxu0 0
        %2089 = vmatpush1.bf16.msra.mxu0 0
        %2090 = vmatprep.subr.bf16.mxu0 0
        %2091 = vmatpush1.bf16.msra.mxu0 0
        %2092 = vmatprep.subr.bf16.mxu0 0
        %2093 = vmatpush1.bf16.msra.mxu0 0
        %2094 = vmatprep.subr.bf16.mxu0 0
        %2095 = vmatpush1.bf16.msra.mxu0 0
        %2096 = vmatprep.subr.bf16.mxu0 0
        %2097 = vmatpush1.bf16.msra.mxu0 0
        %2098 = vmatprep.subr.bf16.mxu0 0
        %2099 = vmatpush1.bf16.msra.mxu0 0
        %2100 = vmatprep.mubr.bf16.mxu0 0
        %2101 = vmatmul.mubr.bf16.gmra.mrb[0].mxu0 %v2063
        %v2102 = vpop.f32.mrb[0].mxu0
        %v2103 = vadd.f32 0.0, %v2102
        %v2104 = vpop.f32.mrb[0].mxu0
        %v2105 = vpop.f32.mrb[0].mxu0
        %v2106 = vpop.f32.mrb[0].mxu0
        %2107 = vdwg.mxu0
        %v2108 = vadd.f32 %v2054, %v2103
        %v2109 = vrcp.pop %v2058
        %v2110 = vmul.f32 %v2108, %v2109
        %2112 = vrot.lane.b32.xlu0 %v1408, 4
        %v2113 = vpop.permute.xlu0 %2112
        %2116 = vrot.lane.b32.xlu0 %v1525, 8
        %v2117 = vpop.permute.xlu0 %2116
        %2120 = vrot.lane.b32.xlu0 %v1642, 12
        %v2121 = vpop.permute.xlu0 %2120
        %2124 = vrot.lane.b32.xlu0 %v1759, 16
        %v2125 = vpop.permute.xlu0 %2124
        %2128 = vrot.lane.b32.xlu0 %v1876, 20
        %v2129 = vpop.permute.xlu0 %2128
        %2132 = vrot.lane.b32.xlu0 %v1993, 24
        %v2133 = vpop.permute.xlu0 %2132
        %2136 = vrot.lane.b32.xlu0 %v2110, 28
        %v2137 = vpop.permute.xlu0 %2136
        %v2139 = vsel %vm1171, %v1284, %v2113
        %v2140 = vsel %vm1218, %v2139, %v2117
        %vm2141 = vcmask 97280
        %v2142 = vsel %vm2141, %v2140, %v2121
        %vm2143 = vcmask 130048
        %v2144 = vsel %vm2143, %v2142, %v2125
        %vm2145 = vcmask 162816
        %v2146 = vsel %vm2145, %v2144, %v2129
        %vm2147 = vcmask 195584
        %v2148 = vsel %vm2147, %v2146, %v2133
        %vm2149 = vcmask 228352
        %v2150 = vsel %vm2149, %v2148, %v2137
        %v2151 = vpack.c.bf16 %v2150, %v2150
        %s2152 = scalar_lea.vmem [#allocation15], 48
        %v2153 = vld [vmem:[%s2152] sm:$0xf]
        %v2154 = vld [vmem:[%s2152 + $0x4] sm:$0xf]
        %v2155 = vld [vmem:[%s2152 + $0x8] sm:$0xf]
        %v2156 = vld [vmem:[%s2152 + $0xc] sm:$0xf]
        %s2157 = scalar_lea.vmem [#allocation17], 3
        %v2158 = vld [vmem:[%s2157] sm:$0x1]
        %v2160 = vlaneseq
        %v2161 = vshrl.u32 %v2160, 7
        %v2162 = vsub.s32 0, %v2161
        %v2163 = vrot.slane %v2158, %v2162
        %v2169 = vunpack.c.l.b16 %v2153
        %v2170 = vunpack.c.l.b16 %v2154
        %v2171 = vunpack.c.l.b16 %v2155
        %v2172 = vunpack.c.l.b16 %v2156
        %v2173 = vpack.c.b16 %v2170, %v2169
        %v2174 = vpack.c.b16 %v2172, %v2171
        %v2178 = vsel %vm1122, %v2151, 0
        %2180 = vmatprep.subr.bf16.mxu0 0
        %2181 = vmatpush1.bf16.msra.mxu0 %v2173
        %2182 = vmatprep.subr.bf16.mxu0 0
        %2183 = vmatpush1.bf16.msra.mxu0 %v2174
        %2184 = vmatprep.subr.bf16.mxu0 0
        %2185 = vmatpush1.bf16.msra.mxu0 0
        %2186 = vmatprep.subr.bf16.mxu0 0
        %2187 = vmatpush1.bf16.msra.mxu0 0
        %2188 = vmatprep.subr.bf16.mxu0 0
        %2189 = vmatpush1.bf16.msra.mxu0 0
        %2190 = vmatprep.subr.bf16.mxu0 0
        %2191 = vmatpush1.bf16.msra.mxu0 0
        %2192 = vmatprep.subr.bf16.mxu0 0
        %2193 = vmatpush1.bf16.msra.mxu0 0
        %2194 = vmatprep.subr.bf16.mxu0 0
        %2195 = vmatpush1.bf16.msra.mxu0 0
        %2196 = vmatprep.subr.bf16.mxu0 0
        %2197 = vmatpush1.bf16.msra.mxu0 0
        %2198 = vmatprep.subr.bf16.mxu0 0
        %2199 = vmatpush1.bf16.msra.mxu0 0
        %2200 = vmatprep.subr.bf16.mxu0 0
        %2201 = vmatpush1.bf16.msra.mxu0 0
        %2202 = vmatprep.subr.bf16.mxu0 0
        %2203 = vmatpush1.bf16.msra.mxu0 0
        %2204 = vmatprep.subr.bf16.mxu0 0
        %2205 = vmatpush1.bf16.msra.mxu0 0
        %2206 = vmatprep.subr.bf16.mxu0 0
        %2207 = vmatpush1.bf16.msra.mxu0 0
        %2208 = vmatprep.subr.bf16.mxu0 0
        %2209 = vmatpush1.bf16.msra.mxu0 0
        %2210 = vmatprep.subr.bf16.mxu0 0
        %2211 = vmatpush1.bf16.msra.mxu0 0
        %2212 = vmatprep.mubr.bf16.mxu0 0
        %2213 = vmatmul.mubr.bf16.gmra.mrb[0].mxu0 %v2178
        %v2214 = vpop.f32.mrb[0].mxu0
        %v2215 = vadd.f32 %v2163, %v2214
        %v2216 = vpop.f32.mrb[0].mxu0
        %v2217 = vpop.f32.mrb[0].mxu0
        %v2218 = vpop.f32.mrb[0].mxu0
        %2219 = vdwg.mxu0
        %v2220 = vadd.f32 %v1095, %v2215
        %v2221 = vld [vmem:[#allocation27] sm:$0x1]
        %v2222 = vld [vmem:[#allocation29] sm:$0x1]
        %v2223 = vsel %vm1122, %v2220, 0.0
        %2224 = vadd.xlane.f32.xlu0 %v2223
        %v2225 = vpop.xlane.xlu0 %2224
        %v2226 = vrcp.pop 32.0
        %v2227 = vmul.f32 %v2225, %v2226
        %v2228 = vsub.f32 %v2220, %v2227
        %v2229 = vmul.f32 %v2228, %v2228
        %v2230 = vsel %vm1122, %v2229, 0.0
        %2231 = vadd.xlane.f32.xlu0 %v2230
        %v2232 = vpop.xlane.xlu0 %2231
        %v2233 = vmul.f32 %v2232, %v2226
        %v2234 = vadd.f32 %v2233, 1e-05
        %v2235 = vrsqrt.pop %v2234
        %v2236 = vmul.f32 %v2228, %v2235
        %v2238 = vlaneseq
        %v2239 = vshrl.u32 %v2238, 7
        %v2240 = vsub.s32 0, %v2239
        %v2241 = vrot.slane %v2221, %v2240
        %v2243 = vmul.f32 %v2236, %v2241
        %v2245 = vlaneseq
        %v2246 = vshrl.u32 %v2245, 7
        %v2247 = vsub.s32 0, %v2246
        %v2248 = vrot.slane %v2222, %v2247
        %v2250 = vadd.f32 %v2243, %v2248
        %v2251 = vpack.c.bf16 %v2250, %v2250
        %s2252 = scalar_lea.vmem [#allocation18], 32
        %v2253 = vld [vmem:[%s2252] sm:$0xf]
        %v2254 = vld [vmem:[%s2252 + $0x4] sm:$0xf]
        %v2255 = vld [vmem:[%s2252 + $0x8] sm:$0xf]
        %v2256 = vld [vmem:[%s2252 + $0xc] sm:$0xf]
        %s2257 = scalar_lea.vmem [#allocation20], 2
        %v2258 = vld [vmem:[%s2257] sm:$0x1]
        %v2260 = vlaneseq
        %v2261 = vshrl.u32 %v2260, 7
        %v2262 = vsub.s32 0, %v2261
        %v2263 = vrot.slane %v2258, %v2262
        %v2269 = vunpack.c.l.b16 %v2253
        %v2270 = vunpack.c.l.b16 %v2254
        %v2271 = vunpack.c.l.b16 %v2255
        %v2272 = vunpack.c.l.b16 %v2256
        %v2273 = vpack.c.b16 %v2270, %v2269
        %v2274 = vpack.c.b16 %v2272, %v2271
        %v2278 = vsel %vm1122, %v2251, 0
        %2280 = vmatprep.subr.bf16.mxu0 0
        %2281 = vmatpush1.bf16.msra.mxu0 %v2273
        %2282 = vmatprep.subr.bf16.mxu0 0
        %2283 = vmatpush1.bf16.msra.mxu0 %v2274
        %2284 = vmatprep.subr.bf16.mxu0 0
        %2285 = vmatpush1.bf16.msra.mxu0 0
        %2286 = vmatprep.subr.bf16.mxu0 0
        %2287 = vmatpush1.bf16.msra.mxu0 0
        %2288 = vmatprep.subr.bf16.mxu0 0
        %2289 = vmatpush1.bf16.msra.mxu0 0
        %2290 = vmatprep.subr.bf16.mxu0 0
        %2291 = vmatpush1.bf16.msra.mxu0 0
        %2292 = vmatprep.subr.bf16.mxu0 0
        %2293 = vmatpush1.bf16.msra.mxu0 0
        %2294 = vmatprep.subr.bf16.mxu0 0
        %2295 = vmatpush1.bf16.msra.mxu0 0
        %2296 = vmatprep.subr.bf16.mxu0 0
        %2297 = vmatpush1.bf16.msra.mxu0 0
        %2298 = vmatprep.subr.bf16.mxu0 0
        %2299 = vmatpush1.bf16.msra.mxu0 0
        %2300 = vmatprep.subr.bf16.mxu0 0
        %2301 = vmatpush1.bf16.msra.mxu0 0
        %2302 = vmatprep.subr.bf16.mxu0 0
        %2303 = vmatpush1.bf16.msra.mxu0 0
        %2304 = vmatprep.subr.bf16.mxu0 0
        %2305 = vmatpush1.bf16.msra.mxu0 0
        %2306 = vmatprep.subr.bf16.mxu0 0
        %2307 = vmatpush1.bf16.msra.mxu0 0
        %2308 = vmatprep.subr.bf16.mxu0 0
        %2309 = vmatpush1.bf16.msra.mxu0 0
        %2310 = vmatprep.subr.bf16.mxu0 0
        %2311 = vmatpush1.bf16.msra.mxu0 0
        %2312 = vmatprep.mubr.bf16.mxu0 0
        %2313 = vmatmul.mubr.bf16.gmra.mrb[0].mxu0 %v2278
        %v2314 = vpop.f32.mrb[0].mxu0
        %v2315 = vadd.f32 %v2263, %v2314
        %v2316 = vpop.f32.mrb[0].mxu0
        %v2317 = vpop.f32.mrb[0].mxu0
        %v2318 = vpop.f32.mrb[0].mxu0
        %2319 = vdwg.mxu0
        %v2320 = vld [vmem:[%s709] sm:$0xf]
        %v2321 = vpack.c.bf16 %v2315, %v2315
        %v2322 = vld [vmem:[#allocation4] sm:$0xf]
        %v2323 = vld [vmem:[#allocation5] sm:$0xf]
        %v2324 = vunpack.c.l.bf16 %v2320
        %v2326 = vsel %vm1171, %v2321, 0
        %v2329 = vsel %vm1171, %v2322, 0
        %2331 = vmatprep.subr.bf16.mxu0 0
        %2332 = vmatpush1.bf16.xpose.msra.mxu0 %v2329
        %2333 = vmatprep.subr.bf16.mxu0 0
        %2334 = vmatpush1.bf16.xpose.msra.mxu0 0
        %2335 = vmatprep.subr.bf16.mxu0 0
        %2336 = vmatpush1.bf16.xpose.msra.mxu0 0
        %2337 = vmatprep.subr.bf16.mxu0 0
        %2338 = vmatpush1.bf16.xpose.msra.mxu0 0
        %2339 = vmatprep.subr.bf16.mxu0 0
        %2340 = vmatpush1.bf16.xpose.msra.mxu0 0
        %2341 = vmatprep.subr.bf16.mxu0 0
        %2342 = vmatpush1.bf16.xpose.msra.mxu0 0
        %2343 = vmatprep.subr.bf16.mxu0 0
        %2344 = vmatpush1.bf16.xpose.msra.mxu0 0
        %2345 = vmatprep.subr.bf16.mxu0 0
        %2346 = vmatpush1.bf16.xpose.msra.mxu0 0
        %2347 = vmatprep.subr.bf16.mxu0 0
        %2348 = vmatpush1.bf16.xpose.msra.mxu0 0
        %2349 = vmatprep.subr.bf16.mxu0 0
        %2350 = vmatpush1.bf16.xpose.msra.mxu0 0
        %2351 = vmatprep.subr.bf16.mxu0 0
        %2352 = vmatpush1.bf16.xpose.msra.mxu0 0
        %2353 = vmatprep.subr.bf16.mxu0 0
        %2354 = vmatpush1.bf16.xpose.msra.mxu0 0
        %2355 = vmatprep.subr.bf16.mxu0 0
        %2356 = vmatpush1.bf16.xpose.msra.mxu0 0
        %2357 = vmatprep.subr.bf16.mxu0 0
        %2358 = vmatpush1.bf16.xpose.msra.mxu0 0
        %2359 = vmatprep.subr.bf16.mxu0 0
        %2360 = vmatpush1.bf16.xpose.msra.mxu0 0
        %2361 = vmatprep.subr.bf16.mxu0 0
        %2362 = vmatpush1.bf16.xpose.msra.mxu0 0
        %2363 = vmatprep.mubr.bf16.mxu0 0
        %2364 = vmatmul.mubr.bf16.gmra.mrb[0].mxu0 %v2326
        %v2365 = vpop.f32.mrb[0].mxu0
        %v2366 = vadd.f32 %v2324, %v2365
        %v2367 = vpop.f32.mrb[0].mxu0
        %v2368 = vpop.f32.mrb[0].mxu0
        %v2369 = vpop.f32.mrb[0].mxu0
        %2370 = vdwg.mxu0
        %v2371 = vsel %vm1218, %v2366, -inf
        %2372 = vmax.xlane.f32.xlu0 %v2371
        %v2373 = vpop.xlane.xlu0 %2372
        %v2374 = vmax.f32 %v2373, -1e+30
        %v2375 = vsub.f32 -1e+30, %v2374
        %v2376 = vmul.f32 %v2375, 1.442695
        %v2377 = vpow.pop %v2376
        %v2378 = vsub.f32 %v2366, %v2374
        %v2379 = vmul.f32 %v2378, 1.442695
        %v2380 = vpow.pop %v2379
        %v2381 = vmul.f32 %v2377, 0.0
        %v2382 = vsel %vm1218, %v2380, 0.0
        %2383 = vadd.xlane.f32.xlu0 %v2382
        %v2384 = vpop.xlane.xlu0 %2383
        %v2385 = vadd.f32 %v2381, %v2384
        %v2386 = vpack.c.bf16 %v2380, %v2380
        %v2388 = vsel %vm1218, %v2386, 0
        %v2391 = vsel %vm1238, %v2323, 0
        %2393 = vmatprep.subr.bf16.mxu0 0
        %2394 = vmatpush1.bf16.msra.mxu0 %v2391
        %2395 = vmatprep.subr.bf16.mxu0 0
        %2396 = vmatpush1.bf16.msra.mxu0 0
        %2397 = vmatprep.subr.bf16.mxu0 0
        %2398 = vmatpush1.bf16.msra.mxu0 0
        %2399 = vmatprep.subr.bf16.mxu0 0
        %2400 = vmatpush1.bf16.msra.mxu0 0
        %2401 = vmatprep.subr.bf16.mxu0 0
        %2402 = vmatpush1.bf16.msra.mxu0 0
        %2403 = vmatprep.subr.bf16.mxu0 0
        %2404 = vmatpush1.bf16.msra.mxu0 0
        %2405 = vmatprep.subr.bf16.mxu0 0
        %2406 = vmatpush1.bf16.msra.mxu0 0
        %2407 = vmatprep.subr.bf16.mxu0 0
        %2408 = vmatpush1.bf16.msra.mxu0 0
        %2409 = vmatprep.subr.bf16.mxu0 0
        %2410 = vmatpush1.bf16.msra.mxu0 0
        %2411 = vmatprep.subr.bf16.mxu0 0
        %2412 = vmatpush1.bf16.msra.mxu0 0
        %2413 = vmatprep.subr.bf16.mxu0 0
        %2414 = vmatpush1.bf16.msra.mxu0 0
        %2415 = vmatprep.subr.bf16.mxu0 0
        %2416 = vmatpush1.bf16.msra.mxu0 0
        %2417 = vmatprep.subr.bf16.mxu0 0
        %2418 = vmatpush1.bf16.msra.mxu0 0
        %2419 = vmatprep.subr.bf16.mxu0 0
        %2420 = vmatpush1.bf16.msra.mxu0 0
        %2421 = vmatprep.subr.bf16.mxu0 0
        %2422 = vmatpush1.bf16.msra.mxu0 0
        %2423 = vmatprep.subr.bf16.mxu0 0
        %2424 = vmatpush1.bf16.msra.mxu0 0
        %2425 = vmatprep.mubr.bf16.mxu0 0
        %2426 = vmatmul.mubr.bf16.gmra.mrb[0].mxu0 %v2388
        %v2427 = vpop.f32.mrb[0].mxu0
        %v2428 = vadd.f32 0.0, %v2427
        %v2429 = vpop.f32.mrb[0].mxu0
        %v2430 = vpop.f32.mrb[0].mxu0
        %v2431 = vpop.f32.mrb[0].mxu0
        %2432 = vdwg.mxu0
        %v2433 = vadd.f32 %v2381, %v2428
        %v2434 = vrcp.pop %v2385
        %v2435 = vmul.f32 %v2433, %v2434
        %2437 = vrot.lane.b32.xlu0 %v2321, 124
        %v2438 = vpop.permute.xlu0 %2437
        %v2440 = vunpack.c.l.b16 %v2322
        %v2441 = vpack.c.b16 %v2440, %v2440
        %2442 = vrot.lane.b32.xlu0 %v2441, 124
        %v2443 = vpop.permute.xlu0 %2442
        %v2445 = vsel %vm1171, %v2438, 0
        %v2448 = vsel %vm1171, %v2443, 0
        %2450 = vmatprep.subr.bf16.mxu0 0
        %2451 = vmatpush1.bf16.xpose.msra.mxu0 %v2448
        %2452 = vmatprep.subr.bf16.mxu0 0
        %2453 = vmatpush1.bf16.xpose.msra.mxu0 0
        %2454 = vmatprep.subr.bf16.mxu0 0
        %2455 = vmatpush1.bf16.xpose.msra.mxu0 0
        %2456 = vmatprep.subr.bf16.mxu0 0
        %2457 = vmatpush1.bf16.xpose.msra.mxu0 0
        %2458 = vmatprep.subr.bf16.mxu0 0
        %2459 = vmatpush1.bf16.xpose.msra.mxu0 0
        %2460 = vmatprep.subr.bf16.mxu0 0
        %2461 = vmatpush1.bf16.xpose.msra.mxu0 0
        %2462 = vmatprep.subr.bf16.mxu0 0
        %2463 = vmatpush1.bf16.xpose.msra.mxu0 0
        %2464 = vmatprep.subr.bf16.mxu0 0
        %2465 = vmatpush1.bf16.xpose.msra.mxu0 0
        %2466 = vmatprep.subr.bf16.mxu0 0
        %2467 = vmatpush1.bf16.xpose.msra.mxu0 0
        %2468 = vmatprep.subr.bf16.mxu0 0
        %2469 = vmatpush1.bf16.xpose.msra.mxu0 0
        %2470 = vmatprep.subr.bf16.mxu0 0
        %2471 = vmatpush1.bf16.xpose.msra.mxu0 0
        %2472 = vmatprep.subr.bf16.mxu0 0
        %2473 = vmatpush1.bf16.xpose.msra.mxu0 0
        %2474 = vmatprep.subr.bf16.mxu0 0
        %2475 = vmatpush1.bf16.xpose.msra.mxu0 0
        %2476 = vmatprep.subr.bf16.mxu0 0
        %2477 = vmatpush1.bf16.xpose.msra.mxu0 0
        %2478 = vmatprep.subr.bf16.mxu0 0
        %2479 = vmatpush1.bf16.xpose.msra.mxu0 0
        %2480 = vmatprep.subr.bf16.mxu0 0
        %2481 = vmatpush1.bf16.xpose.msra.mxu0 0
        %2482 = vmatprep.mubr.bf16.mxu0 0
        %2483 = vmatmul.mubr.bf16.gmra.mrb[0].mxu0 %v2445
        %v2484 = vpop.f32.mrb[0].mxu0
        %v2485 = vadd.f32 %v2324, %v2484
        %v2486 = vpop.f32.mrb[0].mxu0
        %v2487 = vpop.f32.mrb[0].mxu0
        %v2488 = vpop.f32.mrb[0].mxu0
        %2489 = vdwg.mxu0
        %v2490 = vsel %vm1218, %v2485, -inf
        %2491 = vmax.xlane.f32.xlu0 %v2490
        %v2492 = vpop.xlane.xlu0 %2491
        %v2493 = vmax.f32 %v2492, -1e+30
        %v2494 = vsub.f32 -1e+30, %v2493
        %v2495 = vmul.f32 %v2494, 1.442695
        %v2496 = vpow.pop %v2495
        %v2497 = vsub.f32 %v2485, %v2493
        %v2498 = vmul.f32 %v2497, 1.442695
        %v2499 = vpow.pop %v2498
        %v2500 = vmul.f32 %v2496, 0.0
        %v2501 = vsel %vm1218, %v2499, 0.0
        %2502 = vadd.xlane.f32.xlu0 %v2501
        %v2503 = vpop.xlane.xlu0 %2502
        %v2504 = vadd.f32 %v2500, %v2503
        %v2505 = vpack.c.bf16 %v2499, %v2499
        %v2507 = vunpack.c.l.b16 %v2323
        %v2508 = vpack.c.b16 %v2507, %v2507
        %2509 = vrot.lane.b32.xlu0 %v2508, 124
        %v2510 = vpop.permute.xlu0 %2509
        %v2512 = vsel %vm1218, %v2505, 0
        %v2515 = vsel %vm1238, %v2510, 0
        %2517 = vmatprep.subr.bf16.mxu0 0
        %2518 = vmatpush1.bf16.msra.mxu0 %v2515
        %2519 = vmatprep.subr.bf16.mxu0 0
        %2520 = vmatpush1.bf16.msra.mxu0 0
        %2521 = vmatprep.subr.bf16.mxu0 0
        %2522 = vmatpush1.bf16.msra.mxu0 0
        %2523 = vmatprep.subr.bf16.mxu0 0
        %2524 = vmatpush1.bf16.msra.mxu0 0
        %2525 = vmatprep.subr.bf16.mxu0 0
        %2526 = vmatpush1.bf16.msra.mxu0 0
        %2527 = vmatprep.subr.bf16.mxu0 0
        %2528 = vmatpush1.bf16.msra.mxu0 0
        %2529 = vmatprep.subr.bf16.mxu0 0
        %2530 = vmatpush1.bf16.msra.mxu0 0
        %2531 = vmatprep.subr.bf16.mxu0 0
        %2532 = vmatpush1.bf16.msra.mxu0 0
        %2533 = vmatprep.subr.bf16.mxu0 0
        %2534 = vmatpush1.bf16.msra.mxu0 0
        %2535 = vmatprep.subr.bf16.mxu0 0
        %2536 = vmatpush1.bf16.msra.mxu0 0
        %2537 = vmatprep.subr.bf16.mxu0 0
        %2538 = vmatpush1.bf16.msra.mxu0 0
        %2539 = vmatprep.subr.bf16.mxu0 0
        %2540 = vmatpush1.bf16.msra.mxu0 0
        %2541 = vmatprep.subr.bf16.mxu0 0
        %2542 = vmatpush1.bf16.msra.mxu0 0
        %2543 = vmatprep.subr.bf16.mxu0 0
        %2544 = vmatpush1.bf16.msra.mxu0 0
        %2545 = vmatprep.subr.bf16.mxu0 0
        %2546 = vmatpush1.bf16.msra.mxu0 0
        %2547 = vmatprep.subr.bf16.mxu0 0
        %2548 = vmatpush1.bf16.msra.mxu0 0
        %2549 = vmatprep.mubr.bf16.mxu0 0
        %2550 = vmatmul.mubr.bf16.gmra.mrb[0].mxu0 %v2512
        %v2551 = vpop.f32.mrb[0].mxu0
        %v2552 = vadd.f32 0.0, %v2551
        %v2553 = vpop.f32.mrb[0].mxu0
        %v2554 = vpop.f32.mrb[0].mxu0
        %v2555 = vpop.f32.mrb[0].mxu0
        %2556 = vdwg.mxu0
        %v2557 = vadd.f32 %v2500, %v2552
        %v2558 = vrcp.pop %v2504
        %v2559 = vmul.f32 %v2557, %v2558
        %2560 = vrot.lane.b32.xlu0 %v2321, 120
        %v2561 = vpop.permute.xlu0 %2560
        %2562 = vrot.lane.b32.xlu0 %v2441, 120
        %v2563 = vpop.permute.xlu0 %2562
        %v2565 = vsel %vm1171, %v2561, 0
        %v2568 = vsel %vm1171, %v2563, 0
        %2570 = vmatprep.subr.bf16.mxu0 0
        %2571 = vmatpush1.bf16.xpose.msra.mxu0 %v2568
        %2572 = vmatprep.subr.bf16.mxu0 0
        %2573 = vmatpush1.bf16.xpose.msra.mxu0 0
        %2574 = vmatprep.subr.bf16.mxu0 0
        %2575 = vmatpush1.bf16.xpose.msra.mxu0 0
        %2576 = vmatprep.subr.bf16.mxu0 0
        %2577 = vmatpush1.bf16.xpose.msra.mxu0 0
        %2578 = vmatprep.subr.bf16.mxu0 0
        %2579 = vmatpush1.bf16.xpose.msra.mxu0 0
        %2580 = vmatprep.subr.bf16.mxu0 0
        %2581 = vmatpush1.bf16.xpose.msra.mxu0 0
        %2582 = vmatprep.subr.bf16.mxu0 0
        %2583 = vmatpush1.bf16.xpose.msra.mxu0 0
        %2584 = vmatprep.subr.bf16.mxu0 0
        %2585 = vmatpush1.bf16.xpose.msra.mxu0 0
        %2586 = vmatprep.subr.bf16.mxu0 0
        %2587 = vmatpush1.bf16.xpose.msra.mxu0 0
        %2588 = vmatprep.subr.bf16.mxu0 0
        %2589 = vmatpush1.bf16.xpose.msra.mxu0 0
        %2590 = vmatprep.subr.bf16.mxu0 0
        %2591 = vmatpush1.bf16.xpose.msra.mxu0 0
        %2592 = vmatprep.subr.bf16.mxu0 0
        %2593 = vmatpush1.bf16.xpose.msra.mxu0 0
        %2594 = vmatprep.subr.bf16.mxu0 0
        %2595 = vmatpush1.bf16.xpose.msra.mxu0 0
        %2596 = vmatprep.subr.bf16.mxu0 0
        %2597 = vmatpush1.bf16.xpose.msra.mxu0 0
        %2598 = vmatprep.subr.bf16.mxu0 0
        %2599 = vmatpush1.bf16.xpose.msra.mxu0 0
        %2600 = vmatprep.subr.bf16.mxu0 0
        %2601 = vmatpush1.bf16.xpose.msra.mxu0 0
        %2602 = vmatprep.mubr.bf16.mxu0 0
        %2603 = vmatmul.mubr.bf16.gmra.mrb[0].mxu0 %v2565
        %v2604 = vpop.f32.mrb[0].mxu0
        %v2605 = vadd.f32 %v2324, %v2604
        %v2606 = vpop.f32.mrb[0].mxu0
        %v2607 = vpop.f32.mrb[0].mxu0
        %v2608 = vpop.f32.mrb[0].mxu0
        %2609 = vdwg.mxu0
        %v2610 = vsel %vm1218, %v2605, -inf
        %2611 = vmax.xlane.f32.xlu0 %v2610
        %v2612 = vpop.xlane.xlu0 %2611
        %v2613 = vmax.f32 %v2612, -1e+30
        %v2614 = vsub.f32 -1e+30, %v2613
        %v2615 = vmul.f32 %v2614, 1.442695
        %v2616 = vpow.pop %v2615
        %v2617 = vsub.f32 %v2605, %v2613
        %v2618 = vmul.f32 %v2617, 1.442695
        %v2619 = vpow.pop %v2618
        %v2620 = vmul.f32 %v2616, 0.0
        %v2621 = vsel %vm1218, %v2619, 0.0
        %2622 = vadd.xlane.f32.xlu0 %v2621
        %v2623 = vpop.xlane.xlu0 %2622
        %v2624 = vadd.f32 %v2620, %v2623
        %v2625 = vpack.c.bf16 %v2619, %v2619
        %2626 = vrot.lane.b32.xlu0 %v2508, 120
        %v2627 = vpop.permute.xlu0 %2626
        %v2629 = vsel %vm1218, %v2625, 0
        %v2632 = vsel %vm1238, %v2627, 0
        %2634 = vmatprep.subr.bf16.mxu0 0
        %2635 = vmatpush1.bf16.msra.mxu0 %v2632
        %2636 = vmatprep.subr.bf16.mxu0 0
        %2637 = vmatpush1.bf16.msra.mxu0 0
        %2638 = vmatprep.subr.bf16.mxu0 0
        %2639 = vmatpush1.bf16.msra.mxu0 0
        %2640 = vmatprep.subr.bf16.mxu0 0
        %2641 = vmatpush1.bf16.msra.mxu0 0
        %2642 = vmatprep.subr.bf16.mxu0 0
        %2643 = vmatpush1.bf16.msra.mxu0 0
        %2644 = vmatprep.subr.bf16.mxu0 0
        %2645 = vmatpush1.bf16.msra.mxu0 0
        %2646 = vmatprep.subr.bf16.mxu0 0
        %2647 = vmatpush1.bf16.msra.mxu0 0
        %2648 = vmatprep.subr.bf16.mxu0 0
        %2649 = vmatpush1.bf16.msra.mxu0 0
        %2650 = vmatprep.subr.bf16.mxu0 0
        %2651 = vmatpush1.bf16.msra.mxu0 0
        %2652 = vmatprep.subr.bf16.mxu0 0
        %2653 = vmatpush1.bf16.msra.mxu0 0
        %2654 = vmatprep.subr.bf16.mxu0 0
        %2655 = vmatpush1.bf16.msra.mxu0 0
        %2656 = vmatprep.subr.bf16.mxu0 0
        %2657 = vmatpush1.bf16.msra.mxu0 0
        %2658 = vmatprep.subr.bf16.mxu0 0
        %2659 = vmatpush1.bf16.msra.mxu0 0
        %2660 = vmatprep.subr.bf16.mxu0 0
        %2661 = vmatpush1.bf16.msra.mxu0 0
        %2662 = vmatprep.subr.bf16.mxu0 0
        %2663 = vmatpush1.bf16.msra.mxu0 0
        %2664 = vmatprep.subr.bf16.mxu0 0
        %2665 = vmatpush1.bf16.msra.mxu0 0
        %2666 = vmatprep.mubr.bf16.mxu0 0
        %2667 = vmatmul.mubr.bf16.gmra.mrb[0].mxu0 %v2629
        %v2668 = vpop.f32.mrb[0].mxu0
        %v2669 = vadd.f32 0.0, %v2668
        %v2670 = vpop.f32.mrb[0].mxu0
        %v2671 = vpop.f32.mrb[0].mxu0
        %v2672 = vpop.f32.mrb[0].mxu0
        %2673 = vdwg.mxu0
        %v2674 = vadd.f32 %v2620, %v2669
        %v2675 = vrcp.pop %v2624
        %v2676 = vmul.f32 %v2674, %v2675
        %2677 = vrot.lane.b32.xlu0 %v2321, 116
        %v2678 = vpop.permute.xlu0 %2677
        %2679 = vrot.lane.b32.xlu0 %v2441, 116
        %v2680 = vpop.permute.xlu0 %2679
        %v2682 = vsel %vm1171, %v2678, 0
        %v2685 = vsel %vm1171, %v2680, 0
        %2687 = vmatprep.subr.bf16.mxu0 0
        %2688 = vmatpush1.bf16.xpose.msra.mxu0 %v2685
        %2689 = vmatprep.subr.bf16.mxu0 0
        %2690 = vmatpush1.bf16.xpose.msra.mxu0 0
        %2691 = vmatprep.subr.bf16.mxu0 0
        %2692 = vmatpush1.bf16.xpose.msra.mxu0 0
        %2693 = vmatprep.subr.bf16.mxu0 0
        %2694 = vmatpush1.bf16.xpose.msra.mxu0 0
        %2695 = vmatprep.subr.bf16.mxu0 0
        %2696 = vmatpush1.bf16.xpose.msra.mxu0 0
        %2697 = vmatprep.subr.bf16.mxu0 0
        %2698 = vmatpush1.bf16.xpose.msra.mxu0 0
        %2699 = vmatprep.subr.bf16.mxu0 0
        %2700 = vmatpush1.bf16.xpose.msra.mxu0 0
        %2701 = vmatprep.subr.bf16.mxu0 0
        %2702 = vmatpush1.bf16.xpose.msra.mxu0 0
        %2703 = vmatprep.subr.bf16.mxu0 0
        %2704 = vmatpush1.bf16.xpose.msra.mxu0 0
        %2705 = vmatprep.subr.bf16.mxu0 0
        %2706 = vmatpush1.bf16.xpose.msra.mxu0 0
        %2707 = vmatprep.subr.bf16.mxu0 0
        %2708 = vmatpush1.bf16.xpose.msra.mxu0 0
        %2709 = vmatprep.subr.bf16.mxu0 0
        %2710 = vmatpush1.bf16.xpose.msra.mxu0 0
        %2711 = vmatprep.subr.bf16.mxu0 0
        %2712 = vmatpush1.bf16.xpose.msra.mxu0 0
        %2713 = vmatprep.subr.bf16.mxu0 0
        %2714 = vmatpush1.bf16.xpose.msra.mxu0 0
        %2715 = vmatprep.subr.bf16.mxu0 0
        %2716 = vmatpush1.bf16.xpose.msra.mxu0 0
        %2717 = vmatprep.subr.bf16.mxu0 0
        %2718 = vmatpush1.bf16.xpose.msra.mxu0 0
        %2719 = vmatprep.mubr.bf16.mxu0 0
        %2720 = vmatmul.mubr.bf16.gmra.mrb[0].mxu0 %v2682
        %v2721 = vpop.f32.mrb[0].mxu0
        %v2722 = vadd.f32 %v2324, %v2721
        %v2723 = vpop.f32.mrb[0].mxu0
        %v2724 = vpop.f32.mrb[0].mxu0
        %v2725 = vpop.f32.mrb[0].mxu0
        %2726 = vdwg.mxu0
        %v2727 = vsel %vm1218, %v2722, -inf
        %2728 = vmax.xlane.f32.xlu0 %v2727
        %v2729 = vpop.xlane.xlu0 %2728
        %v2730 = vmax.f32 %v2729, -1e+30
        %v2731 = vsub.f32 -1e+30, %v2730
        %v2732 = vmul.f32 %v2731, 1.442695
        %v2733 = vpow.pop %v2732
        %v2734 = vsub.f32 %v2722, %v2730
        %v2735 = vmul.f32 %v2734, 1.442695
        %v2736 = vpow.pop %v2735
        %v2737 = vmul.f32 %v2733, 0.0
        %v2738 = vsel %vm1218, %v2736, 0.0
        %2739 = vadd.xlane.f32.xlu0 %v2738
        %v2740 = vpop.xlane.xlu0 %2739
        %v2741 = vadd.f32 %v2737, %v2740
        %v2742 = vpack.c.bf16 %v2736, %v2736
        %2743 = vrot.lane.b32.xlu0 %v2508, 116
        %v2744 = vpop.permute.xlu0 %2743
        %v2746 = vsel %vm1218, %v2742, 0
        %v2749 = vsel %vm1238, %v2744, 0
        %2751 = vmatprep.subr.bf16.mxu0 0
        %2752 = vmatpush1.bf16.msra.mxu0 %v2749
        %2753 = vmatprep.subr.bf16.mxu0 0
        %2754 = vmatpush1.bf16.msra.mxu0 0
        %2755 = vmatprep.subr.bf16.mxu0 0
        %2756 = vmatpush1.bf16.msra.mxu0 0
        %2757 = vmatprep.subr.bf16.mxu0 0
        %2758 = vmatpush1.bf16.msra.mxu0 0
        %2759 = vmatprep.subr.bf16.mxu0 0
        %2760 = vmatpush1.bf16.msra.mxu0 0
        %2761 = vmatprep.subr.bf16.mxu0 0
        %2762 = vmatpush1.bf16.msra.mxu0 0
        %2763 = vmatprep.subr.bf16.mxu0 0
        %2764 = vmatpush1.bf16.msra.mxu0 0
        %2765 = vmatprep.subr.bf16.mxu0 0
        %2766 = vmatpush1.bf16.msra.mxu0 0
        %2767 = vmatprep.subr.bf16.mxu0 0
        %2768 = vmatpush1.bf16.msra.mxu0 0
        %2769 = vmatprep.subr.bf16.mxu0 0
        %2770 = vmatpush1.bf16.msra.mxu0 0
        %2771 = vmatprep.subr.bf16.mxu0 0
        %2772 = vmatpush1.bf16.msra.mxu0 0
        %2773 = vmatprep.subr.bf16.mxu0 0
        %2774 = vmatpush1.bf16.msra.mxu0 0
        %2775 = vmatprep.subr.bf16.mxu0 0
        %2776 = vmatpush1.bf16.msra.mxu0 0
        %2777 = vmatprep.subr.bf16.mxu0 0
        %2778 = vmatpush1.bf16.msra.mxu0 0
        %2779 = vmatprep.subr.bf16.mxu0 0
        %2780 = vmatpush1.bf16.msra.mxu0 0
        %2781 = vmatprep.subr.bf16.mxu0 0
        %2782 = vmatpush1.bf16.msra.mxu0 0
        %2783 = vmatprep.mubr.bf16.mxu0 0
        %2784 = vmatmul.mubr.bf16.gmra.mrb[0].mxu0 %v2746
        %v2785 = vpop.f32.mrb[0].mxu0
        %v2786 = vadd.f32 0.0, %v2785
        %v2787 = vpop.f32.mrb[0].mxu0
        %v2788 = vpop.f32.mrb[0].mxu0
        %v2789 = vpop.f32.mrb[0].mxu0
        %2790 = vdwg.mxu0
        %v2791 = vadd.f32 %v2737, %v2786
        %v2792 = vrcp.pop %v2741
        %v2793 = vmul.f32 %v2791, %v2792
        %2794 = vrot.lane.b32.xlu0 %v2321, 112
        %v2795 = vpop.permute.xlu0 %2794
        %2796 = vrot.lane.b32.xlu0 %v2441, 112
        %v2797 = vpop.permute.xlu0 %2796
        %v2799 = vsel %vm1171, %v2795, 0
        %v2802 = vsel %vm1171, %v2797, 0
        %2804 = vmatprep.subr.bf16.mxu0 0
        %2805 = vmatpush1.bf16.xpose.msra.mxu0 %v2802
        %2806 = vmatprep.subr.bf16.mxu0 0
        %2807 = vmatpush1.bf16.xpose.msra.mxu0 0
        %2808 = vmatprep.subr.bf16.mxu0 0
        %2809 = vmatpush1.bf16.xpose.msra.mxu0 0
        %2810 = vmatprep.subr.bf16.mxu0 0
        %2811 = vmatpush1.bf16.xpose.msra.mxu0 0
        %2812 = vmatprep.subr.bf16.mxu0 0
        %2813 = vmatpush1.bf16.xpose.msra.mxu0 0
        %2814 = vmatprep.subr.bf16.mxu0 0
        %2815 = vmatpush1.bf16.xpose.msra.mxu0 0
        %2816 = vmatprep.subr.bf16.mxu0 0
        %2817 = vmatpush1.bf16.xpose.msra.mxu0 0
        %2818 = vmatprep.subr.bf16.mxu0 0
        %2819 = vmatpush1.bf16.xpose.msra.mxu0 0
        %2820 = vmatprep.subr.bf16.mxu0 0
        %2821 = vmatpush1.bf16.xpose.msra.mxu0 0
        %2822 = vmatprep.subr.bf16.mxu0 0
        %2823 = vmatpush1.bf16.xpose.msra.mxu0 0
        %2824 = vmatprep.subr.bf16.mxu0 0
        %2825 = vmatpush1.bf16.xpose.msra.mxu0 0
        %2826 = vmatprep.subr.bf16.mxu0 0
        %2827 = vmatpush1.bf16.xpose.msra.mxu0 0
        %2828 = vmatprep.subr.bf16.mxu0 0
        %2829 = vmatpush1.bf16.xpose.msra.mxu0 0
        %2830 = vmatprep.subr.bf16.mxu0 0
        %2831 = vmatpush1.bf16.xpose.msra.mxu0 0
        %2832 = vmatprep.subr.bf16.mxu0 0
        %2833 = vmatpush1.bf16.xpose.msra.mxu0 0
        %2834 = vmatprep.subr.bf16.mxu0 0
        %2835 = vmatpush1.bf16.xpose.msra.mxu0 0
        %2836 = vmatprep.mubr.bf16.mxu0 0
        %2837 = vmatmul.mubr.bf16.gmra.mrb[0].mxu0 %v2799
        %v2838 = vpop.f32.mrb[0].mxu0
        %v2839 = vadd.f32 %v2324, %v2838
        %v2840 = vpop.f32.mrb[0].mxu0
        %v2841 = vpop.f32.mrb[0].mxu0
        %v2842 = vpop.f32.mrb[0].mxu0
        %2843 = vdwg.mxu0
        %v2844 = vsel %vm1218, %v2839, -inf
        %2845 = vmax.xlane.f32.xlu0 %v2844
        %v2846 = vpop.xlane.xlu0 %2845
        %v2847 = vmax.f32 %v2846, -1e+30
        %v2848 = vsub.f32 -1e+30, %v2847
        %v2849 = vmul.f32 %v2848, 1.442695
        %v2850 = vpow.pop %v2849
        %v2851 = vsub.f32 %v2839, %v2847
        %v2852 = vmul.f32 %v2851, 1.442695
        %v2853 = vpow.pop %v2852
        %v2854 = vmul.f32 %v2850, 0.0
        %v2855 = vsel %vm1218, %v2853, 0.0
        %2856 = vadd.xlane.f32.xlu0 %v2855
        %v2857 = vpop.xlane.xlu0 %2856
        %v2858 = vadd.f32 %v2854, %v2857
        %v2859 = vpack.c.bf16 %v2853, %v2853
        %2860 = vrot.lane.b32.xlu0 %v2508, 112
        %v2861 = vpop.permute.xlu0 %2860
        %v2863 = vsel %vm1218, %v2859, 0
        %v2866 = vsel %vm1238, %v2861, 0
        %2868 = vmatprep.subr.bf16.mxu0 0
        %2869 = vmatpush1.bf16.msra.mxu0 %v2866
        %2870 = vmatprep.subr.bf16.mxu0 0
        %2871 = vmatpush1.bf16.msra.mxu0 0
        %2872 = vmatprep.subr.bf16.mxu0 0
        %2873 = vmatpush1.bf16.msra.mxu0 0
        %2874 = vmatprep.subr.bf16.mxu0 0
        %2875 = vmatpush1.bf16.msra.mxu0 0
        %2876 = vmatprep.subr.bf16.mxu0 0
        %2877 = vmatpush1.bf16.msra.mxu0 0
        %2878 = vmatprep.subr.bf16.mxu0 0
        %2879 = vmatpush1.bf16.msra.mxu0 0
        %2880 = vmatprep.subr.bf16.mxu0 0
        %2881 = vmatpush1.bf16.msra.mxu0 0
        %2882 = vmatprep.subr.bf16.mxu0 0
        %2883 = vmatpush1.bf16.msra.mxu0 0
        %2884 = vmatprep.subr.bf16.mxu0 0
        %2885 = vmatpush1.bf16.msra.mxu0 0
        %2886 = vmatprep.subr.bf16.mxu0 0
        %2887 = vmatpush1.bf16.msra.mxu0 0
        %2888 = vmatprep.subr.bf16.mxu0 0
        %2889 = vmatpush1.bf16.msra.mxu0 0
        %2890 = vmatprep.subr.bf16.mxu0 0
        %2891 = vmatpush1.bf16.msra.mxu0 0
        %2892 = vmatprep.subr.bf16.mxu0 0
        %2893 = vmatpush1.bf16.msra.mxu0 0
        %2894 = vmatprep.subr.bf16.mxu0 0
        %2895 = vmatpush1.bf16.msra.mxu0 0
        %2896 = vmatprep.subr.bf16.mxu0 0
        %2897 = vmatpush1.bf16.msra.mxu0 0
        %2898 = vmatprep.subr.bf16.mxu0 0
        %2899 = vmatpush1.bf16.msra.mxu0 0
        %2900 = vmatprep.mubr.bf16.mxu0 0
        %2901 = vmatmul.mubr.bf16.gmra.mrb[0].mxu0 %v2863
        %v2902 = vpop.f32.mrb[0].mxu0
        %v2903 = vadd.f32 0.0, %v2902
        %v2904 = vpop.f32.mrb[0].mxu0
        %v2905 = vpop.f32.mrb[0].mxu0
        %v2906 = vpop.f32.mrb[0].mxu0
        %2907 = vdwg.mxu0
        %v2908 = vadd.f32 %v2854, %v2903
        %v2909 = vrcp.pop %v2858
        %v2910 = vmul.f32 %v2908, %v2909
        %2911 = vrot.lane.b32.xlu0 %v2321, 108
        %v2912 = vpop.permute.xlu0 %2911
        %2913 = vrot.lane.b32.xlu0 %v2441, 108
        %v2914 = vpop.permute.xlu0 %2913
        %v2916 = vsel %vm1171, %v2912, 0
        %v2919 = vsel %vm1171, %v2914, 0
        %2921 = vmatprep.subr.bf16.mxu0 0
        %2922 = vmatpush1.bf16.xpose.msra.mxu0 %v2919
        %2923 = vmatprep.subr.bf16.mxu0 0
        %2924 = vmatpush1.bf16.xpose.msra.mxu0 0
        %2925 = vmatprep.subr.bf16.mxu0 0
        %2926 = vmatpush1.bf16.xpose.msra.mxu0 0
        %2927 = vmatprep.subr.bf16.mxu0 0
        %2928 = vmatpush1.bf16.xpose.msra.mxu0 0
        %2929 = vmatprep.subr.bf16.mxu0 0
        %2930 = vmatpush1.bf16.xpose.msra.mxu0 0
        %2931 = vmatprep.subr.bf16.mxu0 0
        %2932 = vmatpush1.bf16.xpose.msra.mxu0 0
        %2933 = vmatprep.subr.bf16.mxu0 0
        %2934 = vmatpush1.bf16.xpose.msra.mxu0 0
        %2935 = vmatprep.subr.bf16.mxu0 0
        %2936 = vmatpush1.bf16.xpose.msra.mxu0 0
        %2937 = vmatprep.subr.bf16.mxu0 0
        %2938 = vmatpush1.bf16.xpose.msra.mxu0 0
        %2939 = vmatprep.subr.bf16.mxu0 0
        %2940 = vmatpush1.bf16.xpose.msra.mxu0 0
        %2941 = vmatprep.subr.bf16.mxu0 0
        %2942 = vmatpush1.bf16.xpose.msra.mxu0 0
        %2943 = vmatprep.subr.bf16.mxu0 0
        %2944 = vmatpush1.bf16.xpose.msra.mxu0 0
        %2945 = vmatprep.subr.bf16.mxu0 0
        %2946 = vmatpush1.bf16.xpose.msra.mxu0 0
        %2947 = vmatprep.subr.bf16.mxu0 0
        %2948 = vmatpush1.bf16.xpose.msra.mxu0 0
        %2949 = vmatprep.subr.bf16.mxu0 0
        %2950 = vmatpush1.bf16.xpose.msra.mxu0 0
        %2951 = vmatprep.subr.bf16.mxu0 0
        %2952 = vmatpush1.bf16.xpose.msra.mxu0 0
        %2953 = vmatprep.mubr.bf16.mxu0 0
        %2954 = vmatmul.mubr.bf16.gmra.mrb[0].mxu0 %v2916
        %v2955 = vpop.f32.mrb[0].mxu0
        %v2956 = vadd.f32 %v2324, %v2955
        %v2957 = vpop.f32.mrb[0].mxu0
        %v2958 = vpop.f32.mrb[0].mxu0
        %v2959 = vpop.f32.mrb[0].mxu0
        %2960 = vdwg.mxu0
        %v2961 = vsel %vm1218, %v2956, -inf
        %2962 = vmax.xlane.f32.xlu0 %v2961
        %v2963 = vpop.xlane.xlu0 %2962
        %v2964 = vmax.f32 %v2963, -1e+30
        %v2965 = vsub.f32 -1e+30, %v2964
        %v2966 = vmul.f32 %v2965, 1.442695
        %v2967 = vpow.pop %v2966
        %v2968 = vsub.f32 %v2956, %v2964
        %v2969 = vmul.f32 %v2968, 1.442695
        %v2970 = vpow.pop %v2969
        %v2971 = vmul.f32 %v2967, 0.0
        %v2972 = vsel %vm1218, %v2970, 0.0
        %2973 = vadd.xlane.f32.xlu0 %v2972
        %v2974 = vpop.xlane.xlu0 %2973
        %v2975 = vadd.f32 %v2971, %v2974
        %v2976 = vpack.c.bf16 %v2970, %v2970
        %2977 = vrot.lane.b32.xlu0 %v2508, 108
        %v2978 = vpop.permute.xlu0 %2977
        %v2980 = vsel %vm1218, %v2976, 0
        %v2983 = vsel %vm1238, %v2978, 0
        %2985 = vmatprep.subr.bf16.mxu0 0
        %2986 = vmatpush1.bf16.msra.mxu0 %v2983
        %2987 = vmatprep.subr.bf16.mxu0 0
        %2988 = vmatpush1.bf16.msra.mxu0 0
        %2989 = vmatprep.subr.bf16.mxu0 0
        %2990 = vmatpush1.bf16.msra.mxu0 0
        %2991 = vmatprep.subr.bf16.mxu0 0
        %2992 = vmatpush1.bf16.msra.mxu0 0
        %2993 = vmatprep.subr.bf16.mxu0 0
        %2994 = vmatpush1.bf16.msra.mxu0 0
        %2995 = vmatprep.subr.bf16.mxu0 0
        %2996 = vmatpush1.bf16.msra.mxu0 0
        %2997 = vmatprep.subr.bf16.mxu0 0
        %2998 = vmatpush1.bf16.msra.mxu0 0
        %2999 = vmatprep.subr.bf16.mxu0 0
        %3000 = vmatpush1.bf16.msra.mxu0 0
        %3001 = vmatprep.subr.bf16.mxu0 0
        %3002 = vmatpush1.bf16.msra.mxu0 0
        %3003 = vmatprep.subr.bf16.mxu0 0
        %3004 = vmatpush1.bf16.msra.mxu0 0
        %3005 = vmatprep.subr.bf16.mxu0 0
        %3006 = vmatpush1.bf16.msra.mxu0 0
        %3007 = vmatprep.subr.bf16.mxu0 0
        %3008 = vmatpush1.bf16.msra.mxu0 0
        %3009 = vmatprep.subr.bf16.mxu0 0
        %3010 = vmatpush1.bf16.msra.mxu0 0
        %3011 = vmatprep.subr.bf16.mxu0 0
        %3012 = vmatpush1.bf16.msra.mxu0 0
        %3013 = vmatprep.subr.bf16.mxu0 0
        %3014 = vmatpush1.bf16.msra.mxu0 0
        %3015 = vmatprep.subr.bf16.mxu0 0
        %3016 = vmatpush1.bf16.msra.mxu0 0
        %3017 = vmatprep.mubr.bf16.mxu0 0
        %3018 = vmatmul.mubr.bf16.gmra.mrb[0].mxu0 %v2980
        %v3019 = vpop.f32.mrb[0].mxu0
        %v3020 = vadd.f32 0.0, %v3019
        %v3021 = vpop.f32.mrb[0].mxu0
        %v3022 = vpop.f32.mrb[0].mxu0
        %v3023 = vpop.f32.mrb[0].mxu0
        %3024 = vdwg.mxu0
        %v3025 = vadd.f32 %v2971, %v3020
        %v3026 = vrcp.pop %v2975
        %v3027 = vmul.f32 %v3025, %v3026
        %3028 = vrot.lane.b32.xlu0 %v2321, 104
        %v3029 = vpop.permute.xlu0 %3028
        %3030 = vrot.lane.b32.xlu0 %v2441, 104
        %v3031 = vpop.permute.xlu0 %3030
        %v3033 = vsel %vm1171, %v3029, 0
        %v3036 = vsel %vm1171, %v3031, 0
        %3038 = vmatprep.subr.bf16.mxu0 0
        %3039 = vmatpush1.bf16.xpose.msra.mxu0 %v3036
        %3040 = vmatprep.subr.bf16.mxu0 0
        %3041 = vmatpush1.bf16.xpose.msra.mxu0 0
        %3042 = vmatprep.subr.bf16.mxu0 0
        %3043 = vmatpush1.bf16.xpose.msra.mxu0 0
        %3044 = vmatprep.subr.bf16.mxu0 0
        %3045 = vmatpush1.bf16.xpose.msra.mxu0 0
        %3046 = vmatprep.subr.bf16.mxu0 0
        %3047 = vmatpush1.bf16.xpose.msra.mxu0 0
        %3048 = vmatprep.subr.bf16.mxu0 0
        %3049 = vmatpush1.bf16.xpose.msra.mxu0 0
        %3050 = vmatprep.subr.bf16.mxu0 0
        %3051 = vmatpush1.bf16.xpose.msra.mxu0 0
        %3052 = vmatprep.subr.bf16.mxu0 0
        %3053 = vmatpush1.bf16.xpose.msra.mxu0 0
        %3054 = vmatprep.subr.bf16.mxu0 0
        %3055 = vmatpush1.bf16.xpose.msra.mxu0 0
        %3056 = vmatprep.subr.bf16.mxu0 0
        %3057 = vmatpush1.bf16.xpose.msra.mxu0 0
        %3058 = vmatprep.subr.bf16.mxu0 0
        %3059 = vmatpush1.bf16.xpose.msra.mxu0 0
        %3060 = vmatprep.subr.bf16.mxu0 0
        %3061 = vmatpush1.bf16.xpose.msra.mxu0 0
        %3062 = vmatprep.subr.bf16.mxu0 0
        %3063 = vmatpush1.bf16.xpose.msra.mxu0 0
        %3064 = vmatprep.subr.bf16.mxu0 0
        %3065 = vmatpush1.bf16.xpose.msra.mxu0 0
        %3066 = vmatprep.subr.bf16.mxu0 0
        %3067 = vmatpush1.bf16.xpose.msra.mxu0 0
        %3068 = vmatprep.subr.bf16.mxu0 0
        %3069 = vmatpush1.bf16.xpose.msra.mxu0 0
        %3070 = vmatprep.mubr.bf16.mxu0 0
        %3071 = vmatmul.mubr.bf16.gmra.mrb[0].mxu0 %v3033
        %v3072 = vpop.f32.mrb[0].mxu0
        %v3073 = vadd.f32 %v2324, %v3072
        %v3074 = vpop.f32.mrb[0].mxu0
        %v3075 = vpop.f32.mrb[0].mxu0
        %v3076 = vpop.f32.mrb[0].mxu0
        %3077 = vdwg.mxu0
        %v3078 = vsel %vm1218, %v3073, -inf
        %3079 = vmax.xlane.f32.xlu0 %v3078
        %v3080 = vpop.xlane.xlu0 %3079
        %v3081 = vmax.f32 %v3080, -1e+30
        %v3082 = vsub.f32 -1e+30, %v3081
        %v3083 = vmul.f32 %v3082, 1.442695
        %v3084 = vpow.pop %v3083
        %v3085 = vsub.f32 %v3073, %v3081
        %v3086 = vmul.f32 %v3085, 1.442695
        %v3087 = vpow.pop %v3086
        %v3088 = vmul.f32 %v3084, 0.0
        %v3089 = vsel %vm1218, %v3087, 0.0
        %3090 = vadd.xlane.f32.xlu0 %v3089
        %v3091 = vpop.xlane.xlu0 %3090
        %v3092 = vadd.f32 %v3088, %v3091
        %v3093 = vpack.c.bf16 %v3087, %v3087
        %3094 = vrot.lane.b32.xlu0 %v2508, 104
        %v3095 = vpop.permute.xlu0 %3094
        %v3097 = vsel %vm1218, %v3093, 0
        %v3100 = vsel %vm1238, %v3095, 0
        %3102 = vmatprep.subr.bf16.mxu0 0
        %3103 = vmatpush1.bf16.msra.mxu0 %v3100
        %3104 = vmatprep.subr.bf16.mxu0 0
        %3105 = vmatpush1.bf16.msra.mxu0 0
        %3106 = vmatprep.subr.bf16.mxu0 0
        %3107 = vmatpush1.bf16.msra.mxu0 0
        %3108 = vmatprep.subr.bf16.mxu0 0
        %3109 = vmatpush1.bf16.msra.mxu0 0
        %3110 = vmatprep.subr.bf16.mxu0 0
        %3111 = vmatpush1.bf16.msra.mxu0 0
        %3112 = vmatprep.subr.bf16.mxu0 0
        %3113 = vmatpush1.bf16.msra.mxu0 0
        %3114 = vmatprep.subr.bf16.mxu0 0
        %3115 = vmatpush1.bf16.msra.mxu0 0
        %3116 = vmatprep.subr.bf16.mxu0 0
        %3117 = vmatpush1.bf16.msra.mxu0 0
        %3118 = vmatprep.subr.bf16.mxu0 0
        %3119 = vmatpush1.bf16.msra.mxu0 0
        %3120 = vmatprep.subr.bf16.mxu0 0
        %3121 = vmatpush1.bf16.msra.mxu0 0
        %3122 = vmatprep.subr.bf16.mxu0 0
        %3123 = vmatpush1.bf16.msra.mxu0 0
        %3124 = vmatprep.subr.bf16.mxu0 0
        %3125 = vmatpush1.bf16.msra.mxu0 0
        %3126 = vmatprep.subr.bf16.mxu0 0
        %3127 = vmatpush1.bf16.msra.mxu0 0
        %3128 = vmatprep.subr.bf16.mxu0 0
        %3129 = vmatpush1.bf16.msra.mxu0 0
        %3130 = vmatprep.subr.bf16.mxu0 0
        %3131 = vmatpush1.bf16.msra.mxu0 0
        %3132 = vmatprep.subr.bf16.mxu0 0
        %3133 = vmatpush1.bf16.msra.mxu0 0
        %3134 = vmatprep.mubr.bf16.mxu0 0
        %3135 = vmatmul.mubr.bf16.gmra.mrb[0].mxu0 %v3097
        %v3136 = vpop.f32.mrb[0].mxu0
        %v3137 = vadd.f32 0.0, %v3136
        %v3138 = vpop.f32.mrb[0].mxu0
        %v3139 = vpop.f32.mrb[0].mxu0
        %v3140 = vpop.f32.mrb[0].mxu0
        %3141 = vdwg.mxu0
        %v3142 = vadd.f32 %v3088, %v3137
        %v3143 = vrcp.pop %v3092
        %v3144 = vmul.f32 %v3142, %v3143
        %3145 = vrot.lane.b32.xlu0 %v2321, 100
        %v3146 = vpop.permute.xlu0 %3145
        %3147 = vrot.lane.b32.xlu0 %v2441, 100
        %v3148 = vpop.permute.xlu0 %3147
        %v3150 = vsel %vm1171, %v3146, 0
        %v3153 = vsel %vm1171, %v3148, 0
        %3155 = vmatprep.subr.bf16.mxu0 0
        %3156 = vmatpush1.bf16.xpose.msra.mxu0 %v3153
        %3157 = vmatprep.subr.bf16.mxu0 0
        %3158 = vmatpush1.bf16.xpose.msra.mxu0 0
        %3159 = vmatprep.subr.bf16.mxu0 0
        %3160 = vmatpush1.bf16.xpose.msra.mxu0 0
        %3161 = vmatprep.subr.bf16.mxu0 0
        %3162 = vmatpush1.bf16.xpose.msra.mxu0 0
        %3163 = vmatprep.subr.bf16.mxu0 0
        %3164 = vmatpush1.bf16.xpose.msra.mxu0 0
        %3165 = vmatprep.subr.bf16.mxu0 0
        %3166 = vmatpush1.bf16.xpose.msra.mxu0 0
        %3167 = vmatprep.subr.bf16.mxu0 0
        %3168 = vmatpush1.bf16.xpose.msra.mxu0 0
        %3169 = vmatprep.subr.bf16.mxu0 0
        %3170 = vmatpush1.bf16.xpose.msra.mxu0 0
        %3171 = vmatprep.subr.bf16.mxu0 0
        %3172 = vmatpush1.bf16.xpose.msra.mxu0 0
        %3173 = vmatprep.subr.bf16.mxu0 0
        %3174 = vmatpush1.bf16.xpose.msra.mxu0 0
        %3175 = vmatprep.subr.bf16.mxu0 0
        %3176 = vmatpush1.bf16.xpose.msra.mxu0 0
        %3177 = vmatprep.subr.bf16.mxu0 0
        %3178 = vmatpush1.bf16.xpose.msra.mxu0 0
        %3179 = vmatprep.subr.bf16.mxu0 0
        %3180 = vmatpush1.bf16.xpose.msra.mxu0 0
        %3181 = vmatprep.subr.bf16.mxu0 0
        %3182 = vmatpush1.bf16.xpose.msra.mxu0 0
        %3183 = vmatprep.subr.bf16.mxu0 0
        %3184 = vmatpush1.bf16.xpose.msra.mxu0 0
        %3185 = vmatprep.subr.bf16.mxu0 0
        %3186 = vmatpush1.bf16.xpose.msra.mxu0 0
        %3187 = vmatprep.mubr.bf16.mxu0 0
        %3188 = vmatmul.mubr.bf16.gmra.mrb[0].mxu0 %v3150
        %v3189 = vpop.f32.mrb[0].mxu0
        %v3190 = vadd.f32 %v2324, %v3189
        %v3191 = vpop.f32.mrb[0].mxu0
        %v3192 = vpop.f32.mrb[0].mxu0
        %v3193 = vpop.f32.mrb[0].mxu0
        %3194 = vdwg.mxu0
        %v3195 = vsel %vm1218, %v3190, -inf
        %3196 = vmax.xlane.f32.xlu0 %v3195
        %v3197 = vpop.xlane.xlu0 %3196
        %v3198 = vmax.f32 %v3197, -1e+30
        %v3199 = vsub.f32 -1e+30, %v3198
        %v3200 = vmul.f32 %v3199, 1.442695
        %v3201 = vpow.pop %v3200
        %v3202 = vsub.f32 %v3190, %v3198
        %v3203 = vmul.f32 %v3202, 1.442695
        %v3204 = vpow.pop %v3203
        %v3205 = vmul.f32 %v3201, 0.0
        %v3206 = vsel %vm1218, %v3204, 0.0
        %3207 = vadd.xlane.f32.xlu0 %v3206
        %v3208 = vpop.xlane.xlu0 %3207
        %v3209 = vadd.f32 %v3205, %v3208
        %v3210 = vpack.c.bf16 %v3204, %v3204
        %3211 = vrot.lane.b32.xlu0 %v2508, 100
        %v3212 = vpop.permute.xlu0 %3211
        %v3214 = vsel %vm1218, %v3210, 0
        %v3217 = vsel %vm1238, %v3212, 0
        %3219 = vmatprep.subr.bf16.mxu0 0
        %3220 = vmatpush1.bf16.msra.mxu0 %v3217
        %3221 = vmatprep.subr.bf16.mxu0 0
        %3222 = vmatpush1.bf16.msra.mxu0 0
        %3223 = vmatprep.subr.bf16.mxu0 0
        %3224 = vmatpush1.bf16.msra.mxu0 0
        %3225 = vmatprep.subr.bf16.mxu0 0
        %3226 = vmatpush1.bf16.msra.mxu0 0
        %3227 = vmatprep.subr.bf16.mxu0 0
        %3228 = vmatpush1.bf16.msra.mxu0 0
        %3229 = vmatprep.subr.bf16.mxu0 0
        %3230 = vmatpush1.bf16.msra.mxu0 0
        %3231 = vmatprep.subr.bf16.mxu0 0
        %3232 = vmatpush1.bf16.msra.mxu0 0
        %3233 = vmatprep.subr.bf16.mxu0 0
        %3234 = vmatpush1.bf16.msra.mxu0 0
        %3235 = vmatprep.subr.bf16.mxu0 0
        %3236 = vmatpush1.bf16.msra.mxu0 0
        %3237 = vmatprep.subr.bf16.mxu0 0
        %3238 = vmatpush1.bf16.msra.mxu0 0
        %3239 = vmatprep.subr.bf16.mxu0 0
        %3240 = vmatpush1.bf16.msra.mxu0 0
        %3241 = vmatprep.subr.bf16.mxu0 0
        %3242 = vmatpush1.bf16.msra.mxu0 0
        %3243 = vmatprep.subr.bf16.mxu0 0
        %3244 = vmatpush1.bf16.msra.mxu0 0
        %3245 = vmatprep.subr.bf16.mxu0 0
        %3246 = vmatpush1.bf16.msra.mxu0 0
        %3247 = vmatprep.subr.bf16.mxu0 0
        %3248 = vmatpush1.bf16.msra.mxu0 0
        %3249 = vmatprep.subr.bf16.mxu0 0
        %3250 = vmatpush1.bf16.msra.mxu0 0
        %3251 = vmatprep.mubr.bf16.mxu0 0
        %3252 = vmatmul.mubr.bf16.gmra.mrb[0].mxu0 %v3214
        %v3253 = vpop.f32.mrb[0].mxu0
        %v3254 = vadd.f32 0.0, %v3253
        %v3255 = vpop.f32.mrb[0].mxu0
        %v3256 = vpop.f32.mrb[0].mxu0
        %v3257 = vpop.f32.mrb[0].mxu0
        %3258 = vdwg.mxu0
        %v3259 = vadd.f32 %v3205, %v3254
        %v3260 = vrcp.pop %v3209
        %v3261 = vmul.f32 %v3259, %v3260
        %3263 = vrot.lane.b32.xlu0 %v2559, 4
        %v3264 = vpop.permute.xlu0 %3263
        %3267 = vrot.lane.b32.xlu0 %v2676, 8
        %v3268 = vpop.permute.xlu0 %3267
        %3271 = vrot.lane.b32.xlu0 %v2793, 12
        %v3272 = vpop.permute.xlu0 %3271
        %3275 = vrot.lane.b32.xlu0 %v2910, 16
        %v3276 = vpop.permute.xlu0 %3275
        %3279 = vrot.lane.b32.xlu0 %v3027, 20
        %v3280 = vpop.permute.xlu0 %3279
        %3283 = vrot.lane.b32.xlu0 %v3144, 24
        %v3284 = vpop.permute.xlu0 %3283
        %3287 = vrot.lane.b32.xlu0 %v3261, 28
        %v3288 = vpop.permute.xlu0 %3287
        %v3290 = vsel %vm1171, %v2435, %v3264
        %v3291 = vsel %vm1218, %v3290, %v3268
        %v3292 = vsel %vm2141, %v3291, %v3272
        %v3293 = vsel %vm2143, %v3292, %v3276
        %v3294 = vsel %vm2145, %v3293, %v3280
        %v3295 = vsel %vm2147, %v3294, %v3284
        %v3296 = vsel %vm2149, %v3295, %v3288
        %v3297 = vpack.c.bf16 %v3296, %v3296
        %s3298 = scalar_lea.vmem [#allocation18], 48
        %v3299 = vld [vmem:[%s3298] sm:$0xf]
        %v3300 = vld [vmem:[%s3298 + $0x4] sm:$0xf]
        %v3301 = vld [vmem:[%s3298 + $0x8] sm:$0xf]
        %v3302 = vld [vmem:[%s3298 + $0xc] sm:$0xf]
        %s3303 = scalar_lea.vmem [#allocation20], 3
        %v3304 = vld [vmem:[%s3303] sm:$0x1]
        %v3306 = vlaneseq
        %v3307 = vshrl.u32 %v3306, 7
        %v3308 = vsub.s32 0, %v3307
        %v3309 = vrot.slane %v3304, %v3308
        %v3315 = vunpack.c.l.b16 %v3299
        %v3316 = vunpack.c.l.b16 %v3300
        %v3317 = vunpack.c.l.b16 %v3301
        %v3318 = vunpack.c.l.b16 %v3302
        %v3319 = vpack.c.b16 %v3316, %v3315
        %v3320 = vpack.c.b16 %v3318, %v3317
        %v3324 = vsel %vm1122, %v3297, 0
        %3326 = vmatprep.subr.bf16.mxu0 0
        %3327 = vmatpush1.bf16.msra.mxu0 %v3319
        %3328 = vmatprep.subr.bf16.mxu0 0
        %3329 = vmatpush1.bf16.msra.mxu0 %v3320
        %3330 = vmatprep.subr.bf16.mxu0 0
        %3331 = vmatpush1.bf16.msra.mxu0 0
        %3332 = vmatprep.subr.bf16.mxu0 0
        %3333 = vmatpush1.bf16.msra.mxu0 0
        %3334 = vmatprep.subr.bf16.mxu0 0
        %3335 = vmatpush1.bf16.msra.mxu0 0
        %3336 = vmatprep.subr.bf16.mxu0 0
        %3337 = vmatpush1.bf16.msra.mxu0 0
        %3338 = vmatprep.subr.bf16.mxu0 0
        %3339 = vmatpush1.bf16.msra.mxu0 0
        %3340 = vmatprep.subr.bf16.mxu0 0
        %3341 = vmatpush1.bf16.msra.mxu0 0
        %3342 = vmatprep.subr.bf16.mxu0 0
        %3343 = vmatpush1.bf16.msra.mxu0 0
        %3344 = vmatprep.subr.bf16.mxu0 0
        %3345 = vmatpush1.bf16.msra.mxu0 0
        %3346 = vmatprep.subr.bf16.mxu0 0
        %3347 = vmatpush1.bf16.msra.mxu0 0
        %3348 = vmatprep.subr.bf16.mxu0 0
        %3349 = vmatpush1.bf16.msra.mxu0 0
        %3350 = vmatprep.subr.bf16.mxu0 0
        %3351 = vmatpush1.bf16.msra.mxu0 0
        %3352 = vmatprep.subr.bf16.mxu0 0
        %3353 = vmatpush1.bf16.msra.mxu0 0
        %3354 = vmatprep.subr.bf16.mxu0 0
        %3355 = vmatpush1.bf16.msra.mxu0 0
        %3356 = vmatprep.subr.bf16.mxu0 0
        %3357 = vmatpush1.bf16.msra.mxu0 0
        %3358 = vmatprep.mubr.bf16.mxu0 0
        %3359 = vmatmul.mubr.bf16.gmra.mrb[0].mxu0 %v3324
        %v3360 = vpop.f32.mrb[0].mxu0
        %v3361 = vadd.f32 %v3309, %v3360
        %v3362 = vpop.f32.mrb[0].mxu0
        %v3363 = vpop.f32.mrb[0].mxu0
        %v3364 = vpop.f32.mrb[0].mxu0
        %3365 = vdwg.mxu0
        %v3366 = vadd.f32 %v2250, %v3361
        %s3367 = scalar_lea.vmem [#allocation27], 1
        %v3368 = vld [vmem:[%s3367] sm:$0x1]
        %s3369 = scalar_lea.vmem [#allocation29], 1
        %v3370 = vld [vmem:[%s3369] sm:$0x1]
        %v3371 = vsel %vm1122, %v3366, 0.0
        %3372 = vadd.xlane.f32.xlu0 %v3371
        %v3373 = vpop.xlane.xlu0 %3372
        %v3374 = vmul.f32 %v3373, %v2226
        %v3375 = vsub.f32 %v3366, %v3374
        %v3376 = vmul.f32 %v3375, %v3375
        %v3377 = vsel %vm1122, %v3376, 0.0
        %3378 = vadd.xlane.f32.xlu0 %v3377
        %v3379 = vpop.xlane.xlu0 %3378
        %v3380 = vmul.f32 %v3379, %v2226
        %v3381 = vadd.f32 %v3380, 1e-05
        %v3382 = vrsqrt.pop %v3381
        %v3383 = vmul.f32 %v3375, %v3382
        %v3385 = vlaneseq
        %v3386 = vshrl.u32 %v3385, 7
        %v3387 = vsub.s32 0, %v3386
        %v3388 = vrot.slane %v3368, %v3387
        %v3390 = vmul.f32 %v3383, %v3388
        %v3392 = vlaneseq
        %v3393 = vshrl.u32 %v3392, 7
        %v3394 = vsub.s32 0, %v3393
        %v3395 = vrot.slane %v3370, %v3394
        %v3397 = vadd.f32 %v3390, %v3395
        %v3398 = vpack.c.bf16 %v3397, %v3397
        %v3399 = vld [vmem:[#allocation21] sm:$0xf]
        %v3400 = vld [vmem:[#allocation21 + $0x4] sm:$0xf]
        %v3401 = vld [vmem:[#allocation21 + $0x8] sm:$0xf]
        %v3402 = vld [vmem:[#allocation21 + $0xc] sm:$0xf]
        %v3403 = vld [vmem:[#allocation23] sm:$0x1]
        %v3405 = vlaneseq
        %v3406 = vshrl.u32 %v3405, 7
        %v3407 = vsub.s32 0, %v3406
        %v3408 = vrot.slane %v3403, %v3407
        %v3414 = vunpack.c.l.b16 %v3399
        %v3415 = vunpack.c.l.b16 %v3400
        %v3416 = vunpack.c.l.b16 %v3401
        %v3417 = vunpack.c.l.b16 %v3402
        %v3418 = vpack.c.b16 %v3415, %v3414
        %v3419 = vpack.c.b16 %v3417, %v3416
        %v3423 = vsel %vm1122, %v3398, 0
        %3425 = vmatprep.subr.bf16.mxu0 0
        %3426 = vmatpush1.bf16.msra.mxu0 %v3418
        %3427 = vmatprep.subr.bf16.mxu0 0
        %3428 = vmatpush1.bf16.msra.mxu0 %v3419
        %3429 = vmatprep.subr.bf16.mxu0 0
        %3430 = vmatpush1.bf16.msra.mxu0 0
        %3431 = vmatprep.subr.bf16.mxu0 0
        %3432 = vmatpush1.bf16.msra.mxu0 0
        %3433 = vmatprep.subr.bf16.mxu0 0
        %3434 = vmatpush1.bf16.msra.mxu0 0
        %3435 = vmatprep.subr.bf16.mxu0 0
        %3436 = vmatpush1.bf16.msra.mxu0 0
        %3437 = vmatprep.subr.bf16.mxu0 0
        %3438 = vmatpush1.bf16.msra.mxu0 0
        %3439 = vmatprep.subr.bf16.mxu0 0
        %3440 = vmatpush1.bf16.msra.mxu0 0
        %3441 = vmatprep.subr.bf16.mxu0 0
        %3442 = vmatpush1.bf16.msra.mxu0 0
        %3443 = vmatprep.subr.bf16.mxu0 0
        %3444 = vmatpush1.bf16.msra.mxu0 0
        %3445 = vmatprep.subr.bf16.mxu0 0
        %3446 = vmatpush1.bf16.msra.mxu0 0
        %3447 = vmatprep.subr.bf16.mxu0 0
        %3448 = vmatpush1.bf16.msra.mxu0 0
        %3449 = vmatprep.subr.bf16.mxu0 0
        %3450 = vmatpush1.bf16.msra.mxu0 0
        %3451 = vmatprep.subr.bf16.mxu0 0
        %3452 = vmatpush1.bf16.msra.mxu0 0
        %3453 = vmatprep.subr.bf16.mxu0 0
        %3454 = vmatpush1.bf16.msra.mxu0 0
        %3455 = vmatprep.subr.bf16.mxu0 0
        %3456 = vmatpush1.bf16.msra.mxu0 0
        %3457 = vmatprep.mubr.bf16.mxu0 0
        %3458 = vmatmul.mubr.bf16.gmra.mrb[0].mxu0 %v3423
        %v3459 = vpop.f32.mrb[0].mxu0
        %v3460 = vadd.f32 %v3408, %v3459
        %v3461 = vpop.f32.mrb[0].mxu0
        %v3462 = vpop.f32.mrb[0].mxu0
        %v3463 = vpop.f32.mrb[0].mxu0
        %3464 = vdwg.mxu0
        %v3465 = vmax.f32 %v3460, 0.0
        %v3466 = vpack.c.bf16 %v3465, %v3465
        %v3467 = vld [vmem:[#allocation24] sm:$0xf]
        %v3468 = vld [vmem:[#allocation24 + $0x4] sm:$0xf]
        %v3469 = vld [vmem:[#allocation24 + $0x8] sm:$0xf]
        %v3470 = vld [vmem:[#allocation24 + $0xc] sm:$0xf]
        %v3471 = vld [vmem:[#allocation24 + $0x10] sm:$0xf]
        %v3472 = vld [vmem:[#allocation24 + $0x14] sm:$0xf]
        %v3473 = vld [vmem:[#allocation24 + $0x18] sm:$0xf]
        %v3474 = vld [vmem:[#allocation24 + $0x1c] sm:$0xf]
        %v3475 = vld [vmem:[#allocation26] sm:$0x1]
        %v3477 = vlaneseq
        %v3478 = vshrl.u32 %v3477, 7
        %v3479 = vsub.s32 0, %v3478
        %v3480 = vrot.slane %v3475, %v3479
        %v3490 = vunpack.c.l.b16 %v3467
        %v3491 = vunpack.c.l.b16 %v3468
        %v3492 = vunpack.c.l.b16 %v3469
        %v3493 = vunpack.c.l.b16 %v3470
        %v3494 = vunpack.c.l.b16 %v3471
        %v3495 = vunpack.c.l.b16 %v3472
        %v3496 = vunpack.c.l.b16 %v3473
        %v3497 = vunpack.c.l.b16 %v3474
        %v3498 = vpack.c.b16 %v3491, %v3490
        %v3499 = vpack.c.b16 %v3493, %v3492
        %v3500 = vpack.c.b16 %v3495, %v3494
        %v3501 = vpack.c.b16 %v3497, %v3496
        %vm3506 = vcmask 523264
        %v3508 = vsel %vm3506, %v3466, 0
        %3510 = vmatprep.subr.bf16.mxu0 0
        %3511 = vmatpush1.bf16.msra.mxu0 %v3498
        %3512 = vmatprep.subr.bf16.mxu0 0
        %3513 = vmatpush1.bf16.msra.mxu0 %v3499
        %3514 = vmatprep.subr.bf16.mxu0 0
        %3515 = vmatpush1.bf16.msra.mxu0 %v3500
        %3516 = vmatprep.subr.bf16.mxu0 0
        %3517 = vmatpush1.bf16.msra.mxu0 %v3501
        %3518 = vmatprep.subr.bf16.mxu0 0
        %3519 = vmatpush1.bf16.msra.mxu0 0
        %3520 = vmatprep.subr.bf16.mxu0 0
        %3521 = vmatpush1.bf16.msra.mxu0 0
        %3522 = vmatprep.subr.bf16.mxu0 0
        %3523 = vmatpush1.bf16.msra.mxu0 0
        %3524 = vmatprep.subr.bf16.mxu0 0
        %3525 = vmatpush1.bf16.msra.mxu0 0
        %3526 = vmatprep.subr.bf16.mxu0 0
        %3527 = vmatpush1.bf16.msra.mxu0 0
        %3528 = vmatprep.subr.bf16.mxu0 0
        %3529 = vmatpush1.bf16.msra.mxu0 0
        %3530 = vmatprep.subr.bf16.mxu0 0
        %3531 = vmatpush1.bf16.msra.mxu0 0
        %3532 = vmatprep.subr.bf16.mxu0 0
        %3533 = vmatpush1.bf16.msra.mxu0 0
        %3534 = vmatprep.subr.bf16.mxu0 0
        %3535 = vmatpush1.bf16.msra.mxu0 0
        %3536 = vmatprep.subr.bf16.mxu0 0
        %3537 = vmatpush1.bf16.msra.mxu0 0
        %3538 = vmatprep.subr.bf16.mxu0 0
        %3539 = vmatpush1.bf16.msra.mxu0 0
        %3540 = vmatprep.subr.bf16.mxu0 0
        %3541 = vmatpush1.bf16.msra.mxu0 0
        %3542 = vmatprep.mubr.bf16.mxu0 0
        %3543 = vmatmul.mubr.bf16.gmra.mrb[0].mxu0 %v3508
        %v3544 = vpop.f32.mrb[0].mxu0
        %v3545 = vadd.f32 %v3480, %v3544
        %v3546 = vpop.f32.mrb[0].mxu0
        %v3547 = vpop.f32.mrb[0].mxu0
        %v3548 = vpop.f32.mrb[0].mxu0
        %3549 = vdwg.mxu0
        %v3550 = vadd.f32 %v3397, %v3545
        %s3551 = scalar_lea.vmem [#allocation27], 2
        %v3552 = vld [vmem:[%s3551] sm:$0x1]
        %s3553 = scalar_lea.vmem [#allocation29], 2
        %v3554 = vld [vmem:[%s3553] sm:$0x1]
        %v3555 = vsel %vm1122, %v3550, 0.0
        %3556 = vadd.xlane.f32.xlu0 %v3555
        %v3557 = vpop.xlane.xlu0 %3556
        %v3558 = vmul.f32 %v3557, %v2226
        %v3559 = vsub.f32 %v3550, %v3558
        %v3560 = vmul.f32 %v3559, %v3559
        %v3561 = vsel %vm1122, %v3560, 0.0
        %3562 = vadd.xlane.f32.xlu0 %v3561
        %v3563 = vpop.xlane.xlu0 %3562
        %v3564 = vmul.f32 %v3563, %v2226
        %v3565 = vadd.f32 %v3564, 1e-05
        %v3566 = vrsqrt.pop %v3565
        %v3567 = vmul.f32 %v3559, %v3566
        %v3569 = vlaneseq
        %v3570 = vshrl.u32 %v3569, 7
        %v3571 = vsub.s32 0, %v3570
        %v3572 = vrot.slane %v3552, %v3571
        %v3574 = vmul.f32 %v3567, %v3572
        %v3576 = vlaneseq
        %v3577 = vshrl.u32 %v3576, 7
        %v3578 = vsub.s32 0, %v3577
        %v3579 = vrot.slane %v3554, %v3578
        %v3581 = vadd.f32 %v3574, %v3579
        %3582 = vst.msk [vmem:[%s815] sm:$0xff] %vm1122, %v3581
        %s3583 = sand.u32 %s411, 1
        %s3584 = scalar_lea.sflag [#allocation8], %s3583
        %s3585 = sand.u32 %s411, 1
        %s3586 = smul.addr %s3585, 8
        %s3587 = scalar_lea.vmem [#allocation30], %s3586
        // Predicated region
        $region145: #{tpu_custom_call.1} parent=79 // pred_check
          %p3588 = pneg %p421
        $region146: #{tpu_custom_call.1} parent=79 // pred_check_branch
          %3590 = sbr.rel (%p3588) target = $region148
        $region147: #{tpu_custom_call.1} parent=79 // pred_region
          %s3592 = ssub.s32 128, 128
          %3593 = vsyncadd %s3584, %s3592
          %s3594 = sadd.s32 %s48, %s47
          %s3595 = smul.addr %s3594, 128
          %s3596 = scalar_lea.hbm %s15, %s3595
          %s3598 = sshll.u32 %s3587, 4
          %s3599 = int_to_ptr.vmem [resolvable:$true] %s3598
          %3601 = dma.vmem_to_hbm [thread:$0]  %s3599, 128, %s3596, %s3584
        $region148: #{tpu_custom_call.1} parent=79 // pred_fallthru
          _
      $region80: #{tpu_custom_call.1} parent=5 // pred_fallthru
        _
      %p3602 = scmp.le.s32.totalorder 2, %s38
      // Predicated region
      $region149: #{tpu_custom_call.1} parent=5 // pred_check
        %p3603 = pneg %p3602
      $region150: #{tpu_custom_call.1} parent=5 // pred_check_branch
        %3605 = sbr.rel (%p3603) target = $region152
      $region151: #{tpu_custom_call.1} parent=5 // pred_region
        %s3606 = ssub.s32 %s38, 2
        // Predicated region
        $region153: #{tpu_custom_call.1} parent=151 // pred_check
          %p3607 = pneg %p427
        $region154: #{tpu_custom_call.1} parent=151 // pred_check_branch
          %3609 = sbr.rel (%p3607) target = $region156
        $region155: #{tpu_custom_call.1} parent=151 // pred_region
          %s3610 = sand.u32 %s412, 1
          %s3611 = scalar_lea.sflag [#allocation8], %s3610
          %s3612 = sand.u32 %s412, 1
          %s3613 = smul.addr %s3612, 8
          %s3614 = scalar_lea.vmem [#allocation30], %s3613
          %3615 = dma.done %s3611, 128
        $region156: #{tpu_custom_call.1} parent=151 // pred_fallthru
          _
      $region152: #{tpu_custom_call.1} parent=5 // pred_fallthru
        _
    $region6: #{tpu_custom_call.1} parent=1 // loop_footer
      %s42 = sadd.s32 1, %s38
    $region7: #{tpu_custom_call.1} parent=1 // loop_footer_branch
      %37 = sbr.rel target = $region3
    $region8: #{tpu_custom_call.1} parent=1 // loop_exit
      _
    %3616 = vsyncpa [#allocation7], 1
    %s3617 = scalar_lea.sflag [#allocation7], 1
    %3618 = vsyncpa %s3617, 1
    %3619 = vsyncpa [#allocation10], 1
    %s3620 = scalar_lea.sflag [#allocation10], 1
    %3621 = vsyncpa %s3620, 1
    %3622 = vsyncpa [#allocation13], 1
    %s3623 = scalar_lea.sflag [#allocation13], 1
    %3624 = vsyncpa %s3623, 1
    %3625 = vsyncpa [#allocation16], 1
    %3626 = vsyncpa [#allocation19], 1
    %3627 = vsyncpa [#allocation22], 1
    %3628 = vsyncpa [#allocation25], 1
    %3629 = vsyncpa [#allocation28], 1
    %3630 = vsyncpa [#allocation8], 1
    %s3631 = scalar_lea.sflag [#allocation8], 1
    %3632 = vsyncpa %s3631, 1

</llo_original>
